<compile_context>
chip_gen: v6e
topology: v6e:2x2x1
jax: 0.10.0
libtpu: 0.0.40
codegen_flags: <defaults>
</compile_context>

<pallas_src>
import collections

import numpy as np
import jax
import jax.numpy as jnp
from jax.experimental import pallas as pl
from jax.experimental.pallas import tpu as pltpu

# ----------------------------------------------------------------------------
# Model configuration (matches Fullnet.__init__)
# ----------------------------------------------------------------------------
HID = 68
BLOCK_DIMS = [
    (HID, 113, 281, 83, HID),    # block1
    (HID, 138, 283, 128, HID),   # block2
    (HID, 160, 315, 139, HID),   # block3
    (HID, 120, 231, 107, HID),   # block4
    # block5: (HID, 99, 151, 139, out_features) -- filled in at build time
]
SE_REDUCTION = 8
BN_EPS = 1e-5
LANE = 128


def _rup(n, m=LANE):
    return ((n + m - 1) // m) * m


# ----------------------------------------------------------------------------
# Raw (unpadded) parameter construction — deterministic, PyTorch-style init.
# Layout mirrors the original module and is consumed by the pure-JAX reference.
# ----------------------------------------------------------------------------
def _linear_params(key, fan_in, fan_out, bias=True):
    k1, k2 = jax.random.split(key)
    bound = 1.0 / np.sqrt(fan_in)
    w = jax.random.uniform(k1, (fan_in, fan_out), jnp.float32, -bound, bound)
    if not bias:
        return [w]
    b = jax.random.uniform(k2, (1, fan_out), jnp.float32, -bound, bound)
    return [w, b]


def build_params(key, in_features, out_features):
    params = []
    keys = iter(jax.random.split(key, 64))

    # self.input
    params += _linear_params(next(keys), in_features, HID)

    block_dims = BLOCK_DIMS + [(HID, 99, 151, 139, out_features)]
    bn_scale = jnp.full((1, HID), 1.0 / np.sqrt(1.0 + BN_EPS), jnp.float32)
    bn_shift = jnp.zeros((1, HID), jnp.float32)

    for bi, dims in enumerate(block_dims):
        # block: eval-mode BatchNorm (scale/shift) + 4 Linears
        params += [bn_scale, bn_shift]
        for fi, fo in zip(dims[:-1], dims[1:]):
            params += _linear_params(next(keys), fi, fo)
        # SE layer after blocks 1..4 only (no biases)
        if bi < 4:
            params += _linear_params(next(keys), HID, HID // SE_REDUCTION,
                                     bias=False)
            params += _linear_params(next(keys), HID // SE_REDUCTION, HID,
                                     bias=False)
    return params


# ----------------------------------------------------------------------------
# Packing: fold BN into the first Linear of each block, zero-pad every feature
# dim to a multiple of 128, and concatenate everything into two flat slabs.
# ----------------------------------------------------------------------------
LinMeta = collections.namedtuple("LinMeta", ["row", "in_pad", "out_pad", "bias_col"])
Packed = collections.namedtuple("Packed", ["w_slab", "b_slab", "meta",
                                           "in_pad", "out_pad"])


def pack_params(raw_params, in_features, out_features):
    it = iter(raw_params)
    linears = []                       # list of (w[in,out], bias or None)

    # self.input
    w, b = next(it), next(it)
    linears.append((w, b))

    block_dims = BLOCK_DIMS + [(HID, 99, 151, 139, out_features)]
    for bi, dims in enumerate(block_dims):
        scale, shift = next(it), next(it)          # eval BN; shift == 0
        del shift
        for li in range(4):
            w, b = next(it), next(it)
            if li == 0:
                # ReLU(h*scale) == scale*ReLU(h) (scale>0)  ->  fold into W1 rows
                w = w * scale.reshape(-1, 1)
            linears.append((w, b))
        if bi < 4:
            linears.append((next(it), None))       # SE squeeze (no bias)
            linears.append((next(it), None))       # SE excite  (no bias)

    max_out = max(_rup(w.shape[1]) for w, _ in linears)   # 384
    w_blocks, b_blocks, metas = [], [], []
    row_off, n_bias = 0, 0
    for w, b in linears:
        fi, fo = w.shape
        ip, op = _rup(fi), _rup(fo)
        wp = jnp.zeros((ip, max_out), jnp.float32).at[:fi, :fo].set(w)
        w_blocks.append(wp)
        if b is not None:
            bp = jnp.zeros((1, max_out), jnp.float32).at[:, :fo].set(b)
            b_blocks.append(bp)
            bias_col = n_bias * max_out
            n_bias += 1
        else:
            bias_col = None
        metas.append(LinMeta(row_off, ip, op, bias_col))
        row_off += ip

    w_slab = jnp.concatenate(w_blocks, axis=0)     # (sum(in_pad), 384) ~7.7 MiB
    b_slab = jnp.concatenate(b_blocks, axis=1)     # (1, n_bias*384)   ~32 KiB
    return Packed(w_slab, b_slab, tuple(metas),
                  _rup(in_features), _rup(out_features))


# ----------------------------------------------------------------------------
# Kernel factory: entire Fullnet forward on one (TM, 128) batch tile.
# All slab offsets are static Python ints baked in at trace time.
# ----------------------------------------------------------------------------
def make_kernel(meta, out_features):
    def kernel(x_ref, w_ref, b_ref, o_ref):
        it = iter(meta)

        def linear(h, relu):
            m = next(it)
            w = w_ref[m.row:m.row + m.in_pad, :m.out_pad]
            y = jnp.dot(h, w, preferred_element_type=jnp.float32)
            if m.bias_col is not None:
                y = y + b_ref[:, m.bias_col:m.bias_col + m.out_pad]
            return jnp.maximum(y, 0.0) if relu else y

        def block_fn(h):
            # short = BN(eval, folded into W1) + ReLU; density = 4 Linears
            h = jnp.maximum(h, 0.0)
            h = linear(h, True)
            h = linear(h, True)
            h = linear(h, True)
            h = linear(h, False)               # Dropout(0.5) -> identity (eval)
            return h

        def se_fn(h):
            y = linear(h, True)                # squeeze + ReLU (no bias)
            y = linear(y, False)               # excite (no bias)
            return h * jax.nn.sigmoid(y)

        x = x_ref[...]
        x = linear(x, False)                   # self.input
        d1 = x
        x = se_fn(block_fn(d1)); d2 = x + d1
        x = se_fn(block_fn(d2)); d3 = x + d1 + d2
        x = se_fn(block_fn(d3)); d4 = x + d1 + d2 + d3
        x = se_fn(block_fn(d4)); d5 = x + d1 + d2 + d3 + d4
        x = block_fn(d5)                       # block5 (no SE)

        # Masked softmax over the padded (lane-dense) logit width.
        lane = jax.lax.broadcasted_iota(jnp.int32, x.shape, 1)
        x = jnp.where(lane < out_features, x, -1e30)
        m_ = jnp.max(x, axis=1, keepdims=True)
        e = jnp.exp(x - m_)
        o_ref[...] = e * pl.reciprocal(jnp.sum(e, axis=1, keepdims=True))

    return kernel


# ----------------------------------------------------------------------------
# Wrapper: batch grid + constant-index weight/bias slabs (stay VMEM-resident).
# ----------------------------------------------------------------------------
def _pick_tm(batch):
    if batch >= 512:
        return 256
    if batch >= 128:
        return 128
    return _rup(batch, 8)


def fullnet_forward(x, packed, out_features, tm=None):
    batch, in_dim = x.shape
    in_pad, out_pad = packed.in_pad, packed.out_pad
    if tm is None:
        tm = _pick_tm(batch)
    b_pad = ((batch + tm - 1) // tm) * tm

    xp = jnp.zeros((b_pad, in_pad), jnp.float32).at[:batch, :in_dim].set(x)
    grid = (b_pad // tm,)

    flops = 2 * b_pad * sum(m.in_pad * m.out_pad for m in packed.meta)
    transcendentals = b_pad * (out_pad + 4 * LANE)
    bytes_accessed = 4 * (xp.size + b_pad * out_pad
                          + packed.w_slab.size + packed.b_slab.size)

    out = pl.pallas_call(
        make_kernel(packed.meta, out_features),
        out_shape=jax.ShapeDtypeStruct((b_pad, out_pad), jnp.float32),
        grid=grid,
        in_specs=[
            pl.BlockSpec((tm, in_pad), lambda i: (i, 0)),
            pl.BlockSpec(packed.w_slab.shape, lambda i: (0, 0)),
            pl.BlockSpec(packed.b_slab.shape, lambda i: (0, 0)),
        ],
        out_specs=pl.BlockSpec((tm, out_pad), lambda i: (i, 0)),
        compiler_params=pltpu.CompilerParams(
            dimension_semantics=("parallel",),
            vmem_limit_bytes=40 * 1024 * 1024,
        ),
        cost_estimate=pl.CostEstimate(flops=int(flops),
                                      transcendentals=int(transcendentals),
                                      bytes_accessed=int(bytes_accessed)),
    )(xp, packed.w_slab, packed.b_slab)

    return out[:batch, :out_features]


# ----------------------------------------------------------------------------
# Pure-JAX reference on the RAW (unpadded, unfolded) parameters — validates
# both the BN folding and the 128-lane zero-padding end-to-end.
# ----------------------------------------------------------------------------
def fullnet_reference(x, params):
    it = iter(params)

    def linear(h, relu):
        w = next(it); b = next(it)
        y = h @ w + b
        return jnp.maximum(y, 0.0) if relu else y

    def block_fn(h):
        scale = next(it); shift = next(it)
        h = jnp.maximum(h * scale + shift, 0.0)
        h = linear(h, True); h = linear(h, True)
        h = linear(h, True); h = linear(h, False)
        return h

    def se_fn(h):
        w1 = next(it); w2 = next(it)
        y = jnp.maximum(h @ w1, 0.0)
        return h * jax.nn.sigmoid(y @ w2)

    x = linear(x, False)
    d1 = x
    x = se_fn(block_fn(d1)); d2 = x + d1
    x = se_fn(block_fn(d2)); d3 = x + d1 + d2
    x = se_fn(block_fn(d3)); d4 = x + d1 + d2 + d3
    x = se_fn(block_fn(d4)); d5 = x + d1 + d2 + d3 + d4
    x = block_fn(d5)
    return jax.nn.softmax(x, axis=1)


if __name__ == "__main__":
    in_features = 32
    out_features = 10
    batch = 256        # exercises the batch grid (2 tiles of 128)

    key = jax.random.PRNGKey(0)
    kx, kp = jax.random.split(key)
    x = jax.random.normal(kx, (batch, in_features), jnp.float32)

    raw_params = build_params(kp, in_features, out_features)
    packed = pack_params(raw_params, in_features, out_features)

    out = jax.block_until_ready(fullnet_forward(x, packed, out_features))
    ref = jax.block_until_ready(fullnet_reference(x, raw_params))

    assert out.shape == (batch, out_features)
    assert np.allclose(np.asarray(out), np.asarray(ref), rtol=1e-5, atol=1e-5)
    assert np.allclose(np.asarray(out).sum(axis=1), 1.0, atol=1e-5)

    print("KERNEL_OK")
</pallas_src>

<mosaic_0001>
module attributes {stable_mosaic.version = 11 : i64} {
  func.func @kernel(%arg0: i32, %arg1: memref<128x128xf32, #tpu.memory_space<vmem>>, %arg2: memref<5248x384xf32, #tpu.memory_space<vmem>>, %arg3: memref<1x8064xf32, #tpu.memory_space<vmem>>, %arg4: memref<128x128xf32, #tpu.memory_space<vmem>>) attributes {dimension_semantics = [#tpu.dimension_semantics<parallel>], iteration_bounds = array<i64: 2>, scalar_prefetch = 0 : i64, scratch_operands = 0 : i64, tpu.core_type = #tpu.core_type<tc>, window_params = [{transform_indices = @transform_0, window_bounds = array<i64: 128, 128>}, {pipeline_mode = #tpu.pipeline_mode<synchronous>, transform_indices = @transform_1, window_bounds = array<i64: 5248, 384>}, {pipeline_mode = #tpu.pipeline_mode<synchronous>, transform_indices = @transform_2, window_bounds = array<i64: 1, 8064>}, {transform_indices = @transform_3, window_bounds = array<i64: 128, 128>}]} {
    %c0 = arith.constant 0 : index
    %c0_0 = arith.constant 0 : index
    %0 = vector.load %arg1[%c0, %c0_0] : memref<128x128xf32, #tpu.memory_space<vmem>>, vector<128x128xf32>
    %c0_1 = arith.constant 0 : index
    %c0_2 = arith.constant 0 : index
    %1 = vector.load %arg2[%c0_1, %c0_2] : memref<5248x384xf32, #tpu.memory_space<vmem>>, vector<128x128xf32>
    %cst = arith.constant dense<0.000000e+00> : vector<128x128xf32>
    %2 = tpu.matmul %0, %1, %cst {dimension_numbers = #tpu.dot_dimension_numbers<[1], [0], [0], [1], [0, 0, 1, 1], [], []>} : vector<128x128xf32>, vector<128x128xf32>, vector<128x128xf32> -> vector<128x128xf32>
    %c0_3 = arith.constant 0 : index
    %c0_4 = arith.constant 0 : index
    %3 = vector.load %arg3[%c0_3, %c0_4] : memref<1x8064xf32, #tpu.memory_space<vmem>>, vector<1x128xf32>
    %4 = vector.broadcast %3 : vector<1x128xf32> to vector<128x128xf32>
    %5 = arith.addf %2, %4 : vector<128x128xf32>
    %cst_5 = arith.constant 0.000000e+00 : f32
    %6 = vector.broadcast %cst_5 : f32 to vector<128x128xf32>
    %7 = arith.maximumf %5, %6 : vector<128x128xf32>
    %c128 = arith.constant 128 : index
    %c0_6 = arith.constant 0 : index
    %8 = vector.load %arg2[%c128, %c0_6] : memref<5248x384xf32, #tpu.memory_space<vmem>>, vector<128x128xf32>
    %cst_7 = arith.constant dense<0.000000e+00> : vector<128x128xf32>
    %9 = tpu.matmul %7, %8, %cst_7 {dimension_numbers = #tpu.dot_dimension_numbers<[1], [0], [0], [1], [0, 0, 1, 1], [], []>} : vector<128x128xf32>, vector<128x128xf32>, vector<128x128xf32> -> vector<128x128xf32>
    %c0_8 = arith.constant 0 : index
    %c384 = arith.constant 384 : index
    %10 = vector.load %arg3[%c0_8, %c384] : memref<1x8064xf32, #tpu.memory_space<vmem>>, vector<1x128xf32>
    %11 = vector.broadcast %10 : vector<1x128xf32> to vector<128x128xf32>
    %12 = arith.addf %9, %11 : vector<128x128xf32>
    %cst_9 = arith.constant 0.000000e+00 : f32
    %13 = vector.broadcast %cst_9 : f32 to vector<128x128xf32>
    %14 = arith.maximumf %12, %13 : vector<128x128xf32>
    %c256 = arith.constant 256 : index
    %c0_10 = arith.constant 0 : index
    %15 = vector.load %arg2[%c256, %c0_10] : memref<5248x384xf32, #tpu.memory_space<vmem>>, vector<128x384xf32>
    %cst_11 = arith.constant dense<0.000000e+00> : vector<128x384xf32>
    %16 = tpu.matmul %14, %15, %cst_11 {dimension_numbers = #tpu.dot_dimension_numbers<[1], [0], [0], [1], [0, 0, 1, 1], [], []>} : vector<128x128xf32>, vector<128x384xf32>, vector<128x384xf32> -> vector<128x384xf32>
    %c0_12 = arith.constant 0 : index
    %c768 = arith.constant 768 : index
    %17 = vector.load %arg3[%c0_12, %c768] : memref<1x8064xf32, #tpu.memory_space<vmem>>, vector<1x384xf32>
    %18 = vector.broadcast %17 : vector<1x384xf32> to vector<128x384xf32>
    %19 = arith.addf %16, %18 : vector<128x384xf32>
    %cst_13 = arith.constant 0.000000e+00 : f32
    %20 = vector.broadcast %cst_13 : f32 to vector<128x384xf32>
    %21 = arith.maximumf %19, %20 : vector<128x384xf32>
    %c384_14 = arith.constant 384 : index
    %c0_15 = arith.constant 0 : index
    %22 = vector.load %arg2[%c384_14, %c0_15] : memref<5248x384xf32, #tpu.memory_space<vmem>>, vector<384x128xf32>
    %cst_16 = arith.constant dense<0.000000e+00> : vector<128x128xf32>
    %23 = tpu.matmul %21, %22, %cst_16 {dimension_numbers = #tpu.dot_dimension_numbers<[1], [0], [0], [1], [0, 0, 1, 1], [], []>} : vector<128x384xf32>, vector<384x128xf32>, vector<128x128xf32> -> vector<128x128xf32>
    %c0_17 = arith.constant 0 : index
    %c1152 = arith.constant 1152 : index
    %24 = vector.load %arg3[%c0_17, %c1152] : memref<1x8064xf32, #tpu.memory_space<vmem>>, vector<1x128xf32>
    %25 = vector.broadcast %24 : vector<1x128xf32> to vector<128x128xf32>
    %26 = arith.addf %23, %25 : vector<128x128xf32>
    %cst_18 = arith.constant 0.000000e+00 : f32
    %27 = vector.broadcast %cst_18 : f32 to vector<128x128xf32>
    %28 = arith.maximumf %26, %27 : vector<128x128xf32>
    %c768_19 = arith.constant 768 : index
    %c0_20 = arith.constant 0 : index
    %29 = vector.load %arg2[%c768_19, %c0_20] : memref<5248x384xf32, #tpu.memory_space<vmem>>, vector<128x128xf32>
    %cst_21 = arith.constant dense<0.000000e+00> : vector<128x128xf32>
    %30 = tpu.matmul %28, %29, %cst_21 {dimension_numbers = #tpu.dot_dimension_numbers<[1], [0], [0], [1], [0, 0, 1, 1], [], []>} : vector<128x128xf32>, vector<128x128xf32>, vector<128x128xf32> -> vector<128x128xf32>
    %c0_22 = arith.constant 0 : index
    %c1536 = arith.constant 1536 : index
    %31 = vector.load %arg3[%c0_22, %c1536] : memref<1x8064xf32, #tpu.memory_space<vmem>>, vector<1x128xf32>
    %32 = vector.broadcast %31 : vector<1x128xf32> to vector<128x128xf32>
    %33 = arith.addf %30, %32 : vector<128x128xf32>
    %c896 = arith.constant 896 : index
    %c0_23 = arith.constant 0 : index
    %34 = vector.load %arg2[%c896, %c0_23] : memref<5248x384xf32, #tpu.memory_space<vmem>>, vector<128x128xf32>
    %cst_24 = arith.constant dense<0.000000e+00> : vector<128x128xf32>
    %35 = tpu.matmul %33, %34, %cst_24 {dimension_numbers = #tpu.dot_dimension_numbers<[1], [0], [0], [1], [0, 0, 1, 1], [], []>} : vector<128x128xf32>, vector<128x128xf32>, vector<128x128xf32> -> vector<128x128xf32>
    %cst_25 = arith.constant 0.000000e+00 : f32
    %36 = vector.broadcast %cst_25 : f32 to vector<128x128xf32>
    %37 = arith.maximumf %35, %36 : vector<128x128xf32>
    %c1024 = arith.constant 1024 : index
    %c0_26 = arith.constant 0 : index
    %38 = vector.load %arg2[%c1024, %c0_26] : memref<5248x384xf32, #tpu.memory_space<vmem>>, vector<128x128xf32>
    %cst_27 = arith.constant dense<0.000000e+00> : vector<128x128xf32>
    %39 = tpu.matmul %37, %38, %cst_27 {dimension_numbers = #tpu.dot_dimension_numbers<[1], [0], [0], [1], [0, 0, 1, 1], [], []>} : vector<128x128xf32>, vector<128x128xf32>, vector<128x128xf32> -> vector<128x128xf32>
    %40 = arith.negf %39 : vector<128x128xf32>
    %41 = math.exp %40 : vector<128x128xf32>
    %cst_28 = arith.constant 1.000000e+00 : f32
    %42 = vector.broadcast %cst_28 : f32 to vector<128x128xf32>
    %43 = arith.addf %42, %41 : vector<128x128xf32>
    %44 = arith.divf %42, %43 : vector<128x128xf32>
    %45 = arith.mulf %33, %44 : vector<128x128xf32>
    %46 = arith.addf %45, %5 : vector<128x128xf32>
    %cst_29 = arith.constant 0.000000e+00 : f32
    %47 = vector.broadcast %cst_29 : f32 to vector<128x128xf32>
    %48 = arith.maximumf %46, %47 : vector<128x128xf32>
    %c1152_30 = arith.constant 1152 : index
    %c0_31 = arith.constant 0 : index
    %49 = vector.load %arg2[%c1152_30, %c0_31] : memref<5248x384xf32, #tpu.memory_space<vmem>>, vector<128x256xf32>
    %cst_32 = arith.constant dense<0.000000e+00> : vector<128x256xf32>
    %50 = tpu.matmul %48, %49, %cst_32 {dimension_numbers = #tpu.dot_dimension_numbers<[1], [0], [0], [1], [0, 0, 1, 1], [], []>} : vector<128x128xf32>, vector<128x256xf32>, vector<128x256xf32> -> vector<128x256xf32>
    %c0_33 = arith.constant 0 : index
    %c1920 = arith.constant 1920 : index
    %51 = vector.load %arg3[%c0_33, %c1920] : memref<1x8064xf32, #tpu.memory_space<vmem>>, vector<1x256xf32>
    %52 = vector.broadcast %51 : vector<1x256xf32> to vector<128x256xf32>
    %53 = arith.addf %50, %52 : vector<128x256xf32>
    %cst_34 = arith.constant 0.000000e+00 : f32
    %54 = vector.broadcast %cst_34 : f32 to vector<128x256xf32>
    %55 = arith.maximumf %53, %54 : vector<128x256xf32>
    %c1280 = arith.constant 1280 : index
    %c0_35 = arith.constant 0 : index
    %56 = vector.load %arg2[%c1280, %c0_35] : memref<5248x384xf32, #tpu.memory_space<vmem>>, vector<256x384xf32>
    %cst_36 = arith.constant dense<0.000000e+00> : vector<128x384xf32>
    %57 = tpu.matmul %55, %56, %cst_36 {dimension_numbers = #tpu.dot_dimension_numbers<[1], [0], [0], [1], [0, 0, 1, 1], [], []>} : vector<128x256xf32>, vector<256x384xf32>, vector<128x384xf32> -> vector<128x384xf32>
    %c0_37 = arith.constant 0 : index
    %c2304 = arith.constant 2304 : index
    %58 = vector.load %arg3[%c0_37, %c2304] : memref<1x8064xf32, #tpu.memory_space<vmem>>, vector<1x384xf32>
    %59 = vector.broadcast %58 : vector<1x384xf32> to vector<128x384xf32>
    %60 = arith.addf %57, %59 : vector<128x384xf32>
    %cst_38 = arith.constant 0.000000e+00 : f32
    %61 = vector.broadcast %cst_38 : f32 to vector<128x384xf32>
    %62 = arith.maximumf %60, %61 : vector<128x384xf32>
    %c1536_39 = arith.constant 1536 : index
    %c0_40 = arith.constant 0 : index
    %63 = vector.load %arg2[%c1536_39, %c0_40] : memref<5248x384xf32, #tpu.memory_space<vmem>>, vector<384x128xf32>
    %cst_41 = arith.constant dense<0.000000e+00> : vector<128x128xf32>
    %64 = tpu.matmul %62, %63, %cst_41 {dimension_numbers = #tpu.dot_dimension_numbers<[1], [0], [0], [1], [0, 0, 1, 1], [], []>} : vector<128x384xf32>, vector<384x128xf32>, vector<128x128xf32> -> vector<128x128xf32>
    %c0_42 = arith.constant 0 : index
    %c2688 = arith.constant 2688 : index
    %65 = vector.load %arg3[%c0_42, %c2688] : memref<1x8064xf32, #tpu.memory_space<vmem>>, vector<1x128xf32>
    %66 = vector.broadcast %65 : vector<1x128xf32> to vector<128x128xf32>
    %67 = arith.addf %64, %66 : vector<128x128xf32>
    %cst_43 = arith.constant 0.000000e+00 : f32
    %68 = vector.broadcast %cst_43 : f32 to vector<128x128xf32>
    %69 = arith.maximumf %67, %68 : vector<128x128xf32>
    %c1920_44 = arith.constant 1920 : index
    %c0_45 = arith.constant 0 : index
    %70 = vector.load %arg2[%c1920_44, %c0_45] : memref<5248x384xf32, #tpu.memory_space<vmem>>, vector<128x128xf32>
    %cst_46 = arith.constant dense<0.000000e+00> : vector<128x128xf32>
    %71 = tpu.matmul %69, %70, %cst_46 {dimension_numbers = #tpu.dot_dimension_numbers<[1], [0], [0], [1], [0, 0, 1, 1], [], []>} : vector<128x128xf32>, vector<128x128xf32>, vector<128x128xf32> -> vector<128x128xf32>
    %c0_47 = arith.constant 0 : index
    %c3072 = arith.constant 3072 : index
    %72 = vector.load %arg3[%c0_47, %c3072] : memref<1x8064xf32, #tpu.memory_space<vmem>>, vector<1x128xf32>
    %73 = vector.broadcast %72 : vector<1x128xf32> to vector<128x128xf32>
    %74 = arith.addf %71, %73 : vector<128x128xf32>
    %c2048 = arith.constant 2048 : index
    %c0_48 = arith.constant 0 : index
    %75 = vector.load %arg2[%c2048, %c0_48] : memref<5248x384xf32, #tpu.memory_space<vmem>>, vector<128x128xf32>
    %cst_49 = arith.constant dense<0.000000e+00> : vector<128x128xf32>
    %76 = tpu.matmul %74, %75, %cst_49 {dimension_numbers = #tpu.dot_dimension_numbers<[1], [0], [0], [1], [0, 0, 1, 1], [], []>} : vector<128x128xf32>, vector<128x128xf32>, vector<128x128xf32> -> vector<128x128xf32>
    %cst_50 = arith.constant 0.000000e+00 : f32
    %77 = vector.broadcast %cst_50 : f32 to vector<128x128xf32>
    %78 = arith.maximumf %76, %77 : vector<128x128xf32>
    %c2176 = arith.constant 2176 : index
    %c0_51 = arith.constant 0 : index
    %79 = vector.load %arg2[%c2176, %c0_51] : memref<5248x384xf32, #tpu.memory_space<vmem>>, vector<128x128xf32>
    %cst_52 = arith.constant dense<0.000000e+00> : vector<128x128xf32>
    %80 = tpu.matmul %78, %79, %cst_52 {dimension_numbers = #tpu.dot_dimension_numbers<[1], [0], [0], [1], [0, 0, 1, 1], [], []>} : vector<128x128xf32>, vector<128x128xf32>, vector<128x128xf32> -> vector<128x128xf32>
    %81 = arith.negf %80 : vector<128x128xf32>
    %82 = math.exp %81 : vector<128x128xf32>
    %cst_53 = arith.constant 1.000000e+00 : f32
    %83 = vector.broadcast %cst_53 : f32 to vector<128x128xf32>
    %84 = arith.addf %83, %82 : vector<128x128xf32>
    %85 = arith.divf %83, %84 : vector<128x128xf32>
    %86 = arith.mulf %74, %85 : vector<128x128xf32>
    %87 = arith.addf %86, %5 : vector<128x128xf32>
    %88 = arith.addf %87, %46 : vector<128x128xf32>
    %cst_54 = arith.constant 0.000000e+00 : f32
    %89 = vector.broadcast %cst_54 : f32 to vector<128x128xf32>
    %90 = arith.maximumf %88, %89 : vector<128x128xf32>
    %c2304_55 = arith.constant 2304 : index
    %c0_56 = arith.constant 0 : index
    %91 = vector.load %arg2[%c2304_55, %c0_56] : memref<5248x384xf32, #tpu.memory_space<vmem>>, vector<128x256xf32>
    %cst_57 = arith.constant dense<0.000000e+00> : vector<128x256xf32>
    %92 = tpu.matmul %90, %91, %cst_57 {dimension_numbers = #tpu.dot_dimension_numbers<[1], [0], [0], [1], [0, 0, 1, 1], [], []>} : vector<128x128xf32>, vector<128x256xf32>, vector<128x256xf32> -> vector<128x256xf32>
    %c0_58 = arith.constant 0 : index
    %c3456 = arith.constant 3456 : index
    %93 = vector.load %arg3[%c0_58, %c3456] : memref<1x8064xf32, #tpu.memory_space<vmem>>, vector<1x256xf32>
    %94 = vector.broadcast %93 : vector<1x256xf32> to vector<128x256xf32>
    %95 = arith.addf %92, %94 : vector<128x256xf32>
    %cst_59 = arith.constant 0.000000e+00 : f32
    %96 = vector.broadcast %cst_59 : f32 to vector<128x256xf32>
    %97 = arith.maximumf %95, %96 : vector<128x256xf32>
    %c2432 = arith.constant 2432 : index
    %c0_60 = arith.constant 0 : index
    %98 = vector.load %arg2[%c2432, %c0_60] : memref<5248x384xf32, #tpu.memory_space<vmem>>, vector<256x384xf32>
    %cst_61 = arith.constant dense<0.000000e+00> : vector<128x384xf32>
    %99 = tpu.matmul %97, %98, %cst_61 {dimension_numbers = #tpu.dot_dimension_numbers<[1], [0], [0], [1], [0, 0, 1, 1], [], []>} : vector<128x256xf32>, vector<256x384xf32>, vector<128x384xf32> -> vector<128x384xf32>
    %c0_62 = arith.constant 0 : index
    %c3840 = arith.constant 3840 : index
    %100 = vector.load %arg3[%c0_62, %c3840] : memref<1x8064xf32, #tpu.memory_space<vmem>>, vector<1x384xf32>
    %101 = vector.broadcast %100 : vector<1x384xf32> to vector<128x384xf32>
    %102 = arith.addf %99, %101 : vector<128x384xf32>
    %cst_63 = arith.constant 0.000000e+00 : f32
    %103 = vector.broadcast %cst_63 : f32 to vector<128x384xf32>
    %104 = arith.maximumf %102, %103 : vector<128x384xf32>
    %c2688_64 = arith.constant 2688 : index
    %c0_65 = arith.constant 0 : index
    %105 = vector.load %arg2[%c2688_64, %c0_65] : memref<5248x384xf32, #tpu.memory_space<vmem>>, vector<384x256xf32>
    %cst_66 = arith.constant dense<0.000000e+00> : vector<128x256xf32>
    %106 = tpu.matmul %104, %105, %cst_66 {dimension_numbers = #tpu.dot_dimension_numbers<[1], [0], [0], [1], [0, 0, 1, 1], [], []>} : vector<128x384xf32>, vector<384x256xf32>, vector<128x256xf32> -> vector<128x256xf32>
    %c0_67 = arith.constant 0 : index
    %c4224 = arith.constant 4224 : index
    %107 = vector.load %arg3[%c0_67, %c4224] : memref<1x8064xf32, #tpu.memory_space<vmem>>, vector<1x256xf32>
    %108 = vector.broadcast %107 : vector<1x256xf32> to vector<128x256xf32>
    %109 = arith.addf %106, %108 : vector<128x256xf32>
    %cst_68 = arith.constant 0.000000e+00 : f32
    %110 = vector.broadcast %cst_68 : f32 to vector<128x256xf32>
    %111 = arith.maximumf %109, %110 : vector<128x256xf32>
    %c3072_69 = arith.constant 3072 : index
    %c0_70 = arith.constant 0 : index
    %112 = vector.load %arg2[%c3072_69, %c0_70] : memref<5248x384xf32, #tpu.memory_space<vmem>>, vector<256x128xf32>
    %cst_71 = arith.constant dense<0.000000e+00> : vector<128x128xf32>
    %113 = tpu.matmul %111, %112, %cst_71 {dimension_numbers = #tpu.dot_dimension_numbers<[1], [0], [0], [1], [0, 0, 1, 1], [], []>} : vector<128x256xf32>, vector<256x128xf32>, vector<128x128xf32> -> vector<128x128xf32>
    %c0_72 = arith.constant 0 : index
    %c4608 = arith.constant 4608 : index
    %114 = vector.load %arg3[%c0_72, %c4608] : memref<1x8064xf32, #tpu.memory_space<vmem>>, vector<1x128xf32>
    %115 = vector.broadcast %114 : vector<1x128xf32> to vector<128x128xf32>
    %116 = arith.addf %113, %115 : vector<128x128xf32>
    %c3328 = arith.constant 3328 : index
    %c0_73 = arith.constant 0 : index
    %117 = vector.load %arg2[%c3328, %c0_73] : memref<5248x384xf32, #tpu.memory_space<vmem>>, vector<128x128xf32>
    %cst_74 = arith.constant dense<0.000000e+00> : vector<128x128xf32>
    %118 = tpu.matmul %116, %117, %cst_74 {dimension_numbers = #tpu.dot_dimension_numbers<[1], [0], [0], [1], [0, 0, 1, 1], [], []>} : vector<128x128xf32>, vector<128x128xf32>, vector<128x128xf32> -> vector<128x128xf32>
    %cst_75 = arith.constant 0.000000e+00 : f32
    %119 = vector.broadcast %cst_75 : f32 to vector<128x128xf32>
    %120 = arith.maximumf %118, %119 : vector<128x128xf32>
    %c3456_76 = arith.constant 3456 : index
    %c0_77 = arith.constant 0 : index
    %121 = vector.load %arg2[%c3456_76, %c0_77] : memref<5248x384xf32, #tpu.memory_space<vmem>>, vector<128x128xf32>
    %cst_78 = arith.constant dense<0.000000e+00> : vector<128x128xf32>
    %122 = tpu.matmul %120, %121, %cst_78 {dimension_numbers = #tpu.dot_dimension_numbers<[1], [0], [0], [1], [0, 0, 1, 1], [], []>} : vector<128x128xf32>, vector<128x128xf32>, vector<128x128xf32> -> vector<128x128xf32>
    %123 = arith.negf %122 : vector<128x128xf32>
    %124 = math.exp %123 : vector<128x128xf32>
    %cst_79 = arith.constant 1.000000e+00 : f32
    %125 = vector.broadcast %cst_79 : f32 to vector<128x128xf32>
    %126 = arith.addf %125, %124 : vector<128x128xf32>
    %127 = arith.divf %125, %126 : vector<128x128xf32>
    %128 = arith.mulf %116, %127 : vector<128x128xf32>
    %129 = arith.addf %128, %5 : vector<128x128xf32>
    %130 = arith.addf %129, %46 : vector<128x128xf32>
    %131 = arith.addf %130, %88 : vector<128x128xf32>
    %cst_80 = arith.constant 0.000000e+00 : f32
    %132 = vector.broadcast %cst_80 : f32 to vector<128x128xf32>
    %133 = arith.maximumf %131, %132 : vector<128x128xf32>
    %c3584 = arith.constant 3584 : index
    %c0_81 = arith.constant 0 : index
    %134 = vector.load %arg2[%c3584, %c0_81] : memref<5248x384xf32, #tpu.memory_space<vmem>>, vector<128x128xf32>
    %cst_82 = arith.constant dense<0.000000e+00> : vector<128x128xf32>
    %135 = tpu.matmul %133, %134, %cst_82 {dimension_numbers = #tpu.dot_dimension_numbers<[1], [0], [0], [1], [0, 0, 1, 1], [], []>} : vector<128x128xf32>, vector<128x128xf32>, vector<128x128xf32> -> vector<128x128xf32>
    %c0_83 = arith.constant 0 : index
    %c4992 = arith.constant 4992 : index
    %136 = vector.load %arg3[%c0_83, %c4992] : memref<1x8064xf32, #tpu.memory_space<vmem>>, vector<1x128xf32>
    %137 = vector.broadcast %136 : vector<1x128xf32> to vector<128x128xf32>
    %138 = arith.addf %135, %137 : vector<128x128xf32>
    %cst_84 = arith.constant 0.000000e+00 : f32
    %139 = vector.broadcast %cst_84 : f32 to vector<128x128xf32>
    %140 = arith.maximumf %138, %139 : vector<128x128xf32>
    %c3712 = arith.constant 3712 : index
    %c0_85 = arith.constant 0 : index
    %141 = vector.load %arg2[%c3712, %c0_85] : memref<5248x384xf32, #tpu.memory_space<vmem>>, vector<128x256xf32>
    %cst_86 = arith.constant dense<0.000000e+00> : vector<128x256xf32>
    %142 = tpu.matmul %140, %141, %cst_86 {dimension_numbers = #tpu.dot_dimension_numbers<[1], [0], [0], [1], [0, 0, 1, 1], [], []>} : vector<128x128xf32>, vector<128x256xf32>, vector<128x256xf32> -> vector<128x256xf32>
    %c0_87 = arith.constant 0 : index
    %c5376 = arith.constant 5376 : index
    %143 = vector.load %arg3[%c0_87, %c5376] : memref<1x8064xf32, #tpu.memory_space<vmem>>, vector<1x256xf32>
    %144 = vector.broadcast %143 : vector<1x256xf32> to vector<128x256xf32>
    %145 = arith.addf %142, %144 : vector<128x256xf32>
    %cst_88 = arith.constant 0.000000e+00 : f32
    %146 = vector.broadcast %cst_88 : f32 to vector<128x256xf32>
    %147 = arith.maximumf %145, %146 : vector<128x256xf32>
    %c3840_89 = arith.constant 3840 : index
    %c0_90 = arith.constant 0 : index
    %148 = vector.load %arg2[%c3840_89, %c0_90] : memref<5248x384xf32, #tpu.memory_space<vmem>>, vector<256x128xf32>
    %cst_91 = arith.constant dense<0.000000e+00> : vector<128x128xf32>
    %149 = tpu.matmul %147, %148, %cst_91 {dimension_numbers = #tpu.dot_dimension_numbers<[1], [0], [0], [1], [0, 0, 1, 1], [], []>} : vector<128x256xf32>, vector<256x128xf32>, vector<128x128xf32> -> vector<128x128xf32>
    %c0_92 = arith.constant 0 : index
    %c5760 = arith.constant 5760 : index
    %150 = vector.load %arg3[%c0_92, %c5760] : memref<1x8064xf32, #tpu.memory_space<vmem>>, vector<1x128xf32>
    %151 = vector.broadcast %150 : vector<1x128xf32> to vector<128x128xf32>
    %152 = arith.addf %149, %151 : vector<128x128xf32>
    %cst_93 = arith.constant 0.000000e+00 : f32
    %153 = vector.broadcast %cst_93 : f32 to vector<128x128xf32>
    %154 = arith.maximumf %152, %153 : vector<128x128xf32>
    %c4096 = arith.constant 4096 : index
    %c0_94 = arith.constant 0 : index
    %155 = vector.load %arg2[%c4096, %c0_94] : memref<5248x384xf32, #tpu.memory_space<vmem>>, vector<128x128xf32>
    %cst_95 = arith.constant dense<0.000000e+00> : vector<128x128xf32>
    %156 = tpu.matmul %154, %155, %cst_95 {dimension_numbers = #tpu.dot_dimension_numbers<[1], [0], [0], [1], [0, 0, 1, 1], [], []>} : vector<128x128xf32>, vector<128x128xf32>, vector<128x128xf32> -> vector<128x128xf32>
    %c0_96 = arith.constant 0 : index
    %c6144 = arith.constant 6144 : index
    %157 = vector.load %arg3[%c0_96, %c6144] : memref<1x8064xf32, #tpu.memory_space<vmem>>, vector<1x128xf32>
    %158 = vector.broadcast %157 : vector<1x128xf32> to vector<128x128xf32>
    %159 = arith.addf %156, %158 : vector<128x128xf32>
    %c4224_97 = arith.constant 4224 : index
    %c0_98 = arith.constant 0 : index
    %160 = vector.load %arg2[%c4224_97, %c0_98] : memref<5248x384xf32, #tpu.memory_space<vmem>>, vector<128x128xf32>
    %cst_99 = arith.constant dense<0.000000e+00> : vector<128x128xf32>
    %161 = tpu.matmul %159, %160, %cst_99 {dimension_numbers = #tpu.dot_dimension_numbers<[1], [0], [0], [1], [0, 0, 1, 1], [], []>} : vector<128x128xf32>, vector<128x128xf32>, vector<128x128xf32> -> vector<128x128xf32>
    %cst_100 = arith.constant 0.000000e+00 : f32
    %162 = vector.broadcast %cst_100 : f32 to vector<128x128xf32>
    %163 = arith.maximumf %161, %162 : vector<128x128xf32>
    %c4352 = arith.constant 4352 : index
    %c0_101 = arith.constant 0 : index
    %164 = vector.load %arg2[%c4352, %c0_101] : memref<5248x384xf32, #tpu.memory_space<vmem>>, vector<128x128xf32>
    %cst_102 = arith.constant dense<0.000000e+00> : vector<128x128xf32>
    %165 = tpu.matmul %163, %164, %cst_102 {dimension_numbers = #tpu.dot_dimension_numbers<[1], [0], [0], [1], [0, 0, 1, 1], [], []>} : vector<128x128xf32>, vector<128x128xf32>, vector<128x128xf32> -> vector<128x128xf32>
    %166 = arith.negf %165 : vector<128x128xf32>
    %167 = math.exp %166 : vector<128x128xf32>
    %cst_103 = arith.constant 1.000000e+00 : f32
    %168 = vector.broadcast %cst_103 : f32 to vector<128x128xf32>
    %169 = arith.addf %168, %167 : vector<128x128xf32>
    %170 = arith.divf %168, %169 : vector<128x128xf32>
    %171 = arith.mulf %159, %170 : vector<128x128xf32>
    %172 = arith.addf %171, %5 : vector<128x128xf32>
    %173 = arith.addf %172, %46 : vector<128x128xf32>
    %174 = arith.addf %173, %88 : vector<128x128xf32>
    %175 = arith.addf %174, %131 : vector<128x128xf32>
    %cst_104 = arith.constant 0.000000e+00 : f32
    %176 = vector.broadcast %cst_104 : f32 to vector<128x128xf32>
    %177 = arith.maximumf %175, %176 : vector<128x128xf32>
    %c4480 = arith.constant 4480 : index
    %c0_105 = arith.constant 0 : index
    %178 = vector.load %arg2[%c4480, %c0_105] : memref<5248x384xf32, #tpu.memory_space<vmem>>, vector<128x128xf32>
    %cst_106 = arith.constant dense<0.000000e+00> : vector<128x128xf32>
    %179 = tpu.matmul %177, %178, %cst_106 {dimension_numbers = #tpu.dot_dimension_numbers<[1], [0], [0], [1], [0, 0, 1, 1], [], []>} : vector<128x128xf32>, vector<128x128xf32>, vector<128x128xf32> -> vector<128x128xf32>
    %c0_107 = arith.constant 0 : index
    %c6528 = arith.constant 6528 : index
    %180 = vector.load %arg3[%c0_107, %c6528] : memref<1x8064xf32, #tpu.memory_space<vmem>>, vector<1x128xf32>
    %181 = vector.broadcast %180 : vector<1x128xf32> to vector<128x128xf32>
    %182 = arith.addf %179, %181 : vector<128x128xf32>
    %cst_108 = arith.constant 0.000000e+00 : f32
    %183 = vector.broadcast %cst_108 : f32 to vector<128x128xf32>
    %184 = arith.maximumf %182, %183 : vector<128x128xf32>
    %c4608_109 = arith.constant 4608 : index
    %c0_110 = arith.constant 0 : index
    %185 = vector.load %arg2[%c4608_109, %c0_110] : memref<5248x384xf32, #tpu.memory_space<vmem>>, vector<128x256xf32>
    %cst_111 = arith.constant dense<0.000000e+00> : vector<128x256xf32>
    %186 = tpu.matmul %184, %185, %cst_111 {dimension_numbers = #tpu.dot_dimension_numbers<[1], [0], [0], [1], [0, 0, 1, 1], [], []>} : vector<128x128xf32>, vector<128x256xf32>, vector<128x256xf32> -> vector<128x256xf32>
    %c0_112 = arith.constant 0 : index
    %c6912 = arith.constant 6912 : index
    %187 = vector.load %arg3[%c0_112, %c6912] : memref<1x8064xf32, #tpu.memory_space<vmem>>, vector<1x256xf32>
    %188 = vector.broadcast %187 : vector<1x256xf32> to vector<128x256xf32>
    %189 = arith.addf %186, %188 : vector<128x256xf32>
    %cst_113 = arith.constant 0.000000e+00 : f32
    %190 = vector.broadcast %cst_113 : f32 to vector<128x256xf32>
    %191 = arith.maximumf %189, %190 : vector<128x256xf32>
    %c4736 = arith.constant 4736 : index
    %c0_114 = arith.constant 0 : index
    %192 = vector.load %arg2[%c4736, %c0_114] : memref<5248x384xf32, #tpu.memory_space<vmem>>, vector<256x256xf32>
    %cst_115 = arith.constant dense<0.000000e+00> : vector<128x256xf32>
    %193 = tpu.matmul %191, %192, %cst_115 {dimension_numbers = #tpu.dot_dimension_numbers<[1], [0], [0], [1], [0, 0, 1, 1], [], []>} : vector<128x256xf32>, vector<256x256xf32>, vector<128x256xf32> -> vector<128x256xf32>
    %c0_116 = arith.constant 0 : index
    %c7296 = arith.constant 7296 : index
    %194 = vector.load %arg3[%c0_116, %c7296] : memref<1x8064xf32, #tpu.memory_space<vmem>>, vector<1x256xf32>
    %195 = vector.broadcast %194 : vector<1x256xf32> to vector<128x256xf32>
    %196 = arith.addf %193, %195 : vector<128x256xf32>
    %cst_117 = arith.constant 0.000000e+00 : f32
    %197 = vector.broadcast %cst_117 : f32 to vector<128x256xf32>
    %198 = arith.maximumf %196, %197 : vector<128x256xf32>
    %c4992_118 = arith.constant 4992 : index
    %c0_119 = arith.constant 0 : index
    %199 = vector.load %arg2[%c4992_118, %c0_119] : memref<5248x384xf32, #tpu.memory_space<vmem>>, vector<256x128xf32>
    %cst_120 = arith.constant dense<0.000000e+00> : vector<128x128xf32>
    %200 = tpu.matmul %198, %199, %cst_120 {dimension_numbers = #tpu.dot_dimension_numbers<[1], [0], [0], [1], [0, 0, 1, 1], [], []>} : vector<128x256xf32>, vector<256x128xf32>, vector<128x128xf32> -> vector<128x128xf32>
    %c0_121 = arith.constant 0 : index
    %c7680 = arith.constant 7680 : index
    %201 = vector.load %arg3[%c0_121, %c7680] : memref<1x8064xf32, #tpu.memory_space<vmem>>, vector<1x128xf32>
    %202 = vector.broadcast %201 : vector<1x128xf32> to vector<128x128xf32>
    %203 = arith.addf %200, %202 : vector<128x128xf32>
    %204 = tpu.iota {dimensions = array<i32: 1>} : vector<128x128xi32>
    %c10_i32 = arith.constant 10 : i32
    %205 = vector.broadcast %c10_i32 : i32 to vector<128x128xi32>
    %206 = arith.cmpi slt, %204, %205 : vector<128x128xi32>
    %cst_122 = arith.constant -1.000000e+30 : f32
    %207 = vector.broadcast %cst_122 : f32 to vector<128x128xf32>
    %208 = arith.select %206, %203, %207 : vector<128x128xi1>, vector<128x128xf32>
    %cst_123 = arith.constant dense<0xFF800000> : vector<128xf32>
    %209 = vector.multi_reduction <maximumf>, %208, %cst_123 [1] : vector<128x128xf32> to vector<128xf32>
    %210 = vector.shape_cast %209 : vector<128xf32> to vector<128x1xf32>
    %211 = vector.broadcast %210 : vector<128x1xf32> to vector<128x128xf32>
    %212 = arith.subf %208, %211 : vector<128x128xf32>
    %213 = math.exp %212 : vector<128x128xf32>
    %cst_124 = arith.constant dense<0.000000e+00> : vector<128xf32>
    %214 = vector.multi_reduction <add>, %213, %cst_124 [1] : vector<128x128xf32> to vector<128xf32>
    %215 = vector.shape_cast %214 : vector<128xf32> to vector<128x1xf32>
    %216 = tpu.reciprocal %215 : vector<128x1xf32> -> vector<128x1xf32>
    %217 = vector.broadcast %216 : vector<128x1xf32> to vector<128x128xf32>
    %218 = arith.mulf %213, %217 : vector<128x128xf32>
    %c0_125 = arith.constant 0 : index
    %c0_126 = arith.constant 0 : index
    %219 = vector.load %arg4[%c0_125, %c0_126] : memref<128x128xf32, #tpu.memory_space<vmem>>, vector<128x128xf32>
    tpu.vector_store %arg4[%c0_125, %c0_126], %218 {strides = array<i32>} : memref<128x128xf32, #tpu.memory_space<vmem>>, vector<128x128xf32>,
    return
  }
  func.func @transform_0(%arg0: i32) -> (i32, i32) {
    %c0_i32 = arith.constant 0 : i32
    %c0_i32_0 = arith.constant 0 : i32
    return %arg0, %c0_i32 : i32, i32
  }
  func.func @transform_1(%arg0: i32) -> (i32, i32) {
    %c0_i32 = arith.constant 0 : i32
    %c0_i32_0 = arith.constant 0 : i32
    %c0_i32_1 = arith.constant 0 : i32
    return %c0_i32, %c0_i32_0 : i32, i32
  }
  func.func @transform_2(%arg0: i32) -> (i32, i32) {
    %c0_i32 = arith.constant 0 : i32
    %c0_i32_0 = arith.constant 0 : i32
    %c0_i32_1 = arith.constant 0 : i32
    return %c0_i32, %c0_i32_0 : i32, i32
  }
  func.func @transform_3(%arg0: i32) -> (i32, i32) {
    %c0_i32 = arith.constant 0 : i32
    %c0_i32_0 = arith.constant 0 : i32
    return %arg0, %c0_i32 : i32, i32
  }
}

</mosaic_0001>

<llo_original>
// kernel: tpu_custom_call.1
$region0: #{tpu_custom_call.1}
  #allocation0 [shape = 'u32[]', space=smem, size = 0x4, offset = 0x4, fixed_abs, tag = 'smem constant byte address 0x4 - core index']
  #allocation1 [shape = 'u32[144,128]{1,0:T(1,128)}', space=vmem, size = 0x12000, scoped, tag = 'internal scratch']
  %s0 = inlined_call_operand.hbm [shape: f32[256,128], index: 0, kind: input, shape index: {}]
  %s1 = inlined_call_operand.hbm [shape: f32[5248,384], index: 1, kind: input, shape index: {}]
  %s2 = inlined_call_operand.hbm [shape: f32[1,8064], index: 2, kind: input, shape index: {}]
  %s3 = inlined_call_operand.hbm [shape: f32[256,128], index: 3, kind: output, shape index: {}]
  %s4 = sld [smem:[#allocation0]]
  $region57: #{tpu_custom_call.1} parent=0
    _
  %s6 = ssub.s32 1, %s4
  %s7 = scalar_select 0, %s6, %s4
  $region1: #{tpu_custom_call.1} parent=0
    #allocation2 [shape = 'u8[131072]{0}', space=vmem, size = 0x20000, scoped, tag = 'input window, operand 0']
    #allocation3 [shape = 's32[2]{0}', space=sflag, size = 0x8, scoped, tag = 'scoped memory for tpu_custom_call.1']
    #allocation4 [shape = 's32[2]{0}', space=sflag, size = 0x8, scoped, tag = 'scoped memory for tpu_custom_call.1']
    #allocation5 [shape = 'u8[8060928]{0}', space=vmem, size = 0x7b0000, scoped, tag = 'input window, operand 1, single buffered']
    #allocation6 [shape = 's32[1]{0}', space=sflag, size = 0x4, scoped, tag = 'scoped memory for tpu_custom_call.1']
    #allocation7 [shape = 'u8[32256]{0}', space=vmem, size = 0x8000, scoped, tag = 'input window, operand 2, single buffered']
    #allocation8 [shape = 'u8[131072]{0}', space=vmem, size = 0x20000, scoped, tag = 'output window, operand 0']
    %8 = vsyncpa [#allocation3], 0
    %s9 = scalar_lea.sflag [#allocation3], 1
    %10 = vsyncpa %s9, 0
    %11 = vsyncpa [#allocation6], 0
    %12 = vsyncpa [#allocation4], 0
    %s13 = scalar_lea.sflag [#allocation4], 1
    %14 = vsyncpa %s13, 0
    loop: start=0, step=1, limit=4
    $region2: #{tpu_custom_call.1} parent=1 // loop_pre_header
      _
    $region3: #{tpu_custom_call.1} parent=1 // loop_header
      %s16 = sphi 0, %s20
      %p17 = scmp.ge.s32.totalorder %s16, 4
      %s26 = sphi 0, %s28
      %s29 = sphi 0, %s26
      %s30 = sphi 0, %s29
      %s46 = sphi 0, %s30
      %s50 = sphi 0, %s50
      %s52 = sphi 0, %s50
      %s53 = sphi 0, %s52
      %s67 = sphi 0, %s53
      %s71 = sphi 0, %s71
      %s73 = sphi 0, %s71
      %s74 = sphi 0, %s73
      %s88 = sphi 0, %s74
      %s94 = sphi 0, %s96
      %s97 = sphi 0, %s94
      %s98 = sphi 0, %s97
      %s114 = sphi 0, %s98
    $region4: #{tpu_custom_call.1} parent=1 // loop_header_branch
      %19 = sbr.rel (%p17) target = $region8
    $region5: #{tpu_custom_call.1} parent=1 // loop_body
      %s21 = ssub.s32 %s16, 1
      %s22 = ssub.s32 %s16, 2
      %s23 = sadd.s32 %s16, 1
      %s24 = ssub.s32 %s16, %s23
      %p25 = scmp.eq.s32.totalorder %s24, 0
      %s27 = sadd.s32 %s26, 1
      %s28 = scalar_select %p25, %s26, %s27
      %p31 = pneg %p25
      %p32 = scmp.eq.s32.totalorder %s16, 1
      %p33 = por %p31, %p32
      %p34 = scmp.ne.s32.totalorder %s26, %s29
      %p35 = scmp.eq.s32.totalorder %s16, 0
      %p36 = por %p34, %p35
      %p37 = scmp.ne.s32.totalorder %s26, %s29
      %p38 = scmp.eq.s32.totalorder %s21, 1
      %p39 = por %p37, %p38
      %p40 = scmp.ne.s32.totalorder %s29, %s30
      %p41 = scmp.eq.s32.totalorder %s21, 0
      %p42 = por %p40, %p41
      %p43 = scmp.ne.s32.totalorder %s29, %s30
      %p44 = scmp.eq.s32.totalorder %s22, 1
      %p45 = por %p43, %p44
      %p47 = scmp.ne.s32.totalorder %s30, %s46
      %p48 = scmp.eq.s32.totalorder %s22, 0
      %p49 = por %p47, %p48
      %s51 = sadd.s32 %s50, 1
      %p54 = scmp.eq.s32.totalorder %s16, 1
      %p55 = scmp.ne.s32.totalorder %s50, %s52
      %p56 = scmp.eq.s32.totalorder %s16, 0
      %p57 = por %p55, %p56
      %p58 = scmp.ne.s32.totalorder %s50, %s52
      %p59 = scmp.eq.s32.totalorder %s21, 1
      %p60 = por %p58, %p59
      %p61 = scmp.ne.s32.totalorder %s52, %s53
      %p62 = scmp.eq.s32.totalorder %s21, 0
      %p63 = por %p61, %p62
      %p64 = scmp.ne.s32.totalorder %s52, %s53
      %p65 = scmp.eq.s32.totalorder %s22, 1
      %p66 = por %p64, %p65
      %p68 = scmp.ne.s32.totalorder %s53, %s67
      %p69 = scmp.eq.s32.totalorder %s22, 0
      %p70 = por %p68, %p69
      %s72 = sadd.s32 %s71, 1
      %p75 = scmp.eq.s32.totalorder %s16, 1
      %p76 = scmp.ne.s32.totalorder %s71, %s73
      %p77 = scmp.eq.s32.totalorder %s16, 0
      %p78 = por %p76, %p77
      %p79 = scmp.ne.s32.totalorder %s71, %s73
      %p80 = scmp.eq.s32.totalorder %s21, 1
      %p81 = por %p79, %p80
      %p82 = scmp.ne.s32.totalorder %s73, %s74
      %p83 = scmp.eq.s32.totalorder %s21, 0
      %p84 = por %p82, %p83
      %p85 = scmp.ne.s32.totalorder %s73, %s74
      %p86 = scmp.eq.s32.totalorder %s22, 1
      %p87 = por %p85, %p86
      %p89 = scmp.ne.s32.totalorder %s74, %s88
      %p90 = scmp.eq.s32.totalorder %s22, 0
      %p91 = por %p89, %p90
      %s92 = ssub.s32 %s16, %s23
      %p93 = scmp.eq.s32.totalorder %s92, 0
      %s95 = sadd.s32 %s94, 1
      %s96 = scalar_select %p93, %s94, %s95
      %p99 = pneg %p93
      %p100 = scmp.eq.s32.totalorder %s16, 1
      %p101 = por %p99, %p100
      %p102 = scmp.ne.s32.totalorder %s94, %s97
      %p103 = scmp.eq.s32.totalorder %s16, 0
      %p104 = por %p102, %p103
      %p105 = scmp.ne.s32.totalorder %s94, %s97
      %p106 = scmp.eq.s32.totalorder %s21, 1
      %p107 = por %p105, %p106
      %p108 = scmp.ne.s32.totalorder %s97, %s98
      %p109 = scmp.eq.s32.totalorder %s21, 0
      %p110 = por %p108, %p109
      %p111 = scmp.ne.s32.totalorder %s97, %s98
      %p112 = scmp.eq.s32.totalorder %s22, 1
      %p113 = por %p111, %p112
      %p115 = scmp.ne.s32.totalorder %s98, %s114
      %p116 = scmp.eq.s32.totalorder %s22, 0
      %p117 = por %p115, %p116
      %p118 = scmp.le.s32.totalorder 1, %s16
      %p119 = scmp.lt.s32.totalorder %s16, 3
      %p120 = pnand %p118, %p119
      %p121 = pneg %p120
      // Predicated region
      $region9: #{tpu_custom_call.1} parent=5 // pred_check
        _
      $region10: #{tpu_custom_call.1} parent=5 // pred_check_branch
        %123 = sbr.rel (%p120) target = $region12
      $region11: #{tpu_custom_call.1} parent=5 // pred_region
        %s124 = ssub.s32 %s16, 1
        // Predicated region
        $region13: #{tpu_custom_call.1} parent=11 // pred_check
          %p125 = pneg %p63
        $region14: #{tpu_custom_call.1} parent=11 // pred_check_branch
          %127 = sbr.rel (%p125) target = $region16
        $region15: #{tpu_custom_call.1} parent=11 // pred_region
          %s129 = ssub.s32 251904, 251904
          %130 = vsyncadd [#allocation6], %s129
          %s131 = sshll.u32 [#allocation5], 4
          %s132 = int_to_ptr.vmem [resolvable:$true] %s131
          %137 = dma.hbm_to_vmem [thread:$0]  %s1, 251904, %s132, [#allocation6], 384, 384, 24
        $region16: #{tpu_custom_call.1} parent=11 // pred_fallthru
          _
        // Predicated region
        $region17: #{tpu_custom_call.1} parent=11 // pred_check
          %p138 = pneg %p84
        $region18: #{tpu_custom_call.1} parent=11 // pred_check_branch
          %140 = sbr.rel (%p138) target = $region20
        $region19: #{tpu_custom_call.1} parent=11 // pred_region
          %s142 = ssub.s32 1008, 1008
          %143 = vsyncadd [#allocation6], %s142
          %s145 = sshll.u32 [#allocation7], 4
          %s146 = int_to_ptr.vmem [resolvable:$true] %s145
          %148 = dma.hbm_to_vmem [thread:$0]  %s2, 1008, %s146, [#allocation6]
        $region20: #{tpu_custom_call.1} parent=11 // pred_fallthru
          _
      $region12: #{tpu_custom_call.1} parent=5 // pred_fallthru
        _
      %p149 = scmp.lt.s32.totalorder %s16, 2
      // Predicated region
      $region21: #{tpu_custom_call.1} parent=5 // pred_check
        %p150 = pneg %p149
      $region22: #{tpu_custom_call.1} parent=5 // pred_check_branch
        %152 = sbr.rel (%p150) target = $region24
      $region23: #{tpu_custom_call.1} parent=5 // pred_region
        // Predicated region
        $region25: #{tpu_custom_call.1} parent=23 // pred_check
          %p153 = pneg %p36
        $region26: #{tpu_custom_call.1} parent=23 // pred_check_branch
          %155 = sbr.rel (%p153) target = $region28
        $region27: #{tpu_custom_call.1} parent=23 // pred_region
          %s156 = sand.u32 %s26, 1
          %s157 = scalar_lea.sflag [#allocation3], %s156
          %s158 = sand.u32 %s26, 1
          %s159 = smul.addr %s158, 128
          %s160 = scalar_lea.vmem [#allocation2], %s159
          %s161 = smul.u32 16, %s16
          %s163 = ssub.s32 2048, 2048
          %164 = vsyncadd %s157, %s163
          %s165 = smul.addr %s161, 128
          %s166 = scalar_lea.hbm %s0, %s165
          %s167 = sshll.u32 %s160, 4
          %s168 = int_to_ptr.vmem [resolvable:$true] %s167
          %173 = dma.hbm_to_vmem [thread:$0]  %s166, 2048, %s168, %s157, 128, 128, 8
        $region28: #{tpu_custom_call.1} parent=23 // pred_fallthru
          _
      $region24: #{tpu_custom_call.1} parent=5 // pred_fallthru
        _
      %p174 = scmp.le.s32.totalorder 1, %s16
      %p175 = scmp.lt.s32.totalorder %s16, 3
      %p176 = pnand %p174, %p175
      %p177 = pneg %p176
      // Predicated region
      $region29: #{tpu_custom_call.1} parent=5 // pred_check
        _
      $region30: #{tpu_custom_call.1} parent=5 // pred_check_branch
        %179 = sbr.rel (%p176) target = $region32
      $region31: #{tpu_custom_call.1} parent=5 // pred_region
        %s180 = ssub.s32 %s16, 1
        %s181 = sand.u32 %s29, 1
        %s182 = scalar_lea.sflag [#allocation3], %s181
        %s183 = sand.u32 %s29, 1
        %s184 = smul.addr %s183, 128
        %s185 = scalar_lea.vmem [#allocation2], %s184
        // Predicated region
        $region33: #{tpu_custom_call.1} parent=31 // pred_check
          %p186 = pneg %p42
        $region34: #{tpu_custom_call.1} parent=31 // pred_check_branch
          %188 = sbr.rel (%p186) target = $region36
        $region35: #{tpu_custom_call.1} parent=31 // pred_region
          %189 = dma.done %s182, 2048
        $region36: #{tpu_custom_call.1} parent=31 // pred_fallthru
          _
        // Predicated region
        $region37: #{tpu_custom_call.1} parent=31 // pred_check
          %p190 = pneg %p63
        $region38: #{tpu_custom_call.1} parent=31 // pred_check_branch
          %192 = sbr.rel (%p190) target = $region40
        $region39: #{tpu_custom_call.1} parent=31 // pred_region
          %193 = dma.done [#allocation6], 251904
        $region40: #{tpu_custom_call.1} parent=31 // pred_fallthru
          _
        // Predicated region
        $region41: #{tpu_custom_call.1} parent=31 // pred_check
          %p194 = pneg %p84
        $region42: #{tpu_custom_call.1} parent=31 // pred_check_branch
          %196 = sbr.rel (%p194) target = $region44
        $region43: #{tpu_custom_call.1} parent=31 // pred_region
          %197 = dma.done [#allocation6], 1008
        $region44: #{tpu_custom_call.1} parent=31 // pred_fallthru
          _
        %s198 = sand.u32 %s29, 1
        %s199 = scalar_lea.sflag [#allocation3], %s198
        %s200 = sand.u32 %s29, 1
        %s201 = smul.addr %s200, 128
        %s202 = scalar_lea.vmem [#allocation2], %s201
        %p203 = pneg %p42
        %p204 = pneg %p39
        %p205 = pneg %p63
        %p206 = pneg %p60
        %p207 = pneg %p84
        %p208 = pneg %p81
        %p209 = pneg %p110
        %p210 = pneg %p107
        %s211 = sand.u32 %s97, 1
        %s212 = scalar_lea.sflag [#allocation4], %s211
        %s213 = sand.u32 %s97, 1
        %s214 = smul.addr %s213, 128
        %s215 = scalar_lea.vmem [#allocation8], %s214
        %s216 = smul.u32 16, %s21
        %s217 = smul.u32 16, %s21
        %v218 = vld [vmem:[%s185] sm:$0xff]
        %v219 = vld [vmem:[%s185 + $0x8] sm:$0xff]
        %v220 = vld [vmem:[%s185 + $0x10] sm:$0xff]
        %v221 = vld [vmem:[%s185 + $0x18] sm:$0xff]
        %v222 = vld [vmem:[%s185 + $0x20] sm:$0xff]
        %v223 = vld [vmem:[%s185 + $0x28] sm:$0xff]
        %v224 = vld [vmem:[%s185 + $0x30] sm:$0xff]
        %v225 = vld [vmem:[%s185 + $0x38] sm:$0xff]
        %v226 = vld [vmem:[%s185 + $0x40] sm:$0xff]
        %v227 = vld [vmem:[%s185 + $0x48] sm:$0xff]
        %v228 = vld [vmem:[%s185 + $0x50] sm:$0xff]
        %v229 = vld [vmem:[%s185 + $0x58] sm:$0xff]
        %v230 = vld [vmem:[%s185 + $0x60] sm:$0xff]
        %v231 = vld [vmem:[%s185 + $0x68] sm:$0xff]
        %v232 = vld [vmem:[%s185 + $0x70] sm:$0xff]
        %v233 = vld [vmem:[%s185 + $0x78] sm:$0xff]
        %v234 = vld [vmem:[#allocation5] sm:$0xff]
        %v235 = vld [vmem:[#allocation5 + $0x18] sm:$0xff]
        %v236 = vld [vmem:[#allocation5 + $0x30] sm:$0xff]
        %v237 = vld [vmem:[#allocation5 + $0x48] sm:$0xff]
        %v238 = vld [vmem:[#allocation5 + $0x60] sm:$0xff]
        %v239 = vld [vmem:[#allocation5 + $0x78] sm:$0xff]
        %v240 = vld [vmem:[#allocation5 + $0x90] sm:$0xff]
        %v241 = vld [vmem:[#allocation5 + $0xa8] sm:$0xff]
        %v242 = vld [vmem:[#allocation5 + $0xc0] sm:$0xff]
        %v243 = vld [vmem:[#allocation5 + $0xd8] sm:$0xff]
        %v244 = vld [vmem:[#allocation5 + $0xf0] sm:$0xff]
        %v245 = vld [vmem:[#allocation5 + $0x108] sm:$0xff]
        %v246 = vld [vmem:[#allocation5 + $0x120] sm:$0xff]
        %v247 = vld [vmem:[#allocation5 + $0x138] sm:$0xff]
        %v248 = vld [vmem:[#allocation5 + $0x150] sm:$0xff]
        %v249 = vld [vmem:[#allocation5 + $0x168] sm:$0xff]
        %v250 = vld [vmem:[#allocation7] sm:$0x1]
        %v252 = vlaneseq
        %v253 = vshrl.u32 %v252, 7
        %v254 = vsub.s32 0, %v253
        %v255 = vrot.slane %v250, %v254
        %257 = vmatprep.subr.mxu0 0.0
        %258 = vmatpush1.msra.mxu0 %v249
        %259 = vmatprep.subr.mxu0 0.0
        %260 = vmatpush1.msra.mxu0 %v248
        %261 = vmatprep.subr.mxu0 0.0
        %262 = vmatpush1.msra.mxu0 %v247
        %263 = vmatprep.subr.mxu0 0.0
        %264 = vmatpush1.msra.mxu0 %v246
        %265 = vmatprep.subr.mxu0 0.0
        %266 = vmatpush1.msra.mxu0 %v245
        %267 = vmatprep.subr.mxu0 0.0
        %268 = vmatpush1.msra.mxu0 %v244
        %269 = vmatprep.subr.mxu0 0.0
        %270 = vmatpush1.msra.mxu0 %v243
        %271 = vmatprep.subr.mxu0 0.0
        %272 = vmatpush1.msra.mxu0 %v242
        %273 = vmatprep.subr.mxu0 0.0
        %274 = vmatpush1.msra.mxu0 %v241
        %275 = vmatprep.subr.mxu0 0.0
        %276 = vmatpush1.msra.mxu0 %v240
        %277 = vmatprep.subr.mxu0 0.0
        %278 = vmatpush1.msra.mxu0 %v239
        %279 = vmatprep.subr.mxu0 0.0
        %280 = vmatpush1.msra.mxu0 %v238
        %281 = vmatprep.subr.mxu0 0.0
        %282 = vmatpush1.msra.mxu0 %v237
        %283 = vmatprep.subr.mxu0 0.0
        %284 = vmatpush1.msra.mxu0 %v236
        %285 = vmatprep.subr.mxu0 0.0
        %286 = vmatpush1.msra.mxu0 %v235
        %287 = vmatprep.subr.mxu0 0.0
        %288 = vmatpush1.msra.mxu0 %v234
        %289 = vmatprep.subr.mxu0 0.0
        %290 = vmatpush2.msra.mxu0 0.0
        %291 = vmatprep.subr.mxu0 0.0
        %292 = vmatpush2.msra.mxu0 0.0
        %293 = vmatprep.subr.mxu0 0.0
        %294 = vmatpush2.msra.mxu0 0.0
        %295 = vmatprep.subr.mxu0 0.0
        %296 = vmatpush2.msra.mxu0 0.0
        %297 = vmatprep.subr.mxu0 0.0
        %298 = vmatpush2.msra.mxu0 0.0
        %299 = vmatprep.subr.mxu0 0.0
        %300 = vmatpush2.msra.mxu0 0.0
        %301 = vmatprep.subr.mxu0 0.0
        %302 = vmatpush2.msra.mxu0 0.0
        %303 = vmatprep.subr.mxu0 0.0
        %304 = vmatpush2.msra.mxu0 0.0
        %305 = vmatprep.subr.mxu0 0.0
        %306 = vmatpush2.msra.mxu0 0.0
        %307 = vmatprep.subr.mxu0 0.0
        %308 = vmatpush2.msra.mxu0 0.0
        %309 = vmatprep.subr.mxu0 0.0
        %310 = vmatpush2.msra.mxu0 0.0
        %311 = vmatprep.subr.mxu0 0.0
        %312 = vmatpush2.msra.mxu0 0.0
        %313 = vmatprep.subr.mxu0 0.0
        %314 = vmatpush2.msra.mxu0 0.0
        %315 = vmatprep.subr.mxu0 0.0
        %316 = vmatpush2.msra.mxu0 0.0
        %317 = vmatprep.subr.mxu0 0.0
        %318 = vmatpush2.msra.mxu0 0.0
        %319 = vmatprep.subr.mxu0 0.0
        %320 = vmatpush2.msra.mxu0 0.0
        %321 = vmatprep.mubr.f32.mxu0 0.0
        %322 = vmatmul.mubr.f32.gmra.mxu0 %v218
        %v323 = vpop.f32.mrf.mxu0
        %v324 = vadd.f32 %v255, %v323
        %v325 = vpop.f32.mrf.mxu0
        %326 = vmatprep.mubr.f32.mxu0 0.0
        %327 = vmatmul.mubr.f32.gmra.mxu0 %v219
        %v328 = vpop.f32.mrf.mxu0
        %v329 = vadd.f32 %v255, %v328
        %v330 = vpop.f32.mrf.mxu0
        %331 = vmatprep.mubr.f32.mxu0 0.0
        %332 = vmatmul.mubr.f32.gmra.mxu0 %v220
        %v333 = vpop.f32.mrf.mxu0
        %v334 = vadd.f32 %v255, %v333
        %v335 = vpop.f32.mrf.mxu0
        %336 = vmatprep.mubr.f32.mxu0 0.0
        %337 = vmatmul.mubr.f32.gmra.mxu0 %v221
        %v338 = vpop.f32.mrf.mxu0
        %v339 = vadd.f32 %v255, %v338
        %v340 = vpop.f32.mrf.mxu0
        %341 = vmatprep.mubr.f32.mxu0 0.0
        %342 = vmatmul.mubr.f32.gmra.mxu0 %v222
        %v343 = vpop.f32.mrf.mxu0
        %v344 = vadd.f32 %v255, %v343
        %v345 = vpop.f32.mrf.mxu0
        %346 = vmatprep.mubr.f32.mxu0 0.0
        %347 = vmatmul.mubr.f32.gmra.mxu0 %v223
        %v348 = vpop.f32.mrf.mxu0
        %v349 = vadd.f32 %v255, %v348
        %v350 = vpop.f32.mrf.mxu0
        %351 = vmatprep.mubr.f32.mxu0 0.0
        %352 = vmatmul.mubr.f32.gmra.mxu0 %v224
        %v353 = vpop.f32.mrf.mxu0
        %v354 = vadd.f32 %v255, %v353
        %v355 = vpop.f32.mrf.mxu0
        %356 = vmatprep.mubr.f32.mxu0 0.0
        %357 = vmatmul.mubr.f32.gmra.mxu0 %v225
        %v358 = vpop.f32.mrf.mxu0
        %v359 = vadd.f32 %v255, %v358
        %v360 = vpop.f32.mrf.mxu0
        %361 = vmatprep.mubr.f32.mxu0 0.0
        %362 = vmatmul.mubr.f32.gmra.mxu0 %v226
        %v363 = vpop.f32.mrf.mxu0
        %v364 = vadd.f32 %v255, %v363
        %v365 = vpop.f32.mrf.mxu0
        %366 = vmatprep.mubr.f32.mxu0 0.0
        %367 = vmatmul.mubr.f32.gmra.mxu0 %v227
        %v368 = vpop.f32.mrf.mxu0
        %v369 = vadd.f32 %v255, %v368
        %v370 = vpop.f32.mrf.mxu0
        %371 = vmatprep.mubr.f32.mxu0 0.0
        %372 = vmatmul.mubr.f32.gmra.mxu0 %v228
        %v373 = vpop.f32.mrf.mxu0
        %v374 = vadd.f32 %v255, %v373
        %v375 = vpop.f32.mrf.mxu0
        %376 = vmatprep.mubr.f32.mxu0 0.0
        %377 = vmatmul.mubr.f32.gmra.mxu0 %v229
        %v378 = vpop.f32.mrf.mxu0
        %v379 = vadd.f32 %v255, %v378
        %v380 = vpop.f32.mrf.mxu0
        %381 = vmatprep.mubr.f32.mxu0 0.0
        %382 = vmatmul.mubr.f32.gmra.mxu0 %v230
        %v383 = vpop.f32.mrf.mxu0
        %v384 = vadd.f32 %v255, %v383
        %v385 = vpop.f32.mrf.mxu0
        %386 = vmatprep.mubr.f32.mxu0 0.0
        %387 = vmatmul.mubr.f32.gmra.mxu0 %v231
        %v388 = vpop.f32.mrf.mxu0
        %v389 = vadd.f32 %v255, %v388
        %v390 = vpop.f32.mrf.mxu0
        %391 = vmatprep.mubr.f32.mxu0 0.0
        %392 = vmatmul.mubr.f32.gmra.mxu0 %v232
        %v393 = vpop.f32.mrf.mxu0
        %v394 = vadd.f32 %v255, %v393
        %v395 = vpop.f32.mrf.mxu0
        %396 = vmatprep.mubr.f32.mxu0 0.0
        %397 = vmatmul.mubr.f32.gmra.mxu0 %v233
        %v398 = vpop.f32.mrf.mxu0
        %v399 = vadd.f32 %v255, %v398
        %v400 = vpop.f32.mrf.mxu0
        %401 = vdwg.mxu0
        %v402 = vmax.f32 %v324, 0.0
        %v403 = vmax.f32 %v329, 0.0
        %v404 = vmax.f32 %v334, 0.0
        %v405 = vmax.f32 %v339, 0.0
        %v406 = vmax.f32 %v344, 0.0
        %v407 = vmax.f32 %v349, 0.0
        %v408 = vmax.f32 %v354, 0.0
        %v409 = vmax.f32 %v359, 0.0
        %v410 = vmax.f32 %v364, 0.0
        %v411 = vmax.f32 %v369, 0.0
        %v412 = vmax.f32 %v374, 0.0
        %v413 = vmax.f32 %v379, 0.0
        %v414 = vmax.f32 %v384, 0.0
        %v415 = vmax.f32 %v389, 0.0
        %v416 = vmax.f32 %v394, 0.0
        %v417 = vmax.f32 %v399, 0.0
        %v418 = vld [vmem:[#allocation5 + $0x180] sm:$0xff]
        %v419 = vld [vmem:[#allocation5 + $0x198] sm:$0xff]
        %v420 = vld [vmem:[#allocation5 + $0x1b0] sm:$0xff]
        %v421 = vld [vmem:[#allocation5 + $0x1c8] sm:$0xff]
        %v422 = vld [vmem:[#allocation5 + $0x1e0] sm:$0xff]
        %v423 = vld [vmem:[#allocation5 + $0x1f8] sm:$0xff]
        %v424 = vld [vmem:[#allocation5 + $0x210] sm:$0xff]
        %v425 = vld [vmem:[#allocation5 + $0x228] sm:$0xff]
        %v426 = vld [vmem:[#allocation5 + $0x240] sm:$0xff]
        %v427 = vld [vmem:[#allocation5 + $0x258] sm:$0xff]
        %v428 = vld [vmem:[#allocation5 + $0x270] sm:$0xff]
        %v429 = vld [vmem:[#allocation5 + $0x288] sm:$0xff]
        %v430 = vld [vmem:[#allocation5 + $0x2a0] sm:$0xff]
        %v431 = vld [vmem:[#allocation5 + $0x2b8] sm:$0xff]
        %v432 = vld [vmem:[#allocation5 + $0x2d0] sm:$0xff]
        %v433 = vld [vmem:[#allocation5 + $0x2e8] sm:$0xff]
        %v434 = vld [vmem:[#allocation7 + $0x3] sm:$0x1]
        %v436 = vlaneseq
        %v437 = vshrl.u32 %v436, 7
        %v438 = vsub.s32 0, %v437
        %v439 = vrot.slane %v434, %v438
        %441 = vmatprep.subr.mxu0 0.0
        %442 = vmatpush1.msra.mxu0 %v433
        %443 = vmatprep.subr.mxu0 0.0
        %444 = vmatpush1.msra.mxu0 %v432
        %445 = vmatprep.subr.mxu0 0.0
        %446 = vmatpush1.msra.mxu0 %v431
        %447 = vmatprep.subr.mxu0 0.0
        %448 = vmatpush1.msra.mxu0 %v430
        %449 = vmatprep.subr.mxu0 0.0
        %450 = vmatpush1.msra.mxu0 %v429
        %451 = vmatprep.subr.mxu0 0.0
        %452 = vmatpush1.msra.mxu0 %v428
        %453 = vmatprep.subr.mxu0 0.0
        %454 = vmatpush1.msra.mxu0 %v427
        %455 = vmatprep.subr.mxu0 0.0
        %456 = vmatpush1.msra.mxu0 %v426
        %457 = vmatprep.subr.mxu0 0.0
        %458 = vmatpush1.msra.mxu0 %v425
        %459 = vmatprep.subr.mxu0 0.0
        %460 = vmatpush1.msra.mxu0 %v424
        %461 = vmatprep.subr.mxu0 0.0
        %462 = vmatpush1.msra.mxu0 %v423
        %463 = vmatprep.subr.mxu0 0.0
        %464 = vmatpush1.msra.mxu0 %v422
        %465 = vmatprep.subr.mxu0 0.0
        %466 = vmatpush1.msra.mxu0 %v421
        %467 = vmatprep.subr.mxu0 0.0
        %468 = vmatpush1.msra.mxu0 %v420
        %469 = vmatprep.subr.mxu0 0.0
        %470 = vmatpush1.msra.mxu0 %v419
        %471 = vmatprep.subr.mxu0 0.0
        %472 = vmatpush1.msra.mxu0 %v418
        %473 = vmatprep.subr.mxu0 0.0
        %474 = vmatpush2.msra.mxu0 0.0
        %475 = vmatprep.subr.mxu0 0.0
        %476 = vmatpush2.msra.mxu0 0.0
        %477 = vmatprep.subr.mxu0 0.0
        %478 = vmatpush2.msra.mxu0 0.0
        %479 = vmatprep.subr.mxu0 0.0
        %480 = vmatpush2.msra.mxu0 0.0
        %481 = vmatprep.subr.mxu0 0.0
        %482 = vmatpush2.msra.mxu0 0.0
        %483 = vmatprep.subr.mxu0 0.0
        %484 = vmatpush2.msra.mxu0 0.0
        %485 = vmatprep.subr.mxu0 0.0
        %486 = vmatpush2.msra.mxu0 0.0
        %487 = vmatprep.subr.mxu0 0.0
        %488 = vmatpush2.msra.mxu0 0.0
        %489 = vmatprep.subr.mxu0 0.0
        %490 = vmatpush2.msra.mxu0 0.0
        %491 = vmatprep.subr.mxu0 0.0
        %492 = vmatpush2.msra.mxu0 0.0
        %493 = vmatprep.subr.mxu0 0.0
        %494 = vmatpush2.msra.mxu0 0.0
        %495 = vmatprep.subr.mxu0 0.0
        %496 = vmatpush2.msra.mxu0 0.0
        %497 = vmatprep.subr.mxu0 0.0
        %498 = vmatpush2.msra.mxu0 0.0
        %499 = vmatprep.subr.mxu0 0.0
        %500 = vmatpush2.msra.mxu0 0.0
        %501 = vmatprep.subr.mxu0 0.0
        %502 = vmatpush2.msra.mxu0 0.0
        %503 = vmatprep.subr.mxu0 0.0
        %504 = vmatpush2.msra.mxu0 0.0
        %505 = vmatprep.mubr.f32.mxu0 0.0
        %506 = vmatmul.mubr.f32.gmra.mxu0 %v402
        %v507 = vpop.f32.mrf.mxu0
        %v508 = vadd.f32 %v439, %v507
        %v509 = vpop.f32.mrf.mxu0
        %510 = vmatprep.mubr.f32.mxu0 0.0
        %511 = vmatmul.mubr.f32.gmra.mxu0 %v403
        %v512 = vpop.f32.mrf.mxu0
        %v513 = vadd.f32 %v439, %v512
        %v514 = vpop.f32.mrf.mxu0
        %515 = vmatprep.mubr.f32.mxu0 0.0
        %516 = vmatmul.mubr.f32.gmra.mxu0 %v404
        %v517 = vpop.f32.mrf.mxu0
        %v518 = vadd.f32 %v439, %v517
        %v519 = vpop.f32.mrf.mxu0
        %520 = vmatprep.mubr.f32.mxu0 0.0
        %521 = vmatmul.mubr.f32.gmra.mxu0 %v405
        %v522 = vpop.f32.mrf.mxu0
        %v523 = vadd.f32 %v439, %v522
        %v524 = vpop.f32.mrf.mxu0
        %525 = vmatprep.mubr.f32.mxu0 0.0
        %526 = vmatmul.mubr.f32.gmra.mxu0 %v406
        %v527 = vpop.f32.mrf.mxu0
        %v528 = vadd.f32 %v439, %v527
        %v529 = vpop.f32.mrf.mxu0
        %530 = vmatprep.mubr.f32.mxu0 0.0
        %531 = vmatmul.mubr.f32.gmra.mxu0 %v407
        %v532 = vpop.f32.mrf.mxu0
        %v533 = vadd.f32 %v439, %v532
        %v534 = vpop.f32.mrf.mxu0
        %535 = vmatprep.mubr.f32.mxu0 0.0
        %536 = vmatmul.mubr.f32.gmra.mxu0 %v408
        %v537 = vpop.f32.mrf.mxu0
        %v538 = vadd.f32 %v439, %v537
        %v539 = vpop.f32.mrf.mxu0
        %540 = vmatprep.mubr.f32.mxu0 0.0
        %541 = vmatmul.mubr.f32.gmra.mxu0 %v409
        %v542 = vpop.f32.mrf.mxu0
        %v543 = vadd.f32 %v439, %v542
        %v544 = vpop.f32.mrf.mxu0
        %545 = vmatprep.mubr.f32.mxu0 0.0
        %546 = vmatmul.mubr.f32.gmra.mxu0 %v410
        %v547 = vpop.f32.mrf.mxu0
        %v548 = vadd.f32 %v439, %v547
        %v549 = vpop.f32.mrf.mxu0
        %550 = vmatprep.mubr.f32.mxu0 0.0
        %551 = vmatmul.mubr.f32.gmra.mxu0 %v411
        %v552 = vpop.f32.mrf.mxu0
        %v553 = vadd.f32 %v439, %v552
        %v554 = vpop.f32.mrf.mxu0
        %555 = vmatprep.mubr.f32.mxu0 0.0
        %556 = vmatmul.mubr.f32.gmra.mxu0 %v412
        %v557 = vpop.f32.mrf.mxu0
        %v558 = vadd.f32 %v439, %v557
        %v559 = vpop.f32.mrf.mxu0
        %560 = vmatprep.mubr.f32.mxu0 0.0
        %561 = vmatmul.mubr.f32.gmra.mxu0 %v413
        %v562 = vpop.f32.mrf.mxu0
        %v563 = vadd.f32 %v439, %v562
        %v564 = vpop.f32.mrf.mxu0
        %565 = vmatprep.mubr.f32.mxu0 0.0
        %566 = vmatmul.mubr.f32.gmra.mxu0 %v414
        %v567 = vpop.f32.mrf.mxu0
        %v568 = vadd.f32 %v439, %v567
        %v569 = vpop.f32.mrf.mxu0
        %570 = vmatprep.mubr.f32.mxu0 0.0
        %571 = vmatmul.mubr.f32.gmra.mxu0 %v415
        %v572 = vpop.f32.mrf.mxu0
        %v573 = vadd.f32 %v439, %v572
        %v574 = vpop.f32.mrf.mxu0
        %575 = vmatprep.mubr.f32.mxu0 0.0
        %576 = vmatmul.mubr.f32.gmra.mxu0 %v416
        %v577 = vpop.f32.mrf.mxu0
        %v578 = vadd.f32 %v439, %v577
        %v579 = vpop.f32.mrf.mxu0
        %580 = vmatprep.mubr.f32.mxu0 0.0
        %581 = vmatmul.mubr.f32.gmra.mxu0 %v417
        %v582 = vpop.f32.mrf.mxu0
        %v583 = vadd.f32 %v439, %v582
        %v584 = vpop.f32.mrf.mxu0
        %585 = vdwg.mxu0
        %v586 = vmax.f32 %v508, 0.0
        %v587 = vmax.f32 %v513, 0.0
        %v588 = vmax.f32 %v518, 0.0
        %v589 = vmax.f32 %v523, 0.0
        %v590 = vmax.f32 %v528, 0.0
        %v591 = vmax.f32 %v533, 0.0
        %v592 = vmax.f32 %v538, 0.0
        %v593 = vmax.f32 %v543, 0.0
        %v594 = vmax.f32 %v548, 0.0
        %v595 = vmax.f32 %v553, 0.0
        %v596 = vmax.f32 %v558, 0.0
        %v597 = vmax.f32 %v563, 0.0
        %v598 = vmax.f32 %v568, 0.0
        %v599 = vmax.f32 %v573, 0.0
        %v600 = vmax.f32 %v578, 0.0
        %v601 = vmax.f32 %v583, 0.0
        %v602 = vld [vmem:[#allocation5 + $0x300] sm:$0xff]
        %v603 = vld [vmem:[#allocation5 + $0x308] sm:$0xff]
        %v604 = vld [vmem:[#allocation5 + $0x310] sm:$0xff]
        %v605 = vld [vmem:[#allocation5 + $0x318] sm:$0xff]
        %v606 = vld [vmem:[#allocation5 + $0x320] sm:$0xff]
        %v607 = vld [vmem:[#allocation5 + $0x328] sm:$0xff]
        %v608 = vld [vmem:[#allocation5 + $0x330] sm:$0xff]
        %v609 = vld [vmem:[#allocation5 + $0x338] sm:$0xff]
        %v610 = vld [vmem:[#allocation5 + $0x340] sm:$0xff]
        %v611 = vld [vmem:[#allocation5 + $0x348] sm:$0xff]
        %v612 = vld [vmem:[#allocation5 + $0x350] sm:$0xff]
        %v613 = vld [vmem:[#allocation5 + $0x358] sm:$0xff]
        %v614 = vld [vmem:[#allocation5 + $0x360] sm:$0xff]
        %v615 = vld [vmem:[#allocation5 + $0x368] sm:$0xff]
        %v616 = vld [vmem:[#allocation5 + $0x370] sm:$0xff]
        %v617 = vld [vmem:[#allocation5 + $0x378] sm:$0xff]
        %v618 = vld [vmem:[#allocation5 + $0x380] sm:$0xff]
        %v619 = vld [vmem:[#allocation5 + $0x388] sm:$0xff]
        %v620 = vld [vmem:[#allocation5 + $0x390] sm:$0xff]
        %v621 = vld [vmem:[#allocation5 + $0x398] sm:$0xff]
        %v622 = vld [vmem:[#allocation5 + $0x3a0] sm:$0xff]
        %v623 = vld [vmem:[#allocation5 + $0x3a8] sm:$0xff]
        %v624 = vld [vmem:[#allocation5 + $0x3b0] sm:$0xff]
        %v625 = vld [vmem:[#allocation5 + $0x3b8] sm:$0xff]
        %v626 = vld [vmem:[#allocation5 + $0x3c0] sm:$0xff]
        %v627 = vld [vmem:[#allocation5 + $0x3c8] sm:$0xff]
        %v628 = vld [vmem:[#allocation5 + $0x3d0] sm:$0xff]
        %v629 = vld [vmem:[#allocation5 + $0x3d8] sm:$0xff]
        %v630 = vld [vmem:[#allocation5 + $0x3e0] sm:$0xff]
        %v631 = vld [vmem:[#allocation5 + $0x3e8] sm:$0xff]
        %v632 = vld [vmem:[#allocation5 + $0x3f0] sm:$0xff]
        %v633 = vld [vmem:[#allocation5 + $0x3f8] sm:$0xff]
        %v634 = vld [vmem:[#allocation5 + $0x400] sm:$0xff]
        %v635 = vld [vmem:[#allocation5 + $0x408] sm:$0xff]
        %v636 = vld [vmem:[#allocation5 + $0x410] sm:$0xff]
        %v637 = vld [vmem:[#allocation5 + $0x418] sm:$0xff]
        %v638 = vld [vmem:[#allocation5 + $0x420] sm:$0xff]
        %v639 = vld [vmem:[#allocation5 + $0x428] sm:$0xff]
        %v640 = vld [vmem:[#allocation5 + $0x430] sm:$0xff]
        %v641 = vld [vmem:[#allocation5 + $0x438] sm:$0xff]
        %v642 = vld [vmem:[#allocation5 + $0x440] sm:$0xff]
        %v643 = vld [vmem:[#allocation5 + $0x448] sm:$0xff]
        %v644 = vld [vmem:[#allocation5 + $0x450] sm:$0xff]
        %v645 = vld [vmem:[#allocation5 + $0x458] sm:$0xff]
        %v646 = vld [vmem:[#allocation5 + $0x460] sm:$0xff]
        %v647 = vld [vmem:[#allocation5 + $0x468] sm:$0xff]
        %v648 = vld [vmem:[#allocation5 + $0x470] sm:$0xff]
        %v649 = vld [vmem:[#allocation5 + $0x478] sm:$0xff]
        %v650 = vld [vmem:[#allocation7 + $0x6] sm:$0x7]
        %v652 = vlaneseq
        %v653 = vshrl.u32 %v652, 7
        %v654 = vsub.s32 0, %v653
        %v655 = vrot.slane %v650, %v654
        %v656 = vlaneseq
        %v657 = vshrl.u32 %v656, 7
        %v658 = vsub.s32 1, %v657
        %v659 = vrot.slane %v650, %v658
        %v660 = vlaneseq
        %v661 = vshrl.u32 %v660, 7
        %v662 = vsub.s32 2, %v661
        %v663 = vrot.slane %v650, %v662
        %667 = vmatprep.subr.mxu0 %v648
        %668 = vmatpush1.msra.mxu0 %v647
        %669 = vmatprep.subr.mxu0 %v645
        %670 = vmatpush1.msra.mxu0 %v644
        %671 = vmatprep.subr.mxu0 %v642
        %672 = vmatpush1.msra.mxu0 %v641
        %673 = vmatprep.subr.mxu0 %v639
        %674 = vmatpush1.msra.mxu0 %v638
        %675 = vmatprep.subr.mxu0 %v636
        %676 = vmatpush1.msra.mxu0 %v635
        %677 = vmatprep.subr.mxu0 %v633
        %678 = vmatpush1.msra.mxu0 %v632
        %679 = vmatprep.subr.mxu0 %v630
        %680 = vmatpush1.msra.mxu0 %v629
        %681 = vmatprep.subr.mxu0 %v627
        %682 = vmatpush1.msra.mxu0 %v626
        %683 = vmatprep.subr.mxu0 %v624
        %684 = vmatpush1.msra.mxu0 %v623
        %685 = vmatprep.subr.mxu0 %v621
        %686 = vmatpush1.msra.mxu0 %v620
        %687 = vmatprep.subr.mxu0 %v618
        %688 = vmatpush1.msra.mxu0 %v617
        %689 = vmatprep.subr.mxu0 %v615
        %690 = vmatpush1.msra.mxu0 %v614
        %691 = vmatprep.subr.mxu0 %v612
        %692 = vmatpush1.msra.mxu0 %v611
        %693 = vmatprep.subr.mxu0 %v609
        %694 = vmatpush1.msra.mxu0 %v608
        %695 = vmatprep.subr.mxu0 %v606
        %696 = vmatpush1.msra.mxu0 %v605
        %697 = vmatprep.subr.mxu0 %v603
        %698 = vmatpush1.msra.mxu0 %v602
        %699 = vmatprep.subr.mxu0 0.0
        %700 = vmatpush2.msra.mxu0 0.0
        %701 = vmatprep.subr.mxu0 0.0
        %702 = vmatpush2.msra.mxu0 0.0
        %703 = vmatprep.subr.mxu0 0.0
        %704 = vmatpush2.msra.mxu0 0.0
        %705 = vmatprep.subr.mxu0 0.0
        %706 = vmatpush2.msra.mxu0 0.0
        %707 = vmatprep.subr.mxu0 0.0
        %708 = vmatpush2.msra.mxu0 0.0
        %709 = vmatprep.subr.mxu0 0.0
        %710 = vmatpush2.msra.mxu0 0.0
        %711 = vmatprep.subr.mxu0 0.0
        %712 = vmatpush2.msra.mxu0 0.0
        %713 = vmatprep.subr.mxu0 0.0
        %714 = vmatpush2.msra.mxu0 0.0
        %715 = vmatprep.subr.mxu0 0.0
        %716 = vmatpush2.msra.mxu0 0.0
        %717 = vmatprep.subr.mxu0 0.0
        %718 = vmatpush2.msra.mxu0 0.0
        %719 = vmatprep.subr.mxu0 0.0
        %720 = vmatpush2.msra.mxu0 0.0
        %721 = vmatprep.subr.mxu0 0.0
        %722 = vmatpush2.msra.mxu0 0.0
        %723 = vmatprep.subr.mxu0 0.0
        %724 = vmatpush2.msra.mxu0 0.0
        %725 = vmatprep.subr.mxu0 0.0
        %726 = vmatpush2.msra.mxu0 0.0
        %727 = vmatprep.subr.mxu0 0.0
        %728 = vmatpush2.msra.mxu0 0.0
        %729 = vmatprep.subr.mxu0 0.0
        %730 = vmatpush2.msra.mxu0 0.0
        %731 = vmatprep.mubr.f32.mxu0 0.0
        %732 = vmatmul.mubr.f32.gmra.mxu0 %v586
        %v733 = vpop.f32.mrf.mxu0
        %v734 = vadd.f32 %v655, %v733
        %v735 = vpop.f32.mrf.mxu0
        %v736 = vadd.f32 %v659, %v735
        %737 = vmatprep.mubr.f32.mxu0 0.0
        %738 = vmatmul.mubr.f32.gmra.mxu0 %v587
        %v739 = vpop.f32.mrf.mxu0
        %v740 = vadd.f32 %v655, %v739
        %v741 = vpop.f32.mrf.mxu0
        %v742 = vadd.f32 %v659, %v741
        %743 = vmatprep.mubr.f32.mxu0 0.0
        %744 = vmatmul.mubr.f32.gmra.mxu0 %v588
        %v745 = vpop.f32.mrf.mxu0
        %v746 = vadd.f32 %v655, %v745
        %v747 = vpop.f32.mrf.mxu0
        %v748 = vadd.f32 %v659, %v747
        %749 = vmatprep.mubr.f32.mxu0 0.0
        %750 = vmatmul.mubr.f32.gmra.mxu0 %v589
        %v751 = vpop.f32.mrf.mxu0
        %v752 = vadd.f32 %v655, %v751
        %v753 = vpop.f32.mrf.mxu0
        %v754 = vadd.f32 %v659, %v753
        %755 = vmatprep.mubr.f32.mxu0 0.0
        %756 = vmatmul.mubr.f32.gmra.mxu0 %v590
        %v757 = vpop.f32.mrf.mxu0
        %v758 = vadd.f32 %v655, %v757
        %v759 = vpop.f32.mrf.mxu0
        %v760 = vadd.f32 %v659, %v759
        %761 = vmatprep.mubr.f32.mxu0 0.0
        %762 = vmatmul.mubr.f32.gmra.mxu0 %v591
        %v763 = vpop.f32.mrf.mxu0
        %v764 = vadd.f32 %v655, %v763
        %v765 = vpop.f32.mrf.mxu0
        %v766 = vadd.f32 %v659, %v765
        %767 = vmatprep.mubr.f32.mxu0 0.0
        %768 = vmatmul.mubr.f32.gmra.mxu0 %v592
        %v769 = vpop.f32.mrf.mxu0
        %v770 = vadd.f32 %v655, %v769
        %v771 = vpop.f32.mrf.mxu0
        %v772 = vadd.f32 %v659, %v771
        %773 = vmatprep.mubr.f32.mxu0 0.0
        %774 = vmatmul.mubr.f32.gmra.mxu0 %v593
        %v775 = vpop.f32.mrf.mxu0
        %v776 = vadd.f32 %v655, %v775
        %v777 = vpop.f32.mrf.mxu0
        %v778 = vadd.f32 %v659, %v777
        %779 = vmatprep.mubr.f32.mxu0 0.0
        %780 = vmatmul.mubr.f32.gmra.mxu0 %v594
        %v781 = vpop.f32.mrf.mxu0
        %v782 = vadd.f32 %v655, %v781
        %v783 = vpop.f32.mrf.mxu0
        %v784 = vadd.f32 %v659, %v783
        %785 = vmatprep.mubr.f32.mxu0 0.0
        %786 = vmatmul.mubr.f32.gmra.mxu0 %v595
        %v787 = vpop.f32.mrf.mxu0
        %v788 = vadd.f32 %v655, %v787
        %v789 = vpop.f32.mrf.mxu0
        %v790 = vadd.f32 %v659, %v789
        %791 = vmatprep.mubr.f32.mxu0 0.0
        %792 = vmatmul.mubr.f32.gmra.mxu0 %v596
        %v793 = vpop.f32.mrf.mxu0
        %v794 = vadd.f32 %v655, %v793
        %v795 = vpop.f32.mrf.mxu0
        %v796 = vadd.f32 %v659, %v795
        %797 = vmatprep.mubr.f32.mxu0 0.0
        %798 = vmatmul.mubr.f32.gmra.mxu0 %v597
        %v799 = vpop.f32.mrf.mxu0
        %v800 = vadd.f32 %v655, %v799
        %v801 = vpop.f32.mrf.mxu0
        %v802 = vadd.f32 %v659, %v801
        %803 = vmatprep.mubr.f32.mxu0 0.0
        %804 = vmatmul.mubr.f32.gmra.mxu0 %v598
        %v805 = vpop.f32.mrf.mxu0
        %v806 = vadd.f32 %v655, %v805
        %v807 = vpop.f32.mrf.mxu0
        %v808 = vadd.f32 %v659, %v807
        %809 = vmatprep.mubr.f32.mxu0 0.0
        %810 = vmatmul.mubr.f32.gmra.mxu0 %v599
        %v811 = vpop.f32.mrf.mxu0
        %v812 = vadd.f32 %v655, %v811
        %v813 = vpop.f32.mrf.mxu0
        %v814 = vadd.f32 %v659, %v813
        %815 = vmatprep.mubr.f32.mxu0 0.0
        %816 = vmatmul.mubr.f32.gmra.mxu0 %v600
        %v817 = vpop.f32.mrf.mxu0
        %v818 = vadd.f32 %v655, %v817
        %v819 = vpop.f32.mrf.mxu0
        %v820 = vadd.f32 %v659, %v819
        %821 = vmatprep.mubr.f32.mxu0 0.0
        %822 = vmatmul.mubr.f32.gmra.mxu0 %v601
        %v823 = vpop.f32.mrf.mxu0
        %v824 = vadd.f32 %v655, %v823
        %v825 = vpop.f32.mrf.mxu0
        %v826 = vadd.f32 %v659, %v825
        %827 = vdwg.mxu0
        %828 = vmatprep.subr.mxu0 0.0
        %829 = vmatpush1.msra.mxu0 %v649
        %830 = vmatprep.subr.mxu0 0.0
        %831 = vmatpush1.msra.mxu0 %v646
        %832 = vmatprep.subr.mxu0 0.0
        %833 = vmatpush1.msra.mxu0 %v643
        %834 = vmatprep.subr.mxu0 0.0
        %835 = vmatpush1.msra.mxu0 %v640
        %836 = vmatprep.subr.mxu0 0.0
        %837 = vmatpush1.msra.mxu0 %v637
        %838 = vmatprep.subr.mxu0 0.0
        %839 = vmatpush1.msra.mxu0 %v634
        %840 = vmatprep.subr.mxu0 0.0
        %841 = vmatpush1.msra.mxu0 %v631
        %842 = vmatprep.subr.mxu0 0.0
        %843 = vmatpush1.msra.mxu0 %v628
        %844 = vmatprep.subr.mxu0 0.0
        %845 = vmatpush1.msra.mxu0 %v625
        %846 = vmatprep.subr.mxu0 0.0
        %847 = vmatpush1.msra.mxu0 %v622
        %848 = vmatprep.subr.mxu0 0.0
        %849 = vmatpush1.msra.mxu0 %v619
        %850 = vmatprep.subr.mxu0 0.0
        %851 = vmatpush1.msra.mxu0 %v616
        %852 = vmatprep.subr.mxu0 0.0
        %853 = vmatpush1.msra.mxu0 %v613
        %854 = vmatprep.subr.mxu0 0.0
        %855 = vmatpush1.msra.mxu0 %v610
        %856 = vmatprep.subr.mxu0 0.0
        %857 = vmatpush1.msra.mxu0 %v607
        %858 = vmatprep.subr.mxu0 0.0
        %859 = vmatpush1.msra.mxu0 %v604
        %860 = vmatprep.subr.mxu0 0.0
        %861 = vmatpush2.msra.mxu0 0.0
        %862 = vmatprep.subr.mxu0 0.0
        %863 = vmatpush2.msra.mxu0 0.0
        %864 = vmatprep.subr.mxu0 0.0
        %865 = vmatpush2.msra.mxu0 0.0
        %866 = vmatprep.subr.mxu0 0.0
        %867 = vmatpush2.msra.mxu0 0.0
        %868 = vmatprep.subr.mxu0 0.0
        %869 = vmatpush2.msra.mxu0 0.0
        %870 = vmatprep.subr.mxu0 0.0
        %871 = vmatpush2.msra.mxu0 0.0
        %872 = vmatprep.subr.mxu0 0.0
        %873 = vmatpush2.msra.mxu0 0.0
        %874 = vmatprep.subr.mxu0 0.0
        %875 = vmatpush2.msra.mxu0 0.0
        %876 = vmatprep.subr.mxu0 0.0
        %877 = vmatpush2.msra.mxu0 0.0
        %878 = vmatprep.subr.mxu0 0.0
        %879 = vmatpush2.msra.mxu0 0.0
        %880 = vmatprep.subr.mxu0 0.0
        %881 = vmatpush2.msra.mxu0 0.0
        %882 = vmatprep.subr.mxu0 0.0
        %883 = vmatpush2.msra.mxu0 0.0
        %884 = vmatprep.subr.mxu0 0.0
        %885 = vmatpush2.msra.mxu0 0.0
        %886 = vmatprep.subr.mxu0 0.0
        %887 = vmatpush2.msra.mxu0 0.0
        %888 = vmatprep.subr.mxu0 0.0
        %889 = vmatpush2.msra.mxu0 0.0
        %890 = vmatprep.subr.mxu0 0.0
        %891 = vmatpush2.msra.mxu0 0.0
        %892 = vmatprep.mubr.f32.mxu0 0.0
        %893 = vmatmul.mubr.f32.gmra.mxu0 %v586
        %v894 = vpop.f32.mrf.mxu0
        %v895 = vadd.f32 %v663, %v894
        %v896 = vpop.f32.mrf.mxu0
        %897 = vmatprep.mubr.f32.mxu0 0.0
        %898 = vmatmul.mubr.f32.gmra.mxu0 %v587
        %v899 = vpop.f32.mrf.mxu0
        %v900 = vadd.f32 %v663, %v899
        %v901 = vpop.f32.mrf.mxu0
        %902 = vmatprep.mubr.f32.mxu0 0.0
        %903 = vmatmul.mubr.f32.gmra.mxu0 %v588
        %v904 = vpop.f32.mrf.mxu0
        %v905 = vadd.f32 %v663, %v904
        %v906 = vpop.f32.mrf.mxu0
        %907 = vmatprep.mubr.f32.mxu0 0.0
        %908 = vmatmul.mubr.f32.gmra.mxu0 %v589
        %v909 = vpop.f32.mrf.mxu0
        %v910 = vadd.f32 %v663, %v909
        %v911 = vpop.f32.mrf.mxu0
        %912 = vmatprep.mubr.f32.mxu0 0.0
        %913 = vmatmul.mubr.f32.gmra.mxu0 %v590
        %v914 = vpop.f32.mrf.mxu0
        %v915 = vadd.f32 %v663, %v914
        %v916 = vpop.f32.mrf.mxu0
        %917 = vmatprep.mubr.f32.mxu0 0.0
        %918 = vmatmul.mubr.f32.gmra.mxu0 %v591
        %v919 = vpop.f32.mrf.mxu0
        %v920 = vadd.f32 %v663, %v919
        %v921 = vpop.f32.mrf.mxu0
        %922 = vmatprep.mubr.f32.mxu0 0.0
        %923 = vmatmul.mubr.f32.gmra.mxu0 %v592
        %v924 = vpop.f32.mrf.mxu0
        %v925 = vadd.f32 %v663, %v924
        %v926 = vpop.f32.mrf.mxu0
        %927 = vmatprep.mubr.f32.mxu0 0.0
        %928 = vmatmul.mubr.f32.gmra.mxu0 %v593
        %v929 = vpop.f32.mrf.mxu0
        %v930 = vadd.f32 %v663, %v929
        %v931 = vpop.f32.mrf.mxu0
        %932 = vmatprep.mubr.f32.mxu0 0.0
        %933 = vmatmul.mubr.f32.gmra.mxu0 %v594
        %v934 = vpop.f32.mrf.mxu0
        %v935 = vadd.f32 %v663, %v934
        %v936 = vpop.f32.mrf.mxu0
        %937 = vmatprep.mubr.f32.mxu0 0.0
        %938 = vmatmul.mubr.f32.gmra.mxu0 %v595
        %v939 = vpop.f32.mrf.mxu0
        %v940 = vadd.f32 %v663, %v939
        %v941 = vpop.f32.mrf.mxu0
        %942 = vmatprep.mubr.f32.mxu0 0.0
        %943 = vmatmul.mubr.f32.gmra.mxu0 %v596
        %v944 = vpop.f32.mrf.mxu0
        %v945 = vadd.f32 %v663, %v944
        %v946 = vpop.f32.mrf.mxu0
        %947 = vmatprep.mubr.f32.mxu0 0.0
        %948 = vmatmul.mubr.f32.gmra.mxu0 %v597
        %v949 = vpop.f32.mrf.mxu0
        %v950 = vadd.f32 %v663, %v949
        %v951 = vpop.f32.mrf.mxu0
        %952 = vmatprep.mubr.f32.mxu0 0.0
        %953 = vmatmul.mubr.f32.gmra.mxu0 %v598
        %v954 = vpop.f32.mrf.mxu0
        %v955 = vadd.f32 %v663, %v954
        %v956 = vpop.f32.mrf.mxu0
        %957 = vmatprep.mubr.f32.mxu0 0.0
        %958 = vmatmul.mubr.f32.gmra.mxu0 %v599
        %v959 = vpop.f32.mrf.mxu0
        %v960 = vadd.f32 %v663, %v959
        %v961 = vpop.f32.mrf.mxu0
        %962 = vmatprep.mubr.f32.mxu0 0.0
        %963 = vmatmul.mubr.f32.gmra.mxu0 %v600
        %v964 = vpop.f32.mrf.mxu0
        %v965 = vadd.f32 %v663, %v964
        %v966 = vpop.f32.mrf.mxu0
        %967 = vmatprep.mubr.f32.mxu0 0.0
        %968 = vmatmul.mubr.f32.gmra.mxu0 %v601
        %v969 = vpop.f32.mrf.mxu0
        %v970 = vadd.f32 %v663, %v969
        %v971 = vpop.f32.mrf.mxu0
        %972 = vdwg.mxu0
        %v973 = vmax.f32 %v734, 0.0
        %v974 = vmax.f32 %v736, 0.0
        %v975 = vmax.f32 %v895, 0.0
        %v976 = vmax.f32 %v740, 0.0
        %v977 = vmax.f32 %v742, 0.0
        %v978 = vmax.f32 %v900, 0.0
        %v979 = vmax.f32 %v746, 0.0
        %v980 = vmax.f32 %v748, 0.0
        %v981 = vmax.f32 %v905, 0.0
        %v982 = vmax.f32 %v752, 0.0
        %v983 = vmax.f32 %v754, 0.0
        %v984 = vmax.f32 %v910, 0.0
        %v985 = vmax.f32 %v758, 0.0
        %v986 = vmax.f32 %v760, 0.0
        %v987 = vmax.f32 %v915, 0.0
        %v988 = vmax.f32 %v764, 0.0
        %v989 = vmax.f32 %v766, 0.0
        %v990 = vmax.f32 %v920, 0.0
        %v991 = vmax.f32 %v770, 0.0
        %v992 = vmax.f32 %v772, 0.0
        %v993 = vmax.f32 %v925, 0.0
        %v994 = vmax.f32 %v776, 0.0
        %v995 = vmax.f32 %v778, 0.0
        %v996 = vmax.f32 %v930, 0.0
        %v997 = vmax.f32 %v782, 0.0
        %v998 = vmax.f32 %v784, 0.0
        %v999 = vmax.f32 %v935, 0.0
        %v1000 = vmax.f32 %v788, 0.0
        %v1001 = vmax.f32 %v790, 0.0
        %v1002 = vmax.f32 %v940, 0.0
        %v1003 = vmax.f32 %v794, 0.0
        %v1004 = vmax.f32 %v796, 0.0
        %v1005 = vmax.f32 %v945, 0.0
        %v1006 = vmax.f32 %v800, 0.0
        %v1007 = vmax.f32 %v802, 0.0
        %v1008 = vmax.f32 %v950, 0.0
        %v1009 = vmax.f32 %v806, 0.0
        %v1010 = vmax.f32 %v808, 0.0
        %v1011 = vmax.f32 %v955, 0.0
        %v1012 = vmax.f32 %v812, 0.0
        %v1013 = vmax.f32 %v814, 0.0
        %v1014 = vmax.f32 %v960, 0.0
        %v1015 = vmax.f32 %v818, 0.0
        %v1016 = vmax.f32 %v820, 0.0
        %v1017 = vmax.f32 %v965, 0.0
        %v1018 = vmax.f32 %v824, 0.0
        %v1019 = vmax.f32 %v826, 0.0
        %v1020 = vmax.f32 %v970, 0.0
        %v1021 = vld [vmem:[#allocation5 + $0x480] sm:$0xff]
        %v1022 = vld [vmem:[#allocation5 + $0x498] sm:$0xff]
        %v1023 = vld [vmem:[#allocation5 + $0x4b0] sm:$0xff]
        %v1024 = vld [vmem:[#allocation5 + $0x4c8] sm:$0xff]
        %v1025 = vld [vmem:[#allocation5 + $0x4e0] sm:$0xff]
        %v1026 = vld [vmem:[#allocation5 + $0x4f8] sm:$0xff]
        %v1027 = vld [vmem:[#allocation5 + $0x510] sm:$0xff]
        %v1028 = vld [vmem:[#allocation5 + $0x528] sm:$0xff]
        %v1029 = vld [vmem:[#allocation5 + $0x540] sm:$0xff]
        %v1030 = vld [vmem:[#allocation5 + $0x558] sm:$0xff]
        %v1031 = vld [vmem:[#allocation5 + $0x570] sm:$0xff]
        %v1032 = vld [vmem:[#allocation5 + $0x588] sm:$0xff]
        %v1033 = vld [vmem:[#allocation5 + $0x5a0] sm:$0xff]
        %v1034 = vld [vmem:[#allocation5 + $0x5b8] sm:$0xff]
        %v1035 = vld [vmem:[#allocation5 + $0x5d0] sm:$0xff]
        %v1036 = vld [vmem:[#allocation5 + $0x5e8] sm:$0xff]
        %v1037 = vld [vmem:[#allocation5 + $0x600] sm:$0xff]
        %v1038 = vld [vmem:[#allocation5 + $0x618] sm:$0xff]
        %v1039 = vld [vmem:[#allocation5 + $0x630] sm:$0xff]
        %v1040 = vld [vmem:[#allocation5 + $0x648] sm:$0xff]
        %v1041 = vld [vmem:[#allocation5 + $0x660] sm:$0xff]
        %v1042 = vld [vmem:[#allocation5 + $0x678] sm:$0xff]
        %v1043 = vld [vmem:[#allocation5 + $0x690] sm:$0xff]
        %v1044 = vld [vmem:[#allocation5 + $0x6a8] sm:$0xff]
        %v1045 = vld [vmem:[#allocation5 + $0x6c0] sm:$0xff]
        %v1046 = vld [vmem:[#allocation5 + $0x6d8] sm:$0xff]
        %v1047 = vld [vmem:[#allocation5 + $0x6f0] sm:$0xff]
        %v1048 = vld [vmem:[#allocation5 + $0x708] sm:$0xff]
        %v1049 = vld [vmem:[#allocation5 + $0x720] sm:$0xff]
        %v1050 = vld [vmem:[#allocation5 + $0x738] sm:$0xff]
        %v1051 = vld [vmem:[#allocation5 + $0x750] sm:$0xff]
        %v1052 = vld [vmem:[#allocation5 + $0x768] sm:$0xff]
        %v1053 = vld [vmem:[#allocation5 + $0x780] sm:$0xff]
        %v1054 = vld [vmem:[#allocation5 + $0x798] sm:$0xff]
        %v1055 = vld [vmem:[#allocation5 + $0x7b0] sm:$0xff]
        %v1056 = vld [vmem:[#allocation5 + $0x7c8] sm:$0xff]
        %v1057 = vld [vmem:[#allocation5 + $0x7e0] sm:$0xff]
        %v1058 = vld [vmem:[#allocation5 + $0x7f8] sm:$0xff]
        %v1059 = vld [vmem:[#allocation5 + $0x810] sm:$0xff]
        %v1060 = vld [vmem:[#allocation5 + $0x828] sm:$0xff]
        %v1061 = vld [vmem:[#allocation5 + $0x840] sm:$0xff]
        %v1062 = vld [vmem:[#allocation5 + $0x858] sm:$0xff]
        %v1063 = vld [vmem:[#allocation5 + $0x870] sm:$0xff]
        %v1064 = vld [vmem:[#allocation5 + $0x888] sm:$0xff]
        %v1065 = vld [vmem:[#allocation5 + $0x8a0] sm:$0xff]
        %v1066 = vld [vmem:[#allocation5 + $0x8b8] sm:$0xff]
        %v1067 = vld [vmem:[#allocation5 + $0x8d0] sm:$0xff]
        %v1068 = vld [vmem:[#allocation5 + $0x8e8] sm:$0xff]
        %v1069 = vld [vmem:[#allocation7 + $0x9] sm:$0x1]
        %v1071 = vlaneseq
        %v1072 = vshrl.u32 %v1071, 7
        %v1073 = vsub.s32 0, %v1072
        %v1074 = vrot.slane %v1069, %v1073
        %1076 = vmatprep.subr.mxu0 0.0
        %1077 = vmatpush1.msra.mxu0 %v1036
        %1078 = vmatprep.subr.mxu0 0.0
        %1079 = vmatpush1.msra.mxu0 %v1035
        %1080 = vmatprep.subr.mxu0 0.0
        %1081 = vmatpush1.msra.mxu0 %v1034
        %1082 = vmatprep.subr.mxu0 0.0
        %1083 = vmatpush1.msra.mxu0 %v1033
        %1084 = vmatprep.subr.mxu0 0.0
        %1085 = vmatpush1.msra.mxu0 %v1032
        %1086 = vmatprep.subr.mxu0 0.0
        %1087 = vmatpush1.msra.mxu0 %v1031
        %1088 = vmatprep.subr.mxu0 0.0
        %1089 = vmatpush1.msra.mxu0 %v1030
        %1090 = vmatprep.subr.mxu0 0.0
        %1091 = vmatpush1.msra.mxu0 %v1029
        %1092 = vmatprep.subr.mxu0 0.0
        %1093 = vmatpush1.msra.mxu0 %v1028
        %1094 = vmatprep.subr.mxu0 0.0
        %1095 = vmatpush1.msra.mxu0 %v1027
        %1096 = vmatprep.subr.mxu0 0.0
        %1097 = vmatpush1.msra.mxu0 %v1026
        %1098 = vmatprep.subr.mxu0 0.0
        %1099 = vmatpush1.msra.mxu0 %v1025
        %1100 = vmatprep.subr.mxu0 0.0
        %1101 = vmatpush1.msra.mxu0 %v1024
        %1102 = vmatprep.subr.mxu0 0.0
        %1103 = vmatpush1.msra.mxu0 %v1023
        %1104 = vmatprep.subr.mxu0 0.0
        %1105 = vmatpush1.msra.mxu0 %v1022
        %1106 = vmatprep.subr.mxu0 0.0
        %1107 = vmatpush1.msra.mxu0 %v1021
        %1108 = vmatprep.subr.mxu0 0.0
        %1109 = vmatpush2.msra.mxu0 %v1052
        %1110 = vmatprep.subr.mxu0 0.0
        %1111 = vmatpush2.msra.mxu0 %v1051
        %1112 = vmatprep.subr.mxu0 0.0
        %1113 = vmatpush2.msra.mxu0 %v1050
        %1114 = vmatprep.subr.mxu0 0.0
        %1115 = vmatpush2.msra.mxu0 %v1049
        %1116 = vmatprep.subr.mxu0 0.0
        %1117 = vmatpush2.msra.mxu0 %v1048
        %1118 = vmatprep.subr.mxu0 0.0
        %1119 = vmatpush2.msra.mxu0 %v1047
        %1120 = vmatprep.subr.mxu0 0.0
        %1121 = vmatpush2.msra.mxu0 %v1046
        %1122 = vmatprep.subr.mxu0 0.0
        %1123 = vmatpush2.msra.mxu0 %v1045
        %1124 = vmatprep.subr.mxu0 0.0
        %1125 = vmatpush2.msra.mxu0 %v1044
        %1126 = vmatprep.subr.mxu0 0.0
        %1127 = vmatpush2.msra.mxu0 %v1043
        %1128 = vmatprep.subr.mxu0 0.0
        %1129 = vmatpush2.msra.mxu0 %v1042
        %1130 = vmatprep.subr.mxu0 0.0
        %1131 = vmatpush2.msra.mxu0 %v1041
        %1132 = vmatprep.subr.mxu0 0.0
        %1133 = vmatpush2.msra.mxu0 %v1040
        %1134 = vmatprep.subr.mxu0 0.0
        %1135 = vmatpush2.msra.mxu0 %v1039
        %1136 = vmatprep.subr.mxu0 0.0
        %1137 = vmatpush2.msra.mxu0 %v1038
        %1138 = vmatprep.subr.mxu0 0.0
        %1139 = vmatpush2.msra.mxu0 %v1037
        %1140 = vmatprep.mubr.f32.mxu0 %v974
        %1141 = vmatmul.mubr.f32.gmra.mxu0 %v973
        %v1142 = vpop.f32.mrf.mxu0
        %v1143 = vadd.f32 %v1074, %v1142
        %v1144 = vpop.f32.mrf.mxu0
        %1145 = vmatprep.mubr.f32.mxu0 %v977
        %1146 = vmatmul.mubr.f32.gmra.mxu0 %v976
        %v1147 = vpop.f32.mrf.mxu0
        %v1148 = vadd.f32 %v1074, %v1147
        %v1149 = vpop.f32.mrf.mxu0
        %1150 = vmatprep.mubr.f32.mxu0 %v980
        %1151 = vmatmul.mubr.f32.gmra.mxu0 %v979
        %v1152 = vpop.f32.mrf.mxu0
        %v1153 = vadd.f32 %v1074, %v1152
        %v1154 = vpop.f32.mrf.mxu0
        %1155 = vmatprep.mubr.f32.mxu0 %v983
        %1156 = vmatmul.mubr.f32.gmra.mxu0 %v982
        %v1157 = vpop.f32.mrf.mxu0
        %v1158 = vadd.f32 %v1074, %v1157
        %v1159 = vpop.f32.mrf.mxu0
        %1160 = vmatprep.mubr.f32.mxu0 %v986
        %1161 = vmatmul.mubr.f32.gmra.mxu0 %v985
        %v1162 = vpop.f32.mrf.mxu0
        %v1163 = vadd.f32 %v1074, %v1162
        %v1164 = vpop.f32.mrf.mxu0
        %1165 = vmatprep.mubr.f32.mxu0 %v989
        %1166 = vmatmul.mubr.f32.gmra.mxu0 %v988
        %v1167 = vpop.f32.mrf.mxu0
        %v1168 = vadd.f32 %v1074, %v1167
        %v1169 = vpop.f32.mrf.mxu0
        %1170 = vmatprep.mubr.f32.mxu0 %v992
        %1171 = vmatmul.mubr.f32.gmra.mxu0 %v991
        %v1172 = vpop.f32.mrf.mxu0
        %v1173 = vadd.f32 %v1074, %v1172
        %v1174 = vpop.f32.mrf.mxu0
        %1175 = vmatprep.mubr.f32.mxu0 %v995
        %1176 = vmatmul.mubr.f32.gmra.mxu0 %v994
        %v1177 = vpop.f32.mrf.mxu0
        %v1178 = vadd.f32 %v1074, %v1177
        %v1179 = vpop.f32.mrf.mxu0
        %1180 = vmatprep.mubr.f32.mxu0 %v998
        %1181 = vmatmul.mubr.f32.gmra.mxu0 %v997
        %v1182 = vpop.f32.mrf.mxu0
        %v1183 = vadd.f32 %v1074, %v1182
        %v1184 = vpop.f32.mrf.mxu0
        %1185 = vmatprep.mubr.f32.mxu0 %v1001
        %1186 = vmatmul.mubr.f32.gmra.mxu0 %v1000
        %v1187 = vpop.f32.mrf.mxu0
        %v1188 = vadd.f32 %v1074, %v1187
        %v1189 = vpop.f32.mrf.mxu0
        %1190 = vmatprep.mubr.f32.mxu0 %v1004
        %1191 = vmatmul.mubr.f32.gmra.mxu0 %v1003
        %v1192 = vpop.f32.mrf.mxu0
        %v1193 = vadd.f32 %v1074, %v1192
        %v1194 = vpop.f32.mrf.mxu0
        %1195 = vmatprep.mubr.f32.mxu0 %v1007
        %1196 = vmatmul.mubr.f32.gmra.mxu0 %v1006
        %v1197 = vpop.f32.mrf.mxu0
        %v1198 = vadd.f32 %v1074, %v1197
        %v1199 = vpop.f32.mrf.mxu0
        %1200 = vmatprep.mubr.f32.mxu0 %v1010
        %1201 = vmatmul.mubr.f32.gmra.mxu0 %v1009
        %v1202 = vpop.f32.mrf.mxu0
        %v1203 = vadd.f32 %v1074, %v1202
        %v1204 = vpop.f32.mrf.mxu0
        %1205 = vmatprep.mubr.f32.mxu0 %v1013
        %1206 = vmatmul.mubr.f32.gmra.mxu0 %v1012
        %v1207 = vpop.f32.mrf.mxu0
        %v1208 = vadd.f32 %v1074, %v1207
        %v1209 = vpop.f32.mrf.mxu0
        %1210 = vmatprep.mubr.f32.mxu0 %v1016
        %1211 = vmatmul.mubr.f32.gmra.mxu0 %v1015
        %v1212 = vpop.f32.mrf.mxu0
        %v1213 = vadd.f32 %v1074, %v1212
        %v1214 = vpop.f32.mrf.mxu0
        %1215 = vmatprep.mubr.f32.mxu0 %v1019
        %1216 = vmatmul.mubr.f32.gmra.mxu0 %v1018
        %v1217 = vpop.f32.mrf.mxu0
        %v1218 = vadd.f32 %v1074, %v1217
        %v1219 = vpop.f32.mrf.mxu0
        %1220 = vdwg.mxu0
        %1221 = vmatprep.subr.mxu0 0.0
        %1222 = vmatpush1.msra.mxu0 %v1068
        %1223 = vmatprep.subr.mxu0 0.0
        %1224 = vmatpush1.msra.mxu0 %v1067
        %1225 = vmatprep.subr.mxu0 0.0
        %1226 = vmatpush1.msra.mxu0 %v1066
        %1227 = vmatprep.subr.mxu0 0.0
        %1228 = vmatpush1.msra.mxu0 %v1065
        %1229 = vmatprep.subr.mxu0 0.0
        %1230 = vmatpush1.msra.mxu0 %v1064
        %1231 = vmatprep.subr.mxu0 0.0
        %1232 = vmatpush1.msra.mxu0 %v1063
        %1233 = vmatprep.subr.mxu0 0.0
        %1234 = vmatpush1.msra.mxu0 %v1062
        %1235 = vmatprep.subr.mxu0 0.0
        %1236 = vmatpush1.msra.mxu0 %v1061
        %1237 = vmatprep.subr.mxu0 0.0
        %1238 = vmatpush1.msra.mxu0 %v1060
        %1239 = vmatprep.subr.mxu0 0.0
        %1240 = vmatpush1.msra.mxu0 %v1059
        %1241 = vmatprep.subr.mxu0 0.0
        %1242 = vmatpush1.msra.mxu0 %v1058
        %1243 = vmatprep.subr.mxu0 0.0
        %1244 = vmatpush1.msra.mxu0 %v1057
        %1245 = vmatprep.subr.mxu0 0.0
        %1246 = vmatpush1.msra.mxu0 %v1056
        %1247 = vmatprep.subr.mxu0 0.0
        %1248 = vmatpush1.msra.mxu0 %v1055
        %1249 = vmatprep.subr.mxu0 0.0
        %1250 = vmatpush1.msra.mxu0 %v1054
        %1251 = vmatprep.subr.mxu0 0.0
        %1252 = vmatpush1.msra.mxu0 %v1053
        %1253 = vmatprep.subr.mxu0 0.0
        %1254 = vmatpush2.msra.mxu0 0.0
        %1255 = vmatprep.subr.mxu0 0.0
        %1256 = vmatpush2.msra.mxu0 0.0
        %1257 = vmatprep.subr.mxu0 0.0
        %1258 = vmatpush2.msra.mxu0 0.0
        %1259 = vmatprep.subr.mxu0 0.0
        %1260 = vmatpush2.msra.mxu0 0.0
        %1261 = vmatprep.subr.mxu0 0.0
        %1262 = vmatpush2.msra.mxu0 0.0
        %1263 = vmatprep.subr.mxu0 0.0
        %1264 = vmatpush2.msra.mxu0 0.0
        %1265 = vmatprep.subr.mxu0 0.0
        %1266 = vmatpush2.msra.mxu0 0.0
        %1267 = vmatprep.subr.mxu0 0.0
        %1268 = vmatpush2.msra.mxu0 0.0
        %1269 = vmatprep.subr.mxu0 0.0
        %1270 = vmatpush2.msra.mxu0 0.0
        %1271 = vmatprep.subr.mxu0 0.0
        %1272 = vmatpush2.msra.mxu0 0.0
        %1273 = vmatprep.subr.mxu0 0.0
        %1274 = vmatpush2.msra.mxu0 0.0
        %1275 = vmatprep.subr.mxu0 0.0
        %1276 = vmatpush2.msra.mxu0 0.0
        %1277 = vmatprep.subr.mxu0 0.0
        %1278 = vmatpush2.msra.mxu0 0.0
        %1279 = vmatprep.subr.mxu0 0.0
        %1280 = vmatpush2.msra.mxu0 0.0
        %1281 = vmatprep.subr.mxu0 0.0
        %1282 = vmatpush2.msra.mxu0 0.0
        %1283 = vmatprep.subr.mxu0 0.0
        %1284 = vmatpush2.msra.mxu0 0.0
        %1285 = vmatprep.mubr.f32.mxu0 0.0
        %1286 = vmatmul.mubr.f32.gmra.mxu0 %v975
        %v1287 = vpop.f32.mrf.mxu0
        %v1288 = vadd.f32 %v1143, %v1287
        %v1289 = vpop.f32.mrf.mxu0
        %1290 = vmatprep.mubr.f32.mxu0 0.0
        %1291 = vmatmul.mubr.f32.gmra.mxu0 %v978
        %v1292 = vpop.f32.mrf.mxu0
        %v1293 = vadd.f32 %v1148, %v1292
        %v1294 = vpop.f32.mrf.mxu0
        %1295 = vmatprep.mubr.f32.mxu0 0.0
        %1296 = vmatmul.mubr.f32.gmra.mxu0 %v981
        %v1297 = vpop.f32.mrf.mxu0
        %v1298 = vadd.f32 %v1153, %v1297
        %v1299 = vpop.f32.mrf.mxu0
        %1300 = vmatprep.mubr.f32.mxu0 0.0
        %1301 = vmatmul.mubr.f32.gmra.mxu0 %v984
        %v1302 = vpop.f32.mrf.mxu0
        %v1303 = vadd.f32 %v1158, %v1302
        %v1304 = vpop.f32.mrf.mxu0
        %1305 = vmatprep.mubr.f32.mxu0 0.0
        %1306 = vmatmul.mubr.f32.gmra.mxu0 %v987
        %v1307 = vpop.f32.mrf.mxu0
        %v1308 = vadd.f32 %v1163, %v1307
        %v1309 = vpop.f32.mrf.mxu0
        %1310 = vmatprep.mubr.f32.mxu0 0.0
        %1311 = vmatmul.mubr.f32.gmra.mxu0 %v990
        %v1312 = vpop.f32.mrf.mxu0
        %v1313 = vadd.f32 %v1168, %v1312
        %v1314 = vpop.f32.mrf.mxu0
        %1315 = vmatprep.mubr.f32.mxu0 0.0
        %1316 = vmatmul.mubr.f32.gmra.mxu0 %v993
        %v1317 = vpop.f32.mrf.mxu0
        %v1318 = vadd.f32 %v1173, %v1317
        %v1319 = vpop.f32.mrf.mxu0
        %1320 = vmatprep.mubr.f32.mxu0 0.0
        %1321 = vmatmul.mubr.f32.gmra.mxu0 %v996
        %v1322 = vpop.f32.mrf.mxu0
        %v1323 = vadd.f32 %v1178, %v1322
        %v1324 = vpop.f32.mrf.mxu0
        %1325 = vmatprep.mubr.f32.mxu0 0.0
        %1326 = vmatmul.mubr.f32.gmra.mxu0 %v999
        %v1327 = vpop.f32.mrf.mxu0
        %v1328 = vadd.f32 %v1183, %v1327
        %v1329 = vpop.f32.mrf.mxu0
        %1330 = vmatprep.mubr.f32.mxu0 0.0
        %1331 = vmatmul.mubr.f32.gmra.mxu0 %v1002
        %v1332 = vpop.f32.mrf.mxu0
        %v1333 = vadd.f32 %v1188, %v1332
        %v1334 = vpop.f32.mrf.mxu0
        %1335 = vmatprep.mubr.f32.mxu0 0.0
        %1336 = vmatmul.mubr.f32.gmra.mxu0 %v1005
        %v1337 = vpop.f32.mrf.mxu0
        %v1338 = vadd.f32 %v1193, %v1337
        %v1339 = vpop.f32.mrf.mxu0
        %1340 = vmatprep.mubr.f32.mxu0 0.0
        %1341 = vmatmul.mubr.f32.gmra.mxu0 %v1008
        %v1342 = vpop.f32.mrf.mxu0
        %v1343 = vadd.f32 %v1198, %v1342
        %v1344 = vpop.f32.mrf.mxu0
        %1345 = vmatprep.mubr.f32.mxu0 0.0
        %1346 = vmatmul.mubr.f32.gmra.mxu0 %v1011
        %v1347 = vpop.f32.mrf.mxu0
        %v1348 = vadd.f32 %v1203, %v1347
        %v1349 = vpop.f32.mrf.mxu0
        %1350 = vmatprep.mubr.f32.mxu0 0.0
        %1351 = vmatmul.mubr.f32.gmra.mxu0 %v1014
        %v1352 = vpop.f32.mrf.mxu0
        %v1353 = vadd.f32 %v1208, %v1352
        %v1354 = vpop.f32.mrf.mxu0
        %1355 = vmatprep.mubr.f32.mxu0 0.0
        %1356 = vmatmul.mubr.f32.gmra.mxu0 %v1017
        %v1357 = vpop.f32.mrf.mxu0
        %v1358 = vadd.f32 %v1213, %v1357
        %v1359 = vpop.f32.mrf.mxu0
        %1360 = vmatprep.mubr.f32.mxu0 0.0
        %1361 = vmatmul.mubr.f32.gmra.mxu0 %v1020
        %v1362 = vpop.f32.mrf.mxu0
        %v1363 = vadd.f32 %v1218, %v1362
        %v1364 = vpop.f32.mrf.mxu0
        %1365 = vdwg.mxu0
        %v1366 = vmax.f32 %v1288, 0.0
        %v1367 = vmax.f32 %v1293, 0.0
        %v1368 = vmax.f32 %v1298, 0.0
        %v1369 = vmax.f32 %v1303, 0.0
        %v1370 = vmax.f32 %v1308, 0.0
        %v1371 = vmax.f32 %v1313, 0.0
        %v1372 = vmax.f32 %v1318, 0.0
        %v1373 = vmax.f32 %v1323, 0.0
        %v1374 = vmax.f32 %v1328, 0.0
        %v1375 = vmax.f32 %v1333, 0.0
        %v1376 = vmax.f32 %v1338, 0.0
        %v1377 = vmax.f32 %v1343, 0.0
        %v1378 = vmax.f32 %v1348, 0.0
        %v1379 = vmax.f32 %v1353, 0.0
        %v1380 = vmax.f32 %v1358, 0.0
        %v1381 = vmax.f32 %v1363, 0.0
        %v1382 = vld [vmem:[#allocation5 + $0x900] sm:$0xff]
        %v1383 = vld [vmem:[#allocation5 + $0x918] sm:$0xff]
        %v1384 = vld [vmem:[#allocation5 + $0x930] sm:$0xff]
        %v1385 = vld [vmem:[#allocation5 + $0x948] sm:$0xff]
        %v1386 = vld [vmem:[#allocation5 + $0x960] sm:$0xff]
        %v1387 = vld [vmem:[#allocation5 + $0x978] sm:$0xff]
        %v1388 = vld [vmem:[#allocation5 + $0x990] sm:$0xff]
        %v1389 = vld [vmem:[#allocation5 + $0x9a8] sm:$0xff]
        %v1390 = vld [vmem:[#allocation5 + $0x9c0] sm:$0xff]
        %v1391 = vld [vmem:[#allocation5 + $0x9d8] sm:$0xff]
        %v1392 = vld [vmem:[#allocation5 + $0x9f0] sm:$0xff]
        %v1393 = vld [vmem:[#allocation5 + $0xa08] sm:$0xff]
        %v1394 = vld [vmem:[#allocation5 + $0xa20] sm:$0xff]
        %v1395 = vld [vmem:[#allocation5 + $0xa38] sm:$0xff]
        %v1396 = vld [vmem:[#allocation5 + $0xa50] sm:$0xff]
        %v1397 = vld [vmem:[#allocation5 + $0xa68] sm:$0xff]
        %v1398 = vld [vmem:[#allocation7 + $0xc] sm:$0x1]
        %v1400 = vlaneseq
        %v1401 = vshrl.u32 %v1400, 7
        %v1402 = vsub.s32 0, %v1401
        %v1403 = vrot.slane %v1398, %v1402
        %1405 = vmatprep.subr.mxu0 0.0
        %1406 = vmatpush1.msra.mxu0 %v1397
        %1407 = vmatprep.subr.mxu0 0.0
        %1408 = vmatpush1.msra.mxu0 %v1396
        %1409 = vmatprep.subr.mxu0 0.0
        %1410 = vmatpush1.msra.mxu0 %v1395
        %1411 = vmatprep.subr.mxu0 0.0
        %1412 = vmatpush1.msra.mxu0 %v1394
        %1413 = vmatprep.subr.mxu0 0.0
        %1414 = vmatpush1.msra.mxu0 %v1393
        %1415 = vmatprep.subr.mxu0 0.0
        %1416 = vmatpush1.msra.mxu0 %v1392
        %1417 = vmatprep.subr.mxu0 0.0
        %1418 = vmatpush1.msra.mxu0 %v1391
        %1419 = vmatprep.subr.mxu0 0.0
        %1420 = vmatpush1.msra.mxu0 %v1390
        %1421 = vmatprep.subr.mxu0 0.0
        %1422 = vmatpush1.msra.mxu0 %v1389
        %1423 = vmatprep.subr.mxu0 0.0
        %1424 = vmatpush1.msra.mxu0 %v1388
        %1425 = vmatprep.subr.mxu0 0.0
        %1426 = vmatpush1.msra.mxu0 %v1387
        %1427 = vmatprep.subr.mxu0 0.0
        %1428 = vmatpush1.msra.mxu0 %v1386
        %1429 = vmatprep.subr.mxu0 0.0
        %1430 = vmatpush1.msra.mxu0 %v1385
        %1431 = vmatprep.subr.mxu0 0.0
        %1432 = vmatpush1.msra.mxu0 %v1384
        %1433 = vmatprep.subr.mxu0 0.0
        %1434 = vmatpush1.msra.mxu0 %v1383
        %1435 = vmatprep.subr.mxu0 0.0
        %1436 = vmatpush1.msra.mxu0 %v1382
        %1437 = vmatprep.subr.mxu0 0.0
        %1438 = vmatpush2.msra.mxu0 0.0
        %1439 = vmatprep.subr.mxu0 0.0
        %1440 = vmatpush2.msra.mxu0 0.0
        %1441 = vmatprep.subr.mxu0 0.0
        %1442 = vmatpush2.msra.mxu0 0.0
        %1443 = vmatprep.subr.mxu0 0.0
        %1444 = vmatpush2.msra.mxu0 0.0
        %1445 = vmatprep.subr.mxu0 0.0
        %1446 = vmatpush2.msra.mxu0 0.0
        %1447 = vmatprep.subr.mxu0 0.0
        %1448 = vmatpush2.msra.mxu0 0.0
        %1449 = vmatprep.subr.mxu0 0.0
        %1450 = vmatpush2.msra.mxu0 0.0
        %1451 = vmatprep.subr.mxu0 0.0
        %1452 = vmatpush2.msra.mxu0 0.0
        %1453 = vmatprep.subr.mxu0 0.0
        %1454 = vmatpush2.msra.mxu0 0.0
        %1455 = vmatprep.subr.mxu0 0.0
        %1456 = vmatpush2.msra.mxu0 0.0
        %1457 = vmatprep.subr.mxu0 0.0
        %1458 = vmatpush2.msra.mxu0 0.0
        %1459 = vmatprep.subr.mxu0 0.0
        %1460 = vmatpush2.msra.mxu0 0.0
        %1461 = vmatprep.subr.mxu0 0.0
        %1462 = vmatpush2.msra.mxu0 0.0
        %1463 = vmatprep.subr.mxu0 0.0
        %1464 = vmatpush2.msra.mxu0 0.0
        %1465 = vmatprep.subr.mxu0 0.0
        %1466 = vmatpush2.msra.mxu0 0.0
        %1467 = vmatprep.subr.mxu0 0.0
        %1468 = vmatpush2.msra.mxu0 0.0
        %1469 = vmatprep.mubr.f32.mxu0 0.0
        %1470 = vmatmul.mubr.f32.gmra.mxu0 %v1366
        %v1471 = vpop.f32.mrf.mxu0
        %v1472 = vadd.f32 %v1403, %v1471
        %v1473 = vpop.f32.mrf.mxu0
        %1474 = vmatprep.mubr.f32.mxu0 0.0
        %1475 = vmatmul.mubr.f32.gmra.mxu0 %v1367
        %v1476 = vpop.f32.mrf.mxu0
        %v1477 = vadd.f32 %v1403, %v1476
        %v1478 = vpop.f32.mrf.mxu0
        %1479 = vmatprep.mubr.f32.mxu0 0.0
        %1480 = vmatmul.mubr.f32.gmra.mxu0 %v1368
        %v1481 = vpop.f32.mrf.mxu0
        %v1482 = vadd.f32 %v1403, %v1481
        %v1483 = vpop.f32.mrf.mxu0
        %1484 = vmatprep.mubr.f32.mxu0 0.0
        %1485 = vmatmul.mubr.f32.gmra.mxu0 %v1369
        %v1486 = vpop.f32.mrf.mxu0
        %v1487 = vadd.f32 %v1403, %v1486
        %v1488 = vpop.f32.mrf.mxu0
        %1489 = vmatprep.mubr.f32.mxu0 0.0
        %1490 = vmatmul.mubr.f32.gmra.mxu0 %v1370
        %v1491 = vpop.f32.mrf.mxu0
        %v1492 = vadd.f32 %v1403, %v1491
        %v1493 = vpop.f32.mrf.mxu0
        %1494 = vmatprep.mubr.f32.mxu0 0.0
        %1495 = vmatmul.mubr.f32.gmra.mxu0 %v1371
        %v1496 = vpop.f32.mrf.mxu0
        %v1497 = vadd.f32 %v1403, %v1496
        %v1498 = vpop.f32.mrf.mxu0
        %1499 = vmatprep.mubr.f32.mxu0 0.0
        %1500 = vmatmul.mubr.f32.gmra.mxu0 %v1372
        %v1501 = vpop.f32.mrf.mxu0
        %v1502 = vadd.f32 %v1403, %v1501
        %v1503 = vpop.f32.mrf.mxu0
        %1504 = vmatprep.mubr.f32.mxu0 0.0
        %1505 = vmatmul.mubr.f32.gmra.mxu0 %v1373
        %v1506 = vpop.f32.mrf.mxu0
        %v1507 = vadd.f32 %v1403, %v1506
        %v1508 = vpop.f32.mrf.mxu0
        %1509 = vmatprep.mubr.f32.mxu0 0.0
        %1510 = vmatmul.mubr.f32.gmra.mxu0 %v1374
        %v1511 = vpop.f32.mrf.mxu0
        %v1512 = vadd.f32 %v1403, %v1511
        %v1513 = vpop.f32.mrf.mxu0
        %1514 = vmatprep.mubr.f32.mxu0 0.0
        %1515 = vmatmul.mubr.f32.gmra.mxu0 %v1375
        %v1516 = vpop.f32.mrf.mxu0
        %v1517 = vadd.f32 %v1403, %v1516
        %v1518 = vpop.f32.mrf.mxu0
        %1519 = vmatprep.mubr.f32.mxu0 0.0
        %1520 = vmatmul.mubr.f32.gmra.mxu0 %v1376
        %v1521 = vpop.f32.mrf.mxu0
        %v1522 = vadd.f32 %v1403, %v1521
        %v1523 = vpop.f32.mrf.mxu0
        %1524 = vmatprep.mubr.f32.mxu0 0.0
        %1525 = vmatmul.mubr.f32.gmra.mxu0 %v1377
        %v1526 = vpop.f32.mrf.mxu0
        %v1527 = vadd.f32 %v1403, %v1526
        %v1528 = vpop.f32.mrf.mxu0
        %1529 = vmatprep.mubr.f32.mxu0 0.0
        %1530 = vmatmul.mubr.f32.gmra.mxu0 %v1378
        %v1531 = vpop.f32.mrf.mxu0
        %v1532 = vadd.f32 %v1403, %v1531
        %v1533 = vpop.f32.mrf.mxu0
        %1534 = vmatprep.mubr.f32.mxu0 0.0
        %1535 = vmatmul.mubr.f32.gmra.mxu0 %v1379
        %v1536 = vpop.f32.mrf.mxu0
        %v1537 = vadd.f32 %v1403, %v1536
        %v1538 = vpop.f32.mrf.mxu0
        %1539 = vmatprep.mubr.f32.mxu0 0.0
        %1540 = vmatmul.mubr.f32.gmra.mxu0 %v1380
        %v1541 = vpop.f32.mrf.mxu0
        %v1542 = vadd.f32 %v1403, %v1541
        %v1543 = vpop.f32.mrf.mxu0
        %1544 = vmatprep.mubr.f32.mxu0 0.0
        %1545 = vmatmul.mubr.f32.gmra.mxu0 %v1381
        %v1546 = vpop.f32.mrf.mxu0
        %v1547 = vadd.f32 %v1403, %v1546
        %v1548 = vpop.f32.mrf.mxu0
        %1549 = vdwg.mxu0
        %v1550 = vld [vmem:[#allocation5 + $0xa80] sm:$0xff]
        %v1551 = vld [vmem:[#allocation5 + $0xa98] sm:$0xff]
        %v1552 = vld [vmem:[#allocation5 + $0xab0] sm:$0xff]
        %v1553 = vld [vmem:[#allocation5 + $0xac8] sm:$0xff]
        %v1554 = vld [vmem:[#allocation5 + $0xae0] sm:$0xff]
        %v1555 = vld [vmem:[#allocation5 + $0xaf8] sm:$0xff]
        %v1556 = vld [vmem:[#allocation5 + $0xb10] sm:$0xff]
        %v1557 = vld [vmem:[#allocation5 + $0xb28] sm:$0xff]
        %v1558 = vld [vmem:[#allocation5 + $0xb40] sm:$0xff]
        %v1559 = vld [vmem:[#allocation5 + $0xb58] sm:$0xff]
        %v1560 = vld [vmem:[#allocation5 + $0xb70] sm:$0xff]
        %v1561 = vld [vmem:[#allocation5 + $0xb88] sm:$0xff]
        %v1562 = vld [vmem:[#allocation5 + $0xba0] sm:$0xff]
        %v1563 = vld [vmem:[#allocation5 + $0xbb8] sm:$0xff]
        %v1564 = vld [vmem:[#allocation5 + $0xbd0] sm:$0xff]
        %v1565 = vld [vmem:[#allocation5 + $0xbe8] sm:$0xff]
        %1566 = vmatprep.subr.mxu0 0.0
        %1567 = vmatpush1.msra.mxu0 %v1565
        %1568 = vmatprep.subr.mxu0 0.0
        %1569 = vmatpush1.msra.mxu0 %v1564
        %1570 = vmatprep.subr.mxu0 0.0
        %1571 = vmatpush1.msra.mxu0 %v1563
        %1572 = vmatprep.subr.mxu0 0.0
        %1573 = vmatpush1.msra.mxu0 %v1562
        %1574 = vmatprep.subr.mxu0 0.0
        %1575 = vmatpush1.msra.mxu0 %v1561
        %1576 = vmatprep.subr.mxu0 0.0
        %1577 = vmatpush1.msra.mxu0 %v1560
        %1578 = vmatprep.subr.mxu0 0.0
        %1579 = vmatpush1.msra.mxu0 %v1559
        %1580 = vmatprep.subr.mxu0 0.0
        %1581 = vmatpush1.msra.mxu0 %v1558
        %1582 = vmatprep.subr.mxu0 0.0
        %1583 = vmatpush1.msra.mxu0 %v1557
        %1584 = vmatprep.subr.mxu0 0.0
        %1585 = vmatpush1.msra.mxu0 %v1556
        %1586 = vmatprep.subr.mxu0 0.0
        %1587 = vmatpush1.msra.mxu0 %v1555
        %1588 = vmatprep.subr.mxu0 0.0
        %1589 = vmatpush1.msra.mxu0 %v1554
        %1590 = vmatprep.subr.mxu0 0.0
        %1591 = vmatpush1.msra.mxu0 %v1553
        %1592 = vmatprep.subr.mxu0 0.0
        %1593 = vmatpush1.msra.mxu0 %v1552
        %1594 = vmatprep.subr.mxu0 0.0
        %1595 = vmatpush1.msra.mxu0 %v1551
        %1596 = vmatprep.subr.mxu0 0.0
        %1597 = vmatpush1.msra.mxu0 %v1550
        %1598 = vmatprep.subr.mxu0 0.0
        %1599 = vmatpush2.msra.mxu0 0.0
        %1600 = vmatprep.subr.mxu0 0.0
        %1601 = vmatpush2.msra.mxu0 0.0
        %1602 = vmatprep.subr.mxu0 0.0
        %1603 = vmatpush2.msra.mxu0 0.0
        %1604 = vmatprep.subr.mxu0 0.0
        %1605 = vmatpush2.msra.mxu0 0.0
        %1606 = vmatprep.subr.mxu0 0.0
        %1607 = vmatpush2.msra.mxu0 0.0
        %1608 = vmatprep.subr.mxu0 0.0
        %1609 = vmatpush2.msra.mxu0 0.0
        %1610 = vmatprep.subr.mxu0 0.0
        %1611 = vmatpush2.msra.mxu0 0.0
        %1612 = vmatprep.subr.mxu0 0.0
        %1613 = vmatpush2.msra.mxu0 0.0
        %1614 = vmatprep.subr.mxu0 0.0
        %1615 = vmatpush2.msra.mxu0 0.0
        %1616 = vmatprep.subr.mxu0 0.0
        %1617 = vmatpush2.msra.mxu0 0.0
        %1618 = vmatprep.subr.mxu0 0.0
        %1619 = vmatpush2.msra.mxu0 0.0
        %1620 = vmatprep.subr.mxu0 0.0
        %1621 = vmatpush2.msra.mxu0 0.0
        %1622 = vmatprep.subr.mxu0 0.0
        %1623 = vmatpush2.msra.mxu0 0.0
        %1624 = vmatprep.subr.mxu0 0.0
        %1625 = vmatpush2.msra.mxu0 0.0
        %1626 = vmatprep.subr.mxu0 0.0
        %1627 = vmatpush2.msra.mxu0 0.0
        %1628 = vmatprep.subr.mxu0 0.0
        %1629 = vmatpush2.msra.mxu0 0.0
        %1630 = vmatprep.mubr.f32.mxu0 0.0
        %1631 = vmatmul.mubr.f32.gmra.mxu0 %v1472
        %v1632 = vpop.f32.mrf.mxu0
        %v1633 = vadd.f32 0.0, %v1632
        %v1634 = vpop.f32.mrf.mxu0
        %1635 = vmatprep.mubr.f32.mxu0 0.0
        %1636 = vmatmul.mubr.f32.gmra.mxu0 %v1477
        %v1637 = vpop.f32.mrf.mxu0
        %v1638 = vadd.f32 0.0, %v1637
        %v1639 = vpop.f32.mrf.mxu0
        %1640 = vmatprep.mubr.f32.mxu0 0.0
        %1641 = vmatmul.mubr.f32.gmra.mxu0 %v1482
        %v1642 = vpop.f32.mrf.mxu0
        %v1643 = vadd.f32 0.0, %v1642
        %v1644 = vpop.f32.mrf.mxu0
        %1645 = vmatprep.mubr.f32.mxu0 0.0
        %1646 = vmatmul.mubr.f32.gmra.mxu0 %v1487
        %v1647 = vpop.f32.mrf.mxu0
        %v1648 = vadd.f32 0.0, %v1647
        %v1649 = vpop.f32.mrf.mxu0
        %1650 = vmatprep.mubr.f32.mxu0 0.0
        %1651 = vmatmul.mubr.f32.gmra.mxu0 %v1492
        %v1652 = vpop.f32.mrf.mxu0
        %v1653 = vadd.f32 0.0, %v1652
        %v1654 = vpop.f32.mrf.mxu0
        %1655 = vmatprep.mubr.f32.mxu0 0.0
        %1656 = vmatmul.mubr.f32.gmra.mxu0 %v1497
        %v1657 = vpop.f32.mrf.mxu0
        %v1658 = vadd.f32 0.0, %v1657
        %v1659 = vpop.f32.mrf.mxu0
        %1660 = vmatprep.mubr.f32.mxu0 0.0
        %1661 = vmatmul.mubr.f32.gmra.mxu0 %v1502
        %v1662 = vpop.f32.mrf.mxu0
        %v1663 = vadd.f32 0.0, %v1662
        %v1664 = vpop.f32.mrf.mxu0
        %1665 = vmatprep.mubr.f32.mxu0 0.0
        %1666 = vmatmul.mubr.f32.gmra.mxu0 %v1507
        %v1667 = vpop.f32.mrf.mxu0
        %v1668 = vadd.f32 0.0, %v1667
        %v1669 = vpop.f32.mrf.mxu0
        %1670 = vmatprep.mubr.f32.mxu0 0.0
        %1671 = vmatmul.mubr.f32.gmra.mxu0 %v1512
        %v1672 = vpop.f32.mrf.mxu0
        %v1673 = vadd.f32 0.0, %v1672
        %v1674 = vpop.f32.mrf.mxu0
        %1675 = vmatprep.mubr.f32.mxu0 0.0
        %1676 = vmatmul.mubr.f32.gmra.mxu0 %v1517
        %v1677 = vpop.f32.mrf.mxu0
        %v1678 = vadd.f32 0.0, %v1677
        %v1679 = vpop.f32.mrf.mxu0
        %1680 = vmatprep.mubr.f32.mxu0 0.0
        %1681 = vmatmul.mubr.f32.gmra.mxu0 %v1522
        %v1682 = vpop.f32.mrf.mxu0
        %v1683 = vadd.f32 0.0, %v1682
        %v1684 = vpop.f32.mrf.mxu0
        %1685 = vmatprep.mubr.f32.mxu0 0.0
        %1686 = vmatmul.mubr.f32.gmra.mxu0 %v1527
        %v1687 = vpop.f32.mrf.mxu0
        %v1688 = vadd.f32 0.0, %v1687
        %v1689 = vpop.f32.mrf.mxu0
        %1690 = vmatprep.mubr.f32.mxu0 0.0
        %1691 = vmatmul.mubr.f32.gmra.mxu0 %v1532
        %v1692 = vpop.f32.mrf.mxu0
        %v1693 = vadd.f32 0.0, %v1692
        %v1694 = vpop.f32.mrf.mxu0
        %1695 = vmatprep.mubr.f32.mxu0 0.0
        %1696 = vmatmul.mubr.f32.gmra.mxu0 %v1537
        %v1697 = vpop.f32.mrf.mxu0
        %v1698 = vadd.f32 0.0, %v1697
        %v1699 = vpop.f32.mrf.mxu0
        %1700 = vmatprep.mubr.f32.mxu0 0.0
        %1701 = vmatmul.mubr.f32.gmra.mxu0 %v1542
        %v1702 = vpop.f32.mrf.mxu0
        %v1703 = vadd.f32 0.0, %v1702
        %v1704 = vpop.f32.mrf.mxu0
        %1705 = vmatprep.mubr.f32.mxu0 0.0
        %1706 = vmatmul.mubr.f32.gmra.mxu0 %v1547
        %v1707 = vpop.f32.mrf.mxu0
        %v1708 = vadd.f32 0.0, %v1707
        %v1709 = vpop.f32.mrf.mxu0
        %1710 = vdwg.mxu0
        %v1711 = vmax.f32 %v1633, 0.0
        %v1712 = vmax.f32 %v1638, 0.0
        %v1713 = vmax.f32 %v1643, 0.0
        %v1714 = vmax.f32 %v1648, 0.0
        %v1715 = vmax.f32 %v1653, 0.0
        %v1716 = vmax.f32 %v1658, 0.0
        %v1717 = vmax.f32 %v1663, 0.0
        %v1718 = vmax.f32 %v1668, 0.0
        %v1719 = vmax.f32 %v1673, 0.0
        %v1720 = vmax.f32 %v1678, 0.0
        %v1721 = vmax.f32 %v1683, 0.0
        %v1722 = vmax.f32 %v1688, 0.0
        %v1723 = vmax.f32 %v1693, 0.0
        %v1724 = vmax.f32 %v1698, 0.0
        %v1725 = vmax.f32 %v1703, 0.0
        %v1726 = vmax.f32 %v1708, 0.0
        %v1727 = vld [vmem:[#allocation5 + $0xc00] sm:$0xff]
        %v1728 = vld [vmem:[#allocation5 + $0xc18] sm:$0xff]
        %v1729 = vld [vmem:[#allocation5 + $0xc30] sm:$0xff]
        %v1730 = vld [vmem:[#allocation5 + $0xc48] sm:$0xff]
        %v1731 = vld [vmem:[#allocation5 + $0xc60] sm:$0xff]
        %v1732 = vld [vmem:[#allocation5 + $0xc78] sm:$0xff]
        %v1733 = vld [vmem:[#allocation5 + $0xc90] sm:$0xff]
        %v1734 = vld [vmem:[#allocation5 + $0xca8] sm:$0xff]
        %v1735 = vld [vmem:[#allocation5 + $0xcc0] sm:$0xff]
        %v1736 = vld [vmem:[#allocation5 + $0xcd8] sm:$0xff]
        %v1737 = vld [vmem:[#allocation5 + $0xcf0] sm:$0xff]
        %v1738 = vld [vmem:[#allocation5 + $0xd08] sm:$0xff]
        %v1739 = vld [vmem:[#allocation5 + $0xd20] sm:$0xff]
        %v1740 = vld [vmem:[#allocation5 + $0xd38] sm:$0xff]
        %v1741 = vld [vmem:[#allocation5 + $0xd50] sm:$0xff]
        %v1742 = vld [vmem:[#allocation5 + $0xd68] sm:$0xff]
        %1743 = vmatprep.subr.mxu0 0.0
        %1744 = vmatpush1.msra.mxu0 %v1742
        %1745 = vmatprep.subr.mxu0 0.0
        %1746 = vmatpush1.msra.mxu0 %v1741
        %1747 = vmatprep.subr.mxu0 0.0
        %1748 = vmatpush1.msra.mxu0 %v1740
        %1749 = vmatprep.subr.mxu0 0.0
        %1750 = vmatpush1.msra.mxu0 %v1739
        %1751 = vmatprep.subr.mxu0 0.0
        %1752 = vmatpush1.msra.mxu0 %v1738
        %1753 = vmatprep.subr.mxu0 0.0
        %1754 = vmatpush1.msra.mxu0 %v1737
        %1755 = vmatprep.subr.mxu0 0.0
        %1756 = vmatpush1.msra.mxu0 %v1736
        %1757 = vmatprep.subr.mxu0 0.0
        %1758 = vmatpush1.msra.mxu0 %v1735
        %1759 = vmatprep.subr.mxu0 0.0
        %1760 = vmatpush1.msra.mxu0 %v1734
        %1761 = vmatprep.subr.mxu0 0.0
        %1762 = vmatpush1.msra.mxu0 %v1733
        %1763 = vmatprep.subr.mxu0 0.0
        %1764 = vmatpush1.msra.mxu0 %v1732
        %1765 = vmatprep.subr.mxu0 0.0
        %1766 = vmatpush1.msra.mxu0 %v1731
        %1767 = vmatprep.subr.mxu0 0.0
        %1768 = vmatpush1.msra.mxu0 %v1730
        %1769 = vmatprep.subr.mxu0 0.0
        %1770 = vmatpush1.msra.mxu0 %v1729
        %1771 = vmatprep.subr.mxu0 0.0
        %1772 = vmatpush1.msra.mxu0 %v1728
        %1773 = vmatprep.subr.mxu0 0.0
        %1774 = vmatpush1.msra.mxu0 %v1727
        %1775 = vmatprep.subr.mxu0 0.0
        %1776 = vmatpush2.msra.mxu0 0.0
        %1777 = vmatprep.subr.mxu0 0.0
        %1778 = vmatpush2.msra.mxu0 0.0
        %1779 = vmatprep.subr.mxu0 0.0
        %1780 = vmatpush2.msra.mxu0 0.0
        %1781 = vmatprep.subr.mxu0 0.0
        %1782 = vmatpush2.msra.mxu0 0.0
        %1783 = vmatprep.subr.mxu0 0.0
        %1784 = vmatpush2.msra.mxu0 0.0
        %1785 = vmatprep.subr.mxu0 0.0
        %1786 = vmatpush2.msra.mxu0 0.0
        %1787 = vmatprep.subr.mxu0 0.0
        %1788 = vmatpush2.msra.mxu0 0.0
        %1789 = vmatprep.subr.mxu0 0.0
        %1790 = vmatpush2.msra.mxu0 0.0
        %1791 = vmatprep.subr.mxu0 0.0
        %1792 = vmatpush2.msra.mxu0 0.0
        %1793 = vmatprep.subr.mxu0 0.0
        %1794 = vmatpush2.msra.mxu0 0.0
        %1795 = vmatprep.subr.mxu0 0.0
        %1796 = vmatpush2.msra.mxu0 0.0
        %1797 = vmatprep.subr.mxu0 0.0
        %1798 = vmatpush2.msra.mxu0 0.0
        %1799 = vmatprep.subr.mxu0 0.0
        %1800 = vmatpush2.msra.mxu0 0.0
        %1801 = vmatprep.subr.mxu0 0.0
        %1802 = vmatpush2.msra.mxu0 0.0
        %1803 = vmatprep.subr.mxu0 0.0
        %1804 = vmatpush2.msra.mxu0 0.0
        %1805 = vmatprep.subr.mxu0 0.0
        %1806 = vmatpush2.msra.mxu0 0.0
        %1807 = vmatprep.mubr.f32.mxu0 0.0
        %1808 = vmatmul.mubr.f32.gmra.mxu0 %v1711
        %v1809 = vpop.f32.mrf.mxu0
        %v1810 = vadd.f32 0.0, %v1809
        %v1811 = vpop.f32.mrf.mxu0
        %1812 = vmatprep.mubr.f32.mxu0 0.0
        %1813 = vmatmul.mubr.f32.gmra.mxu0 %v1712
        %v1814 = vpop.f32.mrf.mxu0
        %v1815 = vadd.f32 0.0, %v1814
        %v1816 = vpop.f32.mrf.mxu0
        %1817 = vmatprep.mubr.f32.mxu0 0.0
        %1818 = vmatmul.mubr.f32.gmra.mxu0 %v1713
        %v1819 = vpop.f32.mrf.mxu0
        %v1820 = vadd.f32 0.0, %v1819
        %v1821 = vpop.f32.mrf.mxu0
        %1822 = vmatprep.mubr.f32.mxu0 0.0
        %1823 = vmatmul.mubr.f32.gmra.mxu0 %v1714
        %v1824 = vpop.f32.mrf.mxu0
        %v1825 = vadd.f32 0.0, %v1824
        %v1826 = vpop.f32.mrf.mxu0
        %1827 = vmatprep.mubr.f32.mxu0 0.0
        %1828 = vmatmul.mubr.f32.gmra.mxu0 %v1715
        %v1829 = vpop.f32.mrf.mxu0
        %v1830 = vadd.f32 0.0, %v1829
        %v1831 = vpop.f32.mrf.mxu0
        %1832 = vmatprep.mubr.f32.mxu0 0.0
        %1833 = vmatmul.mubr.f32.gmra.mxu0 %v1716
        %v1834 = vpop.f32.mrf.mxu0
        %v1835 = vadd.f32 0.0, %v1834
        %v1836 = vpop.f32.mrf.mxu0
        %1837 = vmatprep.mubr.f32.mxu0 0.0
        %1838 = vmatmul.mubr.f32.gmra.mxu0 %v1717
        %v1839 = vpop.f32.mrf.mxu0
        %v1840 = vadd.f32 0.0, %v1839
        %v1841 = vpop.f32.mrf.mxu0
        %1842 = vmatprep.mubr.f32.mxu0 0.0
        %1843 = vmatmul.mubr.f32.gmra.mxu0 %v1718
        %v1844 = vpop.f32.mrf.mxu0
        %v1845 = vadd.f32 0.0, %v1844
        %v1846 = vpop.f32.mrf.mxu0
        %1847 = vmatprep.mubr.f32.mxu0 0.0
        %1848 = vmatmul.mubr.f32.gmra.mxu0 %v1719
        %v1849 = vpop.f32.mrf.mxu0
        %v1850 = vadd.f32 0.0, %v1849
        %v1851 = vpop.f32.mrf.mxu0
        %1852 = vmatprep.mubr.f32.mxu0 0.0
        %1853 = vmatmul.mubr.f32.gmra.mxu0 %v1720
        %v1854 = vpop.f32.mrf.mxu0
        %v1855 = vadd.f32 0.0, %v1854
        %v1856 = vpop.f32.mrf.mxu0
        %1857 = vmatprep.mubr.f32.mxu0 0.0
        %1858 = vmatmul.mubr.f32.gmra.mxu0 %v1721
        %v1859 = vpop.f32.mrf.mxu0
        %v1860 = vadd.f32 0.0, %v1859
        %v1861 = vpop.f32.mrf.mxu0
        %1862 = vmatprep.mubr.f32.mxu0 0.0
        %1863 = vmatmul.mubr.f32.gmra.mxu0 %v1722
        %v1864 = vpop.f32.mrf.mxu0
        %v1865 = vadd.f32 0.0, %v1864
        %v1866 = vpop.f32.mrf.mxu0
        %1867 = vmatprep.mubr.f32.mxu0 0.0
        %1868 = vmatmul.mubr.f32.gmra.mxu0 %v1723
        %v1869 = vpop.f32.mrf.mxu0
        %v1870 = vadd.f32 0.0, %v1869
        %v1871 = vpop.f32.mrf.mxu0
        %1872 = vmatprep.mubr.f32.mxu0 0.0
        %1873 = vmatmul.mubr.f32.gmra.mxu0 %v1724
        %v1874 = vpop.f32.mrf.mxu0
        %v1875 = vadd.f32 0.0, %v1874
        %v1876 = vpop.f32.mrf.mxu0
        %1877 = vmatprep.mubr.f32.mxu0 0.0
        %1878 = vmatmul.mubr.f32.gmra.mxu0 %v1725
        %v1879 = vpop.f32.mrf.mxu0
        %v1880 = vadd.f32 0.0, %v1879
        %v1881 = vpop.f32.mrf.mxu0
        %1882 = vmatprep.mubr.f32.mxu0 0.0
        %1883 = vmatmul.mubr.f32.gmra.mxu0 %v1726
        %v1884 = vpop.f32.mrf.mxu0
        %v1885 = vadd.f32 0.0, %v1884
        %v1886 = vpop.f32.mrf.mxu0
        %1887 = vdwg.mxu0
        %v1888 = vxor.u32 %v1810, 2147483648
        %v1889 = vxor.u32 %v1815, 2147483648
        %v1890 = vxor.u32 %v1820, 2147483648
        %v1891 = vxor.u32 %v1825, 2147483648
        %v1892 = vxor.u32 %v1830, 2147483648
        %v1893 = vxor.u32 %v1835, 2147483648
        %v1894 = vxor.u32 %v1840, 2147483648
        %v1895 = vxor.u32 %v1845, 2147483648
        %v1896 = vxor.u32 %v1850, 2147483648
        %v1897 = vxor.u32 %v1855, 2147483648
        %v1898 = vxor.u32 %v1860, 2147483648
        %v1899 = vxor.u32 %v1865, 2147483648
        %v1900 = vxor.u32 %v1870, 2147483648
        %v1901 = vxor.u32 %v1875, 2147483648
        %v1902 = vxor.u32 %v1880, 2147483648
        %v1903 = vxor.u32 %v1885, 2147483648
        %v1904 = vmul.f32 %v1888, 1.442695
        %v1905 = vpow.pop %v1904
        %v1906 = vmul.f32 %v1889, 1.442695
        %v1907 = vpow.pop %v1906
        %v1908 = vmul.f32 %v1890, 1.442695
        %v1909 = vpow.pop %v1908
        %v1910 = vmul.f32 %v1891, 1.442695
        %v1911 = vpow.pop %v1910
        %v1912 = vmul.f32 %v1892, 1.442695
        %v1913 = vpow.pop %v1912
        %v1914 = vmul.f32 %v1893, 1.442695
        %v1915 = vpow.pop %v1914
        %v1916 = vmul.f32 %v1894, 1.442695
        %v1917 = vpow.pop %v1916
        %v1918 = vmul.f32 %v1895, 1.442695
        %v1919 = vpow.pop %v1918
        %v1920 = vmul.f32 %v1896, 1.442695
        %v1921 = vpow.pop %v1920
        %v1922 = vmul.f32 %v1897, 1.442695
        %v1923 = vpow.pop %v1922
        %v1924 = vmul.f32 %v1898, 1.442695
        %v1925 = vpow.pop %v1924
        %v1926 = vmul.f32 %v1899, 1.442695
        %v1927 = vpow.pop %v1926
        %v1928 = vmul.f32 %v1900, 1.442695
        %v1929 = vpow.pop %v1928
        %v1930 = vmul.f32 %v1901, 1.442695
        %v1931 = vpow.pop %v1930
        %v1932 = vmul.f32 %v1902, 1.442695
        %v1933 = vpow.pop %v1932
        %v1934 = vmul.f32 %v1903, 1.442695
        %v1935 = vpow.pop %v1934
        %v1936 = vadd.f32 %v1905, 1.0
        %v1937 = vadd.f32 %v1907, 1.0
        %v1938 = vadd.f32 %v1909, 1.0
        %v1939 = vadd.f32 %v1911, 1.0
        %v1940 = vadd.f32 %v1913, 1.0
        %v1941 = vadd.f32 %v1915, 1.0
        %v1942 = vadd.f32 %v1917, 1.0
        %v1943 = vadd.f32 %v1919, 1.0
        %v1944 = vadd.f32 %v1921, 1.0
        %v1945 = vadd.f32 %v1923, 1.0
        %v1946 = vadd.f32 %v1925, 1.0
        %v1947 = vadd.f32 %v1927, 1.0
        %v1948 = vadd.f32 %v1929, 1.0
        %v1949 = vadd.f32 %v1931, 1.0
        %v1950 = vadd.f32 %v1933, 1.0
        %v1951 = vadd.f32 %v1935, 1.0
        %v1952 = vrcp.pop %v1936
        %v1953 = vmul.f32 1.0, %v1952
        %v1954 = vrcp.pop %v1937
        %v1955 = vmul.f32 1.0, %v1954
        %v1956 = vrcp.pop %v1938
        %v1957 = vmul.f32 1.0, %v1956
        %v1958 = vrcp.pop %v1939
        %v1959 = vmul.f32 1.0, %v1958
        %v1960 = vrcp.pop %v1940
        %v1961 = vmul.f32 1.0, %v1960
        %v1962 = vrcp.pop %v1941
        %v1963 = vmul.f32 1.0, %v1962
        %v1964 = vrcp.pop %v1942
        %v1965 = vmul.f32 1.0, %v1964
        %v1966 = vrcp.pop %v1943
        %v1967 = vmul.f32 1.0, %v1966
        %v1968 = vrcp.pop %v1944
        %v1969 = vmul.f32 1.0, %v1968
        %v1970 = vrcp.pop %v1945
        %v1971 = vmul.f32 1.0, %v1970
        %v1972 = vrcp.pop %v1946
        %v1973 = vmul.f32 1.0, %v1972
        %v1974 = vrcp.pop %v1947
        %v1975 = vmul.f32 1.0, %v1974
        %v1976 = vrcp.pop %v1948
        %v1977 = vmul.f32 1.0, %v1976
        %v1978 = vrcp.pop %v1949
        %v1979 = vmul.f32 1.0, %v1978
        %v1980 = vrcp.pop %v1950
        %v1981 = vmul.f32 1.0, %v1980
        %v1982 = vrcp.pop %v1951
        %v1983 = vmul.f32 1.0, %v1982
        %v1984 = vmul.f32 %v1472, %v1953
        %v1985 = vmul.f32 %v1477, %v1955
        %v1986 = vmul.f32 %v1482, %v1957
        %v1987 = vmul.f32 %v1487, %v1959
        %v1988 = vmul.f32 %v1492, %v1961
        %v1989 = vmul.f32 %v1497, %v1963
        %v1990 = vmul.f32 %v1502, %v1965
        %v1991 = vmul.f32 %v1507, %v1967
        %v1992 = vmul.f32 %v1512, %v1969
        %v1993 = vmul.f32 %v1517, %v1971
        %v1994 = vmul.f32 %v1522, %v1973
        %v1995 = vmul.f32 %v1527, %v1975
        %v1996 = vmul.f32 %v1532, %v1977
        %v1997 = vmul.f32 %v1537, %v1979
        %v1998 = vmul.f32 %v1542, %v1981
        %v1999 = vmul.f32 %v1547, %v1983
        %v2000 = vadd.f32 %v1984, %v324
        %v2001 = vadd.f32 %v1985, %v329
        %v2002 = vadd.f32 %v1986, %v334
        %v2003 = vadd.f32 %v1987, %v339
        %v2004 = vadd.f32 %v1988, %v344
        %v2005 = vadd.f32 %v1989, %v349
        %v2006 = vadd.f32 %v1990, %v354
        %v2007 = vadd.f32 %v1991, %v359
        %v2008 = vadd.f32 %v1992, %v364
        %v2009 = vadd.f32 %v1993, %v369
        %v2010 = vadd.f32 %v1994, %v374
        %v2011 = vadd.f32 %v1995, %v379
        %v2012 = vadd.f32 %v1996, %v384
        %v2013 = vadd.f32 %v1997, %v389
        %v2014 = vadd.f32 %v1998, %v394
        %v2015 = vadd.f32 %v1999, %v399
        %v2016 = vmax.f32 %v2000, 0.0
        %v2017 = vmax.f32 %v2001, 0.0
        %v2018 = vmax.f32 %v2002, 0.0
        %v2019 = vmax.f32 %v2003, 0.0
        %v2020 = vmax.f32 %v2004, 0.0
        %v2021 = vmax.f32 %v2005, 0.0
        %v2022 = vmax.f32 %v2006, 0.0
        %v2023 = vmax.f32 %v2007, 0.0
        %v2024 = vmax.f32 %v2008, 0.0
        %v2025 = vmax.f32 %v2009, 0.0
        %v2026 = vmax.f32 %v2010, 0.0
        %v2027 = vmax.f32 %v2011, 0.0
        %v2028 = vmax.f32 %v2012, 0.0
        %v2029 = vmax.f32 %v2013, 0.0
        %v2030 = vmax.f32 %v2014, 0.0
        %v2031 = vmax.f32 %v2015, 0.0
        %v2032 = vld [vmem:[#allocation5 + $0xd80] sm:$0xff]
        %v2033 = vld [vmem:[#allocation5 + $0xd88] sm:$0xff]
        %v2034 = vld [vmem:[#allocation5 + $0xd98] sm:$0xff]
        %v2035 = vld [vmem:[#allocation5 + $0xda0] sm:$0xff]
        %v2036 = vld [vmem:[#allocation5 + $0xdb0] sm:$0xff]
        %v2037 = vld [vmem:[#allocation5 + $0xdb8] sm:$0xff]
        %v2038 = vld [vmem:[#allocation5 + $0xdc8] sm:$0xff]
        %v2039 = vld [vmem:[#allocation5 + $0xdd0] sm:$0xff]
        %v2040 = vld [vmem:[#allocation5 + $0xde0] sm:$0xff]
        %v2041 = vld [vmem:[#allocation5 + $0xde8] sm:$0xff]
        %v2042 = vld [vmem:[#allocation5 + $0xdf8] sm:$0xff]
        %v2043 = vld [vmem:[#allocation5 + $0xe00] sm:$0xff]
        %v2044 = vld [vmem:[#allocation5 + $0xe10] sm:$0xff]
        %v2045 = vld [vmem:[#allocation5 + $0xe18] sm:$0xff]
        %v2046 = vld [vmem:[#allocation5 + $0xe28] sm:$0xff]
        %v2047 = vld [vmem:[#allocation5 + $0xe30] sm:$0xff]
        %v2048 = vld [vmem:[#allocation5 + $0xe40] sm:$0xff]
        %v2049 = vld [vmem:[#allocation5 + $0xe48] sm:$0xff]
        %v2050 = vld [vmem:[#allocation5 + $0xe58] sm:$0xff]
        %v2051 = vld [vmem:[#allocation5 + $0xe60] sm:$0xff]
        %v2052 = vld [vmem:[#allocation5 + $0xe70] sm:$0xff]
        %v2053 = vld [vmem:[#allocation5 + $0xe78] sm:$0xff]
        %v2054 = vld [vmem:[#allocation5 + $0xe88] sm:$0xff]
        %v2055 = vld [vmem:[#allocation5 + $0xe90] sm:$0xff]
        %v2056 = vld [vmem:[#allocation5 + $0xea0] sm:$0xff]
        %v2057 = vld [vmem:[#allocation5 + $0xea8] sm:$0xff]
        %v2058 = vld [vmem:[#allocation5 + $0xeb8] sm:$0xff]
        %v2059 = vld [vmem:[#allocation5 + $0xec0] sm:$0xff]
        %v2060 = vld [vmem:[#allocation5 + $0xed0] sm:$0xff]
        %v2061 = vld [vmem:[#allocation5 + $0xed8] sm:$0xff]
        %v2062 = vld [vmem:[#allocation5 + $0xee8] sm:$0xff]
        %v2063 = vld [vmem:[#allocation5 + $0xef0] sm:$0xff]
        %v2064 = vld [vmem:[#allocation7 + $0xf] sm:$0x3]
        %v2066 = vlaneseq
        %v2067 = vshrl.u32 %v2066, 7
        %v2068 = vsub.s32 0, %v2067
        %v2069 = vrot.slane %v2064, %v2068
        %v2070 = vlaneseq
        %v2071 = vshrl.u32 %v2070, 7
        %v2072 = vsub.s32 1, %v2071
        %v2073 = vrot.slane %v2064, %v2072
        %2076 = vmatprep.subr.mxu0 %v2063
        %2077 = vmatpush1.msra.mxu0 %v2062
        %2078 = vmatprep.subr.mxu0 %v2061
        %2079 = vmatpush1.msra.mxu0 %v2060
        %2080 = vmatprep.subr.mxu0 %v2059
        %2081 = vmatpush1.msra.mxu0 %v2058
        %2082 = vmatprep.subr.mxu0 %v2057
        %2083 = vmatpush1.msra.mxu0 %v2056
        %2084 = vmatprep.subr.mxu0 %v2055
        %2085 = vmatpush1.msra.mxu0 %v2054
        %2086 = vmatprep.subr.mxu0 %v2053
        %2087 = vmatpush1.msra.mxu0 %v2052
        %2088 = vmatprep.subr.mxu0 %v2051
        %2089 = vmatpush1.msra.mxu0 %v2050
        %2090 = vmatprep.subr.mxu0 %v2049
        %2091 = vmatpush1.msra.mxu0 %v2048
        %2092 = vmatprep.subr.mxu0 %v2047
        %2093 = vmatpush1.msra.mxu0 %v2046
        %2094 = vmatprep.subr.mxu0 %v2045
        %2095 = vmatpush1.msra.mxu0 %v2044
        %2096 = vmatprep.subr.mxu0 %v2043
        %2097 = vmatpush1.msra.mxu0 %v2042
        %2098 = vmatprep.subr.mxu0 %v2041
        %2099 = vmatpush1.msra.mxu0 %v2040
        %2100 = vmatprep.subr.mxu0 %v2039
        %2101 = vmatpush1.msra.mxu0 %v2038
        %2102 = vmatprep.subr.mxu0 %v2037
        %2103 = vmatpush1.msra.mxu0 %v2036
        %2104 = vmatprep.subr.mxu0 %v2035
        %2105 = vmatpush1.msra.mxu0 %v2034
        %2106 = vmatprep.subr.mxu0 %v2033
        %2107 = vmatpush1.msra.mxu0 %v2032
        %2108 = vmatprep.subr.mxu0 0.0
        %2109 = vmatpush2.msra.mxu0 0.0
        %2110 = vmatprep.subr.mxu0 0.0
        %2111 = vmatpush2.msra.mxu0 0.0
        %2112 = vmatprep.subr.mxu0 0.0
        %2113 = vmatpush2.msra.mxu0 0.0
        %2114 = vmatprep.subr.mxu0 0.0
        %2115 = vmatpush2.msra.mxu0 0.0
        %2116 = vmatprep.subr.mxu0 0.0
        %2117 = vmatpush2.msra.mxu0 0.0
        %2118 = vmatprep.subr.mxu0 0.0
        %2119 = vmatpush2.msra.mxu0 0.0
        %2120 = vmatprep.subr.mxu0 0.0
        %2121 = vmatpush2.msra.mxu0 0.0
        %2122 = vmatprep.subr.mxu0 0.0
        %2123 = vmatpush2.msra.mxu0 0.0
        %2124 = vmatprep.subr.mxu0 0.0
        %2125 = vmatpush2.msra.mxu0 0.0
        %2126 = vmatprep.subr.mxu0 0.0
        %2127 = vmatpush2.msra.mxu0 0.0
        %2128 = vmatprep.subr.mxu0 0.0
        %2129 = vmatpush2.msra.mxu0 0.0
        %2130 = vmatprep.subr.mxu0 0.0
        %2131 = vmatpush2.msra.mxu0 0.0
        %2132 = vmatprep.subr.mxu0 0.0
        %2133 = vmatpush2.msra.mxu0 0.0
        %2134 = vmatprep.subr.mxu0 0.0
        %2135 = vmatpush2.msra.mxu0 0.0
        %2136 = vmatprep.subr.mxu0 0.0
        %2137 = vmatpush2.msra.mxu0 0.0
        %2138 = vmatprep.subr.mxu0 0.0
        %2139 = vmatpush2.msra.mxu0 0.0
        %2140 = vmatprep.mubr.f32.mxu0 0.0
        %2141 = vmatmul.mubr.f32.gmra.mxu0 %v2016
        %v2142 = vpop.f32.mrf.mxu0
        %v2143 = vadd.f32 %v2069, %v2142
        %v2144 = vpop.f32.mrf.mxu0
        %v2145 = vadd.f32 %v2073, %v2144
        %2146 = vmatprep.mubr.f32.mxu0 0.0
        %2147 = vmatmul.mubr.f32.gmra.mxu0 %v2017
        %v2148 = vpop.f32.mrf.mxu0
        %v2149 = vadd.f32 %v2069, %v2148
        %v2150 = vpop.f32.mrf.mxu0
        %v2151 = vadd.f32 %v2073, %v2150
        %2152 = vmatprep.mubr.f32.mxu0 0.0
        %2153 = vmatmul.mubr.f32.gmra.mxu0 %v2018
        %v2154 = vpop.f32.mrf.mxu0
        %v2155 = vadd.f32 %v2069, %v2154
        %v2156 = vpop.f32.mrf.mxu0
        %v2157 = vadd.f32 %v2073, %v2156
        %2158 = vmatprep.mubr.f32.mxu0 0.0
        %2159 = vmatmul.mubr.f32.gmra.mxu0 %v2019
        %v2160 = vpop.f32.mrf.mxu0
        %v2161 = vadd.f32 %v2069, %v2160
        %v2162 = vpop.f32.mrf.mxu0
        %v2163 = vadd.f32 %v2073, %v2162
        %2164 = vmatprep.mubr.f32.mxu0 0.0
        %2165 = vmatmul.mubr.f32.gmra.mxu0 %v2020
        %v2166 = vpop.f32.mrf.mxu0
        %v2167 = vadd.f32 %v2069, %v2166
        %v2168 = vpop.f32.mrf.mxu0
        %v2169 = vadd.f32 %v2073, %v2168
        %2170 = vmatprep.mubr.f32.mxu0 0.0
        %2171 = vmatmul.mubr.f32.gmra.mxu0 %v2021
        %v2172 = vpop.f32.mrf.mxu0
        %v2173 = vadd.f32 %v2069, %v2172
        %v2174 = vpop.f32.mrf.mxu0
        %v2175 = vadd.f32 %v2073, %v2174
        %2176 = vmatprep.mubr.f32.mxu0 0.0
        %2177 = vmatmul.mubr.f32.gmra.mxu0 %v2022
        %v2178 = vpop.f32.mrf.mxu0
        %v2179 = vadd.f32 %v2069, %v2178
        %v2180 = vpop.f32.mrf.mxu0
        %v2181 = vadd.f32 %v2073, %v2180
        %2182 = vmatprep.mubr.f32.mxu0 0.0
        %2183 = vmatmul.mubr.f32.gmra.mxu0 %v2023
        %v2184 = vpop.f32.mrf.mxu0
        %v2185 = vadd.f32 %v2069, %v2184
        %v2186 = vpop.f32.mrf.mxu0
        %v2187 = vadd.f32 %v2073, %v2186
        %2188 = vmatprep.mubr.f32.mxu0 0.0
        %2189 = vmatmul.mubr.f32.gmra.mxu0 %v2024
        %v2190 = vpop.f32.mrf.mxu0
        %v2191 = vadd.f32 %v2069, %v2190
        %v2192 = vpop.f32.mrf.mxu0
        %v2193 = vadd.f32 %v2073, %v2192
        %2194 = vmatprep.mubr.f32.mxu0 0.0
        %2195 = vmatmul.mubr.f32.gmra.mxu0 %v2025
        %v2196 = vpop.f32.mrf.mxu0
        %v2197 = vadd.f32 %v2069, %v2196
        %v2198 = vpop.f32.mrf.mxu0
        %v2199 = vadd.f32 %v2073, %v2198
        %2200 = vmatprep.mubr.f32.mxu0 0.0
        %2201 = vmatmul.mubr.f32.gmra.mxu0 %v2026
        %v2202 = vpop.f32.mrf.mxu0
        %v2203 = vadd.f32 %v2069, %v2202
        %v2204 = vpop.f32.mrf.mxu0
        %v2205 = vadd.f32 %v2073, %v2204
        %2206 = vmatprep.mubr.f32.mxu0 0.0
        %2207 = vmatmul.mubr.f32.gmra.mxu0 %v2027
        %v2208 = vpop.f32.mrf.mxu0
        %v2209 = vadd.f32 %v2069, %v2208
        %v2210 = vpop.f32.mrf.mxu0
        %v2211 = vadd.f32 %v2073, %v2210
        %2212 = vmatprep.mubr.f32.mxu0 0.0
        %2213 = vmatmul.mubr.f32.gmra.mxu0 %v2028
        %v2214 = vpop.f32.mrf.mxu0
        %v2215 = vadd.f32 %v2069, %v2214
        %v2216 = vpop.f32.mrf.mxu0
        %v2217 = vadd.f32 %v2073, %v2216
        %2218 = vmatprep.mubr.f32.mxu0 0.0
        %2219 = vmatmul.mubr.f32.gmra.mxu0 %v2029
        %v2220 = vpop.f32.mrf.mxu0
        %v2221 = vadd.f32 %v2069, %v2220
        %v2222 = vpop.f32.mrf.mxu0
        %v2223 = vadd.f32 %v2073, %v2222
        %2224 = vmatprep.mubr.f32.mxu0 0.0
        %2225 = vmatmul.mubr.f32.gmra.mxu0 %v2030
        %v2226 = vpop.f32.mrf.mxu0
        %v2227 = vadd.f32 %v2069, %v2226
        %v2228 = vpop.f32.mrf.mxu0
        %v2229 = vadd.f32 %v2073, %v2228
        %2230 = vmatprep.mubr.f32.mxu0 0.0
        %2231 = vmatmul.mubr.f32.gmra.mxu0 %v2031
        %v2232 = vpop.f32.mrf.mxu0
        %v2233 = vadd.f32 %v2069, %v2232
        %v2234 = vpop.f32.mrf.mxu0
        %v2235 = vadd.f32 %v2073, %v2234
        %2236 = vdwg.mxu0
        %v2237 = vmax.f32 %v2143, 0.0
        %v2238 = vmax.f32 %v2145, 0.0
        %v2239 = vmax.f32 %v2149, 0.0
        %v2240 = vmax.f32 %v2151, 0.0
        %v2241 = vmax.f32 %v2155, 0.0
        %v2242 = vmax.f32 %v2157, 0.0
        %v2243 = vmax.f32 %v2161, 0.0
        %v2244 = vmax.f32 %v2163, 0.0
        %v2245 = vmax.f32 %v2167, 0.0
        %v2246 = vmax.f32 %v2169, 0.0
        %v2247 = vmax.f32 %v2173, 0.0
        %v2248 = vmax.f32 %v2175, 0.0
        %v2249 = vmax.f32 %v2179, 0.0
        %v2250 = vmax.f32 %v2181, 0.0
        %v2251 = vmax.f32 %v2185, 0.0
        %v2252 = vmax.f32 %v2187, 0.0
        %v2253 = vmax.f32 %v2191, 0.0
        %v2254 = vmax.f32 %v2193, 0.0
        %v2255 = vmax.f32 %v2197, 0.0
        %v2256 = vmax.f32 %v2199, 0.0
        %v2257 = vmax.f32 %v2203, 0.0
        %v2258 = vmax.f32 %v2205, 0.0
        %v2259 = vmax.f32 %v2209, 0.0
        %v2260 = vmax.f32 %v2211, 0.0
        %v2261 = vmax.f32 %v2215, 0.0
        %v2262 = vmax.f32 %v2217, 0.0
        %v2263 = vmax.f32 %v2221, 0.0
        %v2264 = vmax.f32 %v2223, 0.0
        %v2265 = vmax.f32 %v2227, 0.0
        %v2266 = vmax.f32 %v2229, 0.0
        %v2267 = vmax.f32 %v2233, 0.0
        %v2268 = vmax.f32 %v2235, 0.0
        %v2269 = vld [vmem:[#allocation5 + $0xf00] sm:$0xff]
        %v2270 = vld [vmem:[#allocation5 + $0xf08] sm:$0xff]
        %v2271 = vld [vmem:[#allocation5 + $0xf10] sm:$0xff]
        %v2272 = vld [vmem:[#allocation5 + $0xf18] sm:$0xff]
        %v2273 = vld [vmem:[#allocation5 + $0xf20] sm:$0xff]
        %v2274 = vld [vmem:[#allocation5 + $0xf28] sm:$0xff]
        %v2275 = vld [vmem:[#allocation5 + $0xf30] sm:$0xff]
        %v2276 = vld [vmem:[#allocation5 + $0xf38] sm:$0xff]
        %v2277 = vld [vmem:[#allocation5 + $0xf40] sm:$0xff]
        %v2278 = vld [vmem:[#allocation5 + $0xf48] sm:$0xff]
        %v2279 = vld [vmem:[#allocation5 + $0xf50] sm:$0xff]
        %v2280 = vld [vmem:[#allocation5 + $0xf58] sm:$0xff]
        %v2281 = vld [vmem:[#allocation5 + $0xf60] sm:$0xff]
        %v2282 = vld [vmem:[#allocation5 + $0xf68] sm:$0xff]
        %v2283 = vld [vmem:[#allocation5 + $0xf70] sm:$0xff]
        %v2284 = vld [vmem:[#allocation5 + $0xf78] sm:$0xff]
        %v2285 = vld [vmem:[#allocation5 + $0xf80] sm:$0xff]
        %v2286 = vld [vmem:[#allocation5 + $0xf88] sm:$0xff]
        %v2287 = vld [vmem:[#allocation5 + $0xf90] sm:$0xff]
        %v2288 = vld [vmem:[#allocation5 + $0xf98] sm:$0xff]
        %v2289 = vld [vmem:[#allocation5 + $0xfa0] sm:$0xff]
        %v2290 = vld [vmem:[#allocation5 + $0xfa8] sm:$0xff]
        %v2291 = vld [vmem:[#allocation5 + $0xfb0] sm:$0xff]
        %v2292 = vld [vmem:[#allocation5 + $0xfb8] sm:$0xff]
        %v2293 = vld [vmem:[#allocation5 + $0xfc0] sm:$0xff]
        %v2294 = vld [vmem:[#allocation5 + $0xfc8] sm:$0xff]
        %v2295 = vld [vmem:[#allocation5 + $0xfd0] sm:$0xff]
        %v2296 = vld [vmem:[#allocation5 + $0xfd8] sm:$0xff]
        %v2297 = vld [vmem:[#allocation5 + $0xfe0] sm:$0xff]
        %v2298 = vld [vmem:[#allocation5 + $0xfe8] sm:$0xff]
        %v2299 = vld [vmem:[#allocation5 + $0xff0] sm:$0xff]
        %v2300 = vld [vmem:[#allocation5 + $0xff8] sm:$0xff]
        %v2301 = vld [vmem:[#allocation5 + $0x1000] sm:$0xff]
        %v2302 = vld [vmem:[#allocation5 + $0x1008] sm:$0xff]
        %v2303 = vld [vmem:[#allocation5 + $0x1010] sm:$0xff]
        %v2304 = vld [vmem:[#allocation5 + $0x1018] sm:$0xff]
        %v2305 = vld [vmem:[#allocation5 + $0x1020] sm:$0xff]
        %v2306 = vld [vmem:[#allocation5 + $0x1028] sm:$0xff]
        %v2307 = vld [vmem:[#allocation5 + $0x1030] sm:$0xff]
        %v2308 = vld [vmem:[#allocation5 + $0x1038] sm:$0xff]
        %v2309 = vld [vmem:[#allocation5 + $0x1040] sm:$0xff]
        %v2310 = vld [vmem:[#allocation5 + $0x1048] sm:$0xff]
        %v2311 = vld [vmem:[#allocation5 + $0x1050] sm:$0xff]
        %v2312 = vld [vmem:[#allocation5 + $0x1058] sm:$0xff]
        %v2313 = vld [vmem:[#allocation5 + $0x1060] sm:$0xff]
        %v2314 = vld [vmem:[#allocation5 + $0x1068] sm:$0xff]
        %v2315 = vld [vmem:[#allocation5 + $0x1070] sm:$0xff]
        %v2316 = vld [vmem:[#allocation5 + $0x1078] sm:$0xff]
        %v2317 = vld [vmem:[#allocation5 + $0x1080] sm:$0xff]
        %v2318 = vld [vmem:[#allocation5 + $0x1088] sm:$0xff]
        %v2319 = vld [vmem:[#allocation5 + $0x1090] sm:$0xff]
        %v2320 = vld [vmem:[#allocation5 + $0x1098] sm:$0xff]
        %v2321 = vld [vmem:[#allocation5 + $0x10a0] sm:$0xff]
        %v2322 = vld [vmem:[#allocation5 + $0x10a8] sm:$0xff]
        %v2323 = vld [vmem:[#allocation5 + $0x10b0] sm:$0xff]
        %v2324 = vld [vmem:[#allocation5 + $0x10b8] sm:$0xff]
        %v2325 = vld [vmem:[#allocation5 + $0x10c0] sm:$0xff]
        %v2326 = vld [vmem:[#allocation5 + $0x10c8] sm:$0xff]
        %v2327 = vld [vmem:[#allocation5 + $0x10d0] sm:$0xff]
        %v2328 = vld [vmem:[#allocation5 + $0x10d8] sm:$0xff]
        %v2329 = vld [vmem:[#allocation5 + $0x10e0] sm:$0xff]
        %v2330 = vld [vmem:[#allocation5 + $0x10e8] sm:$0xff]
        %v2331 = vld [vmem:[#allocation5 + $0x10f0] sm:$0xff]
        %v2332 = vld [vmem:[#allocation5 + $0x10f8] sm:$0xff]
        %v2333 = vld [vmem:[#allocation5 + $0x1100] sm:$0xff]
        %v2334 = vld [vmem:[#allocation5 + $0x1108] sm:$0xff]
        %v2335 = vld [vmem:[#allocation5 + $0x1110] sm:$0xff]
        %v2336 = vld [vmem:[#allocation5 + $0x1118] sm:$0xff]
        %v2337 = vld [vmem:[#allocation5 + $0x1120] sm:$0xff]
        %v2338 = vld [vmem:[#allocation5 + $0x1128] sm:$0xff]
        %v2339 = vld [vmem:[#allocation5 + $0x1130] sm:$0xff]
        %v2340 = vld [vmem:[#allocation5 + $0x1138] sm:$0xff]
        %v2341 = vld [vmem:[#allocation5 + $0x1140] sm:$0xff]
        %v2342 = vld [vmem:[#allocation5 + $0x1148] sm:$0xff]
        %v2343 = vld [vmem:[#allocation5 + $0x1150] sm:$0xff]
        %v2344 = vld [vmem:[#allocation5 + $0x1158] sm:$0xff]
        %v2345 = vld [vmem:[#allocation5 + $0x1160] sm:$0xff]
        %v2346 = vld [vmem:[#allocation5 + $0x1168] sm:$0xff]
        %v2347 = vld [vmem:[#allocation5 + $0x1170] sm:$0xff]
        %v2348 = vld [vmem:[#allocation5 + $0x1178] sm:$0xff]
        %v2349 = vld [vmem:[#allocation5 + $0x1180] sm:$0xff]
        %v2350 = vld [vmem:[#allocation5 + $0x1188] sm:$0xff]
        %v2351 = vld [vmem:[#allocation5 + $0x1190] sm:$0xff]
        %v2352 = vld [vmem:[#allocation5 + $0x1198] sm:$0xff]
        %v2353 = vld [vmem:[#allocation5 + $0x11a0] sm:$0xff]
        %v2354 = vld [vmem:[#allocation5 + $0x11a8] sm:$0xff]
        %v2355 = vld [vmem:[#allocation5 + $0x11b0] sm:$0xff]
        %v2356 = vld [vmem:[#allocation5 + $0x11b8] sm:$0xff]
        %v2357 = vld [vmem:[#allocation5 + $0x11c0] sm:$0xff]
        %v2358 = vld [vmem:[#allocation5 + $0x11c8] sm:$0xff]
        %v2359 = vld [vmem:[#allocation5 + $0x11d0] sm:$0xff]
        %v2360 = vld [vmem:[#allocation5 + $0x11d8] sm:$0xff]
        %v2361 = vld [vmem:[#allocation5 + $0x11e0] sm:$0xff]
        %v2362 = vld [vmem:[#allocation5 + $0x11e8] sm:$0xff]
        %v2363 = vld [vmem:[#allocation5 + $0x11f0] sm:$0xff]
        %v2364 = vld [vmem:[#allocation5 + $0x11f8] sm:$0xff]
        %v2365 = vld [vmem:[#allocation7 + $0x12] sm:$0x7]
        %v2367 = vlaneseq
        %v2368 = vshrl.u32 %v2367, 7
        %v2369 = vsub.s32 0, %v2368
        %v2370 = vrot.slane %v2365, %v2369
        %v2371 = vlaneseq
        %v2372 = vshrl.u32 %v2371, 7
        %v2373 = vsub.s32 1, %v2372
        %v2374 = vrot.slane %v2365, %v2373
        %v2375 = vlaneseq
        %v2376 = vshrl.u32 %v2375, 7
        %v2377 = vsub.s32 2, %v2376
        %v2378 = vrot.slane %v2365, %v2377
        %2382 = vmatprep.subr.mxu0 %v2315
        %2383 = vmatpush1.msra.mxu0 %v2314
        %2384 = vmatprep.subr.mxu0 %v2312
        %2385 = vmatpush1.msra.mxu0 %v2311
        %2386 = vmatprep.subr.mxu0 %v2309
        %2387 = vmatpush1.msra.mxu0 %v2308
        %2388 = vmatprep.subr.mxu0 %v2306
        %2389 = vmatpush1.msra.mxu0 %v2305
        %2390 = vmatprep.subr.mxu0 %v2303
        %2391 = vmatpush1.msra.mxu0 %v2302
        %2392 = vmatprep.subr.mxu0 %v2300
        %2393 = vmatpush1.msra.mxu0 %v2299
        %2394 = vmatprep.subr.mxu0 %v2297
        %2395 = vmatpush1.msra.mxu0 %v2296
        %2396 = vmatprep.subr.mxu0 %v2294
        %2397 = vmatpush1.msra.mxu0 %v2293
        %2398 = vmatprep.subr.mxu0 %v2291
        %2399 = vmatpush1.msra.mxu0 %v2290
        %2400 = vmatprep.subr.mxu0 %v2288
        %2401 = vmatpush1.msra.mxu0 %v2287
        %2402 = vmatprep.subr.mxu0 %v2285
        %2403 = vmatpush1.msra.mxu0 %v2284
        %2404 = vmatprep.subr.mxu0 %v2282
        %2405 = vmatpush1.msra.mxu0 %v2281
        %2406 = vmatprep.subr.mxu0 %v2279
        %2407 = vmatpush1.msra.mxu0 %v2278
        %2408 = vmatprep.subr.mxu0 %v2276
        %2409 = vmatpush1.msra.mxu0 %v2275
        %2410 = vmatprep.subr.mxu0 %v2273
        %2411 = vmatpush1.msra.mxu0 %v2272
        %2412 = vmatprep.subr.mxu0 %v2270
        %2413 = vmatpush1.msra.mxu0 %v2269
        %2414 = vmatprep.subr.mxu0 %v2363
        %2415 = vmatpush2.msra.mxu0 %v2362
        %2416 = vmatprep.subr.mxu0 %v2360
        %2417 = vmatpush2.msra.mxu0 %v2359
        %2418 = vmatprep.subr.mxu0 %v2357
        %2419 = vmatpush2.msra.mxu0 %v2356
        %2420 = vmatprep.subr.mxu0 %v2354
        %2421 = vmatpush2.msra.mxu0 %v2353
        %2422 = vmatprep.subr.mxu0 %v2351
        %2423 = vmatpush2.msra.mxu0 %v2350
        %2424 = vmatprep.subr.mxu0 %v2348
        %2425 = vmatpush2.msra.mxu0 %v2347
        %2426 = vmatprep.subr.mxu0 %v2345
        %2427 = vmatpush2.msra.mxu0 %v2344
        %2428 = vmatprep.subr.mxu0 %v2342
        %2429 = vmatpush2.msra.mxu0 %v2341
        %2430 = vmatprep.subr.mxu0 %v2339
        %2431 = vmatpush2.msra.mxu0 %v2338
        %2432 = vmatprep.subr.mxu0 %v2336
        %2433 = vmatpush2.msra.mxu0 %v2335
        %2434 = vmatprep.subr.mxu0 %v2333
        %2435 = vmatpush2.msra.mxu0 %v2332
        %2436 = vmatprep.subr.mxu0 %v2330
        %2437 = vmatpush2.msra.mxu0 %v2329
        %2438 = vmatprep.subr.mxu0 %v2327
        %2439 = vmatpush2.msra.mxu0 %v2326
        %2440 = vmatprep.subr.mxu0 %v2324
        %2441 = vmatpush2.msra.mxu0 %v2323
        %2442 = vmatprep.subr.mxu0 %v2321
        %2443 = vmatpush2.msra.mxu0 %v2320
        %2444 = vmatprep.subr.mxu0 %v2318
        %2445 = vmatpush2.msra.mxu0 %v2317
        %2446 = vmatprep.mubr.f32.mxu0 %v2238
        %2447 = vmatmul.mubr.f32.gmra.mxu0 %v2237
        %v2448 = vpop.f32.mrf.mxu0
        %v2449 = vadd.f32 %v2370, %v2448
        %v2450 = vpop.f32.mrf.mxu0
        %v2451 = vadd.f32 %v2374, %v2450
        %2452 = vmatprep.mubr.f32.mxu0 %v2240
        %2453 = vmatmul.mubr.f32.gmra.mxu0 %v2239
        %v2454 = vpop.f32.mrf.mxu0
        %v2455 = vadd.f32 %v2370, %v2454
        %v2456 = vpop.f32.mrf.mxu0
        %v2457 = vadd.f32 %v2374, %v2456
        %2458 = vmatprep.mubr.f32.mxu0 %v2242
        %2459 = vmatmul.mubr.f32.gmra.mxu0 %v2241
        %v2460 = vpop.f32.mrf.mxu0
        %v2461 = vadd.f32 %v2370, %v2460
        %v2462 = vpop.f32.mrf.mxu0
        %v2463 = vadd.f32 %v2374, %v2462
        %2464 = vmatprep.mubr.f32.mxu0 %v2244
        %2465 = vmatmul.mubr.f32.gmra.mxu0 %v2243
        %v2466 = vpop.f32.mrf.mxu0
        %v2467 = vadd.f32 %v2370, %v2466
        %v2468 = vpop.f32.mrf.mxu0
        %v2469 = vadd.f32 %v2374, %v2468
        %2470 = vmatprep.mubr.f32.mxu0 %v2246
        %2471 = vmatmul.mubr.f32.gmra.mxu0 %v2245
        %v2472 = vpop.f32.mrf.mxu0
        %v2473 = vadd.f32 %v2370, %v2472
        %v2474 = vpop.f32.mrf.mxu0
        %v2475 = vadd.f32 %v2374, %v2474
        %2476 = vmatprep.mubr.f32.mxu0 %v2248
        %2477 = vmatmul.mubr.f32.gmra.mxu0 %v2247
        %v2478 = vpop.f32.mrf.mxu0
        %v2479 = vadd.f32 %v2370, %v2478
        %v2480 = vpop.f32.mrf.mxu0
        %v2481 = vadd.f32 %v2374, %v2480
        %2482 = vmatprep.mubr.f32.mxu0 %v2250
        %2483 = vmatmul.mubr.f32.gmra.mxu0 %v2249
        %v2484 = vpop.f32.mrf.mxu0
        %v2485 = vadd.f32 %v2370, %v2484
        %v2486 = vpop.f32.mrf.mxu0
        %v2487 = vadd.f32 %v2374, %v2486
        %2488 = vmatprep.mubr.f32.mxu0 %v2252
        %2489 = vmatmul.mubr.f32.gmra.mxu0 %v2251
        %v2490 = vpop.f32.mrf.mxu0
        %v2491 = vadd.f32 %v2370, %v2490
        %v2492 = vpop.f32.mrf.mxu0
        %v2493 = vadd.f32 %v2374, %v2492
        %2494 = vmatprep.mubr.f32.mxu0 %v2254
        %2495 = vmatmul.mubr.f32.gmra.mxu0 %v2253
        %v2496 = vpop.f32.mrf.mxu0
        %v2497 = vadd.f32 %v2370, %v2496
        %v2498 = vpop.f32.mrf.mxu0
        %v2499 = vadd.f32 %v2374, %v2498
        %2500 = vmatprep.mubr.f32.mxu0 %v2256
        %2501 = vmatmul.mubr.f32.gmra.mxu0 %v2255
        %v2502 = vpop.f32.mrf.mxu0
        %v2503 = vadd.f32 %v2370, %v2502
        %v2504 = vpop.f32.mrf.mxu0
        %v2505 = vadd.f32 %v2374, %v2504
        %2506 = vmatprep.mubr.f32.mxu0 %v2258
        %2507 = vmatmul.mubr.f32.gmra.mxu0 %v2257
        %v2508 = vpop.f32.mrf.mxu0
        %v2509 = vadd.f32 %v2370, %v2508
        %v2510 = vpop.f32.mrf.mxu0
        %v2511 = vadd.f32 %v2374, %v2510
        %2512 = vmatprep.mubr.f32.mxu0 %v2260
        %2513 = vmatmul.mubr.f32.gmra.mxu0 %v2259
        %v2514 = vpop.f32.mrf.mxu0
        %v2515 = vadd.f32 %v2370, %v2514
        %v2516 = vpop.f32.mrf.mxu0
        %v2517 = vadd.f32 %v2374, %v2516
        %2518 = vmatprep.mubr.f32.mxu0 %v2262
        %2519 = vmatmul.mubr.f32.gmra.mxu0 %v2261
        %v2520 = vpop.f32.mrf.mxu0
        %v2521 = vadd.f32 %v2370, %v2520
        %v2522 = vpop.f32.mrf.mxu0
        %v2523 = vadd.f32 %v2374, %v2522
        %2524 = vmatprep.mubr.f32.mxu0 %v2264
        %2525 = vmatmul.mubr.f32.gmra.mxu0 %v2263
        %v2526 = vpop.f32.mrf.mxu0
        %v2527 = vadd.f32 %v2370, %v2526
        %v2528 = vpop.f32.mrf.mxu0
        %v2529 = vadd.f32 %v2374, %v2528
        %2530 = vmatprep.mubr.f32.mxu0 %v2266
        %2531 = vmatmul.mubr.f32.gmra.mxu0 %v2265
        %v2532 = vpop.f32.mrf.mxu0
        %v2533 = vadd.f32 %v2370, %v2532
        %v2534 = vpop.f32.mrf.mxu0
        %v2535 = vadd.f32 %v2374, %v2534
        %2536 = vmatprep.mubr.f32.mxu0 %v2268
        %2537 = vmatmul.mubr.f32.gmra.mxu0 %v2267
        %v2538 = vpop.f32.mrf.mxu0
        %v2539 = vadd.f32 %v2370, %v2538
        %v2540 = vpop.f32.mrf.mxu0
        %v2541 = vadd.f32 %v2374, %v2540
        %2542 = vdwg.mxu0
        %2543 = vmatprep.subr.mxu0 0.0
        %2544 = vmatpush1.msra.mxu0 %v2316
        %2545 = vmatprep.subr.mxu0 0.0
        %2546 = vmatpush1.msra.mxu0 %v2313
        %2547 = vmatprep.subr.mxu0 0.0
        %2548 = vmatpush1.msra.mxu0 %v2310
        %2549 = vmatprep.subr.mxu0 0.0
        %2550 = vmatpush1.msra.mxu0 %v2307
        %2551 = vmatprep.subr.mxu0 0.0
        %2552 = vmatpush1.msra.mxu0 %v2304
        %2553 = vmatprep.subr.mxu0 0.0
        %2554 = vmatpush1.msra.mxu0 %v2301
        %2555 = vmatprep.subr.mxu0 0.0
        %2556 = vmatpush1.msra.mxu0 %v2298
        %2557 = vmatprep.subr.mxu0 0.0
        %2558 = vmatpush1.msra.mxu0 %v2295
        %2559 = vmatprep.subr.mxu0 0.0
        %2560 = vmatpush1.msra.mxu0 %v2292
        %2561 = vmatprep.subr.mxu0 0.0
        %2562 = vmatpush1.msra.mxu0 %v2289
        %2563 = vmatprep.subr.mxu0 0.0
        %2564 = vmatpush1.msra.mxu0 %v2286
        %2565 = vmatprep.subr.mxu0 0.0
        %2566 = vmatpush1.msra.mxu0 %v2283
        %2567 = vmatprep.subr.mxu0 0.0
        %2568 = vmatpush1.msra.mxu0 %v2280
        %2569 = vmatprep.subr.mxu0 0.0
        %2570 = vmatpush1.msra.mxu0 %v2277
        %2571 = vmatprep.subr.mxu0 0.0
        %2572 = vmatpush1.msra.mxu0 %v2274
        %2573 = vmatprep.subr.mxu0 0.0
        %2574 = vmatpush1.msra.mxu0 %v2271
        %2575 = vmatprep.subr.mxu0 0.0
        %2576 = vmatpush2.msra.mxu0 %v2364
        %2577 = vmatprep.subr.mxu0 0.0
        %2578 = vmatpush2.msra.mxu0 %v2361
        %2579 = vmatprep.subr.mxu0 0.0
        %2580 = vmatpush2.msra.mxu0 %v2358
        %2581 = vmatprep.subr.mxu0 0.0
        %2582 = vmatpush2.msra.mxu0 %v2355
        %2583 = vmatprep.subr.mxu0 0.0
        %2584 = vmatpush2.msra.mxu0 %v2352
        %2585 = vmatprep.subr.mxu0 0.0
        %2586 = vmatpush2.msra.mxu0 %v2349
        %2587 = vmatprep.subr.mxu0 0.0
        %2588 = vmatpush2.msra.mxu0 %v2346
        %2589 = vmatprep.subr.mxu0 0.0
        %2590 = vmatpush2.msra.mxu0 %v2343
        %2591 = vmatprep.subr.mxu0 0.0
        %2592 = vmatpush2.msra.mxu0 %v2340
        %2593 = vmatprep.subr.mxu0 0.0
        %2594 = vmatpush2.msra.mxu0 %v2337
        %2595 = vmatprep.subr.mxu0 0.0
        %2596 = vmatpush2.msra.mxu0 %v2334
        %2597 = vmatprep.subr.mxu0 0.0
        %2598 = vmatpush2.msra.mxu0 %v2331
        %2599 = vmatprep.subr.mxu0 0.0
        %2600 = vmatpush2.msra.mxu0 %v2328
        %2601 = vmatprep.subr.mxu0 0.0
        %2602 = vmatpush2.msra.mxu0 %v2325
        %2603 = vmatprep.subr.mxu0 0.0
        %2604 = vmatpush2.msra.mxu0 %v2322
        %2605 = vmatprep.subr.mxu0 0.0
        %2606 = vmatpush2.msra.mxu0 %v2319
        %2607 = vmatprep.mubr.f32.mxu0 %v2238
        %2608 = vmatmul.mubr.f32.gmra.mxu0 %v2237
        %v2609 = vpop.f32.mrf.mxu0
        %v2610 = vadd.f32 %v2378, %v2609
        %v2611 = vpop.f32.mrf.mxu0
        %2612 = vmatprep.mubr.f32.mxu0 %v2240
        %2613 = vmatmul.mubr.f32.gmra.mxu0 %v2239
        %v2614 = vpop.f32.mrf.mxu0
        %v2615 = vadd.f32 %v2378, %v2614
        %v2616 = vpop.f32.mrf.mxu0
        %2617 = vmatprep.mubr.f32.mxu0 %v2242
        %2618 = vmatmul.mubr.f32.gmra.mxu0 %v2241
        %v2619 = vpop.f32.mrf.mxu0
        %v2620 = vadd.f32 %v2378, %v2619
        %v2621 = vpop.f32.mrf.mxu0
        %2622 = vmatprep.mubr.f32.mxu0 %v2244
        %2623 = vmatmul.mubr.f32.gmra.mxu0 %v2243
        %v2624 = vpop.f32.mrf.mxu0
        %v2625 = vadd.f32 %v2378, %v2624
        %v2626 = vpop.f32.mrf.mxu0
        %2627 = vmatprep.mubr.f32.mxu0 %v2246
        %2628 = vmatmul.mubr.f32.gmra.mxu0 %v2245
        %v2629 = vpop.f32.mrf.mxu0
        %v2630 = vadd.f32 %v2378, %v2629
        %v2631 = vpop.f32.mrf.mxu0
        %2632 = vmatprep.mubr.f32.mxu0 %v2248
        %2633 = vmatmul.mubr.f32.gmra.mxu0 %v2247
        %v2634 = vpop.f32.mrf.mxu0
        %v2635 = vadd.f32 %v2378, %v2634
        %v2636 = vpop.f32.mrf.mxu0
        %2637 = vmatprep.mubr.f32.mxu0 %v2250
        %2638 = vmatmul.mubr.f32.gmra.mxu0 %v2249
        %v2639 = vpop.f32.mrf.mxu0
        %v2640 = vadd.f32 %v2378, %v2639
        %v2641 = vpop.f32.mrf.mxu0
        %2642 = vmatprep.mubr.f32.mxu0 %v2252
        %2643 = vmatmul.mubr.f32.gmra.mxu0 %v2251
        %v2644 = vpop.f32.mrf.mxu0
        %v2645 = vadd.f32 %v2378, %v2644
        %v2646 = vpop.f32.mrf.mxu0
        %2647 = vmatprep.mubr.f32.mxu0 %v2254
        %2648 = vmatmul.mubr.f32.gmra.mxu0 %v2253
        %v2649 = vpop.f32.mrf.mxu0
        %v2650 = vadd.f32 %v2378, %v2649
        %v2651 = vpop.f32.mrf.mxu0
        %2652 = vmatprep.mubr.f32.mxu0 %v2256
        %2653 = vmatmul.mubr.f32.gmra.mxu0 %v2255
        %v2654 = vpop.f32.mrf.mxu0
        %v2655 = vadd.f32 %v2378, %v2654
        %v2656 = vpop.f32.mrf.mxu0
        %2657 = vmatprep.mubr.f32.mxu0 %v2258
        %2658 = vmatmul.mubr.f32.gmra.mxu0 %v2257
        %v2659 = vpop.f32.mrf.mxu0
        %v2660 = vadd.f32 %v2378, %v2659
        %v2661 = vpop.f32.mrf.mxu0
        %2662 = vmatprep.mubr.f32.mxu0 %v2260
        %2663 = vmatmul.mubr.f32.gmra.mxu0 %v2259
        %v2664 = vpop.f32.mrf.mxu0
        %v2665 = vadd.f32 %v2378, %v2664
        %v2666 = vpop.f32.mrf.mxu0
        %2667 = vmatprep.mubr.f32.mxu0 %v2262
        %2668 = vmatmul.mubr.f32.gmra.mxu0 %v2261
        %v2669 = vpop.f32.mrf.mxu0
        %v2670 = vadd.f32 %v2378, %v2669
        %v2671 = vpop.f32.mrf.mxu0
        %2672 = vmatprep.mubr.f32.mxu0 %v2264
        %2673 = vmatmul.mubr.f32.gmra.mxu0 %v2263
        %v2674 = vpop.f32.mrf.mxu0
        %v2675 = vadd.f32 %v2378, %v2674
        %v2676 = vpop.f32.mrf.mxu0
        %2677 = vmatprep.mubr.f32.mxu0 %v2266
        %2678 = vmatmul.mubr.f32.gmra.mxu0 %v2265
        %v2679 = vpop.f32.mrf.mxu0
        %v2680 = vadd.f32 %v2378, %v2679
        %v2681 = vpop.f32.mrf.mxu0
        %2682 = vmatprep.mubr.f32.mxu0 %v2268
        %2683 = vmatmul.mubr.f32.gmra.mxu0 %v2267
        %v2684 = vpop.f32.mrf.mxu0
        %v2685 = vadd.f32 %v2378, %v2684
        %v2686 = vpop.f32.mrf.mxu0
        %2687 = vdwg.mxu0
        %v2688 = vmax.f32 %v2449, 0.0
        %v2689 = vmax.f32 %v2451, 0.0
        %v2690 = vmax.f32 %v2610, 0.0
        %v2691 = vmax.f32 %v2455, 0.0
        %v2692 = vmax.f32 %v2457, 0.0
        %v2693 = vmax.f32 %v2615, 0.0
        %v2694 = vmax.f32 %v2461, 0.0
        %v2695 = vmax.f32 %v2463, 0.0
        %v2696 = vmax.f32 %v2620, 0.0
        %v2697 = vmax.f32 %v2467, 0.0
        %v2698 = vmax.f32 %v2469, 0.0
        %v2699 = vmax.f32 %v2625, 0.0
        %v2700 = vmax.f32 %v2473, 0.0
        %v2701 = vmax.f32 %v2475, 0.0
        %v2702 = vmax.f32 %v2630, 0.0
        %v2703 = vmax.f32 %v2479, 0.0
        %v2704 = vmax.f32 %v2481, 0.0
        %v2705 = vmax.f32 %v2635, 0.0
        %v2706 = vmax.f32 %v2485, 0.0
        %v2707 = vmax.f32 %v2487, 0.0
        %v2708 = vmax.f32 %v2640, 0.0
        %v2709 = vmax.f32 %v2491, 0.0
        %v2710 = vmax.f32 %v2493, 0.0
        %v2711 = vmax.f32 %v2645, 0.0
        %v2712 = vmax.f32 %v2497, 0.0
        %v2713 = vmax.f32 %v2499, 0.0
        %v2714 = vmax.f32 %v2650, 0.0
        %v2715 = vmax.f32 %v2503, 0.0
        %v2716 = vmax.f32 %v2505, 0.0
        %v2717 = vmax.f32 %v2655, 0.0
        %v2718 = vmax.f32 %v2509, 0.0
        %v2719 = vmax.f32 %v2511, 0.0
        %v2720 = vmax.f32 %v2660, 0.0
        %v2721 = vmax.f32 %v2515, 0.0
        %v2722 = vmax.f32 %v2517, 0.0
        %v2723 = vmax.f32 %v2665, 0.0
        %v2724 = vmax.f32 %v2521, 0.0
        %v2725 = vmax.f32 %v2523, 0.0
        %v2726 = vmax.f32 %v2670, 0.0
        %v2727 = vmax.f32 %v2527, 0.0
        %v2728 = vmax.f32 %v2529, 0.0
        %v2729 = vmax.f32 %v2675, 0.0
        %v2730 = vmax.f32 %v2533, 0.0
        %v2731 = vmax.f32 %v2535, 0.0
        %v2732 = vmax.f32 %v2680, 0.0
        %v2733 = vmax.f32 %v2539, 0.0
        %v2734 = vmax.f32 %v2541, 0.0
        %v2735 = vmax.f32 %v2685, 0.0
        %v2736 = vld [vmem:[#allocation5 + $0x1200] sm:$0xff]
        %v2737 = vld [vmem:[#allocation5 + $0x1218] sm:$0xff]
        %v2738 = vld [vmem:[#allocation5 + $0x1230] sm:$0xff]
        %v2739 = vld [vmem:[#allocation5 + $0x1248] sm:$0xff]
        %v2740 = vld [vmem:[#allocation5 + $0x1260] sm:$0xff]
        %v2741 = vld [vmem:[#allocation5 + $0x1278] sm:$0xff]
        %v2742 = vld [vmem:[#allocation5 + $0x1290] sm:$0xff]
        %v2743 = vld [vmem:[#allocation5 + $0x12a8] sm:$0xff]
        %v2744 = vld [vmem:[#allocation5 + $0x12c0] sm:$0xff]
        %v2745 = vld [vmem:[#allocation5 + $0x12d8] sm:$0xff]
        %v2746 = vld [vmem:[#allocation5 + $0x12f0] sm:$0xff]
        %v2747 = vld [vmem:[#allocation5 + $0x1308] sm:$0xff]
        %v2748 = vld [vmem:[#allocation5 + $0x1320] sm:$0xff]
        %v2749 = vld [vmem:[#allocation5 + $0x1338] sm:$0xff]
        %v2750 = vld [vmem:[#allocation5 + $0x1350] sm:$0xff]
        %v2751 = vld [vmem:[#allocation5 + $0x1368] sm:$0xff]
        %v2752 = vld [vmem:[#allocation5 + $0x1380] sm:$0xff]
        %v2753 = vld [vmem:[#allocation5 + $0x1398] sm:$0xff]
        %v2754 = vld [vmem:[#allocation5 + $0x13b0] sm:$0xff]
        %v2755 = vld [vmem:[#allocation5 + $0x13c8] sm:$0xff]
        %v2756 = vld [vmem:[#allocation5 + $0x13e0] sm:$0xff]
        %v2757 = vld [vmem:[#allocation5 + $0x13f8] sm:$0xff]
        %v2758 = vld [vmem:[#allocation5 + $0x1410] sm:$0xff]
        %v2759 = vld [vmem:[#allocation5 + $0x1428] sm:$0xff]
        %v2760 = vld [vmem:[#allocation5 + $0x1440] sm:$0xff]
        %v2761 = vld [vmem:[#allocation5 + $0x1458] sm:$0xff]
        %v2762 = vld [vmem:[#allocation5 + $0x1470] sm:$0xff]
        %v2763 = vld [vmem:[#allocation5 + $0x1488] sm:$0xff]
        %v2764 = vld [vmem:[#allocation5 + $0x14a0] sm:$0xff]
        %v2765 = vld [vmem:[#allocation5 + $0x14b8] sm:$0xff]
        %v2766 = vld [vmem:[#allocation5 + $0x14d0] sm:$0xff]
        %v2767 = vld [vmem:[#allocation5 + $0x14e8] sm:$0xff]
        %v2768 = vld [vmem:[#allocation5 + $0x1500] sm:$0xff]
        %v2769 = vld [vmem:[#allocation5 + $0x1518] sm:$0xff]
        %v2770 = vld [vmem:[#allocation5 + $0x1530] sm:$0xff]
        %v2771 = vld [vmem:[#allocation5 + $0x1548] sm:$0xff]
        %v2772 = vld [vmem:[#allocation5 + $0x1560] sm:$0xff]
        %v2773 = vld [vmem:[#allocation5 + $0x1578] sm:$0xff]
        %v2774 = vld [vmem:[#allocation5 + $0x1590] sm:$0xff]
        %v2775 = vld [vmem:[#allocation5 + $0x15a8] sm:$0xff]
        %v2776 = vld [vmem:[#allocation5 + $0x15c0] sm:$0xff]
        %v2777 = vld [vmem:[#allocation5 + $0x15d8] sm:$0xff]
        %v2778 = vld [vmem:[#allocation5 + $0x15f0] sm:$0xff]
        %v2779 = vld [vmem:[#allocation5 + $0x1608] sm:$0xff]
        %v2780 = vld [vmem:[#allocation5 + $0x1620] sm:$0xff]
        %v2781 = vld [vmem:[#allocation5 + $0x1638] sm:$0xff]
        %v2782 = vld [vmem:[#allocation5 + $0x1650] sm:$0xff]
        %v2783 = vld [vmem:[#allocation5 + $0x1668] sm:$0xff]
        %v2784 = vld [vmem:[#allocation7 + $0x15] sm:$0x1]
        %v2786 = vlaneseq
        %v2787 = vshrl.u32 %v2786, 7
        %v2788 = vsub.s32 0, %v2787
        %v2789 = vrot.slane %v2784, %v2788
        %2791 = vmatprep.subr.mxu0 0.0
        %2792 = vmatpush1.msra.mxu0 %v2751
        %2793 = vmatprep.subr.mxu0 0.0
        %2794 = vmatpush1.msra.mxu0 %v2750
        %2795 = vmatprep.subr.mxu0 0.0
        %2796 = vmatpush1.msra.mxu0 %v2749
        %2797 = vmatprep.subr.mxu0 0.0
        %2798 = vmatpush1.msra.mxu0 %v2748
        %2799 = vmatprep.subr.mxu0 0.0
        %2800 = vmatpush1.msra.mxu0 %v2747
        %2801 = vmatprep.subr.mxu0 0.0
        %2802 = vmatpush1.msra.mxu0 %v2746
        %2803 = vmatprep.subr.mxu0 0.0
        %2804 = vmatpush1.msra.mxu0 %v2745
        %2805 = vmatprep.subr.mxu0 0.0
        %2806 = vmatpush1.msra.mxu0 %v2744
        %2807 = vmatprep.subr.mxu0 0.0
        %2808 = vmatpush1.msra.mxu0 %v2743
        %2809 = vmatprep.subr.mxu0 0.0
        %2810 = vmatpush1.msra.mxu0 %v2742
        %2811 = vmatprep.subr.mxu0 0.0
        %2812 = vmatpush1.msra.mxu0 %v2741
        %2813 = vmatprep.subr.mxu0 0.0
        %2814 = vmatpush1.msra.mxu0 %v2740
        %2815 = vmatprep.subr.mxu0 0.0
        %2816 = vmatpush1.msra.mxu0 %v2739
        %2817 = vmatprep.subr.mxu0 0.0
        %2818 = vmatpush1.msra.mxu0 %v2738
        %2819 = vmatprep.subr.mxu0 0.0
        %2820 = vmatpush1.msra.mxu0 %v2737
        %2821 = vmatprep.subr.mxu0 0.0
        %2822 = vmatpush1.msra.mxu0 %v2736
        %2823 = vmatprep.subr.mxu0 0.0
        %2824 = vmatpush2.msra.mxu0 %v2767
        %2825 = vmatprep.subr.mxu0 0.0
        %2826 = vmatpush2.msra.mxu0 %v2766
        %2827 = vmatprep.subr.mxu0 0.0
        %2828 = vmatpush2.msra.mxu0 %v2765
        %2829 = vmatprep.subr.mxu0 0.0
        %2830 = vmatpush2.msra.mxu0 %v2764
        %2831 = vmatprep.subr.mxu0 0.0
        %2832 = vmatpush2.msra.mxu0 %v2763
        %2833 = vmatprep.subr.mxu0 0.0
        %2834 = vmatpush2.msra.mxu0 %v2762
        %2835 = vmatprep.subr.mxu0 0.0
        %2836 = vmatpush2.msra.mxu0 %v2761
        %2837 = vmatprep.subr.mxu0 0.0
        %2838 = vmatpush2.msra.mxu0 %v2760
        %2839 = vmatprep.subr.mxu0 0.0
        %2840 = vmatpush2.msra.mxu0 %v2759
        %2841 = vmatprep.subr.mxu0 0.0
        %2842 = vmatpush2.msra.mxu0 %v2758
        %2843 = vmatprep.subr.mxu0 0.0
        %2844 = vmatpush2.msra.mxu0 %v2757
        %2845 = vmatprep.subr.mxu0 0.0
        %2846 = vmatpush2.msra.mxu0 %v2756
        %2847 = vmatprep.subr.mxu0 0.0
        %2848 = vmatpush2.msra.mxu0 %v2755
        %2849 = vmatprep.subr.mxu0 0.0
        %2850 = vmatpush2.msra.mxu0 %v2754
        %2851 = vmatprep.subr.mxu0 0.0
        %2852 = vmatpush2.msra.mxu0 %v2753
        %2853 = vmatprep.subr.mxu0 0.0
        %2854 = vmatpush2.msra.mxu0 %v2752
        %2855 = vmatprep.mubr.f32.mxu0 %v2689
        %2856 = vmatmul.mubr.f32.gmra.mxu0 %v2688
        %v2857 = vpop.f32.mrf.mxu0
        %v2858 = vadd.f32 %v2789, %v2857
        %v2859 = vpop.f32.mrf.mxu0
        %2860 = vmatprep.mubr.f32.mxu0 %v2692
        %2861 = vmatmul.mubr.f32.gmra.mxu0 %v2691
        %v2862 = vpop.f32.mrf.mxu0
        %v2863 = vadd.f32 %v2789, %v2862
        %v2864 = vpop.f32.mrf.mxu0
        %2865 = vmatprep.mubr.f32.mxu0 %v2695
        %2866 = vmatmul.mubr.f32.gmra.mxu0 %v2694
        %v2867 = vpop.f32.mrf.mxu0
        %v2868 = vadd.f32 %v2789, %v2867
        %v2869 = vpop.f32.mrf.mxu0
        %2870 = vmatprep.mubr.f32.mxu0 %v2698
        %2871 = vmatmul.mubr.f32.gmra.mxu0 %v2697
        %v2872 = vpop.f32.mrf.mxu0
        %v2873 = vadd.f32 %v2789, %v2872
        %v2874 = vpop.f32.mrf.mxu0
        %2875 = vmatprep.mubr.f32.mxu0 %v2701
        %2876 = vmatmul.mubr.f32.gmra.mxu0 %v2700
        %v2877 = vpop.f32.mrf.mxu0
        %v2878 = vadd.f32 %v2789, %v2877
        %v2879 = vpop.f32.mrf.mxu0
        %2880 = vmatprep.mubr.f32.mxu0 %v2704
        %2881 = vmatmul.mubr.f32.gmra.mxu0 %v2703
        %v2882 = vpop.f32.mrf.mxu0
        %v2883 = vadd.f32 %v2789, %v2882
        %v2884 = vpop.f32.mrf.mxu0
        %2885 = vmatprep.mubr.f32.mxu0 %v2707
        %2886 = vmatmul.mubr.f32.gmra.mxu0 %v2706
        %v2887 = vpop.f32.mrf.mxu0
        %v2888 = vadd.f32 %v2789, %v2887
        %v2889 = vpop.f32.mrf.mxu0
        %2890 = vmatprep.mubr.f32.mxu0 %v2710
        %2891 = vmatmul.mubr.f32.gmra.mxu0 %v2709
        %v2892 = vpop.f32.mrf.mxu0
        %v2893 = vadd.f32 %v2789, %v2892
        %v2894 = vpop.f32.mrf.mxu0
        %2895 = vmatprep.mubr.f32.mxu0 %v2713
        %2896 = vmatmul.mubr.f32.gmra.mxu0 %v2712
        %v2897 = vpop.f32.mrf.mxu0
        %v2898 = vadd.f32 %v2789, %v2897
        %v2899 = vpop.f32.mrf.mxu0
        %2900 = vmatprep.mubr.f32.mxu0 %v2716
        %2901 = vmatmul.mubr.f32.gmra.mxu0 %v2715
        %v2902 = vpop.f32.mrf.mxu0
        %v2903 = vadd.f32 %v2789, %v2902
        %v2904 = vpop.f32.mrf.mxu0
        %2905 = vmatprep.mubr.f32.mxu0 %v2719
        %2906 = vmatmul.mubr.f32.gmra.mxu0 %v2718
        %v2907 = vpop.f32.mrf.mxu0
        %v2908 = vadd.f32 %v2789, %v2907
        %v2909 = vpop.f32.mrf.mxu0
        %2910 = vmatprep.mubr.f32.mxu0 %v2722
        %2911 = vmatmul.mubr.f32.gmra.mxu0 %v2721
        %v2912 = vpop.f32.mrf.mxu0
        %v2913 = vadd.f32 %v2789, %v2912
        %v2914 = vpop.f32.mrf.mxu0
        %2915 = vmatprep.mubr.f32.mxu0 %v2725
        %2916 = vmatmul.mubr.f32.gmra.mxu0 %v2724
        %v2917 = vpop.f32.mrf.mxu0
        %v2918 = vadd.f32 %v2789, %v2917
        %v2919 = vpop.f32.mrf.mxu0
        %2920 = vmatprep.mubr.f32.mxu0 %v2728
        %2921 = vmatmul.mubr.f32.gmra.mxu0 %v2727
        %v2922 = vpop.f32.mrf.mxu0
        %v2923 = vadd.f32 %v2789, %v2922
        %v2924 = vpop.f32.mrf.mxu0
        %2925 = vmatprep.mubr.f32.mxu0 %v2731
        %2926 = vmatmul.mubr.f32.gmra.mxu0 %v2730
        %v2927 = vpop.f32.mrf.mxu0
        %v2928 = vadd.f32 %v2789, %v2927
        %v2929 = vpop.f32.mrf.mxu0
        %2930 = vmatprep.mubr.f32.mxu0 %v2734
        %2931 = vmatmul.mubr.f32.gmra.mxu0 %v2733
        %v2932 = vpop.f32.mrf.mxu0
        %v2933 = vadd.f32 %v2789, %v2932
        %v2934 = vpop.f32.mrf.mxu0
        %2935 = vdwg.mxu0
        %2936 = vmatprep.subr.mxu0 0.0
        %2937 = vmatpush1.msra.mxu0 %v2783
        %2938 = vmatprep.subr.mxu0 0.0
        %2939 = vmatpush1.msra.mxu0 %v2782
        %2940 = vmatprep.subr.mxu0 0.0
        %2941 = vmatpush1.msra.mxu0 %v2781
        %2942 = vmatprep.subr.mxu0 0.0
        %2943 = vmatpush1.msra.mxu0 %v2780
        %2944 = vmatprep.subr.mxu0 0.0
        %2945 = vmatpush1.msra.mxu0 %v2779
        %2946 = vmatprep.subr.mxu0 0.0
        %2947 = vmatpush1.msra.mxu0 %v2778
        %2948 = vmatprep.subr.mxu0 0.0
        %2949 = vmatpush1.msra.mxu0 %v2777
        %2950 = vmatprep.subr.mxu0 0.0
        %2951 = vmatpush1.msra.mxu0 %v2776
        %2952 = vmatprep.subr.mxu0 0.0
        %2953 = vmatpush1.msra.mxu0 %v2775
        %2954 = vmatprep.subr.mxu0 0.0
        %2955 = vmatpush1.msra.mxu0 %v2774
        %2956 = vmatprep.subr.mxu0 0.0
        %2957 = vmatpush1.msra.mxu0 %v2773
        %2958 = vmatprep.subr.mxu0 0.0
        %2959 = vmatpush1.msra.mxu0 %v2772
        %2960 = vmatprep.subr.mxu0 0.0
        %2961 = vmatpush1.msra.mxu0 %v2771
        %2962 = vmatprep.subr.mxu0 0.0
        %2963 = vmatpush1.msra.mxu0 %v2770
        %2964 = vmatprep.subr.mxu0 0.0
        %2965 = vmatpush1.msra.mxu0 %v2769
        %2966 = vmatprep.subr.mxu0 0.0
        %2967 = vmatpush1.msra.mxu0 %v2768
        %2968 = vmatprep.subr.mxu0 0.0
        %2969 = vmatpush2.msra.mxu0 0.0
        %2970 = vmatprep.subr.mxu0 0.0
        %2971 = vmatpush2.msra.mxu0 0.0
        %2972 = vmatprep.subr.mxu0 0.0
        %2973 = vmatpush2.msra.mxu0 0.0
        %2974 = vmatprep.subr.mxu0 0.0
        %2975 = vmatpush2.msra.mxu0 0.0
        %2976 = vmatprep.subr.mxu0 0.0
        %2977 = vmatpush2.msra.mxu0 0.0
        %2978 = vmatprep.subr.mxu0 0.0
        %2979 = vmatpush2.msra.mxu0 0.0
        %2980 = vmatprep.subr.mxu0 0.0
        %2981 = vmatpush2.msra.mxu0 0.0
        %2982 = vmatprep.subr.mxu0 0.0
        %2983 = vmatpush2.msra.mxu0 0.0
        %2984 = vmatprep.subr.mxu0 0.0
        %2985 = vmatpush2.msra.mxu0 0.0
        %2986 = vmatprep.subr.mxu0 0.0
        %2987 = vmatpush2.msra.mxu0 0.0
        %2988 = vmatprep.subr.mxu0 0.0
        %2989 = vmatpush2.msra.mxu0 0.0
        %2990 = vmatprep.subr.mxu0 0.0
        %2991 = vmatpush2.msra.mxu0 0.0
        %2992 = vmatprep.subr.mxu0 0.0
        %2993 = vmatpush2.msra.mxu0 0.0
        %2994 = vmatprep.subr.mxu0 0.0
        %2995 = vmatpush2.msra.mxu0 0.0
        %2996 = vmatprep.subr.mxu0 0.0
        %2997 = vmatpush2.msra.mxu0 0.0
        %2998 = vmatprep.subr.mxu0 0.0
        %2999 = vmatpush2.msra.mxu0 0.0
        %3000 = vmatprep.mubr.f32.mxu0 0.0
        %3001 = vmatmul.mubr.f32.gmra.mxu0 %v2690
        %v3002 = vpop.f32.mrf.mxu0
        %v3003 = vadd.f32 %v2858, %v3002
        %v3004 = vpop.f32.mrf.mxu0
        %3005 = vmatprep.mubr.f32.mxu0 0.0
        %3006 = vmatmul.mubr.f32.gmra.mxu0 %v2693
        %v3007 = vpop.f32.mrf.mxu0
        %v3008 = vadd.f32 %v2863, %v3007
        %v3009 = vpop.f32.mrf.mxu0
        %3010 = vmatprep.mubr.f32.mxu0 0.0
        %3011 = vmatmul.mubr.f32.gmra.mxu0 %v2696
        %v3012 = vpop.f32.mrf.mxu0
        %v3013 = vadd.f32 %v2868, %v3012
        %v3014 = vpop.f32.mrf.mxu0
        %3015 = vmatprep.mubr.f32.mxu0 0.0
        %3016 = vmatmul.mubr.f32.gmra.mxu0 %v2699
        %v3017 = vpop.f32.mrf.mxu0
        %v3018 = vadd.f32 %v2873, %v3017
        %v3019 = vpop.f32.mrf.mxu0
        %3020 = vmatprep.mubr.f32.mxu0 0.0
        %3021 = vmatmul.mubr.f32.gmra.mxu0 %v2702
        %v3022 = vpop.f32.mrf.mxu0
        %v3023 = vadd.f32 %v2878, %v3022
        %v3024 = vpop.f32.mrf.mxu0
        %3025 = vmatprep.mubr.f32.mxu0 0.0
        %3026 = vmatmul.mubr.f32.gmra.mxu0 %v2705
        %v3027 = vpop.f32.mrf.mxu0
        %v3028 = vadd.f32 %v2883, %v3027
        %v3029 = vpop.f32.mrf.mxu0
        %3030 = vmatprep.mubr.f32.mxu0 0.0
        %3031 = vmatmul.mubr.f32.gmra.mxu0 %v2708
        %v3032 = vpop.f32.mrf.mxu0
        %v3033 = vadd.f32 %v2888, %v3032
        %v3034 = vpop.f32.mrf.mxu0
        %3035 = vmatprep.mubr.f32.mxu0 0.0
        %3036 = vmatmul.mubr.f32.gmra.mxu0 %v2711
        %v3037 = vpop.f32.mrf.mxu0
        %v3038 = vadd.f32 %v2893, %v3037
        %v3039 = vpop.f32.mrf.mxu0
        %3040 = vmatprep.mubr.f32.mxu0 0.0
        %3041 = vmatmul.mubr.f32.gmra.mxu0 %v2714
        %v3042 = vpop.f32.mrf.mxu0
        %v3043 = vadd.f32 %v2898, %v3042
        %v3044 = vpop.f32.mrf.mxu0
        %3045 = vmatprep.mubr.f32.mxu0 0.0
        %3046 = vmatmul.mubr.f32.gmra.mxu0 %v2717
        %v3047 = vpop.f32.mrf.mxu0
        %v3048 = vadd.f32 %v2903, %v3047
        %v3049 = vpop.f32.mrf.mxu0
        %3050 = vmatprep.mubr.f32.mxu0 0.0
        %3051 = vmatmul.mubr.f32.gmra.mxu0 %v2720
        %v3052 = vpop.f32.mrf.mxu0
        %v3053 = vadd.f32 %v2908, %v3052
        %v3054 = vpop.f32.mrf.mxu0
        %3055 = vmatprep.mubr.f32.mxu0 0.0
        %3056 = vmatmul.mubr.f32.gmra.mxu0 %v2723
        %v3057 = vpop.f32.mrf.mxu0
        %v3058 = vadd.f32 %v2913, %v3057
        %v3059 = vpop.f32.mrf.mxu0
        %3060 = vmatprep.mubr.f32.mxu0 0.0
        %3061 = vmatmul.mubr.f32.gmra.mxu0 %v2726
        %v3062 = vpop.f32.mrf.mxu0
        %v3063 = vadd.f32 %v2918, %v3062
        %v3064 = vpop.f32.mrf.mxu0
        %3065 = vmatprep.mubr.f32.mxu0 0.0
        %3066 = vmatmul.mubr.f32.gmra.mxu0 %v2729
        %v3067 = vpop.f32.mrf.mxu0
        %v3068 = vadd.f32 %v2923, %v3067
        %v3069 = vpop.f32.mrf.mxu0
        %3070 = vmatprep.mubr.f32.mxu0 0.0
        %3071 = vmatmul.mubr.f32.gmra.mxu0 %v2732
        %v3072 = vpop.f32.mrf.mxu0
        %v3073 = vadd.f32 %v2928, %v3072
        %v3074 = vpop.f32.mrf.mxu0
        %3075 = vmatprep.mubr.f32.mxu0 0.0
        %3076 = vmatmul.mubr.f32.gmra.mxu0 %v2735
        %v3077 = vpop.f32.mrf.mxu0
        %v3078 = vadd.f32 %v2933, %v3077
        %v3079 = vpop.f32.mrf.mxu0
        %3080 = vdwg.mxu0
        %v3081 = vmax.f32 %v3003, 0.0
        %v3082 = vmax.f32 %v3008, 0.0
        %v3083 = vmax.f32 %v3013, 0.0
        %v3084 = vmax.f32 %v3018, 0.0
        %v3085 = vmax.f32 %v3023, 0.0
        %v3086 = vmax.f32 %v3028, 0.0
        %v3087 = vmax.f32 %v3033, 0.0
        %v3088 = vmax.f32 %v3038, 0.0
        %v3089 = vmax.f32 %v3043, 0.0
        %v3090 = vmax.f32 %v3048, 0.0
        %v3091 = vmax.f32 %v3053, 0.0
        %v3092 = vmax.f32 %v3058, 0.0
        %v3093 = vmax.f32 %v3063, 0.0
        %v3094 = vmax.f32 %v3068, 0.0
        %v3095 = vmax.f32 %v3073, 0.0
        %v3096 = vmax.f32 %v3078, 0.0
        %v3097 = vld [vmem:[#allocation5 + $0x1680] sm:$0xff]
        %v3098 = vld [vmem:[#allocation5 + $0x1698] sm:$0xff]
        %v3099 = vld [vmem:[#allocation5 + $0x16b0] sm:$0xff]
        %v3100 = vld [vmem:[#allocation5 + $0x16c8] sm:$0xff]
        %v3101 = vld [vmem:[#allocation5 + $0x16e0] sm:$0xff]
        %v3102 = vld [vmem:[#allocation5 + $0x16f8] sm:$0xff]
        %v3103 = vld [vmem:[#allocation5 + $0x1710] sm:$0xff]
        %v3104 = vld [vmem:[#allocation5 + $0x1728] sm:$0xff]
        %v3105 = vld [vmem:[#allocation5 + $0x1740] sm:$0xff]
        %v3106 = vld [vmem:[#allocation5 + $0x1758] sm:$0xff]
        %v3107 = vld [vmem:[#allocation5 + $0x1770] sm:$0xff]
        %v3108 = vld [vmem:[#allocation5 + $0x1788] sm:$0xff]
        %v3109 = vld [vmem:[#allocation5 + $0x17a0] sm:$0xff]
        %v3110 = vld [vmem:[#allocation5 + $0x17b8] sm:$0xff]
        %v3111 = vld [vmem:[#allocation5 + $0x17d0] sm:$0xff]
        %v3112 = vld [vmem:[#allocation5 + $0x17e8] sm:$0xff]
        %v3113 = vld [vmem:[#allocation7 + $0x18] sm:$0x1]
        %v3115 = vlaneseq
        %v3116 = vshrl.u32 %v3115, 7
        %v3117 = vsub.s32 0, %v3116
        %v3118 = vrot.slane %v3113, %v3117
        %3120 = vmatprep.subr.mxu0 0.0
        %3121 = vmatpush1.msra.mxu0 %v3112
        %3122 = vmatprep.subr.mxu0 0.0
        %3123 = vmatpush1.msra.mxu0 %v3111
        %3124 = vmatprep.subr.mxu0 0.0
        %3125 = vmatpush1.msra.mxu0 %v3110
        %3126 = vmatprep.subr.mxu0 0.0
        %3127 = vmatpush1.msra.mxu0 %v3109
        %3128 = vmatprep.subr.mxu0 0.0
        %3129 = vmatpush1.msra.mxu0 %v3108
        %3130 = vmatprep.subr.mxu0 0.0
        %3131 = vmatpush1.msra.mxu0 %v3107
        %3132 = vmatprep.subr.mxu0 0.0
        %3133 = vmatpush1.msra.mxu0 %v3106
        %3134 = vmatprep.subr.mxu0 0.0
        %3135 = vmatpush1.msra.mxu0 %v3105
        %3136 = vmatprep.subr.mxu0 0.0
        %3137 = vmatpush1.msra.mxu0 %v3104
        %3138 = vmatprep.subr.mxu0 0.0
        %3139 = vmatpush1.msra.mxu0 %v3103
        %3140 = vmatprep.subr.mxu0 0.0
        %3141 = vmatpush1.msra.mxu0 %v3102
        %3142 = vmatprep.subr.mxu0 0.0
        %3143 = vmatpush1.msra.mxu0 %v3101
        %3144 = vmatprep.subr.mxu0 0.0
        %3145 = vmatpush1.msra.mxu0 %v3100
        %3146 = vmatprep.subr.mxu0 0.0
        %3147 = vmatpush1.msra.mxu0 %v3099
        %3148 = vmatprep.subr.mxu0 0.0
        %3149 = vmatpush1.msra.mxu0 %v3098
        %3150 = vmatprep.subr.mxu0 0.0
        %3151 = vmatpush1.msra.mxu0 %v3097
        %3152 = vmatprep.subr.mxu0 0.0
        %3153 = vmatpush2.msra.mxu0 0.0
        %3154 = vmatprep.subr.mxu0 0.0
        %3155 = vmatpush2.msra.mxu0 0.0
        %3156 = vmatprep.subr.mxu0 0.0
        %3157 = vmatpush2.msra.mxu0 0.0
        %3158 = vmatprep.subr.mxu0 0.0
        %3159 = vmatpush2.msra.mxu0 0.0
        %3160 = vmatprep.subr.mxu0 0.0
        %3161 = vmatpush2.msra.mxu0 0.0
        %3162 = vmatprep.subr.mxu0 0.0
        %3163 = vmatpush2.msra.mxu0 0.0
        %3164 = vmatprep.subr.mxu0 0.0
        %3165 = vmatpush2.msra.mxu0 0.0
        %3166 = vmatprep.subr.mxu0 0.0
        %3167 = vmatpush2.msra.mxu0 0.0
        %3168 = vmatprep.subr.mxu0 0.0
        %3169 = vmatpush2.msra.mxu0 0.0
        %3170 = vmatprep.subr.mxu0 0.0
        %3171 = vmatpush2.msra.mxu0 0.0
        %3172 = vmatprep.subr.mxu0 0.0
        %3173 = vmatpush2.msra.mxu0 0.0
        %3174 = vmatprep.subr.mxu0 0.0
        %3175 = vmatpush2.msra.mxu0 0.0
        %3176 = vmatprep.subr.mxu0 0.0
        %3177 = vmatpush2.msra.mxu0 0.0
        %3178 = vmatprep.subr.mxu0 0.0
        %3179 = vmatpush2.msra.mxu0 0.0
        %3180 = vmatprep.subr.mxu0 0.0
        %3181 = vmatpush2.msra.mxu0 0.0
        %3182 = vmatprep.subr.mxu0 0.0
        %3183 = vmatpush2.msra.mxu0 0.0
        %3184 = vmatprep.mubr.f32.mxu0 0.0
        %3185 = vmatmul.mubr.f32.gmra.mxu0 %v3081
        %v3186 = vpop.f32.mrf.mxu0
        %v3187 = vadd.f32 %v3118, %v3186
        %v3188 = vpop.f32.mrf.mxu0
        %3189 = vmatprep.mubr.f32.mxu0 0.0
        %3190 = vmatmul.mubr.f32.gmra.mxu0 %v3082
        %v3191 = vpop.f32.mrf.mxu0
        %v3192 = vadd.f32 %v3118, %v3191
        %v3193 = vpop.f32.mrf.mxu0
        %3194 = vmatprep.mubr.f32.mxu0 0.0
        %3195 = vmatmul.mubr.f32.gmra.mxu0 %v3083
        %v3196 = vpop.f32.mrf.mxu0
        %v3197 = vadd.f32 %v3118, %v3196
        %v3198 = vpop.f32.mrf.mxu0
        %3199 = vmatprep.mubr.f32.mxu0 0.0
        %3200 = vmatmul.mubr.f32.gmra.mxu0 %v3084
        %v3201 = vpop.f32.mrf.mxu0
        %v3202 = vadd.f32 %v3118, %v3201
        %v3203 = vpop.f32.mrf.mxu0
        %3204 = vmatprep.mubr.f32.mxu0 0.0
        %3205 = vmatmul.mubr.f32.gmra.mxu0 %v3085
        %v3206 = vpop.f32.mrf.mxu0
        %v3207 = vadd.f32 %v3118, %v3206
        %v3208 = vpop.f32.mrf.mxu0
        %3209 = vmatprep.mubr.f32.mxu0 0.0
        %3210 = vmatmul.mubr.f32.gmra.mxu0 %v3086
        %v3211 = vpop.f32.mrf.mxu0
        %v3212 = vadd.f32 %v3118, %v3211
        %v3213 = vpop.f32.mrf.mxu0
        %3214 = vmatprep.mubr.f32.mxu0 0.0
        %3215 = vmatmul.mubr.f32.gmra.mxu0 %v3087
        %v3216 = vpop.f32.mrf.mxu0
        %v3217 = vadd.f32 %v3118, %v3216
        %v3218 = vpop.f32.mrf.mxu0
        %3219 = vmatprep.mubr.f32.mxu0 0.0
        %3220 = vmatmul.mubr.f32.gmra.mxu0 %v3088
        %v3221 = vpop.f32.mrf.mxu0
        %v3222 = vadd.f32 %v3118, %v3221
        %v3223 = vpop.f32.mrf.mxu0
        %3224 = vmatprep.mubr.f32.mxu0 0.0
        %3225 = vmatmul.mubr.f32.gmra.mxu0 %v3089
        %v3226 = vpop.f32.mrf.mxu0
        %v3227 = vadd.f32 %v3118, %v3226
        %v3228 = vpop.f32.mrf.mxu0
        %3229 = vmatprep.mubr.f32.mxu0 0.0
        %3230 = vmatmul.mubr.f32.gmra.mxu0 %v3090
        %v3231 = vpop.f32.mrf.mxu0
        %v3232 = vadd.f32 %v3118, %v3231
        %v3233 = vpop.f32.mrf.mxu0
        %3234 = vmatprep.mubr.f32.mxu0 0.0
        %3235 = vmatmul.mubr.f32.gmra.mxu0 %v3091
        %v3236 = vpop.f32.mrf.mxu0
        %v3237 = vadd.f32 %v3118, %v3236
        %v3238 = vpop.f32.mrf.mxu0
        %3239 = vmatprep.mubr.f32.mxu0 0.0
        %3240 = vmatmul.mubr.f32.gmra.mxu0 %v3092
        %v3241 = vpop.f32.mrf.mxu0
        %v3242 = vadd.f32 %v3118, %v3241
        %v3243 = vpop.f32.mrf.mxu0
        %3244 = vmatprep.mubr.f32.mxu0 0.0
        %3245 = vmatmul.mubr.f32.gmra.mxu0 %v3093
        %v3246 = vpop.f32.mrf.mxu0
        %v3247 = vadd.f32 %v3118, %v3246
        %v3248 = vpop.f32.mrf.mxu0
        %3249 = vmatprep.mubr.f32.mxu0 0.0
        %3250 = vmatmul.mubr.f32.gmra.mxu0 %v3094
        %v3251 = vpop.f32.mrf.mxu0
        %v3252 = vadd.f32 %v3118, %v3251
        %v3253 = vpop.f32.mrf.mxu0
        %3254 = vmatprep.mubr.f32.mxu0 0.0
        %3255 = vmatmul.mubr.f32.gmra.mxu0 %v3095
        %v3256 = vpop.f32.mrf.mxu0
        %v3257 = vadd.f32 %v3118, %v3256
        %v3258 = vpop.f32.mrf.mxu0
        %3259 = vmatprep.mubr.f32.mxu0 0.0
        %3260 = vmatmul.mubr.f32.gmra.mxu0 %v3096
        %v3261 = vpop.f32.mrf.mxu0
        %v3262 = vadd.f32 %v3118, %v3261
        %v3263 = vpop.f32.mrf.mxu0
        %3264 = vdwg.mxu0
        %v3265 = vld [vmem:[#allocation5 + $0x1800] sm:$0xff]
        %v3266 = vld [vmem:[#allocation5 + $0x1818] sm:$0xff]
        %v3267 = vld [vmem:[#allocation5 + $0x1830] sm:$0xff]
        %v3268 = vld [vmem:[#allocation5 + $0x1848] sm:$0xff]
        %v3269 = vld [vmem:[#allocation5 + $0x1860] sm:$0xff]
        %v3270 = vld [vmem:[#allocation5 + $0x1878] sm:$0xff]
        %v3271 = vld [vmem:[#allocation5 + $0x1890] sm:$0xff]
        %v3272 = vld [vmem:[#allocation5 + $0x18a8] sm:$0xff]
        %v3273 = vld [vmem:[#allocation5 + $0x18c0] sm:$0xff]
        %v3274 = vld [vmem:[#allocation5 + $0x18d8] sm:$0xff]
        %v3275 = vld [vmem:[#allocation5 + $0x18f0] sm:$0xff]
        %v3276 = vld [vmem:[#allocation5 + $0x1908] sm:$0xff]
        %v3277 = vld [vmem:[#allocation5 + $0x1920] sm:$0xff]
        %v3278 = vld [vmem:[#allocation5 + $0x1938] sm:$0xff]
        %v3279 = vld [vmem:[#allocation5 + $0x1950] sm:$0xff]
        %v3280 = vld [vmem:[#allocation5 + $0x1968] sm:$0xff]
        %3281 = vmatprep.subr.mxu0 0.0
        %3282 = vmatpush1.msra.mxu0 %v3280
        %3283 = vmatprep.subr.mxu0 0.0
        %3284 = vmatpush1.msra.mxu0 %v3279
        %3285 = vmatprep.subr.mxu0 0.0
        %3286 = vmatpush1.msra.mxu0 %v3278
        %3287 = vmatprep.subr.mxu0 0.0
        %3288 = vmatpush1.msra.mxu0 %v3277
        %3289 = vmatprep.subr.mxu0 0.0
        %3290 = vmatpush1.msra.mxu0 %v3276
        %3291 = vmatprep.subr.mxu0 0.0
        %3292 = vmatpush1.msra.mxu0 %v3275
        %3293 = vmatprep.subr.mxu0 0.0
        %3294 = vmatpush1.msra.mxu0 %v3274
        %3295 = vmatprep.subr.mxu0 0.0
        %3296 = vmatpush1.msra.mxu0 %v3273
        %3297 = vmatprep.subr.mxu0 0.0
        %3298 = vmatpush1.msra.mxu0 %v3272
        %3299 = vmatprep.subr.mxu0 0.0
        %3300 = vmatpush1.msra.mxu0 %v3271
        %3301 = vmatprep.subr.mxu0 0.0
        %3302 = vmatpush1.msra.mxu0 %v3270
        %3303 = vmatprep.subr.mxu0 0.0
        %3304 = vmatpush1.msra.mxu0 %v3269
        %3305 = vmatprep.subr.mxu0 0.0
        %3306 = vmatpush1.msra.mxu0 %v3268
        %3307 = vmatprep.subr.mxu0 0.0
        %3308 = vmatpush1.msra.mxu0 %v3267
        %3309 = vmatprep.subr.mxu0 0.0
        %3310 = vmatpush1.msra.mxu0 %v3266
        %3311 = vmatprep.subr.mxu0 0.0
        %3312 = vmatpush1.msra.mxu0 %v3265
        %3313 = vmatprep.subr.mxu0 0.0
        %3314 = vmatpush2.msra.mxu0 0.0
        %3315 = vmatprep.subr.mxu0 0.0
        %3316 = vmatpush2.msra.mxu0 0.0
        %3317 = vmatprep.subr.mxu0 0.0
        %3318 = vmatpush2.msra.mxu0 0.0
        %3319 = vmatprep.subr.mxu0 0.0
        %3320 = vmatpush2.msra.mxu0 0.0
        %3321 = vmatprep.subr.mxu0 0.0
        %3322 = vmatpush2.msra.mxu0 0.0
        %3323 = vmatprep.subr.mxu0 0.0
        %3324 = vmatpush2.msra.mxu0 0.0
        %3325 = vmatprep.subr.mxu0 0.0
        %3326 = vmatpush2.msra.mxu0 0.0
        %3327 = vmatprep.subr.mxu0 0.0
        %3328 = vmatpush2.msra.mxu0 0.0
        %3329 = vmatprep.subr.mxu0 0.0
        %3330 = vmatpush2.msra.mxu0 0.0
        %3331 = vmatprep.subr.mxu0 0.0
        %3332 = vmatpush2.msra.mxu0 0.0
        %3333 = vmatprep.subr.mxu0 0.0
        %3334 = vmatpush2.msra.mxu0 0.0
        %3335 = vmatprep.subr.mxu0 0.0
        %3336 = vmatpush2.msra.mxu0 0.0
        %3337 = vmatprep.subr.mxu0 0.0
        %3338 = vmatpush2.msra.mxu0 0.0
        %3339 = vmatprep.subr.mxu0 0.0
        %3340 = vmatpush2.msra.mxu0 0.0
        %3341 = vmatprep.subr.mxu0 0.0
        %3342 = vmatpush2.msra.mxu0 0.0
        %3343 = vmatprep.subr.mxu0 0.0
        %3344 = vmatpush2.msra.mxu0 0.0
        %3345 = vmatprep.mubr.f32.mxu0 0.0
        %3346 = vmatmul.mubr.f32.gmra.mxu0 %v3187
        %v3347 = vpop.f32.mrf.mxu0
        %v3348 = vadd.f32 0.0, %v3347
        %v3349 = vpop.f32.mrf.mxu0
        %3350 = vmatprep.mubr.f32.mxu0 0.0
        %3351 = vmatmul.mubr.f32.gmra.mxu0 %v3192
        %v3352 = vpop.f32.mrf.mxu0
        %v3353 = vadd.f32 0.0, %v3352
        %v3354 = vpop.f32.mrf.mxu0
        %3355 = vmatprep.mubr.f32.mxu0 0.0
        %3356 = vmatmul.mubr.f32.gmra.mxu0 %v3197
        %v3357 = vpop.f32.mrf.mxu0
        %v3358 = vadd.f32 0.0, %v3357
        %v3359 = vpop.f32.mrf.mxu0
        %3360 = vmatprep.mubr.f32.mxu0 0.0
        %3361 = vmatmul.mubr.f32.gmra.mxu0 %v3202
        %v3362 = vpop.f32.mrf.mxu0
        %v3363 = vadd.f32 0.0, %v3362
        %v3364 = vpop.f32.mrf.mxu0
        %3365 = vmatprep.mubr.f32.mxu0 0.0
        %3366 = vmatmul.mubr.f32.gmra.mxu0 %v3207
        %v3367 = vpop.f32.mrf.mxu0
        %v3368 = vadd.f32 0.0, %v3367
        %v3369 = vpop.f32.mrf.mxu0
        %3370 = vmatprep.mubr.f32.mxu0 0.0
        %3371 = vmatmul.mubr.f32.gmra.mxu0 %v3212
        %v3372 = vpop.f32.mrf.mxu0
        %v3373 = vadd.f32 0.0, %v3372
        %v3374 = vpop.f32.mrf.mxu0
        %3375 = vmatprep.mubr.f32.mxu0 0.0
        %3376 = vmatmul.mubr.f32.gmra.mxu0 %v3217
        %v3377 = vpop.f32.mrf.mxu0
        %v3378 = vadd.f32 0.0, %v3377
        %v3379 = vpop.f32.mrf.mxu0
        %3380 = vmatprep.mubr.f32.mxu0 0.0
        %3381 = vmatmul.mubr.f32.gmra.mxu0 %v3222
        %v3382 = vpop.f32.mrf.mxu0
        %v3383 = vadd.f32 0.0, %v3382
        %v3384 = vpop.f32.mrf.mxu0
        %3385 = vmatprep.mubr.f32.mxu0 0.0
        %3386 = vmatmul.mubr.f32.gmra.mxu0 %v3227
        %v3387 = vpop.f32.mrf.mxu0
        %v3388 = vadd.f32 0.0, %v3387
        %v3389 = vpop.f32.mrf.mxu0
        %3390 = vmatprep.mubr.f32.mxu0 0.0
        %3391 = vmatmul.mubr.f32.gmra.mxu0 %v3232
        %v3392 = vpop.f32.mrf.mxu0
        %v3393 = vadd.f32 0.0, %v3392
        %v3394 = vpop.f32.mrf.mxu0
        %3395 = vmatprep.mubr.f32.mxu0 0.0
        %3396 = vmatmul.mubr.f32.gmra.mxu0 %v3237
        %v3397 = vpop.f32.mrf.mxu0
        %v3398 = vadd.f32 0.0, %v3397
        %v3399 = vpop.f32.mrf.mxu0
        %3400 = vmatprep.mubr.f32.mxu0 0.0
        %3401 = vmatmul.mubr.f32.gmra.mxu0 %v3242
        %v3402 = vpop.f32.mrf.mxu0
        %v3403 = vadd.f32 0.0, %v3402
        %v3404 = vpop.f32.mrf.mxu0
        %3405 = vmatprep.mubr.f32.mxu0 0.0
        %3406 = vmatmul.mubr.f32.gmra.mxu0 %v3247
        %v3407 = vpop.f32.mrf.mxu0
        %v3408 = vadd.f32 0.0, %v3407
        %v3409 = vpop.f32.mrf.mxu0
        %3410 = vmatprep.mubr.f32.mxu0 0.0
        %3411 = vmatmul.mubr.f32.gmra.mxu0 %v3252
        %v3412 = vpop.f32.mrf.mxu0
        %v3413 = vadd.f32 0.0, %v3412
        %v3414 = vpop.f32.mrf.mxu0
        %3415 = vmatprep.mubr.f32.mxu0 0.0
        %3416 = vmatmul.mubr.f32.gmra.mxu0 %v3257
        %v3417 = vpop.f32.mrf.mxu0
        %v3418 = vadd.f32 0.0, %v3417
        %v3419 = vpop.f32.mrf.mxu0
        %3420 = vmatprep.mubr.f32.mxu0 0.0
        %3421 = vmatmul.mubr.f32.gmra.mxu0 %v3262
        %v3422 = vpop.f32.mrf.mxu0
        %v3423 = vadd.f32 0.0, %v3422
        %v3424 = vpop.f32.mrf.mxu0
        %3425 = vdwg.mxu0
        %v3426 = vmax.f32 %v3348, 0.0
        %v3427 = vmax.f32 %v3353, 0.0
        %v3428 = vmax.f32 %v3358, 0.0
        %v3429 = vmax.f32 %v3363, 0.0
        %v3430 = vmax.f32 %v3368, 0.0
        %v3431 = vmax.f32 %v3373, 0.0
        %v3432 = vmax.f32 %v3378, 0.0
        %v3433 = vmax.f32 %v3383, 0.0
        %v3434 = vmax.f32 %v3388, 0.0
        %v3435 = vmax.f32 %v3393, 0.0
        %v3436 = vmax.f32 %v3398, 0.0
        %v3437 = vmax.f32 %v3403, 0.0
        %v3438 = vmax.f32 %v3408, 0.0
        %v3439 = vmax.f32 %v3413, 0.0
        %v3440 = vmax.f32 %v3418, 0.0
        %v3441 = vmax.f32 %v3423, 0.0
        %v3442 = vld [vmem:[#allocation5 + $0x1980] sm:$0xff]
        %v3443 = vld [vmem:[#allocation5 + $0x1998] sm:$0xff]
        %v3444 = vld [vmem:[#allocation5 + $0x19b0] sm:$0xff]
        %v3445 = vld [vmem:[#allocation5 + $0x19c8] sm:$0xff]
        %v3446 = vld [vmem:[#allocation5 + $0x19e0] sm:$0xff]
        %v3447 = vld [vmem:[#allocation5 + $0x19f8] sm:$0xff]
        %v3448 = vld [vmem:[#allocation5 + $0x1a10] sm:$0xff]
        %v3449 = vld [vmem:[#allocation5 + $0x1a28] sm:$0xff]
        %v3450 = vld [vmem:[#allocation5 + $0x1a40] sm:$0xff]
        %v3451 = vld [vmem:[#allocation5 + $0x1a58] sm:$0xff]
        %v3452 = vld [vmem:[#allocation5 + $0x1a70] sm:$0xff]
        %v3453 = vld [vmem:[#allocation5 + $0x1a88] sm:$0xff]
        %v3454 = vld [vmem:[#allocation5 + $0x1aa0] sm:$0xff]
        %v3455 = vld [vmem:[#allocation5 + $0x1ab8] sm:$0xff]
        %v3456 = vld [vmem:[#allocation5 + $0x1ad0] sm:$0xff]
        %v3457 = vld [vmem:[#allocation5 + $0x1ae8] sm:$0xff]
        %3458 = vmatprep.subr.mxu0 0.0
        %3459 = vmatpush1.msra.mxu0 %v3457
        %3460 = vmatprep.subr.mxu0 0.0
        %3461 = vmatpush1.msra.mxu0 %v3456
        %3462 = vmatprep.subr.mxu0 0.0
        %3463 = vmatpush1.msra.mxu0 %v3455
        %3464 = vmatprep.subr.mxu0 0.0
        %3465 = vmatpush1.msra.mxu0 %v3454
        %3466 = vmatprep.subr.mxu0 0.0
        %3467 = vmatpush1.msra.mxu0 %v3453
        %3468 = vmatprep.subr.mxu0 0.0
        %3469 = vmatpush1.msra.mxu0 %v3452
        %3470 = vmatprep.subr.mxu0 0.0
        %3471 = vmatpush1.msra.mxu0 %v3451
        %3472 = vmatprep.subr.mxu0 0.0
        %3473 = vmatpush1.msra.mxu0 %v3450
        %3474 = vmatprep.subr.mxu0 0.0
        %3475 = vmatpush1.msra.mxu0 %v3449
        %3476 = vmatprep.subr.mxu0 0.0
        %3477 = vmatpush1.msra.mxu0 %v3448
        %3478 = vmatprep.subr.mxu0 0.0
        %3479 = vmatpush1.msra.mxu0 %v3447
        %3480 = vmatprep.subr.mxu0 0.0
        %3481 = vmatpush1.msra.mxu0 %v3446
        %3482 = vmatprep.subr.mxu0 0.0
        %3483 = vmatpush1.msra.mxu0 %v3445
        %3484 = vmatprep.subr.mxu0 0.0
        %3485 = vmatpush1.msra.mxu0 %v3444
        %3486 = vmatprep.subr.mxu0 0.0
        %3487 = vmatpush1.msra.mxu0 %v3443
        %3488 = vmatprep.subr.mxu0 0.0
        %3489 = vmatpush1.msra.mxu0 %v3442
        %3490 = vmatprep.subr.mxu0 0.0
        %3491 = vmatpush2.msra.mxu0 0.0
        %3492 = vmatprep.subr.mxu0 0.0
        %3493 = vmatpush2.msra.mxu0 0.0
        %3494 = vmatprep.subr.mxu0 0.0
        %3495 = vmatpush2.msra.mxu0 0.0
        %3496 = vmatprep.subr.mxu0 0.0
        %3497 = vmatpush2.msra.mxu0 0.0
        %3498 = vmatprep.subr.mxu0 0.0
        %3499 = vmatpush2.msra.mxu0 0.0
        %3500 = vmatprep.subr.mxu0 0.0
        %3501 = vmatpush2.msra.mxu0 0.0
        %3502 = vmatprep.subr.mxu0 0.0
        %3503 = vmatpush2.msra.mxu0 0.0
        %3504 = vmatprep.subr.mxu0 0.0
        %3505 = vmatpush2.msra.mxu0 0.0
        %3506 = vmatprep.subr.mxu0 0.0
        %3507 = vmatpush2.msra.mxu0 0.0
        %3508 = vmatprep.subr.mxu0 0.0
        %3509 = vmatpush2.msra.mxu0 0.0
        %3510 = vmatprep.subr.mxu0 0.0
        %3511 = vmatpush2.msra.mxu0 0.0
        %3512 = vmatprep.subr.mxu0 0.0
        %3513 = vmatpush2.msra.mxu0 0.0
        %3514 = vmatprep.subr.mxu0 0.0
        %3515 = vmatpush2.msra.mxu0 0.0
        %3516 = vmatprep.subr.mxu0 0.0
        %3517 = vmatpush2.msra.mxu0 0.0
        %3518 = vmatprep.subr.mxu0 0.0
        %3519 = vmatpush2.msra.mxu0 0.0
        %3520 = vmatprep.subr.mxu0 0.0
        %3521 = vmatpush2.msra.mxu0 0.0
        %3522 = vmatprep.mubr.f32.mxu0 0.0
        %3523 = vmatmul.mubr.f32.gmra.mxu0 %v3426
        %v3524 = vpop.f32.mrf.mxu0
        %v3525 = vadd.f32 0.0, %v3524
        %v3526 = vpop.f32.mrf.mxu0
        %3527 = vmatprep.mubr.f32.mxu0 0.0
        %3528 = vmatmul.mubr.f32.gmra.mxu0 %v3427
        %v3529 = vpop.f32.mrf.mxu0
        %v3530 = vadd.f32 0.0, %v3529
        %v3531 = vpop.f32.mrf.mxu0
        %3532 = vmatprep.mubr.f32.mxu0 0.0
        %3533 = vmatmul.mubr.f32.gmra.mxu0 %v3428
        %v3534 = vpop.f32.mrf.mxu0
        %v3535 = vadd.f32 0.0, %v3534
        %v3536 = vpop.f32.mrf.mxu0
        %3537 = vmatprep.mubr.f32.mxu0 0.0
        %3538 = vmatmul.mubr.f32.gmra.mxu0 %v3429
        %v3539 = vpop.f32.mrf.mxu0
        %v3540 = vadd.f32 0.0, %v3539
        %v3541 = vpop.f32.mrf.mxu0
        %3542 = vmatprep.mubr.f32.mxu0 0.0
        %3543 = vmatmul.mubr.f32.gmra.mxu0 %v3430
        %v3544 = vpop.f32.mrf.mxu0
        %v3545 = vadd.f32 0.0, %v3544
        %v3546 = vpop.f32.mrf.mxu0
        %3547 = vmatprep.mubr.f32.mxu0 0.0
        %3548 = vmatmul.mubr.f32.gmra.mxu0 %v3431
        %v3549 = vpop.f32.mrf.mxu0
        %v3550 = vadd.f32 0.0, %v3549
        %v3551 = vpop.f32.mrf.mxu0
        %3552 = vmatprep.mubr.f32.mxu0 0.0
        %3553 = vmatmul.mubr.f32.gmra.mxu0 %v3432
        %v3554 = vpop.f32.mrf.mxu0
        %v3555 = vadd.f32 0.0, %v3554
        %v3556 = vpop.f32.mrf.mxu0
        %3557 = vmatprep.mubr.f32.mxu0 0.0
        %3558 = vmatmul.mubr.f32.gmra.mxu0 %v3433
        %v3559 = vpop.f32.mrf.mxu0
        %v3560 = vadd.f32 0.0, %v3559
        %v3561 = vpop.f32.mrf.mxu0
        %3562 = vmatprep.mubr.f32.mxu0 0.0
        %3563 = vmatmul.mubr.f32.gmra.mxu0 %v3434
        %v3564 = vpop.f32.mrf.mxu0
        %v3565 = vadd.f32 0.0, %v3564
        %v3566 = vpop.f32.mrf.mxu0
        %3567 = vmatprep.mubr.f32.mxu0 0.0
        %3568 = vmatmul.mubr.f32.gmra.mxu0 %v3435
        %v3569 = vpop.f32.mrf.mxu0
        %v3570 = vadd.f32 0.0, %v3569
        %v3571 = vpop.f32.mrf.mxu0
        %3572 = vmatprep.mubr.f32.mxu0 0.0
        %3573 = vmatmul.mubr.f32.gmra.mxu0 %v3436
        %v3574 = vpop.f32.mrf.mxu0
        %v3575 = vadd.f32 0.0, %v3574
        %v3576 = vpop.f32.mrf.mxu0
        %3577 = vmatprep.mubr.f32.mxu0 0.0
        %3578 = vmatmul.mubr.f32.gmra.mxu0 %v3437
        %v3579 = vpop.f32.mrf.mxu0
        %v3580 = vadd.f32 0.0, %v3579
        %v3581 = vpop.f32.mrf.mxu0
        %3582 = vmatprep.mubr.f32.mxu0 0.0
        %3583 = vmatmul.mubr.f32.gmra.mxu0 %v3438
        %v3584 = vpop.f32.mrf.mxu0
        %v3585 = vadd.f32 0.0, %v3584
        %v3586 = vpop.f32.mrf.mxu0
        %3587 = vmatprep.mubr.f32.mxu0 0.0
        %3588 = vmatmul.mubr.f32.gmra.mxu0 %v3439
        %v3589 = vpop.f32.mrf.mxu0
        %v3590 = vadd.f32 0.0, %v3589
        %v3591 = vpop.f32.mrf.mxu0
        %3592 = vmatprep.mubr.f32.mxu0 0.0
        %3593 = vmatmul.mubr.f32.gmra.mxu0 %v3440
        %v3594 = vpop.f32.mrf.mxu0
        %v3595 = vadd.f32 0.0, %v3594
        %v3596 = vpop.f32.mrf.mxu0
        %3597 = vmatprep.mubr.f32.mxu0 0.0
        %3598 = vmatmul.mubr.f32.gmra.mxu0 %v3441
        %v3599 = vpop.f32.mrf.mxu0
        %v3600 = vadd.f32 0.0, %v3599
        %v3601 = vpop.f32.mrf.mxu0
        %3602 = vdwg.mxu0
        %v3603 = vxor.u32 %v3525, 2147483648
        %v3604 = vxor.u32 %v3530, 2147483648
        %v3605 = vxor.u32 %v3535, 2147483648
        %v3606 = vxor.u32 %v3540, 2147483648
        %v3607 = vxor.u32 %v3545, 2147483648
        %v3608 = vxor.u32 %v3550, 2147483648
        %v3609 = vxor.u32 %v3555, 2147483648
        %v3610 = vxor.u32 %v3560, 2147483648
        %v3611 = vxor.u32 %v3565, 2147483648
        %v3612 = vxor.u32 %v3570, 2147483648
        %v3613 = vxor.u32 %v3575, 2147483648
        %v3614 = vxor.u32 %v3580, 2147483648
        %v3615 = vxor.u32 %v3585, 2147483648
        %v3616 = vxor.u32 %v3590, 2147483648
        %v3617 = vxor.u32 %v3595, 2147483648
        %v3618 = vxor.u32 %v3600, 2147483648
        %v3619 = vmul.f32 %v3603, 1.442695
        %v3620 = vpow.pop %v3619
        %v3621 = vmul.f32 %v3604, 1.442695
        %v3622 = vpow.pop %v3621
        %v3623 = vmul.f32 %v3605, 1.442695
        %v3624 = vpow.pop %v3623
        %v3625 = vmul.f32 %v3606, 1.442695
        %v3626 = vpow.pop %v3625
        %v3627 = vmul.f32 %v3607, 1.442695
        %v3628 = vpow.pop %v3627
        %v3629 = vmul.f32 %v3608, 1.442695
        %v3630 = vpow.pop %v3629
        %v3631 = vmul.f32 %v3609, 1.442695
        %v3632 = vpow.pop %v3631
        %v3633 = vmul.f32 %v3610, 1.442695
        %v3634 = vpow.pop %v3633
        %v3635 = vmul.f32 %v3611, 1.442695
        %v3636 = vpow.pop %v3635
        %v3637 = vmul.f32 %v3612, 1.442695
        %v3638 = vpow.pop %v3637
        %v3639 = vmul.f32 %v3613, 1.442695
        %v3640 = vpow.pop %v3639
        %v3641 = vmul.f32 %v3614, 1.442695
        %v3642 = vpow.pop %v3641
        %v3643 = vmul.f32 %v3615, 1.442695
        %v3644 = vpow.pop %v3643
        %v3645 = vmul.f32 %v3616, 1.442695
        %v3646 = vpow.pop %v3645
        %v3647 = vmul.f32 %v3617, 1.442695
        %v3648 = vpow.pop %v3647
        %v3649 = vmul.f32 %v3618, 1.442695
        %v3650 = vpow.pop %v3649
        %v3651 = vadd.f32 %v3620, 1.0
        %v3652 = vadd.f32 %v3622, 1.0
        %v3653 = vadd.f32 %v3624, 1.0
        %v3654 = vadd.f32 %v3626, 1.0
        %v3655 = vadd.f32 %v3628, 1.0
        %v3656 = vadd.f32 %v3630, 1.0
        %v3657 = vadd.f32 %v3632, 1.0
        %v3658 = vadd.f32 %v3634, 1.0
        %v3659 = vadd.f32 %v3636, 1.0
        %v3660 = vadd.f32 %v3638, 1.0
        %v3661 = vadd.f32 %v3640, 1.0
        %v3662 = vadd.f32 %v3642, 1.0
        %v3663 = vadd.f32 %v3644, 1.0
        %v3664 = vadd.f32 %v3646, 1.0
        %v3665 = vadd.f32 %v3648, 1.0
        %v3666 = vadd.f32 %v3650, 1.0
        %v3667 = vrcp.pop %v3651
        %v3668 = vmul.f32 1.0, %v3667
        %v3669 = vrcp.pop %v3652
        %v3670 = vmul.f32 1.0, %v3669
        %v3671 = vrcp.pop %v3653
        %v3672 = vmul.f32 1.0, %v3671
        %v3673 = vrcp.pop %v3654
        %v3674 = vmul.f32 1.0, %v3673
        %v3675 = vrcp.pop %v3655
        %v3676 = vmul.f32 1.0, %v3675
        %v3677 = vrcp.pop %v3656
        %v3678 = vmul.f32 1.0, %v3677
        %v3679 = vrcp.pop %v3657
        %v3680 = vmul.f32 1.0, %v3679
        %v3681 = vrcp.pop %v3658
        %v3682 = vmul.f32 1.0, %v3681
        %v3683 = vrcp.pop %v3659
        %v3684 = vmul.f32 1.0, %v3683
        %v3685 = vrcp.pop %v3660
        %v3686 = vmul.f32 1.0, %v3685
        %v3687 = vrcp.pop %v3661
        %v3688 = vmul.f32 1.0, %v3687
        %v3689 = vrcp.pop %v3662
        %v3690 = vmul.f32 1.0, %v3689
        %v3691 = vrcp.pop %v3663
        %v3692 = vmul.f32 1.0, %v3691
        %v3693 = vrcp.pop %v3664
        %v3694 = vmul.f32 1.0, %v3693
        %v3695 = vrcp.pop %v3665
        %v3696 = vmul.f32 1.0, %v3695
        %v3697 = vrcp.pop %v3666
        %v3698 = vmul.f32 1.0, %v3697
        %v3699 = vmul.f32 %v3187, %v3668
        %v3700 = vmul.f32 %v3192, %v3670
        %v3701 = vmul.f32 %v3197, %v3672
        %v3702 = vmul.f32 %v3202, %v3674
        %v3703 = vmul.f32 %v3207, %v3676
        %v3704 = vmul.f32 %v3212, %v3678
        %v3705 = vmul.f32 %v3217, %v3680
        %v3706 = vmul.f32 %v3222, %v3682
        %v3707 = vmul.f32 %v3227, %v3684
        %v3708 = vmul.f32 %v3232, %v3686
        %v3709 = vmul.f32 %v3237, %v3688
        %v3710 = vmul.f32 %v3242, %v3690
        %v3711 = vmul.f32 %v3247, %v3692
        %v3712 = vmul.f32 %v3252, %v3694
        %v3713 = vmul.f32 %v3257, %v3696
        %v3714 = vmul.f32 %v3262, %v3698
        %v3715 = vadd.f32 %v3699, %v324
        %v3716 = vadd.f32 %v3700, %v329
        %v3717 = vadd.f32 %v3701, %v334
        %v3718 = vadd.f32 %v3702, %v339
        %v3719 = vadd.f32 %v3703, %v344
        %v3720 = vadd.f32 %v3704, %v349
        %v3721 = vadd.f32 %v3705, %v354
        %v3722 = vadd.f32 %v3706, %v359
        %v3723 = vadd.f32 %v3707, %v364
        %v3724 = vadd.f32 %v3708, %v369
        %v3725 = vadd.f32 %v3709, %v374
        %v3726 = vadd.f32 %v3710, %v379
        %v3727 = vadd.f32 %v3711, %v384
        %v3728 = vadd.f32 %v3712, %v389
        %v3729 = vadd.f32 %v3713, %v394
        %v3730 = vadd.f32 %v3714, %v399
        %v3731 = vadd.f32 %v3715, %v2000
        %v3732 = vadd.f32 %v3716, %v2001
        %v3733 = vadd.f32 %v3717, %v2002
        %v3734 = vadd.f32 %v3718, %v2003
        %v3735 = vadd.f32 %v3719, %v2004
        %v3736 = vadd.f32 %v3720, %v2005
        %v3737 = vadd.f32 %v3721, %v2006
        %v3738 = vadd.f32 %v3722, %v2007
        %v3739 = vadd.f32 %v3723, %v2008
        %v3740 = vadd.f32 %v3724, %v2009
        %v3741 = vadd.f32 %v3725, %v2010
        %v3742 = vadd.f32 %v3726, %v2011
        %v3743 = vadd.f32 %v3727, %v2012
        %v3744 = vadd.f32 %v3728, %v2013
        %v3745 = vadd.f32 %v3729, %v2014
        %v3746 = vadd.f32 %v3730, %v2015
        %v3747 = vmax.f32 %v3731, 0.0
        %v3748 = vmax.f32 %v3732, 0.0
        %v3749 = vmax.f32 %v3733, 0.0
        %v3750 = vmax.f32 %v3734, 0.0
        %v3751 = vmax.f32 %v3735, 0.0
        %v3752 = vmax.f32 %v3736, 0.0
        %v3753 = vmax.f32 %v3737, 0.0
        %v3754 = vmax.f32 %v3738, 0.0
        %v3755 = vmax.f32 %v3739, 0.0
        %v3756 = vmax.f32 %v3740, 0.0
        %v3757 = vmax.f32 %v3741, 0.0
        %v3758 = vmax.f32 %v3742, 0.0
        %v3759 = vmax.f32 %v3743, 0.0
        %v3760 = vmax.f32 %v3744, 0.0
        %v3761 = vmax.f32 %v3745, 0.0
        %v3762 = vmax.f32 %v3746, 0.0
        %v3763 = vld [vmem:[#allocation5 + $0x1b00] sm:$0xff]
        %v3764 = vld [vmem:[#allocation5 + $0x1b08] sm:$0xff]
        %v3765 = vld [vmem:[#allocation5 + $0x1b18] sm:$0xff]
        %v3766 = vld [vmem:[#allocation5 + $0x1b20] sm:$0xff]
        %v3767 = vld [vmem:[#allocation5 + $0x1b30] sm:$0xff]
        %v3768 = vld [vmem:[#allocation5 + $0x1b38] sm:$0xff]
        %v3769 = vld [vmem:[#allocation5 + $0x1b48] sm:$0xff]
        %v3770 = vld [vmem:[#allocation5 + $0x1b50] sm:$0xff]
        %v3771 = vld [vmem:[#allocation5 + $0x1b60] sm:$0xff]
        %v3772 = vld [vmem:[#allocation5 + $0x1b68] sm:$0xff]
        %v3773 = vld [vmem:[#allocation5 + $0x1b78] sm:$0xff]
        %v3774 = vld [vmem:[#allocation5 + $0x1b80] sm:$0xff]
        %v3775 = vld [vmem:[#allocation5 + $0x1b90] sm:$0xff]
        %v3776 = vld [vmem:[#allocation5 + $0x1b98] sm:$0xff]
        %v3777 = vld [vmem:[#allocation5 + $0x1ba8] sm:$0xff]
        %v3778 = vld [vmem:[#allocation5 + $0x1bb0] sm:$0xff]
        %v3779 = vld [vmem:[#allocation5 + $0x1bc0] sm:$0xff]
        %v3780 = vld [vmem:[#allocation5 + $0x1bc8] sm:$0xff]
        %v3781 = vld [vmem:[#allocation5 + $0x1bd8] sm:$0xff]
        %v3782 = vld [vmem:[#allocation5 + $0x1be0] sm:$0xff]
        %v3783 = vld [vmem:[#allocation5 + $0x1bf0] sm:$0xff]
        %v3784 = vld [vmem:[#allocation5 + $0x1bf8] sm:$0xff]
        %v3785 = vld [vmem:[#allocation5 + $0x1c08] sm:$0xff]
        %v3786 = vld [vmem:[#allocation5 + $0x1c10] sm:$0xff]
        %v3787 = vld [vmem:[#allocation5 + $0x1c20] sm:$0xff]
        %v3788 = vld [vmem:[#allocation5 + $0x1c28] sm:$0xff]
        %v3789 = vld [vmem:[#allocation5 + $0x1c38] sm:$0xff]
        %v3790 = vld [vmem:[#allocation5 + $0x1c40] sm:$0xff]
        %v3791 = vld [vmem:[#allocation5 + $0x1c50] sm:$0xff]
        %v3792 = vld [vmem:[#allocation5 + $0x1c58] sm:$0xff]
        %v3793 = vld [vmem:[#allocation5 + $0x1c68] sm:$0xff]
        %v3794 = vld [vmem:[#allocation5 + $0x1c70] sm:$0xff]
        %v3795 = vld [vmem:[#allocation7 + $0x1b] sm:$0x3]
        %v3797 = vlaneseq
        %v3798 = vshrl.u32 %v3797, 7
        %v3799 = vsub.s32 0, %v3798
        %v3800 = vrot.slane %v3795, %v3799
        %v3801 = vlaneseq
        %v3802 = vshrl.u32 %v3801, 7
        %v3803 = vsub.s32 1, %v3802
        %v3804 = vrot.slane %v3795, %v3803
        %3807 = vmatprep.subr.mxu0 %v3794
        %3808 = vmatpush1.msra.mxu0 %v3793
        %3809 = vmatprep.subr.mxu0 %v3792
        %3810 = vmatpush1.msra.mxu0 %v3791
        %3811 = vmatprep.subr.mxu0 %v3790
        %3812 = vmatpush1.msra.mxu0 %v3789
        %3813 = vmatprep.subr.mxu0 %v3788
        %3814 = vmatpush1.msra.mxu0 %v3787
        %3815 = vmatprep.subr.mxu0 %v3786
        %3816 = vmatpush1.msra.mxu0 %v3785
        %3817 = vmatprep.subr.mxu0 %v3784
        %3818 = vmatpush1.msra.mxu0 %v3783
        %3819 = vmatprep.subr.mxu0 %v3782
        %3820 = vmatpush1.msra.mxu0 %v3781
        %3821 = vmatprep.subr.mxu0 %v3780
        %3822 = vmatpush1.msra.mxu0 %v3779
        %3823 = vmatprep.subr.mxu0 %v3778
        %3824 = vmatpush1.msra.mxu0 %v3777
        %3825 = vmatprep.subr.mxu0 %v3776
        %3826 = vmatpush1.msra.mxu0 %v3775
        %3827 = vmatprep.subr.mxu0 %v3774
        %3828 = vmatpush1.msra.mxu0 %v3773
        %3829 = vmatprep.subr.mxu0 %v3772
        %3830 = vmatpush1.msra.mxu0 %v3771
        %3831 = vmatprep.subr.mxu0 %v3770
        %3832 = vmatpush1.msra.mxu0 %v3769
        %3833 = vmatprep.subr.mxu0 %v3768
        %3834 = vmatpush1.msra.mxu0 %v3767
        %3835 = vmatprep.subr.mxu0 %v3766
        %3836 = vmatpush1.msra.mxu0 %v3765
        %3837 = vmatprep.subr.mxu0 %v3764
        %3838 = vmatpush1.msra.mxu0 %v3763
        %3839 = vmatprep.subr.mxu0 0.0
        %3840 = vmatpush2.msra.mxu0 0.0
        %3841 = vmatprep.subr.mxu0 0.0
        %3842 = vmatpush2.msra.mxu0 0.0
        %3843 = vmatprep.subr.mxu0 0.0
        %3844 = vmatpush2.msra.mxu0 0.0
        %3845 = vmatprep.subr.mxu0 0.0
        %3846 = vmatpush2.msra.mxu0 0.0
        %3847 = vmatprep.subr.mxu0 0.0
        %3848 = vmatpush2.msra.mxu0 0.0
        %3849 = vmatprep.subr.mxu0 0.0
        %3850 = vmatpush2.msra.mxu0 0.0
        %3851 = vmatprep.subr.mxu0 0.0
        %3852 = vmatpush2.msra.mxu0 0.0
        %3853 = vmatprep.subr.mxu0 0.0
        %3854 = vmatpush2.msra.mxu0 0.0
        %3855 = vmatprep.subr.mxu0 0.0
        %3856 = vmatpush2.msra.mxu0 0.0
        %3857 = vmatprep.subr.mxu0 0.0
        %3858 = vmatpush2.msra.mxu0 0.0
        %3859 = vmatprep.subr.mxu0 0.0
        %3860 = vmatpush2.msra.mxu0 0.0
        %3861 = vmatprep.subr.mxu0 0.0
        %3862 = vmatpush2.msra.mxu0 0.0
        %3863 = vmatprep.subr.mxu0 0.0
        %3864 = vmatpush2.msra.mxu0 0.0
        %3865 = vmatprep.subr.mxu0 0.0
        %3866 = vmatpush2.msra.mxu0 0.0
        %3867 = vmatprep.subr.mxu0 0.0
        %3868 = vmatpush2.msra.mxu0 0.0
        %3869 = vmatprep.subr.mxu0 0.0
        %3870 = vmatpush2.msra.mxu0 0.0
        %3871 = vmatprep.mubr.f32.mxu0 0.0
        %3872 = vmatmul.mubr.f32.gmra.mxu0 %v3747
        %v3873 = vpop.f32.mrf.mxu0
        %v3874 = vadd.f32 %v3800, %v3873
        %v3875 = vpop.f32.mrf.mxu0
        %v3876 = vadd.f32 %v3804, %v3875
        %3877 = vmatprep.mubr.f32.mxu0 0.0
        %3878 = vmatmul.mubr.f32.gmra.mxu0 %v3748
        %v3879 = vpop.f32.mrf.mxu0
        %v3880 = vadd.f32 %v3800, %v3879
        %v3881 = vpop.f32.mrf.mxu0
        %v3882 = vadd.f32 %v3804, %v3881
        %3883 = vmatprep.mubr.f32.mxu0 0.0
        %3884 = vmatmul.mubr.f32.gmra.mxu0 %v3749
        %v3885 = vpop.f32.mrf.mxu0
        %v3886 = vadd.f32 %v3800, %v3885
        %v3887 = vpop.f32.mrf.mxu0
        %v3888 = vadd.f32 %v3804, %v3887
        %3889 = vmatprep.mubr.f32.mxu0 0.0
        %3890 = vmatmul.mubr.f32.gmra.mxu0 %v3750
        %v3891 = vpop.f32.mrf.mxu0
        %v3892 = vadd.f32 %v3800, %v3891
        %v3893 = vpop.f32.mrf.mxu0
        %v3894 = vadd.f32 %v3804, %v3893
        %3895 = vmatprep.mubr.f32.mxu0 0.0
        %3896 = vmatmul.mubr.f32.gmra.mxu0 %v3751
        %v3897 = vpop.f32.mrf.mxu0
        %v3898 = vadd.f32 %v3800, %v3897
        %v3899 = vpop.f32.mrf.mxu0
        %v3900 = vadd.f32 %v3804, %v3899
        %3901 = vmatprep.mubr.f32.mxu0 0.0
        %3902 = vmatmul.mubr.f32.gmra.mxu0 %v3752
        %v3903 = vpop.f32.mrf.mxu0
        %v3904 = vadd.f32 %v3800, %v3903
        %v3905 = vpop.f32.mrf.mxu0
        %v3906 = vadd.f32 %v3804, %v3905
        %3907 = vmatprep.mubr.f32.mxu0 0.0
        %3908 = vmatmul.mubr.f32.gmra.mxu0 %v3753
        %v3909 = vpop.f32.mrf.mxu0
        %v3910 = vadd.f32 %v3800, %v3909
        %v3911 = vpop.f32.mrf.mxu0
        %v3912 = vadd.f32 %v3804, %v3911
        %3913 = vmatprep.mubr.f32.mxu0 0.0
        %3914 = vmatmul.mubr.f32.gmra.mxu0 %v3754
        %v3915 = vpop.f32.mrf.mxu0
        %v3916 = vadd.f32 %v3800, %v3915
        %v3917 = vpop.f32.mrf.mxu0
        %v3918 = vadd.f32 %v3804, %v3917
        %3919 = vmatprep.mubr.f32.mxu0 0.0
        %3920 = vmatmul.mubr.f32.gmra.mxu0 %v3755
        %v3921 = vpop.f32.mrf.mxu0
        %v3922 = vadd.f32 %v3800, %v3921
        %v3923 = vpop.f32.mrf.mxu0
        %v3924 = vadd.f32 %v3804, %v3923
        %3925 = vmatprep.mubr.f32.mxu0 0.0
        %3926 = vmatmul.mubr.f32.gmra.mxu0 %v3756
        %v3927 = vpop.f32.mrf.mxu0
        %v3928 = vadd.f32 %v3800, %v3927
        %v3929 = vpop.f32.mrf.mxu0
        %v3930 = vadd.f32 %v3804, %v3929
        %3931 = vmatprep.mubr.f32.mxu0 0.0
        %3932 = vmatmul.mubr.f32.gmra.mxu0 %v3757
        %v3933 = vpop.f32.mrf.mxu0
        %v3934 = vadd.f32 %v3800, %v3933
        %v3935 = vpop.f32.mrf.mxu0
        %v3936 = vadd.f32 %v3804, %v3935
        %3937 = vmatprep.mubr.f32.mxu0 0.0
        %3938 = vmatmul.mubr.f32.gmra.mxu0 %v3758
        %v3939 = vpop.f32.mrf.mxu0
        %v3940 = vadd.f32 %v3800, %v3939
        %v3941 = vpop.f32.mrf.mxu0
        %v3942 = vadd.f32 %v3804, %v3941
        %3943 = vmatprep.mubr.f32.mxu0 0.0
        %3944 = vmatmul.mubr.f32.gmra.mxu0 %v3759
        %v3945 = vpop.f32.mrf.mxu0
        %v3946 = vadd.f32 %v3800, %v3945
        %v3947 = vpop.f32.mrf.mxu0
        %v3948 = vadd.f32 %v3804, %v3947
        %3949 = vmatprep.mubr.f32.mxu0 0.0
        %3950 = vmatmul.mubr.f32.gmra.mxu0 %v3760
        %v3951 = vpop.f32.mrf.mxu0
        %v3952 = vadd.f32 %v3800, %v3951
        %v3953 = vpop.f32.mrf.mxu0
        %v3954 = vadd.f32 %v3804, %v3953
        %3955 = vmatprep.mubr.f32.mxu0 0.0
        %3956 = vmatmul.mubr.f32.gmra.mxu0 %v3761
        %v3957 = vpop.f32.mrf.mxu0
        %v3958 = vadd.f32 %v3800, %v3957
        %v3959 = vpop.f32.mrf.mxu0
        %v3960 = vadd.f32 %v3804, %v3959
        %3961 = vmatprep.mubr.f32.mxu0 0.0
        %3962 = vmatmul.mubr.f32.gmra.mxu0 %v3762
        %v3963 = vpop.f32.mrf.mxu0
        %v3964 = vadd.f32 %v3800, %v3963
        %v3965 = vpop.f32.mrf.mxu0
        %v3966 = vadd.f32 %v3804, %v3965
        %3967 = vdwg.mxu0
        %v3968 = vmax.f32 %v3874, 0.0
        %v3969 = vmax.f32 %v3876, 0.0
        %v3970 = vmax.f32 %v3880, 0.0
        %v3971 = vmax.f32 %v3882, 0.0
        %v3972 = vmax.f32 %v3886, 0.0
        %v3973 = vmax.f32 %v3888, 0.0
        %v3974 = vmax.f32 %v3892, 0.0
        %v3975 = vmax.f32 %v3894, 0.0
        %v3976 = vmax.f32 %v3898, 0.0
        %v3977 = vmax.f32 %v3900, 0.0
        %v3978 = vmax.f32 %v3904, 0.0
        %v3979 = vmax.f32 %v3906, 0.0
        %v3980 = vmax.f32 %v3910, 0.0
        %v3981 = vmax.f32 %v3912, 0.0
        %v3982 = vmax.f32 %v3916, 0.0
        %v3983 = vmax.f32 %v3918, 0.0
        %v3984 = vmax.f32 %v3922, 0.0
        %v3985 = vmax.f32 %v3924, 0.0
        %v3986 = vmax.f32 %v3928, 0.0
        %v3987 = vmax.f32 %v3930, 0.0
        %v3988 = vmax.f32 %v3934, 0.0
        %v3989 = vmax.f32 %v3936, 0.0
        %v3990 = vmax.f32 %v3940, 0.0
        %v3991 = vmax.f32 %v3942, 0.0
        %v3992 = vmax.f32 %v3946, 0.0
        %v3993 = vmax.f32 %v3948, 0.0
        %v3994 = vmax.f32 %v3952, 0.0
        %v3995 = vmax.f32 %v3954, 0.0
        %v3996 = vmax.f32 %v3958, 0.0
        %v3997 = vmax.f32 %v3960, 0.0
        %v3998 = vmax.f32 %v3964, 0.0
        %v3999 = vmax.f32 %v3966, 0.0
        %v4000 = vld [vmem:[#allocation5 + $0x1c80] sm:$0xff]
        %v4001 = vld [vmem:[#allocation5 + $0x1c88] sm:$0xff]
        %v4002 = vld [vmem:[#allocation5 + $0x1c90] sm:$0xff]
        %v4003 = vld [vmem:[#allocation5 + $0x1c98] sm:$0xff]
        %v4004 = vld [vmem:[#allocation5 + $0x1ca0] sm:$0xff]
        %v4005 = vld [vmem:[#allocation5 + $0x1ca8] sm:$0xff]
        %v4006 = vld [vmem:[#allocation5 + $0x1cb0] sm:$0xff]
        %v4007 = vld [vmem:[#allocation5 + $0x1cb8] sm:$0xff]
        %v4008 = vld [vmem:[#allocation5 + $0x1cc0] sm:$0xff]
        %v4009 = vld [vmem:[#allocation5 + $0x1cc8] sm:$0xff]
        %v4010 = vld [vmem:[#allocation5 + $0x1cd0] sm:$0xff]
        %v4011 = vld [vmem:[#allocation5 + $0x1cd8] sm:$0xff]
        %v4012 = vld [vmem:[#allocation5 + $0x1ce0] sm:$0xff]
        %v4013 = vld [vmem:[#allocation5 + $0x1ce8] sm:$0xff]
        %v4014 = vld [vmem:[#allocation5 + $0x1cf0] sm:$0xff]
        %v4015 = vld [vmem:[#allocation5 + $0x1cf8] sm:$0xff]
        %v4016 = vld [vmem:[#allocation5 + $0x1d00] sm:$0xff]
        %v4017 = vld [vmem:[#allocation5 + $0x1d08] sm:$0xff]
        %v4018 = vld [vmem:[#allocation5 + $0x1d10] sm:$0xff]
        %v4019 = vld [vmem:[#allocation5 + $0x1d18] sm:$0xff]
        %v4020 = vld [vmem:[#allocation5 + $0x1d20] sm:$0xff]
        %v4021 = vld [vmem:[#allocation5 + $0x1d28] sm:$0xff]
        %v4022 = vld [vmem:[#allocation5 + $0x1d30] sm:$0xff]
        %v4023 = vld [vmem:[#allocation5 + $0x1d38] sm:$0xff]
        %v4024 = vld [vmem:[#allocation5 + $0x1d40] sm:$0xff]
        %v4025 = vld [vmem:[#allocation5 + $0x1d48] sm:$0xff]
        %v4026 = vld [vmem:[#allocation5 + $0x1d50] sm:$0xff]
        %v4027 = vld [vmem:[#allocation5 + $0x1d58] sm:$0xff]
        %v4028 = vld [vmem:[#allocation5 + $0x1d60] sm:$0xff]
        %v4029 = vld [vmem:[#allocation5 + $0x1d68] sm:$0xff]
        %v4030 = vld [vmem:[#allocation5 + $0x1d70] sm:$0xff]
        %v4031 = vld [vmem:[#allocation5 + $0x1d78] sm:$0xff]
        %v4032 = vld [vmem:[#allocation5 + $0x1d80] sm:$0xff]
        %v4033 = vld [vmem:[#allocation5 + $0x1d88] sm:$0xff]
        %v4034 = vld [vmem:[#allocation5 + $0x1d90] sm:$0xff]
        %v4035 = vld [vmem:[#allocation5 + $0x1d98] sm:$0xff]
        %v4036 = vld [vmem:[#allocation5 + $0x1da0] sm:$0xff]
        %v4037 = vld [vmem:[#allocation5 + $0x1da8] sm:$0xff]
        %v4038 = vld [vmem:[#allocation5 + $0x1db0] sm:$0xff]
        %v4039 = vld [vmem:[#allocation5 + $0x1db8] sm:$0xff]
        %v4040 = vld [vmem:[#allocation5 + $0x1dc0] sm:$0xff]
        %v4041 = vld [vmem:[#allocation5 + $0x1dc8] sm:$0xff]
        %v4042 = vld [vmem:[#allocation5 + $0x1dd0] sm:$0xff]
        %v4043 = vld [vmem:[#allocation5 + $0x1dd8] sm:$0xff]
        %v4044 = vld [vmem:[#allocation5 + $0x1de0] sm:$0xff]
        %v4045 = vld [vmem:[#allocation5 + $0x1de8] sm:$0xff]
        %v4046 = vld [vmem:[#allocation5 + $0x1df0] sm:$0xff]
        %v4047 = vld [vmem:[#allocation5 + $0x1df8] sm:$0xff]
        %v4048 = vld [vmem:[#allocation5 + $0x1e00] sm:$0xff]
        %v4049 = vld [vmem:[#allocation5 + $0x1e08] sm:$0xff]
        %v4050 = vld [vmem:[#allocation5 + $0x1e10] sm:$0xff]
        %v4051 = vld [vmem:[#allocation5 + $0x1e18] sm:$0xff]
        %v4052 = vld [vmem:[#allocation5 + $0x1e20] sm:$0xff]
        %v4053 = vld [vmem:[#allocation5 + $0x1e28] sm:$0xff]
        %v4054 = vld [vmem:[#allocation5 + $0x1e30] sm:$0xff]
        %v4055 = vld [vmem:[#allocation5 + $0x1e38] sm:$0xff]
        %v4056 = vld [vmem:[#allocation5 + $0x1e40] sm:$0xff]
        %v4057 = vld [vmem:[#allocation5 + $0x1e48] sm:$0xff]
        %v4058 = vld [vmem:[#allocation5 + $0x1e50] sm:$0xff]
        %v4059 = vld [vmem:[#allocation5 + $0x1e58] sm:$0xff]
        %v4060 = vld [vmem:[#allocation5 + $0x1e60] sm:$0xff]
        %v4061 = vld [vmem:[#allocation5 + $0x1e68] sm:$0xff]
        %v4062 = vld [vmem:[#allocation5 + $0x1e70] sm:$0xff]
        %v4063 = vld [vmem:[#allocation5 + $0x1e78] sm:$0xff]
        %v4064 = vld [vmem:[#allocation5 + $0x1e80] sm:$0xff]
        %v4065 = vld [vmem:[#allocation5 + $0x1e88] sm:$0xff]
        %v4066 = vld [vmem:[#allocation5 + $0x1e90] sm:$0xff]
        %v4067 = vld [vmem:[#allocation5 + $0x1e98] sm:$0xff]
        %v4068 = vld [vmem:[#allocation5 + $0x1ea0] sm:$0xff]
        %v4069 = vld [vmem:[#allocation5 + $0x1ea8] sm:$0xff]
        %v4070 = vld [vmem:[#allocation5 + $0x1eb0] sm:$0xff]
        %v4071 = vld [vmem:[#allocation5 + $0x1eb8] sm:$0xff]
        %v4072 = vld [vmem:[#allocation5 + $0x1ec0] sm:$0xff]
        %v4073 = vld [vmem:[#allocation5 + $0x1ec8] sm:$0xff]
        %v4074 = vld [vmem:[#allocation5 + $0x1ed0] sm:$0xff]
        %v4075 = vld [vmem:[#allocation5 + $0x1ed8] sm:$0xff]
        %v4076 = vld [vmem:[#allocation5 + $0x1ee0] sm:$0xff]
        %v4077 = vld [vmem:[#allocation5 + $0x1ee8] sm:$0xff]
        %v4078 = vld [vmem:[#allocation5 + $0x1ef0] sm:$0xff]
        %v4079 = vld [vmem:[#allocation5 + $0x1ef8] sm:$0xff]
        %v4080 = vld [vmem:[#allocation5 + $0x1f00] sm:$0xff]
        %v4081 = vld [vmem:[#allocation5 + $0x1f08] sm:$0xff]
        %v4082 = vld [vmem:[#allocation5 + $0x1f10] sm:$0xff]
        %v4083 = vld [vmem:[#allocation5 + $0x1f18] sm:$0xff]
        %v4084 = vld [vmem:[#allocation5 + $0x1f20] sm:$0xff]
        %v4085 = vld [vmem:[#allocation5 + $0x1f28] sm:$0xff]
        %v4086 = vld [vmem:[#allocation5 + $0x1f30] sm:$0xff]
        %v4087 = vld [vmem:[#allocation5 + $0x1f38] sm:$0xff]
        %v4088 = vld [vmem:[#allocation5 + $0x1f40] sm:$0xff]
        %v4089 = vld [vmem:[#allocation5 + $0x1f48] sm:$0xff]
        %v4090 = vld [vmem:[#allocation5 + $0x1f50] sm:$0xff]
        %v4091 = vld [vmem:[#allocation5 + $0x1f58] sm:$0xff]
        %v4092 = vld [vmem:[#allocation5 + $0x1f60] sm:$0xff]
        %v4093 = vld [vmem:[#allocation5 + $0x1f68] sm:$0xff]
        %v4094 = vld [vmem:[#allocation5 + $0x1f70] sm:$0xff]
        %v4095 = vld [vmem:[#allocation5 + $0x1f78] sm:$0xff]
        %v4096 = vld [vmem:[#allocation7 + $0x1e] sm:$0x7]
        %v4098 = vlaneseq
        %v4099 = vshrl.u32 %v4098, 7
        %v4100 = vsub.s32 0, %v4099
        %v4101 = vrot.slane %v4096, %v4100
        %v4102 = vlaneseq
        %v4103 = vshrl.u32 %v4102, 7
        %v4104 = vsub.s32 1, %v4103
        %v4105 = vrot.slane %v4096, %v4104
        %v4106 = vlaneseq
        %v4107 = vshrl.u32 %v4106, 7
        %v4108 = vsub.s32 2, %v4107
        %v4109 = vrot.slane %v4096, %v4108
        %4113 = vmatprep.subr.mxu0 %v4046
        %4114 = vmatpush1.msra.mxu0 %v4045
        %4115 = vmatprep.subr.mxu0 %v4043
        %4116 = vmatpush1.msra.mxu0 %v4042
        %4117 = vmatprep.subr.mxu0 %v4040
        %4118 = vmatpush1.msra.mxu0 %v4039
        %4119 = vmatprep.subr.mxu0 %v4037
        %4120 = vmatpush1.msra.mxu0 %v4036
        %4121 = vmatprep.subr.mxu0 %v4034
        %4122 = vmatpush1.msra.mxu0 %v4033
        %4123 = vmatprep.subr.mxu0 %v4031
        %4124 = vmatpush1.msra.mxu0 %v4030
        %4125 = vmatprep.subr.mxu0 %v4028
        %4126 = vmatpush1.msra.mxu0 %v4027
        %4127 = vmatprep.subr.mxu0 %v4025
        %4128 = vmatpush1.msra.mxu0 %v4024
        %4129 = vmatprep.subr.mxu0 %v4022
        %4130 = vmatpush1.msra.mxu0 %v4021
        %4131 = vmatprep.subr.mxu0 %v4019
        %4132 = vmatpush1.msra.mxu0 %v4018
        %4133 = vmatprep.subr.mxu0 %v4016
        %4134 = vmatpush1.msra.mxu0 %v4015
        %4135 = vmatprep.subr.mxu0 %v4013
        %4136 = vmatpush1.msra.mxu0 %v4012
        %4137 = vmatprep.subr.mxu0 %v4010
        %4138 = vmatpush1.msra.mxu0 %v4009
        %4139 = vmatprep.subr.mxu0 %v4007
        %4140 = vmatpush1.msra.mxu0 %v4006
        %4141 = vmatprep.subr.mxu0 %v4004
        %4142 = vmatpush1.msra.mxu0 %v4003
        %4143 = vmatprep.subr.mxu0 %v4001
        %4144 = vmatpush1.msra.mxu0 %v4000
        %4145 = vmatprep.subr.mxu0 %v4094
        %4146 = vmatpush2.msra.mxu0 %v4093
        %4147 = vmatprep.subr.mxu0 %v4091
        %4148 = vmatpush2.msra.mxu0 %v4090
        %4149 = vmatprep.subr.mxu0 %v4088
        %4150 = vmatpush2.msra.mxu0 %v4087
        %4151 = vmatprep.subr.mxu0 %v4085
        %4152 = vmatpush2.msra.mxu0 %v4084
        %4153 = vmatprep.subr.mxu0 %v4082
        %4154 = vmatpush2.msra.mxu0 %v4081
        %4155 = vmatprep.subr.mxu0 %v4079
        %4156 = vmatpush2.msra.mxu0 %v4078
        %4157 = vmatprep.subr.mxu0 %v4076
        %4158 = vmatpush2.msra.mxu0 %v4075
        %4159 = vmatprep.subr.mxu0 %v4073
        %4160 = vmatpush2.msra.mxu0 %v4072
        %4161 = vmatprep.subr.mxu0 %v4070
        %4162 = vmatpush2.msra.mxu0 %v4069
        %4163 = vmatprep.subr.mxu0 %v4067
        %4164 = vmatpush2.msra.mxu0 %v4066
        %4165 = vmatprep.subr.mxu0 %v4064
        %4166 = vmatpush2.msra.mxu0 %v4063
        %4167 = vmatprep.subr.mxu0 %v4061
        %4168 = vmatpush2.msra.mxu0 %v4060
        %4169 = vmatprep.subr.mxu0 %v4058
        %4170 = vmatpush2.msra.mxu0 %v4057
        %4171 = vmatprep.subr.mxu0 %v4055
        %4172 = vmatpush2.msra.mxu0 %v4054
        %4173 = vmatprep.subr.mxu0 %v4052
        %4174 = vmatpush2.msra.mxu0 %v4051
        %4175 = vmatprep.subr.mxu0 %v4049
        %4176 = vmatpush2.msra.mxu0 %v4048
        %4177 = vmatprep.mubr.f32.mxu0 %v3969
        %4178 = vmatmul.mubr.f32.gmra.mxu0 %v3968
        %v4179 = vpop.f32.mrf.mxu0
        %v4180 = vadd.f32 %v4101, %v4179
        %v4181 = vpop.f32.mrf.mxu0
        %v4182 = vadd.f32 %v4105, %v4181
        %4183 = vmatprep.mubr.f32.mxu0 %v3971
        %4184 = vmatmul.mubr.f32.gmra.mxu0 %v3970
        %v4185 = vpop.f32.mrf.mxu0
        %v4186 = vadd.f32 %v4101, %v4185
        %v4187 = vpop.f32.mrf.mxu0
        %v4188 = vadd.f32 %v4105, %v4187
        %4189 = vmatprep.mubr.f32.mxu0 %v3973
        %4190 = vmatmul.mubr.f32.gmra.mxu0 %v3972
        %v4191 = vpop.f32.mrf.mxu0
        %v4192 = vadd.f32 %v4101, %v4191
        %v4193 = vpop.f32.mrf.mxu0
        %v4194 = vadd.f32 %v4105, %v4193
        %4195 = vmatprep.mubr.f32.mxu0 %v3975
        %4196 = vmatmul.mubr.f32.gmra.mxu0 %v3974
        %v4197 = vpop.f32.mrf.mxu0
        %v4198 = vadd.f32 %v4101, %v4197
        %v4199 = vpop.f32.mrf.mxu0
        %v4200 = vadd.f32 %v4105, %v4199
        %4201 = vmatprep.mubr.f32.mxu0 %v3977
        %4202 = vmatmul.mubr.f32.gmra.mxu0 %v3976
        %v4203 = vpop.f32.mrf.mxu0
        %v4204 = vadd.f32 %v4101, %v4203
        %v4205 = vpop.f32.mrf.mxu0
        %v4206 = vadd.f32 %v4105, %v4205
        %4207 = vmatprep.mubr.f32.mxu0 %v3979
        %4208 = vmatmul.mubr.f32.gmra.mxu0 %v3978
        %v4209 = vpop.f32.mrf.mxu0
        %v4210 = vadd.f32 %v4101, %v4209
        %v4211 = vpop.f32.mrf.mxu0
        %v4212 = vadd.f32 %v4105, %v4211
        %4213 = vmatprep.mubr.f32.mxu0 %v3981
        %4214 = vmatmul.mubr.f32.gmra.mxu0 %v3980
        %v4215 = vpop.f32.mrf.mxu0
        %v4216 = vadd.f32 %v4101, %v4215
        %v4217 = vpop.f32.mrf.mxu0
        %v4218 = vadd.f32 %v4105, %v4217
        %4219 = vmatprep.mubr.f32.mxu0 %v3983
        %4220 = vmatmul.mubr.f32.gmra.mxu0 %v3982
        %v4221 = vpop.f32.mrf.mxu0
        %v4222 = vadd.f32 %v4101, %v4221
        %v4223 = vpop.f32.mrf.mxu0
        %v4224 = vadd.f32 %v4105, %v4223
        %4225 = vmatprep.mubr.f32.mxu0 %v3985
        %4226 = vmatmul.mubr.f32.gmra.mxu0 %v3984
        %v4227 = vpop.f32.mrf.mxu0
        %v4228 = vadd.f32 %v4101, %v4227
        %v4229 = vpop.f32.mrf.mxu0
        %v4230 = vadd.f32 %v4105, %v4229
        %4231 = vmatprep.mubr.f32.mxu0 %v3987
        %4232 = vmatmul.mubr.f32.gmra.mxu0 %v3986
        %v4233 = vpop.f32.mrf.mxu0
        %v4234 = vadd.f32 %v4101, %v4233
        %v4235 = vpop.f32.mrf.mxu0
        %v4236 = vadd.f32 %v4105, %v4235
        %4237 = vmatprep.mubr.f32.mxu0 %v3989
        %4238 = vmatmul.mubr.f32.gmra.mxu0 %v3988
        %v4239 = vpop.f32.mrf.mxu0
        %v4240 = vadd.f32 %v4101, %v4239
        %v4241 = vpop.f32.mrf.mxu0
        %v4242 = vadd.f32 %v4105, %v4241
        %4243 = vmatprep.mubr.f32.mxu0 %v3991
        %4244 = vmatmul.mubr.f32.gmra.mxu0 %v3990
        %v4245 = vpop.f32.mrf.mxu0
        %v4246 = vadd.f32 %v4101, %v4245
        %v4247 = vpop.f32.mrf.mxu0
        %v4248 = vadd.f32 %v4105, %v4247
        %4249 = vmatprep.mubr.f32.mxu0 %v3993
        %4250 = vmatmul.mubr.f32.gmra.mxu0 %v3992
        %v4251 = vpop.f32.mrf.mxu0
        %v4252 = vadd.f32 %v4101, %v4251
        %v4253 = vpop.f32.mrf.mxu0
        %v4254 = vadd.f32 %v4105, %v4253
        %4255 = vmatprep.mubr.f32.mxu0 %v3995
        %4256 = vmatmul.mubr.f32.gmra.mxu0 %v3994
        %v4257 = vpop.f32.mrf.mxu0
        %v4258 = vadd.f32 %v4101, %v4257
        %v4259 = vpop.f32.mrf.mxu0
        %v4260 = vadd.f32 %v4105, %v4259
        %4261 = vmatprep.mubr.f32.mxu0 %v3997
        %4262 = vmatmul.mubr.f32.gmra.mxu0 %v3996
        %v4263 = vpop.f32.mrf.mxu0
        %v4264 = vadd.f32 %v4101, %v4263
        %v4265 = vpop.f32.mrf.mxu0
        %v4266 = vadd.f32 %v4105, %v4265
        %4267 = vmatprep.mubr.f32.mxu0 %v3999
        %4268 = vmatmul.mubr.f32.gmra.mxu0 %v3998
        %v4269 = vpop.f32.mrf.mxu0
        %v4270 = vadd.f32 %v4101, %v4269
        %v4271 = vpop.f32.mrf.mxu0
        %v4272 = vadd.f32 %v4105, %v4271
        %4273 = vdwg.mxu0
        %4274 = vmatprep.subr.mxu0 0.0
        %4275 = vmatpush1.msra.mxu0 %v4047
        %4276 = vmatprep.subr.mxu0 0.0
        %4277 = vmatpush1.msra.mxu0 %v4044
        %4278 = vmatprep.subr.mxu0 0.0
        %4279 = vmatpush1.msra.mxu0 %v4041
        %4280 = vmatprep.subr.mxu0 0.0
        %4281 = vmatpush1.msra.mxu0 %v4038
        %4282 = vmatprep.subr.mxu0 0.0
        %4283 = vmatpush1.msra.mxu0 %v4035
        %4284 = vmatprep.subr.mxu0 0.0
        %4285 = vmatpush1.msra.mxu0 %v4032
        %4286 = vmatprep.subr.mxu0 0.0
        %4287 = vmatpush1.msra.mxu0 %v4029
        %4288 = vmatprep.subr.mxu0 0.0
        %4289 = vmatpush1.msra.mxu0 %v4026
        %4290 = vmatprep.subr.mxu0 0.0
        %4291 = vmatpush1.msra.mxu0 %v4023
        %4292 = vmatprep.subr.mxu0 0.0
        %4293 = vmatpush1.msra.mxu0 %v4020
        %4294 = vmatprep.subr.mxu0 0.0
        %4295 = vmatpush1.msra.mxu0 %v4017
        %4296 = vmatprep.subr.mxu0 0.0
        %4297 = vmatpush1.msra.mxu0 %v4014
        %4298 = vmatprep.subr.mxu0 0.0
        %4299 = vmatpush1.msra.mxu0 %v4011
        %4300 = vmatprep.subr.mxu0 0.0
        %4301 = vmatpush1.msra.mxu0 %v4008
        %4302 = vmatprep.subr.mxu0 0.0
        %4303 = vmatpush1.msra.mxu0 %v4005
        %4304 = vmatprep.subr.mxu0 0.0
        %4305 = vmatpush1.msra.mxu0 %v4002
        %4306 = vmatprep.subr.mxu0 0.0
        %4307 = vmatpush2.msra.mxu0 %v4095
        %4308 = vmatprep.subr.mxu0 0.0
        %4309 = vmatpush2.msra.mxu0 %v4092
        %4310 = vmatprep.subr.mxu0 0.0
        %4311 = vmatpush2.msra.mxu0 %v4089
        %4312 = vmatprep.subr.mxu0 0.0
        %4313 = vmatpush2.msra.mxu0 %v4086
        %4314 = vmatprep.subr.mxu0 0.0
        %4315 = vmatpush2.msra.mxu0 %v4083
        %4316 = vmatprep.subr.mxu0 0.0
        %4317 = vmatpush2.msra.mxu0 %v4080
        %4318 = vmatprep.subr.mxu0 0.0
        %4319 = vmatpush2.msra.mxu0 %v4077
        %4320 = vmatprep.subr.mxu0 0.0
        %4321 = vmatpush2.msra.mxu0 %v4074
        %4322 = vmatprep.subr.mxu0 0.0
        %4323 = vmatpush2.msra.mxu0 %v4071
        %4324 = vmatprep.subr.mxu0 0.0
        %4325 = vmatpush2.msra.mxu0 %v4068
        %4326 = vmatprep.subr.mxu0 0.0
        %4327 = vmatpush2.msra.mxu0 %v4065
        %4328 = vmatprep.subr.mxu0 0.0
        %4329 = vmatpush2.msra.mxu0 %v4062
        %4330 = vmatprep.subr.mxu0 0.0
        %4331 = vmatpush2.msra.mxu0 %v4059
        %4332 = vmatprep.subr.mxu0 0.0
        %4333 = vmatpush2.msra.mxu0 %v4056
        %4334 = vmatprep.subr.mxu0 0.0
        %4335 = vmatpush2.msra.mxu0 %v4053
        %4336 = vmatprep.subr.mxu0 0.0
        %4337 = vmatpush2.msra.mxu0 %v4050
        %4338 = vmatprep.mubr.f32.mxu0 %v3969
        %4339 = vmatmul.mubr.f32.gmra.mxu0 %v3968
        %v4340 = vpop.f32.mrf.mxu0
        %v4341 = vadd.f32 %v4109, %v4340
        %v4342 = vpop.f32.mrf.mxu0
        %4343 = vmatprep.mubr.f32.mxu0 %v3971
        %4344 = vmatmul.mubr.f32.gmra.mxu0 %v3970
        %v4345 = vpop.f32.mrf.mxu0
        %v4346 = vadd.f32 %v4109, %v4345
        %v4347 = vpop.f32.mrf.mxu0
        %4348 = vmatprep.mubr.f32.mxu0 %v3973
        %4349 = vmatmul.mubr.f32.gmra.mxu0 %v3972
        %v4350 = vpop.f32.mrf.mxu0
        %v4351 = vadd.f32 %v4109, %v4350
        %v4352 = vpop.f32.mrf.mxu0
        %4353 = vmatprep.mubr.f32.mxu0 %v3975
        %4354 = vmatmul.mubr.f32.gmra.mxu0 %v3974
        %v4355 = vpop.f32.mrf.mxu0
        %v4356 = vadd.f32 %v4109, %v4355
        %v4357 = vpop.f32.mrf.mxu0
        %4358 = vmatprep.mubr.f32.mxu0 %v3977
        %4359 = vmatmul.mubr.f32.gmra.mxu0 %v3976
        %v4360 = vpop.f32.mrf.mxu0
        %v4361 = vadd.f32 %v4109, %v4360
        %v4362 = vpop.f32.mrf.mxu0
        %4363 = vmatprep.mubr.f32.mxu0 %v3979
        %4364 = vmatmul.mubr.f32.gmra.mxu0 %v3978
        %v4365 = vpop.f32.mrf.mxu0
        %v4366 = vadd.f32 %v4109, %v4365
        %v4367 = vpop.f32.mrf.mxu0
        %4368 = vmatprep.mubr.f32.mxu0 %v3981
        %4369 = vmatmul.mubr.f32.gmra.mxu0 %v3980
        %v4370 = vpop.f32.mrf.mxu0
        %v4371 = vadd.f32 %v4109, %v4370
        %v4372 = vpop.f32.mrf.mxu0
        %4373 = vmatprep.mubr.f32.mxu0 %v3983
        %4374 = vmatmul.mubr.f32.gmra.mxu0 %v3982
        %v4375 = vpop.f32.mrf.mxu0
        %v4376 = vadd.f32 %v4109, %v4375
        %v4377 = vpop.f32.mrf.mxu0
        %4378 = vmatprep.mubr.f32.mxu0 %v3985
        %4379 = vmatmul.mubr.f32.gmra.mxu0 %v3984
        %v4380 = vpop.f32.mrf.mxu0
        %v4381 = vadd.f32 %v4109, %v4380
        %v4382 = vpop.f32.mrf.mxu0
        %4383 = vmatprep.mubr.f32.mxu0 %v3987
        %4384 = vmatmul.mubr.f32.gmra.mxu0 %v3986
        %v4385 = vpop.f32.mrf.mxu0
        %v4386 = vadd.f32 %v4109, %v4385
        %v4387 = vpop.f32.mrf.mxu0
        %4388 = vmatprep.mubr.f32.mxu0 %v3989
        %4389 = vmatmul.mubr.f32.gmra.mxu0 %v3988
        %v4390 = vpop.f32.mrf.mxu0
        %v4391 = vadd.f32 %v4109, %v4390
        %v4392 = vpop.f32.mrf.mxu0
        %4393 = vmatprep.mubr.f32.mxu0 %v3991
        %4394 = vmatmul.mubr.f32.gmra.mxu0 %v3990
        %v4395 = vpop.f32.mrf.mxu0
        %v4396 = vadd.f32 %v4109, %v4395
        %v4397 = vpop.f32.mrf.mxu0
        %4398 = vmatprep.mubr.f32.mxu0 %v3993
        %4399 = vmatmul.mubr.f32.gmra.mxu0 %v3992
        %v4400 = vpop.f32.mrf.mxu0
        %v4401 = vadd.f32 %v4109, %v4400
        %v4402 = vpop.f32.mrf.mxu0
        %4403 = vmatprep.mubr.f32.mxu0 %v3995
        %4404 = vmatmul.mubr.f32.gmra.mxu0 %v3994
        %v4405 = vpop.f32.mrf.mxu0
        %v4406 = vadd.f32 %v4109, %v4405
        %v4407 = vpop.f32.mrf.mxu0
        %4408 = vmatprep.mubr.f32.mxu0 %v3997
        %4409 = vmatmul.mubr.f32.gmra.mxu0 %v3996
        %v4410 = vpop.f32.mrf.mxu0
        %v4411 = vadd.f32 %v4109, %v4410
        %v4412 = vpop.f32.mrf.mxu0
        %4413 = vmatprep.mubr.f32.mxu0 %v3999
        %4414 = vmatmul.mubr.f32.gmra.mxu0 %v3998
        %v4415 = vpop.f32.mrf.mxu0
        %v4416 = vadd.f32 %v4109, %v4415
        %v4417 = vpop.f32.mrf.mxu0
        %4418 = vdwg.mxu0
        %v4419 = vmax.f32 %v4180, 0.0
        %v4420 = vmax.f32 %v4182, 0.0
        %v4421 = vmax.f32 %v4341, 0.0
        %v4422 = vmax.f32 %v4186, 0.0
        %v4423 = vmax.f32 %v4188, 0.0
        %v4424 = vmax.f32 %v4346, 0.0
        %v4425 = vmax.f32 %v4192, 0.0
        %v4426 = vmax.f32 %v4194, 0.0
        %v4427 = vmax.f32 %v4351, 0.0
        %v4428 = vmax.f32 %v4198, 0.0
        %v4429 = vmax.f32 %v4200, 0.0
        %v4430 = vmax.f32 %v4356, 0.0
        %v4431 = vmax.f32 %v4204, 0.0
        %v4432 = vmax.f32 %v4206, 0.0
        %v4433 = vmax.f32 %v4361, 0.0
        %v4434 = vmax.f32 %v4210, 0.0
        %v4435 = vmax.f32 %v4212, 0.0
        %v4436 = vmax.f32 %v4366, 0.0
        %v4437 = vmax.f32 %v4216, 0.0
        %v4438 = vmax.f32 %v4218, 0.0
        %v4439 = vmax.f32 %v4371, 0.0
        %v4440 = vmax.f32 %v4222, 0.0
        %v4441 = vmax.f32 %v4224, 0.0
        %v4442 = vmax.f32 %v4376, 0.0
        %v4443 = vmax.f32 %v4228, 0.0
        %v4444 = vmax.f32 %v4230, 0.0
        %v4445 = vmax.f32 %v4381, 0.0
        %v4446 = vmax.f32 %v4234, 0.0
        %v4447 = vmax.f32 %v4236, 0.0
        %v4448 = vmax.f32 %v4386, 0.0
        %v4449 = vmax.f32 %v4240, 0.0
        %v4450 = vmax.f32 %v4242, 0.0
        %v4451 = vmax.f32 %v4391, 0.0
        %v4452 = vmax.f32 %v4246, 0.0
        %v4453 = vmax.f32 %v4248, 0.0
        %v4454 = vmax.f32 %v4396, 0.0
        %v4455 = vmax.f32 %v4252, 0.0
        %v4456 = vmax.f32 %v4254, 0.0
        %v4457 = vmax.f32 %v4401, 0.0
        %v4458 = vmax.f32 %v4258, 0.0
        %v4459 = vmax.f32 %v4260, 0.0
        %v4460 = vmax.f32 %v4406, 0.0
        %v4461 = vmax.f32 %v4264, 0.0
        %v4462 = vmax.f32 %v4266, 0.0
        %v4463 = vmax.f32 %v4411, 0.0
        %v4464 = vmax.f32 %v4270, 0.0
        %v4465 = vmax.f32 %v4272, 0.0
        %v4466 = vmax.f32 %v4416, 0.0
        %v4467 = vld [vmem:[#allocation5 + $0x1f80] sm:$0xff]
        %v4468 = vld [vmem:[#allocation5 + $0x1f88] sm:$0xff]
        %v4469 = vld [vmem:[#allocation5 + $0x1f98] sm:$0xff]
        %v4470 = vld [vmem:[#allocation5 + $0x1fa0] sm:$0xff]
        %v4471 = vld [vmem:[#allocation5 + $0x1fb0] sm:$0xff]
        %v4472 = vld [vmem:[#allocation5 + $0x1fb8] sm:$0xff]
        %v4473 = vld [vmem:[#allocation5 + $0x1fc8] sm:$0xff]
        %v4474 = vld [vmem:[#allocation5 + $0x1fd0] sm:$0xff]
        %v4475 = vld [vmem:[#allocation5 + $0x1fe0] sm:$0xff]
        %v4476 = vld [vmem:[#allocation5 + $0x1fe8] sm:$0xff]
        %v4477 = vld [vmem:[#allocation5 + $0x1ff8] sm:$0xff]
        %v4478 = vld [vmem:[#allocation5 + $0x2000] sm:$0xff]
        %v4479 = vld [vmem:[#allocation5 + $0x2010] sm:$0xff]
        %v4480 = vld [vmem:[#allocation5 + $0x2018] sm:$0xff]
        %v4481 = vld [vmem:[#allocation5 + $0x2028] sm:$0xff]
        %v4482 = vld [vmem:[#allocation5 + $0x2030] sm:$0xff]
        %v4483 = vld [vmem:[#allocation5 + $0x2040] sm:$0xff]
        %v4484 = vld [vmem:[#allocation5 + $0x2048] sm:$0xff]
        %v4485 = vld [vmem:[#allocation5 + $0x2058] sm:$0xff]
        %v4486 = vld [vmem:[#allocation5 + $0x2060] sm:$0xff]
        %v4487 = vld [vmem:[#allocation5 + $0x2070] sm:$0xff]
        %v4488 = vld [vmem:[#allocation5 + $0x2078] sm:$0xff]
        %v4489 = vld [vmem:[#allocation5 + $0x2088] sm:$0xff]
        %v4490 = vld [vmem:[#allocation5 + $0x2090] sm:$0xff]
        %v4491 = vld [vmem:[#allocation5 + $0x20a0] sm:$0xff]
        %v4492 = vld [vmem:[#allocation5 + $0x20a8] sm:$0xff]
        %v4493 = vld [vmem:[#allocation5 + $0x20b8] sm:$0xff]
        %v4494 = vld [vmem:[#allocation5 + $0x20c0] sm:$0xff]
        %v4495 = vld [vmem:[#allocation5 + $0x20d0] sm:$0xff]
        %v4496 = vld [vmem:[#allocation5 + $0x20d8] sm:$0xff]
        %v4497 = vld [vmem:[#allocation5 + $0x20e8] sm:$0xff]
        %v4498 = vld [vmem:[#allocation5 + $0x20f0] sm:$0xff]
        %v4499 = vld [vmem:[#allocation5 + $0x2100] sm:$0xff]
        %v4500 = vld [vmem:[#allocation5 + $0x2108] sm:$0xff]
        %v4501 = vld [vmem:[#allocation5 + $0x2118] sm:$0xff]
        %v4502 = vld [vmem:[#allocation5 + $0x2120] sm:$0xff]
        %v4503 = vld [vmem:[#allocation5 + $0x2130] sm:$0xff]
        %v4504 = vld [vmem:[#allocation5 + $0x2138] sm:$0xff]
        %v4505 = vld [vmem:[#allocation5 + $0x2148] sm:$0xff]
        %v4506 = vld [vmem:[#allocation5 + $0x2150] sm:$0xff]
        %v4507 = vld [vmem:[#allocation5 + $0x2160] sm:$0xff]
        %v4508 = vld [vmem:[#allocation5 + $0x2168] sm:$0xff]
        %v4509 = vld [vmem:[#allocation5 + $0x2178] sm:$0xff]
        %v4510 = vld [vmem:[#allocation5 + $0x2180] sm:$0xff]
        %v4511 = vld [vmem:[#allocation5 + $0x2190] sm:$0xff]
        %v4512 = vld [vmem:[#allocation5 + $0x2198] sm:$0xff]
        %v4513 = vld [vmem:[#allocation5 + $0x21a8] sm:$0xff]
        %v4514 = vld [vmem:[#allocation5 + $0x21b0] sm:$0xff]
        %v4515 = vld [vmem:[#allocation5 + $0x21c0] sm:$0xff]
        %v4516 = vld [vmem:[#allocation5 + $0x21c8] sm:$0xff]
        %v4517 = vld [vmem:[#allocation5 + $0x21d8] sm:$0xff]
        %v4518 = vld [vmem:[#allocation5 + $0x21e0] sm:$0xff]
        %v4519 = vld [vmem:[#allocation5 + $0x21f0] sm:$0xff]
        %v4520 = vld [vmem:[#allocation5 + $0x21f8] sm:$0xff]
        %v4521 = vld [vmem:[#allocation5 + $0x2208] sm:$0xff]
        %v4522 = vld [vmem:[#allocation5 + $0x2210] sm:$0xff]
        %v4523 = vld [vmem:[#allocation5 + $0x2220] sm:$0xff]
        %v4524 = vld [vmem:[#allocation5 + $0x2228] sm:$0xff]
        %v4525 = vld [vmem:[#allocation5 + $0x2238] sm:$0xff]
        %v4526 = vld [vmem:[#allocation5 + $0x2240] sm:$0xff]
        %v4527 = vld [vmem:[#allocation5 + $0x2250] sm:$0xff]
        %v4528 = vld [vmem:[#allocation5 + $0x2258] sm:$0xff]
        %v4529 = vld [vmem:[#allocation5 + $0x2268] sm:$0xff]
        %v4530 = vld [vmem:[#allocation5 + $0x2270] sm:$0xff]
        %v4531 = vld [vmem:[#allocation5 + $0x2280] sm:$0xff]
        %v4532 = vld [vmem:[#allocation5 + $0x2288] sm:$0xff]
        %v4533 = vld [vmem:[#allocation5 + $0x2298] sm:$0xff]
        %v4534 = vld [vmem:[#allocation5 + $0x22a0] sm:$0xff]
        %v4535 = vld [vmem:[#allocation5 + $0x22b0] sm:$0xff]
        %v4536 = vld [vmem:[#allocation5 + $0x22b8] sm:$0xff]
        %v4537 = vld [vmem:[#allocation5 + $0x22c8] sm:$0xff]
        %v4538 = vld [vmem:[#allocation5 + $0x22d0] sm:$0xff]
        %v4539 = vld [vmem:[#allocation5 + $0x22e0] sm:$0xff]
        %v4540 = vld [vmem:[#allocation5 + $0x22e8] sm:$0xff]
        %v4541 = vld [vmem:[#allocation5 + $0x22f8] sm:$0xff]
        %v4542 = vld [vmem:[#allocation5 + $0x2300] sm:$0xff]
        %v4543 = vld [vmem:[#allocation5 + $0x2310] sm:$0xff]
        %v4544 = vld [vmem:[#allocation5 + $0x2318] sm:$0xff]
        %v4545 = vld [vmem:[#allocation5 + $0x2328] sm:$0xff]
        %v4546 = vld [vmem:[#allocation5 + $0x2330] sm:$0xff]
        %v4547 = vld [vmem:[#allocation5 + $0x2340] sm:$0xff]
        %v4548 = vld [vmem:[#allocation5 + $0x2348] sm:$0xff]
        %v4549 = vld [vmem:[#allocation5 + $0x2358] sm:$0xff]
        %v4550 = vld [vmem:[#allocation5 + $0x2360] sm:$0xff]
        %v4551 = vld [vmem:[#allocation5 + $0x2370] sm:$0xff]
        %v4552 = vld [vmem:[#allocation5 + $0x2378] sm:$0xff]
        %v4553 = vld [vmem:[#allocation5 + $0x2388] sm:$0xff]
        %v4554 = vld [vmem:[#allocation5 + $0x2390] sm:$0xff]
        %v4555 = vld [vmem:[#allocation5 + $0x23a0] sm:$0xff]
        %v4556 = vld [vmem:[#allocation5 + $0x23a8] sm:$0xff]
        %v4557 = vld [vmem:[#allocation5 + $0x23b8] sm:$0xff]
        %v4558 = vld [vmem:[#allocation5 + $0x23c0] sm:$0xff]
        %v4559 = vld [vmem:[#allocation5 + $0x23d0] sm:$0xff]
        %v4560 = vld [vmem:[#allocation5 + $0x23d8] sm:$0xff]
        %v4561 = vld [vmem:[#allocation5 + $0x23e8] sm:$0xff]
        %v4562 = vld [vmem:[#allocation5 + $0x23f0] sm:$0xff]
        %v4563 = vld [vmem:[#allocation7 + $0x21] sm:$0x3]
        %v4565 = vlaneseq
        %v4566 = vshrl.u32 %v4565, 7
        %v4567 = vsub.s32 0, %v4566
        %v4568 = vrot.slane %v4563, %v4567
        %v4569 = vlaneseq
        %v4570 = vshrl.u32 %v4569, 7
        %v4571 = vsub.s32 1, %v4570
        %v4572 = vrot.slane %v4563, %v4571
        %4575 = vmatprep.subr.mxu0 %v4498
        %4576 = vmatpush1.msra.mxu0 %v4497
        %4577 = vmatprep.subr.mxu0 %v4496
        %4578 = vmatpush1.msra.mxu0 %v4495
        %4579 = vmatprep.subr.mxu0 %v4494
        %4580 = vmatpush1.msra.mxu0 %v4493
        %4581 = vmatprep.subr.mxu0 %v4492
        %4582 = vmatpush1.msra.mxu0 %v4491
        %4583 = vmatprep.subr.mxu0 %v4490
        %4584 = vmatpush1.msra.mxu0 %v4489
        %4585 = vmatprep.subr.mxu0 %v4488
        %4586 = vmatpush1.msra.mxu0 %v4487
        %4587 = vmatprep.subr.mxu0 %v4486
        %4588 = vmatpush1.msra.mxu0 %v4485
        %4589 = vmatprep.subr.mxu0 %v4484
        %4590 = vmatpush1.msra.mxu0 %v4483
        %4591 = vmatprep.subr.mxu0 %v4482
        %4592 = vmatpush1.msra.mxu0 %v4481
        %4593 = vmatprep.subr.mxu0 %v4480
        %4594 = vmatpush1.msra.mxu0 %v4479
        %4595 = vmatprep.subr.mxu0 %v4478
        %4596 = vmatpush1.msra.mxu0 %v4477
        %4597 = vmatprep.subr.mxu0 %v4476
        %4598 = vmatpush1.msra.mxu0 %v4475
        %4599 = vmatprep.subr.mxu0 %v4474
        %4600 = vmatpush1.msra.mxu0 %v4473
        %4601 = vmatprep.subr.mxu0 %v4472
        %4602 = vmatpush1.msra.mxu0 %v4471
        %4603 = vmatprep.subr.mxu0 %v4470
        %4604 = vmatpush1.msra.mxu0 %v4469
        %4605 = vmatprep.subr.mxu0 %v4468
        %4606 = vmatpush1.msra.mxu0 %v4467
        %4607 = vmatprep.subr.mxu0 %v4530
        %4608 = vmatpush2.msra.mxu0 %v4529
        %4609 = vmatprep.subr.mxu0 %v4528
        %4610 = vmatpush2.msra.mxu0 %v4527
        %4611 = vmatprep.subr.mxu0 %v4526
        %4612 = vmatpush2.msra.mxu0 %v4525
        %4613 = vmatprep.subr.mxu0 %v4524
        %4614 = vmatpush2.msra.mxu0 %v4523
        %4615 = vmatprep.subr.mxu0 %v4522
        %4616 = vmatpush2.msra.mxu0 %v4521
        %4617 = vmatprep.subr.mxu0 %v4520
        %4618 = vmatpush2.msra.mxu0 %v4519
        %4619 = vmatprep.subr.mxu0 %v4518
        %4620 = vmatpush2.msra.mxu0 %v4517
        %4621 = vmatprep.subr.mxu0 %v4516
        %4622 = vmatpush2.msra.mxu0 %v4515
        %4623 = vmatprep.subr.mxu0 %v4514
        %4624 = vmatpush2.msra.mxu0 %v4513
        %4625 = vmatprep.subr.mxu0 %v4512
        %4626 = vmatpush2.msra.mxu0 %v4511
        %4627 = vmatprep.subr.mxu0 %v4510
        %4628 = vmatpush2.msra.mxu0 %v4509
        %4629 = vmatprep.subr.mxu0 %v4508
        %4630 = vmatpush2.msra.mxu0 %v4507
        %4631 = vmatprep.subr.mxu0 %v4506
        %4632 = vmatpush2.msra.mxu0 %v4505
        %4633 = vmatprep.subr.mxu0 %v4504
        %4634 = vmatpush2.msra.mxu0 %v4503
        %4635 = vmatprep.subr.mxu0 %v4502
        %4636 = vmatpush2.msra.mxu0 %v4501
        %4637 = vmatprep.subr.mxu0 %v4500
        %4638 = vmatpush2.msra.mxu0 %v4499
        %4639 = vmatprep.mubr.f32.mxu0 %v4420
        %4640 = vmatmul.mubr.f32.gmra.mxu0 %v4419
        %v4641 = vpop.f32.mrf.mxu0
        %v4642 = vadd.f32 %v4568, %v4641
        %v4643 = vpop.f32.mrf.mxu0
        %v4644 = vadd.f32 %v4572, %v4643
        %4645 = vmatprep.mubr.f32.mxu0 %v4423
        %4646 = vmatmul.mubr.f32.gmra.mxu0 %v4422
        %v4647 = vpop.f32.mrf.mxu0
        %v4648 = vadd.f32 %v4568, %v4647
        %v4649 = vpop.f32.mrf.mxu0
        %v4650 = vadd.f32 %v4572, %v4649
        %4651 = vmatprep.mubr.f32.mxu0 %v4426
        %4652 = vmatmul.mubr.f32.gmra.mxu0 %v4425
        %v4653 = vpop.f32.mrf.mxu0
        %v4654 = vadd.f32 %v4568, %v4653
        %v4655 = vpop.f32.mrf.mxu0
        %v4656 = vadd.f32 %v4572, %v4655
        %4657 = vmatprep.mubr.f32.mxu0 %v4429
        %4658 = vmatmul.mubr.f32.gmra.mxu0 %v4428
        %v4659 = vpop.f32.mrf.mxu0
        %v4660 = vadd.f32 %v4568, %v4659
        %v4661 = vpop.f32.mrf.mxu0
        %v4662 = vadd.f32 %v4572, %v4661
        %4663 = vmatprep.mubr.f32.mxu0 %v4432
        %4664 = vmatmul.mubr.f32.gmra.mxu0 %v4431
        %v4665 = vpop.f32.mrf.mxu0
        %v4666 = vadd.f32 %v4568, %v4665
        %v4667 = vpop.f32.mrf.mxu0
        %v4668 = vadd.f32 %v4572, %v4667
        %4669 = vmatprep.mubr.f32.mxu0 %v4435
        %4670 = vmatmul.mubr.f32.gmra.mxu0 %v4434
        %v4671 = vpop.f32.mrf.mxu0
        %v4672 = vadd.f32 %v4568, %v4671
        %v4673 = vpop.f32.mrf.mxu0
        %v4674 = vadd.f32 %v4572, %v4673
        %4675 = vmatprep.mubr.f32.mxu0 %v4438
        %4676 = vmatmul.mubr.f32.gmra.mxu0 %v4437
        %v4677 = vpop.f32.mrf.mxu0
        %v4678 = vadd.f32 %v4568, %v4677
        %v4679 = vpop.f32.mrf.mxu0
        %v4680 = vadd.f32 %v4572, %v4679
        %4681 = vmatprep.mubr.f32.mxu0 %v4441
        %4682 = vmatmul.mubr.f32.gmra.mxu0 %v4440
        %v4683 = vpop.f32.mrf.mxu0
        %v4684 = vadd.f32 %v4568, %v4683
        %v4685 = vpop.f32.mrf.mxu0
        %v4686 = vadd.f32 %v4572, %v4685
        %4687 = vmatprep.mubr.f32.mxu0 %v4444
        %4688 = vmatmul.mubr.f32.gmra.mxu0 %v4443
        %v4689 = vpop.f32.mrf.mxu0
        %v4690 = vadd.f32 %v4568, %v4689
        %v4691 = vpop.f32.mrf.mxu0
        %v4692 = vadd.f32 %v4572, %v4691
        %4693 = vmatprep.mubr.f32.mxu0 %v4447
        %4694 = vmatmul.mubr.f32.gmra.mxu0 %v4446
        %v4695 = vpop.f32.mrf.mxu0
        %v4696 = vadd.f32 %v4568, %v4695
        %v4697 = vpop.f32.mrf.mxu0
        %v4698 = vadd.f32 %v4572, %v4697
        %4699 = vmatprep.mubr.f32.mxu0 %v4450
        %4700 = vmatmul.mubr.f32.gmra.mxu0 %v4449
        %v4701 = vpop.f32.mrf.mxu0
        %v4702 = vadd.f32 %v4568, %v4701
        %v4703 = vpop.f32.mrf.mxu0
        %v4704 = vadd.f32 %v4572, %v4703
        %4705 = vmatprep.mubr.f32.mxu0 %v4453
        %4706 = vmatmul.mubr.f32.gmra.mxu0 %v4452
        %v4707 = vpop.f32.mrf.mxu0
        %v4708 = vadd.f32 %v4568, %v4707
        %v4709 = vpop.f32.mrf.mxu0
        %v4710 = vadd.f32 %v4572, %v4709
        %4711 = vmatprep.mubr.f32.mxu0 %v4456
        %4712 = vmatmul.mubr.f32.gmra.mxu0 %v4455
        %v4713 = vpop.f32.mrf.mxu0
        %v4714 = vadd.f32 %v4568, %v4713
        %v4715 = vpop.f32.mrf.mxu0
        %v4716 = vadd.f32 %v4572, %v4715
        %4717 = vmatprep.mubr.f32.mxu0 %v4459
        %4718 = vmatmul.mubr.f32.gmra.mxu0 %v4458
        %v4719 = vpop.f32.mrf.mxu0
        %v4720 = vadd.f32 %v4568, %v4719
        %v4721 = vpop.f32.mrf.mxu0
        %v4722 = vadd.f32 %v4572, %v4721
        %4723 = vmatprep.mubr.f32.mxu0 %v4462
        %4724 = vmatmul.mubr.f32.gmra.mxu0 %v4461
        %v4725 = vpop.f32.mrf.mxu0
        %v4726 = vadd.f32 %v4568, %v4725
        %v4727 = vpop.f32.mrf.mxu0
        %v4728 = vadd.f32 %v4572, %v4727
        %4729 = vmatprep.mubr.f32.mxu0 %v4465
        %4730 = vmatmul.mubr.f32.gmra.mxu0 %v4464
        %v4731 = vpop.f32.mrf.mxu0
        %v4732 = vadd.f32 %v4568, %v4731
        %v4733 = vpop.f32.mrf.mxu0
        %v4734 = vadd.f32 %v4572, %v4733
        %4735 = vdwg.mxu0
        %4736 = vmatprep.subr.mxu0 %v4562
        %4737 = vmatpush1.msra.mxu0 %v4561
        %4738 = vmatprep.subr.mxu0 %v4560
        %4739 = vmatpush1.msra.mxu0 %v4559
        %4740 = vmatprep.subr.mxu0 %v4558
        %4741 = vmatpush1.msra.mxu0 %v4557
        %4742 = vmatprep.subr.mxu0 %v4556
        %4743 = vmatpush1.msra.mxu0 %v4555
        %4744 = vmatprep.subr.mxu0 %v4554
        %4745 = vmatpush1.msra.mxu0 %v4553
        %4746 = vmatprep.subr.mxu0 %v4552
        %4747 = vmatpush1.msra.mxu0 %v4551
        %4748 = vmatprep.subr.mxu0 %v4550
        %4749 = vmatpush1.msra.mxu0 %v4549
        %4750 = vmatprep.subr.mxu0 %v4548
        %4751 = vmatpush1.msra.mxu0 %v4547
        %4752 = vmatprep.subr.mxu0 %v4546
        %4753 = vmatpush1.msra.mxu0 %v4545
        %4754 = vmatprep.subr.mxu0 %v4544
        %4755 = vmatpush1.msra.mxu0 %v4543
        %4756 = vmatprep.subr.mxu0 %v4542
        %4757 = vmatpush1.msra.mxu0 %v4541
        %4758 = vmatprep.subr.mxu0 %v4540
        %4759 = vmatpush1.msra.mxu0 %v4539
        %4760 = vmatprep.subr.mxu0 %v4538
        %4761 = vmatpush1.msra.mxu0 %v4537
        %4762 = vmatprep.subr.mxu0 %v4536
        %4763 = vmatpush1.msra.mxu0 %v4535
        %4764 = vmatprep.subr.mxu0 %v4534
        %4765 = vmatpush1.msra.mxu0 %v4533
        %4766 = vmatprep.subr.mxu0 %v4532
        %4767 = vmatpush1.msra.mxu0 %v4531
        %4768 = vmatprep.subr.mxu0 0.0
        %4769 = vmatpush2.msra.mxu0 0.0
        %4770 = vmatprep.subr.mxu0 0.0
        %4771 = vmatpush2.msra.mxu0 0.0
        %4772 = vmatprep.subr.mxu0 0.0
        %4773 = vmatpush2.msra.mxu0 0.0
        %4774 = vmatprep.subr.mxu0 0.0
        %4775 = vmatpush2.msra.mxu0 0.0
        %4776 = vmatprep.subr.mxu0 0.0
        %4777 = vmatpush2.msra.mxu0 0.0
        %4778 = vmatprep.subr.mxu0 0.0
        %4779 = vmatpush2.msra.mxu0 0.0
        %4780 = vmatprep.subr.mxu0 0.0
        %4781 = vmatpush2.msra.mxu0 0.0
        %4782 = vmatprep.subr.mxu0 0.0
        %4783 = vmatpush2.msra.mxu0 0.0
        %4784 = vmatprep.subr.mxu0 0.0
        %4785 = vmatpush2.msra.mxu0 0.0
        %4786 = vmatprep.subr.mxu0 0.0
        %4787 = vmatpush2.msra.mxu0 0.0
        %4788 = vmatprep.subr.mxu0 0.0
        %4789 = vmatpush2.msra.mxu0 0.0
        %4790 = vmatprep.subr.mxu0 0.0
        %4791 = vmatpush2.msra.mxu0 0.0
        %4792 = vmatprep.subr.mxu0 0.0
        %4793 = vmatpush2.msra.mxu0 0.0
        %4794 = vmatprep.subr.mxu0 0.0
        %4795 = vmatpush2.msra.mxu0 0.0
        %4796 = vmatprep.subr.mxu0 0.0
        %4797 = vmatpush2.msra.mxu0 0.0
        %4798 = vmatprep.subr.mxu0 0.0
        %4799 = vmatpush2.msra.mxu0 0.0
        %4800 = vmatprep.mubr.f32.mxu0 0.0
        %4801 = vmatmul.mubr.f32.gmra.mxu0 %v4421
        %v4802 = vpop.f32.mrf.mxu0
        %v4803 = vadd.f32 %v4642, %v4802
        %v4804 = vpop.f32.mrf.mxu0
        %v4805 = vadd.f32 %v4644, %v4804
        %4806 = vmatprep.mubr.f32.mxu0 0.0
        %4807 = vmatmul.mubr.f32.gmra.mxu0 %v4424
        %v4808 = vpop.f32.mrf.mxu0
        %v4809 = vadd.f32 %v4648, %v4808
        %v4810 = vpop.f32.mrf.mxu0
        %v4811 = vadd.f32 %v4650, %v4810
        %4812 = vmatprep.mubr.f32.mxu0 0.0
        %4813 = vmatmul.mubr.f32.gmra.mxu0 %v4427
        %v4814 = vpop.f32.mrf.mxu0
        %v4815 = vadd.f32 %v4654, %v4814
        %v4816 = vpop.f32.mrf.mxu0
        %v4817 = vadd.f32 %v4656, %v4816
        %4818 = vmatprep.mubr.f32.mxu0 0.0
        %4819 = vmatmul.mubr.f32.gmra.mxu0 %v4430
        %v4820 = vpop.f32.mrf.mxu0
        %v4821 = vadd.f32 %v4660, %v4820
        %v4822 = vpop.f32.mrf.mxu0
        %v4823 = vadd.f32 %v4662, %v4822
        %4824 = vmatprep.mubr.f32.mxu0 0.0
        %4825 = vmatmul.mubr.f32.gmra.mxu0 %v4433
        %v4826 = vpop.f32.mrf.mxu0
        %v4827 = vadd.f32 %v4666, %v4826
        %v4828 = vpop.f32.mrf.mxu0
        %v4829 = vadd.f32 %v4668, %v4828
        %4830 = vmatprep.mubr.f32.mxu0 0.0
        %4831 = vmatmul.mubr.f32.gmra.mxu0 %v4436
        %v4832 = vpop.f32.mrf.mxu0
        %v4833 = vadd.f32 %v4672, %v4832
        %v4834 = vpop.f32.mrf.mxu0
        %v4835 = vadd.f32 %v4674, %v4834
        %4836 = vmatprep.mubr.f32.mxu0 0.0
        %4837 = vmatmul.mubr.f32.gmra.mxu0 %v4439
        %v4838 = vpop.f32.mrf.mxu0
        %v4839 = vadd.f32 %v4678, %v4838
        %v4840 = vpop.f32.mrf.mxu0
        %v4841 = vadd.f32 %v4680, %v4840
        %4842 = vmatprep.mubr.f32.mxu0 0.0
        %4843 = vmatmul.mubr.f32.gmra.mxu0 %v4442
        %v4844 = vpop.f32.mrf.mxu0
        %v4845 = vadd.f32 %v4684, %v4844
        %v4846 = vpop.f32.mrf.mxu0
        %v4847 = vadd.f32 %v4686, %v4846
        %4848 = vmatprep.mubr.f32.mxu0 0.0
        %4849 = vmatmul.mubr.f32.gmra.mxu0 %v4445
        %v4850 = vpop.f32.mrf.mxu0
        %v4851 = vadd.f32 %v4690, %v4850
        %v4852 = vpop.f32.mrf.mxu0
        %v4853 = vadd.f32 %v4692, %v4852
        %4854 = vmatprep.mubr.f32.mxu0 0.0
        %4855 = vmatmul.mubr.f32.gmra.mxu0 %v4448
        %v4856 = vpop.f32.mrf.mxu0
        %v4857 = vadd.f32 %v4696, %v4856
        %v4858 = vpop.f32.mrf.mxu0
        %v4859 = vadd.f32 %v4698, %v4858
        %4860 = vmatprep.mubr.f32.mxu0 0.0
        %4861 = vmatmul.mubr.f32.gmra.mxu0 %v4451
        %v4862 = vpop.f32.mrf.mxu0
        %v4863 = vadd.f32 %v4702, %v4862
        %v4864 = vpop.f32.mrf.mxu0
        %v4865 = vadd.f32 %v4704, %v4864
        %4866 = vmatprep.mubr.f32.mxu0 0.0
        %4867 = vmatmul.mubr.f32.gmra.mxu0 %v4454
        %v4868 = vpop.f32.mrf.mxu0
        %v4869 = vadd.f32 %v4708, %v4868
        %v4870 = vpop.f32.mrf.mxu0
        %v4871 = vadd.f32 %v4710, %v4870
        %4872 = vmatprep.mubr.f32.mxu0 0.0
        %4873 = vmatmul.mubr.f32.gmra.mxu0 %v4457
        %v4874 = vpop.f32.mrf.mxu0
        %v4875 = vadd.f32 %v4714, %v4874
        %v4876 = vpop.f32.mrf.mxu0
        %v4877 = vadd.f32 %v4716, %v4876
        %4878 = vmatprep.mubr.f32.mxu0 0.0
        %4879 = vmatmul.mubr.f32.gmra.mxu0 %v4460
        %v4880 = vpop.f32.mrf.mxu0
        %v4881 = vadd.f32 %v4720, %v4880
        %v4882 = vpop.f32.mrf.mxu0
        %v4883 = vadd.f32 %v4722, %v4882
        %4884 = vmatprep.mubr.f32.mxu0 0.0
        %4885 = vmatmul.mubr.f32.gmra.mxu0 %v4463
        %v4886 = vpop.f32.mrf.mxu0
        %v4887 = vadd.f32 %v4726, %v4886
        %v4888 = vpop.f32.mrf.mxu0
        %v4889 = vadd.f32 %v4728, %v4888
        %4890 = vmatprep.mubr.f32.mxu0 0.0
        %4891 = vmatmul.mubr.f32.gmra.mxu0 %v4466
        %v4892 = vpop.f32.mrf.mxu0
        %v4893 = vadd.f32 %v4732, %v4892
        %v4894 = vpop.f32.mrf.mxu0
        %v4895 = vadd.f32 %v4734, %v4894
        %4896 = vdwg.mxu0
        %v4897 = vmax.f32 %v4803, 0.0
        %v4898 = vmax.f32 %v4805, 0.0
        %v4899 = vmax.f32 %v4809, 0.0
        %v4900 = vmax.f32 %v4811, 0.0
        %v4901 = vmax.f32 %v4815, 0.0
        %v4902 = vmax.f32 %v4817, 0.0
        %v4903 = vmax.f32 %v4821, 0.0
        %v4904 = vmax.f32 %v4823, 0.0
        %v4905 = vmax.f32 %v4827, 0.0
        %v4906 = vmax.f32 %v4829, 0.0
        %v4907 = vmax.f32 %v4833, 0.0
        %v4908 = vmax.f32 %v4835, 0.0
        %v4909 = vmax.f32 %v4839, 0.0
        %v4910 = vmax.f32 %v4841, 0.0
        %v4911 = vmax.f32 %v4845, 0.0
        %v4912 = vmax.f32 %v4847, 0.0
        %v4913 = vmax.f32 %v4851, 0.0
        %v4914 = vmax.f32 %v4853, 0.0
        %v4915 = vmax.f32 %v4857, 0.0
        %v4916 = vmax.f32 %v4859, 0.0
        %v4917 = vmax.f32 %v4863, 0.0
        %v4918 = vmax.f32 %v4865, 0.0
        %v4919 = vmax.f32 %v4869, 0.0
        %v4920 = vmax.f32 %v4871, 0.0
        %v4921 = vmax.f32 %v4875, 0.0
        %v4922 = vmax.f32 %v4877, 0.0
        %v4923 = vmax.f32 %v4881, 0.0
        %v4924 = vmax.f32 %v4883, 0.0
        %v4925 = vmax.f32 %v4887, 0.0
        %v4926 = vmax.f32 %v4889, 0.0
        %v4927 = vmax.f32 %v4893, 0.0
        %v4928 = vmax.f32 %v4895, 0.0
        %v4929 = vld [vmem:[#allocation5 + $0x2400] sm:$0xff]
        %v4930 = vld [vmem:[#allocation5 + $0x2418] sm:$0xff]
        %v4931 = vld [vmem:[#allocation5 + $0x2430] sm:$0xff]
        %v4932 = vld [vmem:[#allocation5 + $0x2448] sm:$0xff]
        %v4933 = vld [vmem:[#allocation5 + $0x2460] sm:$0xff]
        %v4934 = vld [vmem:[#allocation5 + $0x2478] sm:$0xff]
        %v4935 = vld [vmem:[#allocation5 + $0x2490] sm:$0xff]
        %v4936 = vld [vmem:[#allocation5 + $0x24a8] sm:$0xff]
        %v4937 = vld [vmem:[#allocation5 + $0x24c0] sm:$0xff]
        %v4938 = vld [vmem:[#allocation5 + $0x24d8] sm:$0xff]
        %v4939 = vld [vmem:[#allocation5 + $0x24f0] sm:$0xff]
        %v4940 = vld [vmem:[#allocation5 + $0x2508] sm:$0xff]
        %v4941 = vld [vmem:[#allocation5 + $0x2520] sm:$0xff]
        %v4942 = vld [vmem:[#allocation5 + $0x2538] sm:$0xff]
        %v4943 = vld [vmem:[#allocation5 + $0x2550] sm:$0xff]
        %v4944 = vld [vmem:[#allocation5 + $0x2568] sm:$0xff]
        %v4945 = vld [vmem:[#allocation5 + $0x2580] sm:$0xff]
        %v4946 = vld [vmem:[#allocation5 + $0x2598] sm:$0xff]
        %v4947 = vld [vmem:[#allocation5 + $0x25b0] sm:$0xff]
        %v4948 = vld [vmem:[#allocation5 + $0x25c8] sm:$0xff]
        %v4949 = vld [vmem:[#allocation5 + $0x25e0] sm:$0xff]
        %v4950 = vld [vmem:[#allocation5 + $0x25f8] sm:$0xff]
        %v4951 = vld [vmem:[#allocation5 + $0x2610] sm:$0xff]
        %v4952 = vld [vmem:[#allocation5 + $0x2628] sm:$0xff]
        %v4953 = vld [vmem:[#allocation5 + $0x2640] sm:$0xff]
        %v4954 = vld [vmem:[#allocation5 + $0x2658] sm:$0xff]
        %v4955 = vld [vmem:[#allocation5 + $0x2670] sm:$0xff]
        %v4956 = vld [vmem:[#allocation5 + $0x2688] sm:$0xff]
        %v4957 = vld [vmem:[#allocation5 + $0x26a0] sm:$0xff]
        %v4958 = vld [vmem:[#allocation5 + $0x26b8] sm:$0xff]
        %v4959 = vld [vmem:[#allocation5 + $0x26d0] sm:$0xff]
        %v4960 = vld [vmem:[#allocation5 + $0x26e8] sm:$0xff]
        %v4961 = vld [vmem:[#allocation7 + $0x24] sm:$0x1]
        %v4963 = vlaneseq
        %v4964 = vshrl.u32 %v4963, 7
        %v4965 = vsub.s32 0, %v4964
        %v4966 = vrot.slane %v4961, %v4965
        %4968 = vmatprep.subr.mxu0 0.0
        %4969 = vmatpush1.msra.mxu0 %v4944
        %4970 = vmatprep.subr.mxu0 0.0
        %4971 = vmatpush1.msra.mxu0 %v4943
        %4972 = vmatprep.subr.mxu0 0.0
        %4973 = vmatpush1.msra.mxu0 %v4942
        %4974 = vmatprep.subr.mxu0 0.0
        %4975 = vmatpush1.msra.mxu0 %v4941
        %4976 = vmatprep.subr.mxu0 0.0
        %4977 = vmatpush1.msra.mxu0 %v4940
        %4978 = vmatprep.subr.mxu0 0.0
        %4979 = vmatpush1.msra.mxu0 %v4939
        %4980 = vmatprep.subr.mxu0 0.0
        %4981 = vmatpush1.msra.mxu0 %v4938
        %4982 = vmatprep.subr.mxu0 0.0
        %4983 = vmatpush1.msra.mxu0 %v4937
        %4984 = vmatprep.subr.mxu0 0.0
        %4985 = vmatpush1.msra.mxu0 %v4936
        %4986 = vmatprep.subr.mxu0 0.0
        %4987 = vmatpush1.msra.mxu0 %v4935
        %4988 = vmatprep.subr.mxu0 0.0
        %4989 = vmatpush1.msra.mxu0 %v4934
        %4990 = vmatprep.subr.mxu0 0.0
        %4991 = vmatpush1.msra.mxu0 %v4933
        %4992 = vmatprep.subr.mxu0 0.0
        %4993 = vmatpush1.msra.mxu0 %v4932
        %4994 = vmatprep.subr.mxu0 0.0
        %4995 = vmatpush1.msra.mxu0 %v4931
        %4996 = vmatprep.subr.mxu0 0.0
        %4997 = vmatpush1.msra.mxu0 %v4930
        %4998 = vmatprep.subr.mxu0 0.0
        %4999 = vmatpush1.msra.mxu0 %v4929
        %5000 = vmatprep.subr.mxu0 0.0
        %5001 = vmatpush2.msra.mxu0 %v4960
        %5002 = vmatprep.subr.mxu0 0.0
        %5003 = vmatpush2.msra.mxu0 %v4959
        %5004 = vmatprep.subr.mxu0 0.0
        %5005 = vmatpush2.msra.mxu0 %v4958
        %5006 = vmatprep.subr.mxu0 0.0
        %5007 = vmatpush2.msra.mxu0 %v4957
        %5008 = vmatprep.subr.mxu0 0.0
        %5009 = vmatpush2.msra.mxu0 %v4956
        %5010 = vmatprep.subr.mxu0 0.0
        %5011 = vmatpush2.msra.mxu0 %v4955
        %5012 = vmatprep.subr.mxu0 0.0
        %5013 = vmatpush2.msra.mxu0 %v4954
        %5014 = vmatprep.subr.mxu0 0.0
        %5015 = vmatpush2.msra.mxu0 %v4953
        %5016 = vmatprep.subr.mxu0 0.0
        %5017 = vmatpush2.msra.mxu0 %v4952
        %5018 = vmatprep.subr.mxu0 0.0
        %5019 = vmatpush2.msra.mxu0 %v4951
        %5020 = vmatprep.subr.mxu0 0.0
        %5021 = vmatpush2.msra.mxu0 %v4950
        %5022 = vmatprep.subr.mxu0 0.0
        %5023 = vmatpush2.msra.mxu0 %v4949
        %5024 = vmatprep.subr.mxu0 0.0
        %5025 = vmatpush2.msra.mxu0 %v4948
        %5026 = vmatprep.subr.mxu0 0.0
        %5027 = vmatpush2.msra.mxu0 %v4947
        %5028 = vmatprep.subr.mxu0 0.0
        %5029 = vmatpush2.msra.mxu0 %v4946
        %5030 = vmatprep.subr.mxu0 0.0
        %5031 = vmatpush2.msra.mxu0 %v4945
        %5032 = vmatprep.mubr.f32.mxu0 %v4898
        %5033 = vmatmul.mubr.f32.gmra.mxu0 %v4897
        %v5034 = vpop.f32.mrf.mxu0
        %v5035 = vadd.f32 %v4966, %v5034
        %v5036 = vpop.f32.mrf.mxu0
        %5037 = vmatprep.mubr.f32.mxu0 %v4900
        %5038 = vmatmul.mubr.f32.gmra.mxu0 %v4899
        %v5039 = vpop.f32.mrf.mxu0
        %v5040 = vadd.f32 %v4966, %v5039
        %v5041 = vpop.f32.mrf.mxu0
        %5042 = vmatprep.mubr.f32.mxu0 %v4902
        %5043 = vmatmul.mubr.f32.gmra.mxu0 %v4901
        %v5044 = vpop.f32.mrf.mxu0
        %v5045 = vadd.f32 %v4966, %v5044
        %v5046 = vpop.f32.mrf.mxu0
        %5047 = vmatprep.mubr.f32.mxu0 %v4904
        %5048 = vmatmul.mubr.f32.gmra.mxu0 %v4903
        %v5049 = vpop.f32.mrf.mxu0
        %v5050 = vadd.f32 %v4966, %v5049
        %v5051 = vpop.f32.mrf.mxu0
        %5052 = vmatprep.mubr.f32.mxu0 %v4906
        %5053 = vmatmul.mubr.f32.gmra.mxu0 %v4905
        %v5054 = vpop.f32.mrf.mxu0
        %v5055 = vadd.f32 %v4966, %v5054
        %v5056 = vpop.f32.mrf.mxu0
        %5057 = vmatprep.mubr.f32.mxu0 %v4908
        %5058 = vmatmul.mubr.f32.gmra.mxu0 %v4907
        %v5059 = vpop.f32.mrf.mxu0
        %v5060 = vadd.f32 %v4966, %v5059
        %v5061 = vpop.f32.mrf.mxu0
        %5062 = vmatprep.mubr.f32.mxu0 %v4910
        %5063 = vmatmul.mubr.f32.gmra.mxu0 %v4909
        %v5064 = vpop.f32.mrf.mxu0
        %v5065 = vadd.f32 %v4966, %v5064
        %v5066 = vpop.f32.mrf.mxu0
        %5067 = vmatprep.mubr.f32.mxu0 %v4912
        %5068 = vmatmul.mubr.f32.gmra.mxu0 %v4911
        %v5069 = vpop.f32.mrf.mxu0
        %v5070 = vadd.f32 %v4966, %v5069
        %v5071 = vpop.f32.mrf.mxu0
        %5072 = vmatprep.mubr.f32.mxu0 %v4914
        %5073 = vmatmul.mubr.f32.gmra.mxu0 %v4913
        %v5074 = vpop.f32.mrf.mxu0
        %v5075 = vadd.f32 %v4966, %v5074
        %v5076 = vpop.f32.mrf.mxu0
        %5077 = vmatprep.mubr.f32.mxu0 %v4916
        %5078 = vmatmul.mubr.f32.gmra.mxu0 %v4915
        %v5079 = vpop.f32.mrf.mxu0
        %v5080 = vadd.f32 %v4966, %v5079
        %v5081 = vpop.f32.mrf.mxu0
        %5082 = vmatprep.mubr.f32.mxu0 %v4918
        %5083 = vmatmul.mubr.f32.gmra.mxu0 %v4917
        %v5084 = vpop.f32.mrf.mxu0
        %v5085 = vadd.f32 %v4966, %v5084
        %v5086 = vpop.f32.mrf.mxu0
        %5087 = vmatprep.mubr.f32.mxu0 %v4920
        %5088 = vmatmul.mubr.f32.gmra.mxu0 %v4919
        %v5089 = vpop.f32.mrf.mxu0
        %v5090 = vadd.f32 %v4966, %v5089
        %v5091 = vpop.f32.mrf.mxu0
        %5092 = vmatprep.mubr.f32.mxu0 %v4922
        %5093 = vmatmul.mubr.f32.gmra.mxu0 %v4921
        %v5094 = vpop.f32.mrf.mxu0
        %v5095 = vadd.f32 %v4966, %v5094
        %v5096 = vpop.f32.mrf.mxu0
        %5097 = vmatprep.mubr.f32.mxu0 %v4924
        %5098 = vmatmul.mubr.f32.gmra.mxu0 %v4923
        %v5099 = vpop.f32.mrf.mxu0
        %v5100 = vadd.f32 %v4966, %v5099
        %v5101 = vpop.f32.mrf.mxu0
        %5102 = vmatprep.mubr.f32.mxu0 %v4926
        %5103 = vmatmul.mubr.f32.gmra.mxu0 %v4925
        %v5104 = vpop.f32.mrf.mxu0
        %v5105 = vadd.f32 %v4966, %v5104
        %v5106 = vpop.f32.mrf.mxu0
        %5107 = vmatprep.mubr.f32.mxu0 %v4928
        %5108 = vmatmul.mubr.f32.gmra.mxu0 %v4927
        %v5109 = vpop.f32.mrf.mxu0
        %v5110 = vadd.f32 %v4966, %v5109
        %v5111 = vpop.f32.mrf.mxu0
        %5112 = vdwg.mxu0
        %v5113 = vld [vmem:[#allocation5 + $0x2700] sm:$0xff]
        %v5114 = vld [vmem:[#allocation5 + $0x2718] sm:$0xff]
        %v5115 = vld [vmem:[#allocation5 + $0x2730] sm:$0xff]
        %v5116 = vld [vmem:[#allocation5 + $0x2748] sm:$0xff]
        %v5117 = vld [vmem:[#allocation5 + $0x2760] sm:$0xff]
        %v5118 = vld [vmem:[#allocation5 + $0x2778] sm:$0xff]
        %v5119 = vld [vmem:[#allocation5 + $0x2790] sm:$0xff]
        %v5120 = vld [vmem:[#allocation5 + $0x27a8] sm:$0xff]
        %v5121 = vld [vmem:[#allocation5 + $0x27c0] sm:$0xff]
        %v5122 = vld [vmem:[#allocation5 + $0x27d8] sm:$0xff]
        %v5123 = vld [vmem:[#allocation5 + $0x27f0] sm:$0xff]
        %v5124 = vld [vmem:[#allocation5 + $0x2808] sm:$0xff]
        %v5125 = vld [vmem:[#allocation5 + $0x2820] sm:$0xff]
        %v5126 = vld [vmem:[#allocation5 + $0x2838] sm:$0xff]
        %v5127 = vld [vmem:[#allocation5 + $0x2850] sm:$0xff]
        %v5128 = vld [vmem:[#allocation5 + $0x2868] sm:$0xff]
        %5129 = vmatprep.subr.mxu0 0.0
        %5130 = vmatpush1.msra.mxu0 %v5128
        %5131 = vmatprep.subr.mxu0 0.0
        %5132 = vmatpush1.msra.mxu0 %v5127
        %5133 = vmatprep.subr.mxu0 0.0
        %5134 = vmatpush1.msra.mxu0 %v5126
        %5135 = vmatprep.subr.mxu0 0.0
        %5136 = vmatpush1.msra.mxu0 %v5125
        %5137 = vmatprep.subr.mxu0 0.0
        %5138 = vmatpush1.msra.mxu0 %v5124
        %5139 = vmatprep.subr.mxu0 0.0
        %5140 = vmatpush1.msra.mxu0 %v5123
        %5141 = vmatprep.subr.mxu0 0.0
        %5142 = vmatpush1.msra.mxu0 %v5122
        %5143 = vmatprep.subr.mxu0 0.0
        %5144 = vmatpush1.msra.mxu0 %v5121
        %5145 = vmatprep.subr.mxu0 0.0
        %5146 = vmatpush1.msra.mxu0 %v5120
        %5147 = vmatprep.subr.mxu0 0.0
        %5148 = vmatpush1.msra.mxu0 %v5119
        %5149 = vmatprep.subr.mxu0 0.0
        %5150 = vmatpush1.msra.mxu0 %v5118
        %5151 = vmatprep.subr.mxu0 0.0
        %5152 = vmatpush1.msra.mxu0 %v5117
        %5153 = vmatprep.subr.mxu0 0.0
        %5154 = vmatpush1.msra.mxu0 %v5116
        %5155 = vmatprep.subr.mxu0 0.0
        %5156 = vmatpush1.msra.mxu0 %v5115
        %5157 = vmatprep.subr.mxu0 0.0
        %5158 = vmatpush1.msra.mxu0 %v5114
        %5159 = vmatprep.subr.mxu0 0.0
        %5160 = vmatpush1.msra.mxu0 %v5113
        %5161 = vmatprep.subr.mxu0 0.0
        %5162 = vmatpush2.msra.mxu0 0.0
        %5163 = vmatprep.subr.mxu0 0.0
        %5164 = vmatpush2.msra.mxu0 0.0
        %5165 = vmatprep.subr.mxu0 0.0
        %5166 = vmatpush2.msra.mxu0 0.0
        %5167 = vmatprep.subr.mxu0 0.0
        %5168 = vmatpush2.msra.mxu0 0.0
        %5169 = vmatprep.subr.mxu0 0.0
        %5170 = vmatpush2.msra.mxu0 0.0
        %5171 = vmatprep.subr.mxu0 0.0
        %5172 = vmatpush2.msra.mxu0 0.0
        %5173 = vmatprep.subr.mxu0 0.0
        %5174 = vmatpush2.msra.mxu0 0.0
        %5175 = vmatprep.subr.mxu0 0.0
        %5176 = vmatpush2.msra.mxu0 0.0
        %5177 = vmatprep.subr.mxu0 0.0
        %5178 = vmatpush2.msra.mxu0 0.0
        %5179 = vmatprep.subr.mxu0 0.0
        %5180 = vmatpush2.msra.mxu0 0.0
        %5181 = vmatprep.subr.mxu0 0.0
        %5182 = vmatpush2.msra.mxu0 0.0
        %5183 = vmatprep.subr.mxu0 0.0
        %5184 = vmatpush2.msra.mxu0 0.0
        %5185 = vmatprep.subr.mxu0 0.0
        %5186 = vmatpush2.msra.mxu0 0.0
        %5187 = vmatprep.subr.mxu0 0.0
        %5188 = vmatpush2.msra.mxu0 0.0
        %5189 = vmatprep.subr.mxu0 0.0
        %5190 = vmatpush2.msra.mxu0 0.0
        %5191 = vmatprep.subr.mxu0 0.0
        %5192 = vmatpush2.msra.mxu0 0.0
        %5193 = vmatprep.mubr.f32.mxu0 0.0
        %5194 = vmatmul.mubr.f32.gmra.mxu0 %v5035
        %v5195 = vpop.f32.mrf.mxu0
        %v5196 = vadd.f32 0.0, %v5195
        %v5197 = vpop.f32.mrf.mxu0
        %5198 = vmatprep.mubr.f32.mxu0 0.0
        %5199 = vmatmul.mubr.f32.gmra.mxu0 %v5040
        %v5200 = vpop.f32.mrf.mxu0
        %v5201 = vadd.f32 0.0, %v5200
        %v5202 = vpop.f32.mrf.mxu0
        %5203 = vmatprep.mubr.f32.mxu0 0.0
        %5204 = vmatmul.mubr.f32.gmra.mxu0 %v5045
        %v5205 = vpop.f32.mrf.mxu0
        %v5206 = vadd.f32 0.0, %v5205
        %v5207 = vpop.f32.mrf.mxu0
        %5208 = vmatprep.mubr.f32.mxu0 0.0
        %5209 = vmatmul.mubr.f32.gmra.mxu0 %v5050
        %v5210 = vpop.f32.mrf.mxu0
        %v5211 = vadd.f32 0.0, %v5210
        %v5212 = vpop.f32.mrf.mxu0
        %5213 = vmatprep.mubr.f32.mxu0 0.0
        %5214 = vmatmul.mubr.f32.gmra.mxu0 %v5055
        %v5215 = vpop.f32.mrf.mxu0
        %v5216 = vadd.f32 0.0, %v5215
        %v5217 = vpop.f32.mrf.mxu0
        %5218 = vmatprep.mubr.f32.mxu0 0.0
        %5219 = vmatmul.mubr.f32.gmra.mxu0 %v5060
        %v5220 = vpop.f32.mrf.mxu0
        %v5221 = vadd.f32 0.0, %v5220
        %v5222 = vpop.f32.mrf.mxu0
        %5223 = vmatprep.mubr.f32.mxu0 0.0
        %5224 = vmatmul.mubr.f32.gmra.mxu0 %v5065
        %v5225 = vpop.f32.mrf.mxu0
        %v5226 = vadd.f32 0.0, %v5225
        %v5227 = vpop.f32.mrf.mxu0
        %5228 = vmatprep.mubr.f32.mxu0 0.0
        %5229 = vmatmul.mubr.f32.gmra.mxu0 %v5070
        %v5230 = vpop.f32.mrf.mxu0
        %v5231 = vadd.f32 0.0, %v5230
        %v5232 = vpop.f32.mrf.mxu0
        %5233 = vmatprep.mubr.f32.mxu0 0.0
        %5234 = vmatmul.mubr.f32.gmra.mxu0 %v5075
        %v5235 = vpop.f32.mrf.mxu0
        %v5236 = vadd.f32 0.0, %v5235
        %v5237 = vpop.f32.mrf.mxu0
        %5238 = vmatprep.mubr.f32.mxu0 0.0
        %5239 = vmatmul.mubr.f32.gmra.mxu0 %v5080
        %v5240 = vpop.f32.mrf.mxu0
        %v5241 = vadd.f32 0.0, %v5240
        %v5242 = vpop.f32.mrf.mxu0
        %5243 = vmatprep.mubr.f32.mxu0 0.0
        %5244 = vmatmul.mubr.f32.gmra.mxu0 %v5085
        %v5245 = vpop.f32.mrf.mxu0
        %v5246 = vadd.f32 0.0, %v5245
        %v5247 = vpop.f32.mrf.mxu0
        %5248 = vmatprep.mubr.f32.mxu0 0.0
        %5249 = vmatmul.mubr.f32.gmra.mxu0 %v5090
        %v5250 = vpop.f32.mrf.mxu0
        %v5251 = vadd.f32 0.0, %v5250
        %v5252 = vpop.f32.mrf.mxu0
        %5253 = vmatprep.mubr.f32.mxu0 0.0
        %5254 = vmatmul.mubr.f32.gmra.mxu0 %v5095
        %v5255 = vpop.f32.mrf.mxu0
        %v5256 = vadd.f32 0.0, %v5255
        %v5257 = vpop.f32.mrf.mxu0
        %5258 = vmatprep.mubr.f32.mxu0 0.0
        %5259 = vmatmul.mubr.f32.gmra.mxu0 %v5100
        %v5260 = vpop.f32.mrf.mxu0
        %v5261 = vadd.f32 0.0, %v5260
        %v5262 = vpop.f32.mrf.mxu0
        %5263 = vmatprep.mubr.f32.mxu0 0.0
        %5264 = vmatmul.mubr.f32.gmra.mxu0 %v5105
        %v5265 = vpop.f32.mrf.mxu0
        %v5266 = vadd.f32 0.0, %v5265
        %v5267 = vpop.f32.mrf.mxu0
        %5268 = vmatprep.mubr.f32.mxu0 0.0
        %5269 = vmatmul.mubr.f32.gmra.mxu0 %v5110
        %v5270 = vpop.f32.mrf.mxu0
        %v5271 = vadd.f32 0.0, %v5270
        %v5272 = vpop.f32.mrf.mxu0
        %5273 = vdwg.mxu0
        %v5274 = vmax.f32 %v5196, 0.0
        %v5275 = vmax.f32 %v5201, 0.0
        %v5276 = vmax.f32 %v5206, 0.0
        %v5277 = vmax.f32 %v5211, 0.0
        %v5278 = vmax.f32 %v5216, 0.0
        %v5279 = vmax.f32 %v5221, 0.0
        %v5280 = vmax.f32 %v5226, 0.0
        %v5281 = vmax.f32 %v5231, 0.0
        %v5282 = vmax.f32 %v5236, 0.0
        %v5283 = vmax.f32 %v5241, 0.0
        %v5284 = vmax.f32 %v5246, 0.0
        %v5285 = vmax.f32 %v5251, 0.0
        %v5286 = vmax.f32 %v5256, 0.0
        %v5287 = vmax.f32 %v5261, 0.0
        %v5288 = vmax.f32 %v5266, 0.0
        %v5289 = vmax.f32 %v5271, 0.0
        %v5290 = vld [vmem:[#allocation5 + $0x2880] sm:$0xff]
        %v5291 = vld [vmem:[#allocation5 + $0x2898] sm:$0xff]
        %v5292 = vld [vmem:[#allocation5 + $0x28b0] sm:$0xff]
        %v5293 = vld [vmem:[#allocation5 + $0x28c8] sm:$0xff]
        %v5294 = vld [vmem:[#allocation5 + $0x28e0] sm:$0xff]
        %v5295 = vld [vmem:[#allocation5 + $0x28f8] sm:$0xff]
        %v5296 = vld [vmem:[#allocation5 + $0x2910] sm:$0xff]
        %v5297 = vld [vmem:[#allocation5 + $0x2928] sm:$0xff]
        %v5298 = vld [vmem:[#allocation5 + $0x2940] sm:$0xff]
        %v5299 = vld [vmem:[#allocation5 + $0x2958] sm:$0xff]
        %v5300 = vld [vmem:[#allocation5 + $0x2970] sm:$0xff]
        %v5301 = vld [vmem:[#allocation5 + $0x2988] sm:$0xff]
        %v5302 = vld [vmem:[#allocation5 + $0x29a0] sm:$0xff]
        %v5303 = vld [vmem:[#allocation5 + $0x29b8] sm:$0xff]
        %v5304 = vld [vmem:[#allocation5 + $0x29d0] sm:$0xff]
        %v5305 = vld [vmem:[#allocation5 + $0x29e8] sm:$0xff]
        %5306 = vmatprep.subr.mxu0 0.0
        %5307 = vmatpush1.msra.mxu0 %v5305
        %5308 = vmatprep.subr.mxu0 0.0
        %5309 = vmatpush1.msra.mxu0 %v5304
        %5310 = vmatprep.subr.mxu0 0.0
        %5311 = vmatpush1.msra.mxu0 %v5303
        %5312 = vmatprep.subr.mxu0 0.0
        %5313 = vmatpush1.msra.mxu0 %v5302
        %5314 = vmatprep.subr.mxu0 0.0
        %5315 = vmatpush1.msra.mxu0 %v5301
        %5316 = vmatprep.subr.mxu0 0.0
        %5317 = vmatpush1.msra.mxu0 %v5300
        %5318 = vmatprep.subr.mxu0 0.0
        %5319 = vmatpush1.msra.mxu0 %v5299
        %5320 = vmatprep.subr.mxu0 0.0
        %5321 = vmatpush1.msra.mxu0 %v5298
        %5322 = vmatprep.subr.mxu0 0.0
        %5323 = vmatpush1.msra.mxu0 %v5297
        %5324 = vmatprep.subr.mxu0 0.0
        %5325 = vmatpush1.msra.mxu0 %v5296
        %5326 = vmatprep.subr.mxu0 0.0
        %5327 = vmatpush1.msra.mxu0 %v5295
        %5328 = vmatprep.subr.mxu0 0.0
        %5329 = vmatpush1.msra.mxu0 %v5294
        %5330 = vmatprep.subr.mxu0 0.0
        %5331 = vmatpush1.msra.mxu0 %v5293
        %5332 = vmatprep.subr.mxu0 0.0
        %5333 = vmatpush1.msra.mxu0 %v5292
        %5334 = vmatprep.subr.mxu0 0.0
        %5335 = vmatpush1.msra.mxu0 %v5291
        %5336 = vmatprep.subr.mxu0 0.0
        %5337 = vmatpush1.msra.mxu0 %v5290
        %5338 = vmatprep.subr.mxu0 0.0
        %5339 = vmatpush2.msra.mxu0 0.0
        %5340 = vmatprep.subr.mxu0 0.0
        %5341 = vmatpush2.msra.mxu0 0.0
        %5342 = vmatprep.subr.mxu0 0.0
        %5343 = vmatpush2.msra.mxu0 0.0
        %5344 = vmatprep.subr.mxu0 0.0
        %5345 = vmatpush2.msra.mxu0 0.0
        %5346 = vmatprep.subr.mxu0 0.0
        %5347 = vmatpush2.msra.mxu0 0.0
        %5348 = vmatprep.subr.mxu0 0.0
        %5349 = vmatpush2.msra.mxu0 0.0
        %5350 = vmatprep.subr.mxu0 0.0
        %5351 = vmatpush2.msra.mxu0 0.0
        %5352 = vmatprep.subr.mxu0 0.0
        %5353 = vmatpush2.msra.mxu0 0.0
        %5354 = vmatprep.subr.mxu0 0.0
        %5355 = vmatpush2.msra.mxu0 0.0
        %5356 = vmatprep.subr.mxu0 0.0
        %5357 = vmatpush2.msra.mxu0 0.0
        %5358 = vmatprep.subr.mxu0 0.0
        %5359 = vmatpush2.msra.mxu0 0.0
        %5360 = vmatprep.subr.mxu0 0.0
        %5361 = vmatpush2.msra.mxu0 0.0
        %5362 = vmatprep.subr.mxu0 0.0
        %5363 = vmatpush2.msra.mxu0 0.0
        %5364 = vmatprep.subr.mxu0 0.0
        %5365 = vmatpush2.msra.mxu0 0.0
        %5366 = vmatprep.subr.mxu0 0.0
        %5367 = vmatpush2.msra.mxu0 0.0
        %5368 = vmatprep.subr.mxu0 0.0
        %5369 = vmatpush2.msra.mxu0 0.0
        %5370 = vmatprep.mubr.f32.mxu0 0.0
        %5371 = vmatmul.mubr.f32.gmra.mxu0 %v5274
        %v5372 = vpop.f32.mrf.mxu0
        %v5373 = vadd.f32 0.0, %v5372
        %v5374 = vpop.f32.mrf.mxu0
        %5375 = vmatprep.mubr.f32.mxu0 0.0
        %5376 = vmatmul.mubr.f32.gmra.mxu0 %v5275
        %v5377 = vpop.f32.mrf.mxu0
        %v5378 = vadd.f32 0.0, %v5377
        %v5379 = vpop.f32.mrf.mxu0
        %5380 = vmatprep.mubr.f32.mxu0 0.0
        %5381 = vmatmul.mubr.f32.gmra.mxu0 %v5276
        %v5382 = vpop.f32.mrf.mxu0
        %v5383 = vadd.f32 0.0, %v5382
        %v5384 = vpop.f32.mrf.mxu0
        %5385 = vmatprep.mubr.f32.mxu0 0.0
        %5386 = vmatmul.mubr.f32.gmra.mxu0 %v5277
        %v5387 = vpop.f32.mrf.mxu0
        %v5388 = vadd.f32 0.0, %v5387
        %v5389 = vpop.f32.mrf.mxu0
        %5390 = vmatprep.mubr.f32.mxu0 0.0
        %5391 = vmatmul.mubr.f32.gmra.mxu0 %v5278
        %v5392 = vpop.f32.mrf.mxu0
        %v5393 = vadd.f32 0.0, %v5392
        %v5394 = vpop.f32.mrf.mxu0
        %5395 = vmatprep.mubr.f32.mxu0 0.0
        %5396 = vmatmul.mubr.f32.gmra.mxu0 %v5279
        %v5397 = vpop.f32.mrf.mxu0
        %v5398 = vadd.f32 0.0, %v5397
        %v5399 = vpop.f32.mrf.mxu0
        %5400 = vmatprep.mubr.f32.mxu0 0.0
        %5401 = vmatmul.mubr.f32.gmra.mxu0 %v5280
        %v5402 = vpop.f32.mrf.mxu0
        %v5403 = vadd.f32 0.0, %v5402
        %v5404 = vpop.f32.mrf.mxu0
        %5405 = vmatprep.mubr.f32.mxu0 0.0
        %5406 = vmatmul.mubr.f32.gmra.mxu0 %v5281
        %v5407 = vpop.f32.mrf.mxu0
        %v5408 = vadd.f32 0.0, %v5407
        %v5409 = vpop.f32.mrf.mxu0
        %5410 = vmatprep.mubr.f32.mxu0 0.0
        %5411 = vmatmul.mubr.f32.gmra.mxu0 %v5282
        %v5412 = vpop.f32.mrf.mxu0
        %v5413 = vadd.f32 0.0, %v5412
        %v5414 = vpop.f32.mrf.mxu0
        %5415 = vmatprep.mubr.f32.mxu0 0.0
        %5416 = vmatmul.mubr.f32.gmra.mxu0 %v5283
        %v5417 = vpop.f32.mrf.mxu0
        %v5418 = vadd.f32 0.0, %v5417
        %v5419 = vpop.f32.mrf.mxu0
        %5420 = vmatprep.mubr.f32.mxu0 0.0
        %5421 = vmatmul.mubr.f32.gmra.mxu0 %v5284
        %v5422 = vpop.f32.mrf.mxu0
        %v5423 = vadd.f32 0.0, %v5422
        %v5424 = vpop.f32.mrf.mxu0
        %5425 = vmatprep.mubr.f32.mxu0 0.0
        %5426 = vmatmul.mubr.f32.gmra.mxu0 %v5285
        %v5427 = vpop.f32.mrf.mxu0
        %v5428 = vadd.f32 0.0, %v5427
        %v5429 = vpop.f32.mrf.mxu0
        %5430 = vmatprep.mubr.f32.mxu0 0.0
        %5431 = vmatmul.mubr.f32.gmra.mxu0 %v5286
        %v5432 = vpop.f32.mrf.mxu0
        %v5433 = vadd.f32 0.0, %v5432
        %v5434 = vpop.f32.mrf.mxu0
        %5435 = vmatprep.mubr.f32.mxu0 0.0
        %5436 = vmatmul.mubr.f32.gmra.mxu0 %v5287
        %v5437 = vpop.f32.mrf.mxu0
        %v5438 = vadd.f32 0.0, %v5437
        %v5439 = vpop.f32.mrf.mxu0
        %5440 = vmatprep.mubr.f32.mxu0 0.0
        %5441 = vmatmul.mubr.f32.gmra.mxu0 %v5288
        %v5442 = vpop.f32.mrf.mxu0
        %v5443 = vadd.f32 0.0, %v5442
        %v5444 = vpop.f32.mrf.mxu0
        %5445 = vmatprep.mubr.f32.mxu0 0.0
        %5446 = vmatmul.mubr.f32.gmra.mxu0 %v5289
        %v5447 = vpop.f32.mrf.mxu0
        %v5448 = vadd.f32 0.0, %v5447
        %v5449 = vpop.f32.mrf.mxu0
        %5450 = vdwg.mxu0
        %v5451 = vxor.u32 %v5373, 2147483648
        %v5452 = vxor.u32 %v5378, 2147483648
        %v5453 = vxor.u32 %v5383, 2147483648
        %v5454 = vxor.u32 %v5388, 2147483648
        %v5455 = vxor.u32 %v5393, 2147483648
        %v5456 = vxor.u32 %v5398, 2147483648
        %v5457 = vxor.u32 %v5403, 2147483648
        %v5458 = vxor.u32 %v5408, 2147483648
        %v5459 = vxor.u32 %v5413, 2147483648
        %v5460 = vxor.u32 %v5418, 2147483648
        %v5461 = vxor.u32 %v5423, 2147483648
        %v5462 = vxor.u32 %v5428, 2147483648
        %v5463 = vxor.u32 %v5433, 2147483648
        %v5464 = vxor.u32 %v5438, 2147483648
        %v5465 = vxor.u32 %v5443, 2147483648
        %v5466 = vxor.u32 %v5448, 2147483648
        %v5467 = vmul.f32 %v5451, 1.442695
        %v5468 = vpow.pop %v5467
        %v5469 = vmul.f32 %v5452, 1.442695
        %v5470 = vpow.pop %v5469
        %v5471 = vmul.f32 %v5453, 1.442695
        %v5472 = vpow.pop %v5471
        %v5473 = vmul.f32 %v5454, 1.442695
        %v5474 = vpow.pop %v5473
        %v5475 = vmul.f32 %v5455, 1.442695
        %v5476 = vpow.pop %v5475
        %v5477 = vmul.f32 %v5456, 1.442695
        %v5478 = vpow.pop %v5477
        %v5479 = vmul.f32 %v5457, 1.442695
        %v5480 = vpow.pop %v5479
        %v5481 = vmul.f32 %v5458, 1.442695
        %v5482 = vpow.pop %v5481
        %v5483 = vmul.f32 %v5459, 1.442695
        %v5484 = vpow.pop %v5483
        %v5485 = vmul.f32 %v5460, 1.442695
        %v5486 = vpow.pop %v5485
        %v5487 = vmul.f32 %v5461, 1.442695
        %v5488 = vpow.pop %v5487
        %v5489 = vmul.f32 %v5462, 1.442695
        %v5490 = vpow.pop %v5489
        %v5491 = vmul.f32 %v5463, 1.442695
        %v5492 = vpow.pop %v5491
        %v5493 = vmul.f32 %v5464, 1.442695
        %v5494 = vpow.pop %v5493
        %v5495 = vmul.f32 %v5465, 1.442695
        %v5496 = vpow.pop %v5495
        %v5497 = vmul.f32 %v5466, 1.442695
        %v5498 = vpow.pop %v5497
        %v5499 = vadd.f32 %v5468, 1.0
        %v5500 = vadd.f32 %v5470, 1.0
        %v5501 = vadd.f32 %v5472, 1.0
        %v5502 = vadd.f32 %v5474, 1.0
        %v5503 = vadd.f32 %v5476, 1.0
        %v5504 = vadd.f32 %v5478, 1.0
        %v5505 = vadd.f32 %v5480, 1.0
        %v5506 = vadd.f32 %v5482, 1.0
        %v5507 = vadd.f32 %v5484, 1.0
        %v5508 = vadd.f32 %v5486, 1.0
        %v5509 = vadd.f32 %v5488, 1.0
        %v5510 = vadd.f32 %v5490, 1.0
        %v5511 = vadd.f32 %v5492, 1.0
        %v5512 = vadd.f32 %v5494, 1.0
        %v5513 = vadd.f32 %v5496, 1.0
        %v5514 = vadd.f32 %v5498, 1.0
        %v5515 = vrcp.pop %v5499
        %v5516 = vmul.f32 1.0, %v5515
        %v5517 = vrcp.pop %v5500
        %v5518 = vmul.f32 1.0, %v5517
        %v5519 = vrcp.pop %v5501
        %v5520 = vmul.f32 1.0, %v5519
        %v5521 = vrcp.pop %v5502
        %v5522 = vmul.f32 1.0, %v5521
        %v5523 = vrcp.pop %v5503
        %v5524 = vmul.f32 1.0, %v5523
        %v5525 = vrcp.pop %v5504
        %v5526 = vmul.f32 1.0, %v5525
        %v5527 = vrcp.pop %v5505
        %v5528 = vmul.f32 1.0, %v5527
        %v5529 = vrcp.pop %v5506
        %v5530 = vmul.f32 1.0, %v5529
        %v5531 = vrcp.pop %v5507
        %v5532 = vmul.f32 1.0, %v5531
        %v5533 = vrcp.pop %v5508
        %v5534 = vmul.f32 1.0, %v5533
        %v5535 = vrcp.pop %v5509
        %v5536 = vmul.f32 1.0, %v5535
        %v5537 = vrcp.pop %v5510
        %v5538 = vmul.f32 1.0, %v5537
        %v5539 = vrcp.pop %v5511
        %v5540 = vmul.f32 1.0, %v5539
        %v5541 = vrcp.pop %v5512
        %v5542 = vmul.f32 1.0, %v5541
        %v5543 = vrcp.pop %v5513
        %v5544 = vmul.f32 1.0, %v5543
        %v5545 = vrcp.pop %v5514
        %v5546 = vmul.f32 1.0, %v5545
        %v5547 = vmul.f32 %v5035, %v5516
        %v5548 = vmul.f32 %v5040, %v5518
        %v5549 = vmul.f32 %v5045, %v5520
        %v5550 = vmul.f32 %v5050, %v5522
        %v5551 = vmul.f32 %v5055, %v5524
        %v5552 = vmul.f32 %v5060, %v5526
        %v5553 = vmul.f32 %v5065, %v5528
        %v5554 = vmul.f32 %v5070, %v5530
        %v5555 = vmul.f32 %v5075, %v5532
        %v5556 = vmul.f32 %v5080, %v5534
        %v5557 = vmul.f32 %v5085, %v5536
        %v5558 = vmul.f32 %v5090, %v5538
        %v5559 = vmul.f32 %v5095, %v5540
        %v5560 = vmul.f32 %v5100, %v5542
        %v5561 = vmul.f32 %v5105, %v5544
        %v5562 = vmul.f32 %v5110, %v5546
        %v5563 = vadd.f32 %v5547, %v324
        %v5564 = vadd.f32 %v5548, %v329
        %v5565 = vadd.f32 %v5549, %v334
        %v5566 = vadd.f32 %v5550, %v339
        %v5567 = vadd.f32 %v5551, %v344
        %v5568 = vadd.f32 %v5552, %v349
        %v5569 = vadd.f32 %v5553, %v354
        %v5570 = vadd.f32 %v5554, %v359
        %v5571 = vadd.f32 %v5555, %v364
        %v5572 = vadd.f32 %v5556, %v369
        %v5573 = vadd.f32 %v5557, %v374
        %v5574 = vadd.f32 %v5558, %v379
        %v5575 = vadd.f32 %v5559, %v384
        %v5576 = vadd.f32 %v5560, %v389
        %v5577 = vadd.f32 %v5561, %v394
        %v5578 = vadd.f32 %v5562, %v399
        %v5579 = vadd.f32 %v5563, %v2000
        %v5580 = vadd.f32 %v5564, %v2001
        %v5581 = vadd.f32 %v5565, %v2002
        %v5582 = vadd.f32 %v5566, %v2003
        %v5583 = vadd.f32 %v5567, %v2004
        %v5584 = vadd.f32 %v5568, %v2005
        %v5585 = vadd.f32 %v5569, %v2006
        %v5586 = vadd.f32 %v5570, %v2007
        %v5587 = vadd.f32 %v5571, %v2008
        %v5588 = vadd.f32 %v5572, %v2009
        %v5589 = vadd.f32 %v5573, %v2010
        %v5590 = vadd.f32 %v5574, %v2011
        %v5591 = vadd.f32 %v5575, %v2012
        %v5592 = vadd.f32 %v5576, %v2013
        %v5593 = vadd.f32 %v5577, %v2014
        %v5594 = vadd.f32 %v5578, %v2015
        %v5595 = vadd.f32 %v5579, %v3731
        %v5596 = vadd.f32 %v5580, %v3732
        %v5597 = vadd.f32 %v5581, %v3733
        %v5598 = vadd.f32 %v5582, %v3734
        %v5599 = vadd.f32 %v5583, %v3735
        %v5600 = vadd.f32 %v5584, %v3736
        %v5601 = vadd.f32 %v5585, %v3737
        %v5602 = vadd.f32 %v5586, %v3738
        %v5603 = vadd.f32 %v5587, %v3739
        %v5604 = vadd.f32 %v5588, %v3740
        %v5605 = vadd.f32 %v5589, %v3741
        %v5606 = vadd.f32 %v5590, %v3742
        %v5607 = vadd.f32 %v5591, %v3743
        %v5608 = vadd.f32 %v5592, %v3744
        %v5609 = vadd.f32 %v5593, %v3745
        %v5610 = vadd.f32 %v5594, %v3746
        %v5611 = vmax.f32 %v5595, 0.0
        %v5612 = vmax.f32 %v5596, 0.0
        %v5613 = vmax.f32 %v5597, 0.0
        %v5614 = vmax.f32 %v5598, 0.0
        %v5615 = vmax.f32 %v5599, 0.0
        %v5616 = vmax.f32 %v5600, 0.0
        %v5617 = vmax.f32 %v5601, 0.0
        %v5618 = vmax.f32 %v5602, 0.0
        %v5619 = vmax.f32 %v5603, 0.0
        %v5620 = vmax.f32 %v5604, 0.0
        %v5621 = vmax.f32 %v5605, 0.0
        %v5622 = vmax.f32 %v5606, 0.0
        %v5623 = vmax.f32 %v5607, 0.0
        %v5624 = vmax.f32 %v5608, 0.0
        %v5625 = vmax.f32 %v5609, 0.0
        %v5626 = vmax.f32 %v5610, 0.0
        %v5627 = vld [vmem:[#allocation5 + $0x2a00] sm:$0xff]
        %v5628 = vld [vmem:[#allocation5 + $0x2a18] sm:$0xff]
        %v5629 = vld [vmem:[#allocation5 + $0x2a30] sm:$0xff]
        %v5630 = vld [vmem:[#allocation5 + $0x2a48] sm:$0xff]
        %v5631 = vld [vmem:[#allocation5 + $0x2a60] sm:$0xff]
        %v5632 = vld [vmem:[#allocation5 + $0x2a78] sm:$0xff]
        %v5633 = vld [vmem:[#allocation5 + $0x2a90] sm:$0xff]
        %v5634 = vld [vmem:[#allocation5 + $0x2aa8] sm:$0xff]
        %v5635 = vld [vmem:[#allocation5 + $0x2ac0] sm:$0xff]
        %v5636 = vld [vmem:[#allocation5 + $0x2ad8] sm:$0xff]
        %v5637 = vld [vmem:[#allocation5 + $0x2af0] sm:$0xff]
        %v5638 = vld [vmem:[#allocation5 + $0x2b08] sm:$0xff]
        %v5639 = vld [vmem:[#allocation5 + $0x2b20] sm:$0xff]
        %v5640 = vld [vmem:[#allocation5 + $0x2b38] sm:$0xff]
        %v5641 = vld [vmem:[#allocation5 + $0x2b50] sm:$0xff]
        %v5642 = vld [vmem:[#allocation5 + $0x2b68] sm:$0xff]
        %v5643 = vld [vmem:[#allocation7 + $0x27] sm:$0x1]
        %v5645 = vlaneseq
        %v5646 = vshrl.u32 %v5645, 7
        %v5647 = vsub.s32 0, %v5646
        %v5648 = vrot.slane %v5643, %v5647
        %5650 = vmatprep.subr.mxu0 0.0
        %5651 = vmatpush1.msra.mxu0 %v5642
        %5652 = vmatprep.subr.mxu0 0.0
        %5653 = vmatpush1.msra.mxu0 %v5641
        %5654 = vmatprep.subr.mxu0 0.0
        %5655 = vmatpush1.msra.mxu0 %v5640
        %5656 = vmatprep.subr.mxu0 0.0
        %5657 = vmatpush1.msra.mxu0 %v5639
        %5658 = vmatprep.subr.mxu0 0.0
        %5659 = vmatpush1.msra.mxu0 %v5638
        %5660 = vmatprep.subr.mxu0 0.0
        %5661 = vmatpush1.msra.mxu0 %v5637
        %5662 = vmatprep.subr.mxu0 0.0
        %5663 = vmatpush1.msra.mxu0 %v5636
        %5664 = vmatprep.subr.mxu0 0.0
        %5665 = vmatpush1.msra.mxu0 %v5635
        %5666 = vmatprep.subr.mxu0 0.0
        %5667 = vmatpush1.msra.mxu0 %v5634
        %5668 = vmatprep.subr.mxu0 0.0
        %5669 = vmatpush1.msra.mxu0 %v5633
        %5670 = vmatprep.subr.mxu0 0.0
        %5671 = vmatpush1.msra.mxu0 %v5632
        %5672 = vmatprep.subr.mxu0 0.0
        %5673 = vmatpush1.msra.mxu0 %v5631
        %5674 = vmatprep.subr.mxu0 0.0
        %5675 = vmatpush1.msra.mxu0 %v5630
        %5676 = vmatprep.subr.mxu0 0.0
        %5677 = vmatpush1.msra.mxu0 %v5629
        %5678 = vmatprep.subr.mxu0 0.0
        %5679 = vmatpush1.msra.mxu0 %v5628
        %5680 = vmatprep.subr.mxu0 0.0
        %5681 = vmatpush1.msra.mxu0 %v5627
        %5682 = vmatprep.subr.mxu0 0.0
        %5683 = vmatpush2.msra.mxu0 0.0
        %5684 = vmatprep.subr.mxu0 0.0
        %5685 = vmatpush2.msra.mxu0 0.0
        %5686 = vmatprep.subr.mxu0 0.0
        %5687 = vmatpush2.msra.mxu0 0.0
        %5688 = vmatprep.subr.mxu0 0.0
        %5689 = vmatpush2.msra.mxu0 0.0
        %5690 = vmatprep.subr.mxu0 0.0
        %5691 = vmatpush2.msra.mxu0 0.0
        %5692 = vmatprep.subr.mxu0 0.0
        %5693 = vmatpush2.msra.mxu0 0.0
        %5694 = vmatprep.subr.mxu0 0.0
        %5695 = vmatpush2.msra.mxu0 0.0
        %5696 = vmatprep.subr.mxu0 0.0
        %5697 = vmatpush2.msra.mxu0 0.0
        %5698 = vmatprep.subr.mxu0 0.0
        %5699 = vmatpush2.msra.mxu0 0.0
        %5700 = vmatprep.subr.mxu0 0.0
        %5701 = vmatpush2.msra.mxu0 0.0
        %5702 = vmatprep.subr.mxu0 0.0
        %5703 = vmatpush2.msra.mxu0 0.0
        %5704 = vmatprep.subr.mxu0 0.0
        %5705 = vmatpush2.msra.mxu0 0.0
        %5706 = vmatprep.subr.mxu0 0.0
        %5707 = vmatpush2.msra.mxu0 0.0
        %5708 = vmatprep.subr.mxu0 0.0
        %5709 = vmatpush2.msra.mxu0 0.0
        %5710 = vmatprep.subr.mxu0 0.0
        %5711 = vmatpush2.msra.mxu0 0.0
        %5712 = vmatprep.subr.mxu0 0.0
        %5713 = vmatpush2.msra.mxu0 0.0
        %5714 = vmatprep.mubr.f32.mxu0 0.0
        %5715 = vmatmul.mubr.f32.gmra.mxu0 %v5611
        %v5716 = vpop.f32.mrf.mxu0
        %v5717 = vadd.f32 %v5648, %v5716
        %v5718 = vpop.f32.mrf.mxu0
        %5719 = vmatprep.mubr.f32.mxu0 0.0
        %5720 = vmatmul.mubr.f32.gmra.mxu0 %v5612
        %v5721 = vpop.f32.mrf.mxu0
        %v5722 = vadd.f32 %v5648, %v5721
        %v5723 = vpop.f32.mrf.mxu0
        %5724 = vmatprep.mubr.f32.mxu0 0.0
        %5725 = vmatmul.mubr.f32.gmra.mxu0 %v5613
        %v5726 = vpop.f32.mrf.mxu0
        %v5727 = vadd.f32 %v5648, %v5726
        %v5728 = vpop.f32.mrf.mxu0
        %5729 = vmatprep.mubr.f32.mxu0 0.0
        %5730 = vmatmul.mubr.f32.gmra.mxu0 %v5614
        %v5731 = vpop.f32.mrf.mxu0
        %v5732 = vadd.f32 %v5648, %v5731
        %v5733 = vpop.f32.mrf.mxu0
        %5734 = vmatprep.mubr.f32.mxu0 0.0
        %5735 = vmatmul.mubr.f32.gmra.mxu0 %v5615
        %v5736 = vpop.f32.mrf.mxu0
        %v5737 = vadd.f32 %v5648, %v5736
        %v5738 = vpop.f32.mrf.mxu0
        %5739 = vmatprep.mubr.f32.mxu0 0.0
        %5740 = vmatmul.mubr.f32.gmra.mxu0 %v5616
        %v5741 = vpop.f32.mrf.mxu0
        %v5742 = vadd.f32 %v5648, %v5741
        %v5743 = vpop.f32.mrf.mxu0
        %5744 = vmatprep.mubr.f32.mxu0 0.0
        %5745 = vmatmul.mubr.f32.gmra.mxu0 %v5617
        %v5746 = vpop.f32.mrf.mxu0
        %v5747 = vadd.f32 %v5648, %v5746
        %v5748 = vpop.f32.mrf.mxu0
        %5749 = vmatprep.mubr.f32.mxu0 0.0
        %5750 = vmatmul.mubr.f32.gmra.mxu0 %v5618
        %v5751 = vpop.f32.mrf.mxu0
        %v5752 = vadd.f32 %v5648, %v5751
        %v5753 = vpop.f32.mrf.mxu0
        %5754 = vmatprep.mubr.f32.mxu0 0.0
        %5755 = vmatmul.mubr.f32.gmra.mxu0 %v5619
        %v5756 = vpop.f32.mrf.mxu0
        %v5757 = vadd.f32 %v5648, %v5756
        %v5758 = vpop.f32.mrf.mxu0
        %5759 = vmatprep.mubr.f32.mxu0 0.0
        %5760 = vmatmul.mubr.f32.gmra.mxu0 %v5620
        %v5761 = vpop.f32.mrf.mxu0
        %v5762 = vadd.f32 %v5648, %v5761
        %v5763 = vpop.f32.mrf.mxu0
        %5764 = vmatprep.mubr.f32.mxu0 0.0
        %5765 = vmatmul.mubr.f32.gmra.mxu0 %v5621
        %v5766 = vpop.f32.mrf.mxu0
        %v5767 = vadd.f32 %v5648, %v5766
        %v5768 = vpop.f32.mrf.mxu0
        %5769 = vmatprep.mubr.f32.mxu0 0.0
        %5770 = vmatmul.mubr.f32.gmra.mxu0 %v5622
        %v5771 = vpop.f32.mrf.mxu0
        %v5772 = vadd.f32 %v5648, %v5771
        %v5773 = vpop.f32.mrf.mxu0
        %5774 = vmatprep.mubr.f32.mxu0 0.0
        %5775 = vmatmul.mubr.f32.gmra.mxu0 %v5623
        %v5776 = vpop.f32.mrf.mxu0
        %v5777 = vadd.f32 %v5648, %v5776
        %v5778 = vpop.f32.mrf.mxu0
        %5779 = vmatprep.mubr.f32.mxu0 0.0
        %5780 = vmatmul.mubr.f32.gmra.mxu0 %v5624
        %v5781 = vpop.f32.mrf.mxu0
        %v5782 = vadd.f32 %v5648, %v5781
        %v5783 = vpop.f32.mrf.mxu0
        %5784 = vmatprep.mubr.f32.mxu0 0.0
        %5785 = vmatmul.mubr.f32.gmra.mxu0 %v5625
        %v5786 = vpop.f32.mrf.mxu0
        %v5787 = vadd.f32 %v5648, %v5786
        %v5788 = vpop.f32.mrf.mxu0
        %5789 = vmatprep.mubr.f32.mxu0 0.0
        %5790 = vmatmul.mubr.f32.gmra.mxu0 %v5626
        %v5791 = vpop.f32.mrf.mxu0
        %v5792 = vadd.f32 %v5648, %v5791
        %v5793 = vpop.f32.mrf.mxu0
        %5794 = vdwg.mxu0
        %v5795 = vmax.f32 %v5717, 0.0
        %v5796 = vmax.f32 %v5722, 0.0
        %v5797 = vmax.f32 %v5727, 0.0
        %v5798 = vmax.f32 %v5732, 0.0
        %v5799 = vmax.f32 %v5737, 0.0
        %v5800 = vmax.f32 %v5742, 0.0
        %v5801 = vmax.f32 %v5747, 0.0
        %v5802 = vmax.f32 %v5752, 0.0
        %v5803 = vmax.f32 %v5757, 0.0
        %v5804 = vmax.f32 %v5762, 0.0
        %v5805 = vmax.f32 %v5767, 0.0
        %v5806 = vmax.f32 %v5772, 0.0
        %v5807 = vmax.f32 %v5777, 0.0
        %v5808 = vmax.f32 %v5782, 0.0
        %v5809 = vmax.f32 %v5787, 0.0
        %v5810 = vmax.f32 %v5792, 0.0
        %v5811 = vld [vmem:[#allocation5 + $0x2b80] sm:$0xff]
        %v5812 = vld [vmem:[#allocation5 + $0x2b88] sm:$0xff]
        %v5813 = vld [vmem:[#allocation5 + $0x2b98] sm:$0xff]
        %v5814 = vld [vmem:[#allocation5 + $0x2ba0] sm:$0xff]
        %v5815 = vld [vmem:[#allocation5 + $0x2bb0] sm:$0xff]
        %v5816 = vld [vmem:[#allocation5 + $0x2bb8] sm:$0xff]
        %v5817 = vld [vmem:[#allocation5 + $0x2bc8] sm:$0xff]
        %v5818 = vld [vmem:[#allocation5 + $0x2bd0] sm:$0xff]
        %v5819 = vld [vmem:[#allocation5 + $0x2be0] sm:$0xff]
        %v5820 = vld [vmem:[#allocation5 + $0x2be8] sm:$0xff]
        %v5821 = vld [vmem:[#allocation5 + $0x2bf8] sm:$0xff]
        %v5822 = vld [vmem:[#allocation5 + $0x2c00] sm:$0xff]
        %v5823 = vld [vmem:[#allocation5 + $0x2c10] sm:$0xff]
        %v5824 = vld [vmem:[#allocation5 + $0x2c18] sm:$0xff]
        %v5825 = vld [vmem:[#allocation5 + $0x2c28] sm:$0xff]
        %v5826 = vld [vmem:[#allocation5 + $0x2c30] sm:$0xff]
        %v5827 = vld [vmem:[#allocation5 + $0x2c40] sm:$0xff]
        %v5828 = vld [vmem:[#allocation5 + $0x2c48] sm:$0xff]
        %v5829 = vld [vmem:[#allocation5 + $0x2c58] sm:$0xff]
        %v5830 = vld [vmem:[#allocation5 + $0x2c60] sm:$0xff]
        %v5831 = vld [vmem:[#allocation5 + $0x2c70] sm:$0xff]
        %v5832 = vld [vmem:[#allocation5 + $0x2c78] sm:$0xff]
        %v5833 = vld [vmem:[#allocation5 + $0x2c88] sm:$0xff]
        %v5834 = vld [vmem:[#allocation5 + $0x2c90] sm:$0xff]
        %v5835 = vld [vmem:[#allocation5 + $0x2ca0] sm:$0xff]
        %v5836 = vld [vmem:[#allocation5 + $0x2ca8] sm:$0xff]
        %v5837 = vld [vmem:[#allocation5 + $0x2cb8] sm:$0xff]
        %v5838 = vld [vmem:[#allocation5 + $0x2cc0] sm:$0xff]
        %v5839 = vld [vmem:[#allocation5 + $0x2cd0] sm:$0xff]
        %v5840 = vld [vmem:[#allocation5 + $0x2cd8] sm:$0xff]
        %v5841 = vld [vmem:[#allocation5 + $0x2ce8] sm:$0xff]
        %v5842 = vld [vmem:[#allocation5 + $0x2cf0] sm:$0xff]
        %v5843 = vld [vmem:[#allocation7 + $0x2a] sm:$0x3]
        %v5845 = vlaneseq
        %v5846 = vshrl.u32 %v5845, 7
        %v5847 = vsub.s32 0, %v5846
        %v5848 = vrot.slane %v5843, %v5847
        %v5849 = vlaneseq
        %v5850 = vshrl.u32 %v5849, 7
        %v5851 = vsub.s32 1, %v5850
        %v5852 = vrot.slane %v5843, %v5851
        %5855 = vmatprep.subr.mxu0 %v5842
        %5856 = vmatpush1.msra.mxu0 %v5841
        %5857 = vmatprep.subr.mxu0 %v5840
        %5858 = vmatpush1.msra.mxu0 %v5839
        %5859 = vmatprep.subr.mxu0 %v5838
        %5860 = vmatpush1.msra.mxu0 %v5837
        %5861 = vmatprep.subr.mxu0 %v5836
        %5862 = vmatpush1.msra.mxu0 %v5835
        %5863 = vmatprep.subr.mxu0 %v5834
        %5864 = vmatpush1.msra.mxu0 %v5833
        %5865 = vmatprep.subr.mxu0 %v5832
        %5866 = vmatpush1.msra.mxu0 %v5831
        %5867 = vmatprep.subr.mxu0 %v5830
        %5868 = vmatpush1.msra.mxu0 %v5829
        %5869 = vmatprep.subr.mxu0 %v5828
        %5870 = vmatpush1.msra.mxu0 %v5827
        %5871 = vmatprep.subr.mxu0 %v5826
        %5872 = vmatpush1.msra.mxu0 %v5825
        %5873 = vmatprep.subr.mxu0 %v5824
        %5874 = vmatpush1.msra.mxu0 %v5823
        %5875 = vmatprep.subr.mxu0 %v5822
        %5876 = vmatpush1.msra.mxu0 %v5821
        %5877 = vmatprep.subr.mxu0 %v5820
        %5878 = vmatpush1.msra.mxu0 %v5819
        %5879 = vmatprep.subr.mxu0 %v5818
        %5880 = vmatpush1.msra.mxu0 %v5817
        %5881 = vmatprep.subr.mxu0 %v5816
        %5882 = vmatpush1.msra.mxu0 %v5815
        %5883 = vmatprep.subr.mxu0 %v5814
        %5884 = vmatpush1.msra.mxu0 %v5813
        %5885 = vmatprep.subr.mxu0 %v5812
        %5886 = vmatpush1.msra.mxu0 %v5811
        %5887 = vmatprep.subr.mxu0 0.0
        %5888 = vmatpush2.msra.mxu0 0.0
        %5889 = vmatprep.subr.mxu0 0.0
        %5890 = vmatpush2.msra.mxu0 0.0
        %5891 = vmatprep.subr.mxu0 0.0
        %5892 = vmatpush2.msra.mxu0 0.0
        %5893 = vmatprep.subr.mxu0 0.0
        %5894 = vmatpush2.msra.mxu0 0.0
        %5895 = vmatprep.subr.mxu0 0.0
        %5896 = vmatpush2.msra.mxu0 0.0
        %5897 = vmatprep.subr.mxu0 0.0
        %5898 = vmatpush2.msra.mxu0 0.0
        %5899 = vmatprep.subr.mxu0 0.0
        %5900 = vmatpush2.msra.mxu0 0.0
        %5901 = vmatprep.subr.mxu0 0.0
        %5902 = vmatpush2.msra.mxu0 0.0
        %5903 = vmatprep.subr.mxu0 0.0
        %5904 = vmatpush2.msra.mxu0 0.0
        %5905 = vmatprep.subr.mxu0 0.0
        %5906 = vmatpush2.msra.mxu0 0.0
        %5907 = vmatprep.subr.mxu0 0.0
        %5908 = vmatpush2.msra.mxu0 0.0
        %5909 = vmatprep.subr.mxu0 0.0
        %5910 = vmatpush2.msra.mxu0 0.0
        %5911 = vmatprep.subr.mxu0 0.0
        %5912 = vmatpush2.msra.mxu0 0.0
        %5913 = vmatprep.subr.mxu0 0.0
        %5914 = vmatpush2.msra.mxu0 0.0
        %5915 = vmatprep.subr.mxu0 0.0
        %5916 = vmatpush2.msra.mxu0 0.0
        %5917 = vmatprep.subr.mxu0 0.0
        %5918 = vmatpush2.msra.mxu0 0.0
        %5919 = vmatprep.mubr.f32.mxu0 0.0
        %5920 = vmatmul.mubr.f32.gmra.mxu0 %v5795
        %v5921 = vpop.f32.mrf.mxu0
        %v5922 = vadd.f32 %v5848, %v5921
        %v5923 = vpop.f32.mrf.mxu0
        %v5924 = vadd.f32 %v5852, %v5923
        %5925 = vmatprep.mubr.f32.mxu0 0.0
        %5926 = vmatmul.mubr.f32.gmra.mxu0 %v5796
        %v5927 = vpop.f32.mrf.mxu0
        %v5928 = vadd.f32 %v5848, %v5927
        %v5929 = vpop.f32.mrf.mxu0
        %v5930 = vadd.f32 %v5852, %v5929
        %5931 = vmatprep.mubr.f32.mxu0 0.0
        %5932 = vmatmul.mubr.f32.gmra.mxu0 %v5797
        %v5933 = vpop.f32.mrf.mxu0
        %v5934 = vadd.f32 %v5848, %v5933
        %v5935 = vpop.f32.mrf.mxu0
        %v5936 = vadd.f32 %v5852, %v5935
        %5937 = vmatprep.mubr.f32.mxu0 0.0
        %5938 = vmatmul.mubr.f32.gmra.mxu0 %v5798
        %v5939 = vpop.f32.mrf.mxu0
        %v5940 = vadd.f32 %v5848, %v5939
        %v5941 = vpop.f32.mrf.mxu0
        %v5942 = vadd.f32 %v5852, %v5941
        %5943 = vmatprep.mubr.f32.mxu0 0.0
        %5944 = vmatmul.mubr.f32.gmra.mxu0 %v5799
        %v5945 = vpop.f32.mrf.mxu0
        %v5946 = vadd.f32 %v5848, %v5945
        %v5947 = vpop.f32.mrf.mxu0
        %v5948 = vadd.f32 %v5852, %v5947
        %5949 = vmatprep.mubr.f32.mxu0 0.0
        %5950 = vmatmul.mubr.f32.gmra.mxu0 %v5800
        %v5951 = vpop.f32.mrf.mxu0
        %v5952 = vadd.f32 %v5848, %v5951
        %v5953 = vpop.f32.mrf.mxu0
        %v5954 = vadd.f32 %v5852, %v5953
        %5955 = vmatprep.mubr.f32.mxu0 0.0
        %5956 = vmatmul.mubr.f32.gmra.mxu0 %v5801
        %v5957 = vpop.f32.mrf.mxu0
        %v5958 = vadd.f32 %v5848, %v5957
        %v5959 = vpop.f32.mrf.mxu0
        %v5960 = vadd.f32 %v5852, %v5959
        %5961 = vmatprep.mubr.f32.mxu0 0.0
        %5962 = vmatmul.mubr.f32.gmra.mxu0 %v5802
        %v5963 = vpop.f32.mrf.mxu0
        %v5964 = vadd.f32 %v5848, %v5963
        %v5965 = vpop.f32.mrf.mxu0
        %v5966 = vadd.f32 %v5852, %v5965
        %5967 = vmatprep.mubr.f32.mxu0 0.0
        %5968 = vmatmul.mubr.f32.gmra.mxu0 %v5803
        %v5969 = vpop.f32.mrf.mxu0
        %v5970 = vadd.f32 %v5848, %v5969
        %v5971 = vpop.f32.mrf.mxu0
        %v5972 = vadd.f32 %v5852, %v5971
        %5973 = vmatprep.mubr.f32.mxu0 0.0
        %5974 = vmatmul.mubr.f32.gmra.mxu0 %v5804
        %v5975 = vpop.f32.mrf.mxu0
        %v5976 = vadd.f32 %v5848, %v5975
        %v5977 = vpop.f32.mrf.mxu0
        %v5978 = vadd.f32 %v5852, %v5977
        %5979 = vmatprep.mubr.f32.mxu0 0.0
        %5980 = vmatmul.mubr.f32.gmra.mxu0 %v5805
        %v5981 = vpop.f32.mrf.mxu0
        %v5982 = vadd.f32 %v5848, %v5981
        %v5983 = vpop.f32.mrf.mxu0
        %v5984 = vadd.f32 %v5852, %v5983
        %5985 = vmatprep.mubr.f32.mxu0 0.0
        %5986 = vmatmul.mubr.f32.gmra.mxu0 %v5806
        %v5987 = vpop.f32.mrf.mxu0
        %v5988 = vadd.f32 %v5848, %v5987
        %v5989 = vpop.f32.mrf.mxu0
        %v5990 = vadd.f32 %v5852, %v5989
        %5991 = vmatprep.mubr.f32.mxu0 0.0
        %5992 = vmatmul.mubr.f32.gmra.mxu0 %v5807
        %v5993 = vpop.f32.mrf.mxu0
        %v5994 = vadd.f32 %v5848, %v5993
        %v5995 = vpop.f32.mrf.mxu0
        %v5996 = vadd.f32 %v5852, %v5995
        %5997 = vmatprep.mubr.f32.mxu0 0.0
        %5998 = vmatmul.mubr.f32.gmra.mxu0 %v5808
        %v5999 = vpop.f32.mrf.mxu0
        %v6000 = vadd.f32 %v5848, %v5999
        %v6001 = vpop.f32.mrf.mxu0
        %v6002 = vadd.f32 %v5852, %v6001
        %6003 = vmatprep.mubr.f32.mxu0 0.0
        %6004 = vmatmul.mubr.f32.gmra.mxu0 %v5809
        %v6005 = vpop.f32.mrf.mxu0
        %v6006 = vadd.f32 %v5848, %v6005
        %v6007 = vpop.f32.mrf.mxu0
        %v6008 = vadd.f32 %v5852, %v6007
        %6009 = vmatprep.mubr.f32.mxu0 0.0
        %6010 = vmatmul.mubr.f32.gmra.mxu0 %v5810
        %v6011 = vpop.f32.mrf.mxu0
        %v6012 = vadd.f32 %v5848, %v6011
        %v6013 = vpop.f32.mrf.mxu0
        %v6014 = vadd.f32 %v5852, %v6013
        %6015 = vdwg.mxu0
        %v6016 = vmax.f32 %v5922, 0.0
        %v6017 = vmax.f32 %v5924, 0.0
        %v6018 = vmax.f32 %v5928, 0.0
        %v6019 = vmax.f32 %v5930, 0.0
        %v6020 = vmax.f32 %v5934, 0.0
        %v6021 = vmax.f32 %v5936, 0.0
        %v6022 = vmax.f32 %v5940, 0.0
        %v6023 = vmax.f32 %v5942, 0.0
        %v6024 = vmax.f32 %v5946, 0.0
        %v6025 = vmax.f32 %v5948, 0.0
        %v6026 = vmax.f32 %v5952, 0.0
        %v6027 = vmax.f32 %v5954, 0.0
        %v6028 = vmax.f32 %v5958, 0.0
        %v6029 = vmax.f32 %v5960, 0.0
        %v6030 = vmax.f32 %v5964, 0.0
        %v6031 = vmax.f32 %v5966, 0.0
        %v6032 = vmax.f32 %v5970, 0.0
        %v6033 = vmax.f32 %v5972, 0.0
        %v6034 = vmax.f32 %v5976, 0.0
        %v6035 = vmax.f32 %v5978, 0.0
        %v6036 = vmax.f32 %v5982, 0.0
        %v6037 = vmax.f32 %v5984, 0.0
        %v6038 = vmax.f32 %v5988, 0.0
        %v6039 = vmax.f32 %v5990, 0.0
        %v6040 = vmax.f32 %v5994, 0.0
        %v6041 = vmax.f32 %v5996, 0.0
        %v6042 = vmax.f32 %v6000, 0.0
        %v6043 = vmax.f32 %v6002, 0.0
        %v6044 = vmax.f32 %v6006, 0.0
        %v6045 = vmax.f32 %v6008, 0.0
        %v6046 = vmax.f32 %v6012, 0.0
        %v6047 = vmax.f32 %v6014, 0.0
        %v6048 = vld [vmem:[#allocation5 + $0x2d00] sm:$0xff]
        %v6049 = vld [vmem:[#allocation5 + $0x2d18] sm:$0xff]
        %v6050 = vld [vmem:[#allocation5 + $0x2d30] sm:$0xff]
        %v6051 = vld [vmem:[#allocation5 + $0x2d48] sm:$0xff]
        %v6052 = vld [vmem:[#allocation5 + $0x2d60] sm:$0xff]
        %v6053 = vld [vmem:[#allocation5 + $0x2d78] sm:$0xff]
        %v6054 = vld [vmem:[#allocation5 + $0x2d90] sm:$0xff]
        %v6055 = vld [vmem:[#allocation5 + $0x2da8] sm:$0xff]
        %v6056 = vld [vmem:[#allocation5 + $0x2dc0] sm:$0xff]
        %v6057 = vld [vmem:[#allocation5 + $0x2dd8] sm:$0xff]
        %v6058 = vld [vmem:[#allocation5 + $0x2df0] sm:$0xff]
        %v6059 = vld [vmem:[#allocation5 + $0x2e08] sm:$0xff]
        %v6060 = vld [vmem:[#allocation5 + $0x2e20] sm:$0xff]
        %v6061 = vld [vmem:[#allocation5 + $0x2e38] sm:$0xff]
        %v6062 = vld [vmem:[#allocation5 + $0x2e50] sm:$0xff]
        %v6063 = vld [vmem:[#allocation5 + $0x2e68] sm:$0xff]
        %v6064 = vld [vmem:[#allocation5 + $0x2e80] sm:$0xff]
        %v6065 = vld [vmem:[#allocation5 + $0x2e98] sm:$0xff]
        %v6066 = vld [vmem:[#allocation5 + $0x2eb0] sm:$0xff]
        %v6067 = vld [vmem:[#allocation5 + $0x2ec8] sm:$0xff]
        %v6068 = vld [vmem:[#allocation5 + $0x2ee0] sm:$0xff]
        %v6069 = vld [vmem:[#allocation5 + $0x2ef8] sm:$0xff]
        %v6070 = vld [vmem:[#allocation5 + $0x2f10] sm:$0xff]
        %v6071 = vld [vmem:[#allocation5 + $0x2f28] sm:$0xff]
        %v6072 = vld [vmem:[#allocation5 + $0x2f40] sm:$0xff]
        %v6073 = vld [vmem:[#allocation5 + $0x2f58] sm:$0xff]
        %v6074 = vld [vmem:[#allocation5 + $0x2f70] sm:$0xff]
        %v6075 = vld [vmem:[#allocation5 + $0x2f88] sm:$0xff]
        %v6076 = vld [vmem:[#allocation5 + $0x2fa0] sm:$0xff]
        %v6077 = vld [vmem:[#allocation5 + $0x2fb8] sm:$0xff]
        %v6078 = vld [vmem:[#allocation5 + $0x2fd0] sm:$0xff]
        %v6079 = vld [vmem:[#allocation5 + $0x2fe8] sm:$0xff]
        %v6080 = vld [vmem:[#allocation7 + $0x2d] sm:$0x1]
        %v6082 = vlaneseq
        %v6083 = vshrl.u32 %v6082, 7
        %v6084 = vsub.s32 0, %v6083
        %v6085 = vrot.slane %v6080, %v6084
        %6087 = vmatprep.subr.mxu0 0.0
        %6088 = vmatpush1.msra.mxu0 %v6063
        %6089 = vmatprep.subr.mxu0 0.0
        %6090 = vmatpush1.msra.mxu0 %v6062
        %6091 = vmatprep.subr.mxu0 0.0
        %6092 = vmatpush1.msra.mxu0 %v6061
        %6093 = vmatprep.subr.mxu0 0.0
        %6094 = vmatpush1.msra.mxu0 %v6060
        %6095 = vmatprep.subr.mxu0 0.0
        %6096 = vmatpush1.msra.mxu0 %v6059
        %6097 = vmatprep.subr.mxu0 0.0
        %6098 = vmatpush1.msra.mxu0 %v6058
        %6099 = vmatprep.subr.mxu0 0.0
        %6100 = vmatpush1.msra.mxu0 %v6057
        %6101 = vmatprep.subr.mxu0 0.0
        %6102 = vmatpush1.msra.mxu0 %v6056
        %6103 = vmatprep.subr.mxu0 0.0
        %6104 = vmatpush1.msra.mxu0 %v6055
        %6105 = vmatprep.subr.mxu0 0.0
        %6106 = vmatpush1.msra.mxu0 %v6054
        %6107 = vmatprep.subr.mxu0 0.0
        %6108 = vmatpush1.msra.mxu0 %v6053
        %6109 = vmatprep.subr.mxu0 0.0
        %6110 = vmatpush1.msra.mxu0 %v6052
        %6111 = vmatprep.subr.mxu0 0.0
        %6112 = vmatpush1.msra.mxu0 %v6051
        %6113 = vmatprep.subr.mxu0 0.0
        %6114 = vmatpush1.msra.mxu0 %v6050
        %6115 = vmatprep.subr.mxu0 0.0
        %6116 = vmatpush1.msra.mxu0 %v6049
        %6117 = vmatprep.subr.mxu0 0.0
        %6118 = vmatpush1.msra.mxu0 %v6048
        %6119 = vmatprep.subr.mxu0 0.0
        %6120 = vmatpush2.msra.mxu0 %v6079
        %6121 = vmatprep.subr.mxu0 0.0
        %6122 = vmatpush2.msra.mxu0 %v6078
        %6123 = vmatprep.subr.mxu0 0.0
        %6124 = vmatpush2.msra.mxu0 %v6077
        %6125 = vmatprep.subr.mxu0 0.0
        %6126 = vmatpush2.msra.mxu0 %v6076
        %6127 = vmatprep.subr.mxu0 0.0
        %6128 = vmatpush2.msra.mxu0 %v6075
        %6129 = vmatprep.subr.mxu0 0.0
        %6130 = vmatpush2.msra.mxu0 %v6074
        %6131 = vmatprep.subr.mxu0 0.0
        %6132 = vmatpush2.msra.mxu0 %v6073
        %6133 = vmatprep.subr.mxu0 0.0
        %6134 = vmatpush2.msra.mxu0 %v6072
        %6135 = vmatprep.subr.mxu0 0.0
        %6136 = vmatpush2.msra.mxu0 %v6071
        %6137 = vmatprep.subr.mxu0 0.0
        %6138 = vmatpush2.msra.mxu0 %v6070
        %6139 = vmatprep.subr.mxu0 0.0
        %6140 = vmatpush2.msra.mxu0 %v6069
        %6141 = vmatprep.subr.mxu0 0.0
        %6142 = vmatpush2.msra.mxu0 %v6068
        %6143 = vmatprep.subr.mxu0 0.0
        %6144 = vmatpush2.msra.mxu0 %v6067
        %6145 = vmatprep.subr.mxu0 0.0
        %6146 = vmatpush2.msra.mxu0 %v6066
        %6147 = vmatprep.subr.mxu0 0.0
        %6148 = vmatpush2.msra.mxu0 %v6065
        %6149 = vmatprep.subr.mxu0 0.0
        %6150 = vmatpush2.msra.mxu0 %v6064
        %6151 = vmatprep.mubr.f32.mxu0 %v6017
        %6152 = vmatmul.mubr.f32.gmra.mxu0 %v6016
        %v6153 = vpop.f32.mrf.mxu0
        %v6154 = vadd.f32 %v6085, %v6153
        %v6155 = vpop.f32.mrf.mxu0
        %6156 = vmatprep.mubr.f32.mxu0 %v6019
        %6157 = vmatmul.mubr.f32.gmra.mxu0 %v6018
        %v6158 = vpop.f32.mrf.mxu0
        %v6159 = vadd.f32 %v6085, %v6158
        %v6160 = vpop.f32.mrf.mxu0
        %6161 = vmatprep.mubr.f32.mxu0 %v6021
        %6162 = vmatmul.mubr.f32.gmra.mxu0 %v6020
        %v6163 = vpop.f32.mrf.mxu0
        %v6164 = vadd.f32 %v6085, %v6163
        %v6165 = vpop.f32.mrf.mxu0
        %6166 = vmatprep.mubr.f32.mxu0 %v6023
        %6167 = vmatmul.mubr.f32.gmra.mxu0 %v6022
        %v6168 = vpop.f32.mrf.mxu0
        %v6169 = vadd.f32 %v6085, %v6168
        %v6170 = vpop.f32.mrf.mxu0
        %6171 = vmatprep.mubr.f32.mxu0 %v6025
        %6172 = vmatmul.mubr.f32.gmra.mxu0 %v6024
        %v6173 = vpop.f32.mrf.mxu0
        %v6174 = vadd.f32 %v6085, %v6173
        %v6175 = vpop.f32.mrf.mxu0
        %6176 = vmatprep.mubr.f32.mxu0 %v6027
        %6177 = vmatmul.mubr.f32.gmra.mxu0 %v6026
        %v6178 = vpop.f32.mrf.mxu0
        %v6179 = vadd.f32 %v6085, %v6178
        %v6180 = vpop.f32.mrf.mxu0
        %6181 = vmatprep.mubr.f32.mxu0 %v6029
        %6182 = vmatmul.mubr.f32.gmra.mxu0 %v6028
        %v6183 = vpop.f32.mrf.mxu0
        %v6184 = vadd.f32 %v6085, %v6183
        %v6185 = vpop.f32.mrf.mxu0
        %6186 = vmatprep.mubr.f32.mxu0 %v6031
        %6187 = vmatmul.mubr.f32.gmra.mxu0 %v6030
        %v6188 = vpop.f32.mrf.mxu0
        %v6189 = vadd.f32 %v6085, %v6188
        %v6190 = vpop.f32.mrf.mxu0
        %6191 = vmatprep.mubr.f32.mxu0 %v6033
        %6192 = vmatmul.mubr.f32.gmra.mxu0 %v6032
        %v6193 = vpop.f32.mrf.mxu0
        %v6194 = vadd.f32 %v6085, %v6193
        %v6195 = vpop.f32.mrf.mxu0
        %6196 = vmatprep.mubr.f32.mxu0 %v6035
        %6197 = vmatmul.mubr.f32.gmra.mxu0 %v6034
        %v6198 = vpop.f32.mrf.mxu0
        %v6199 = vadd.f32 %v6085, %v6198
        %v6200 = vpop.f32.mrf.mxu0
        %6201 = vmatprep.mubr.f32.mxu0 %v6037
        %6202 = vmatmul.mubr.f32.gmra.mxu0 %v6036
        %v6203 = vpop.f32.mrf.mxu0
        %v6204 = vadd.f32 %v6085, %v6203
        %v6205 = vpop.f32.mrf.mxu0
        %6206 = vmatprep.mubr.f32.mxu0 %v6039
        %6207 = vmatmul.mubr.f32.gmra.mxu0 %v6038
        %v6208 = vpop.f32.mrf.mxu0
        %v6209 = vadd.f32 %v6085, %v6208
        %v6210 = vpop.f32.mrf.mxu0
        %6211 = vmatprep.mubr.f32.mxu0 %v6041
        %6212 = vmatmul.mubr.f32.gmra.mxu0 %v6040
        %v6213 = vpop.f32.mrf.mxu0
        %v6214 = vadd.f32 %v6085, %v6213
        %v6215 = vpop.f32.mrf.mxu0
        %6216 = vmatprep.mubr.f32.mxu0 %v6043
        %6217 = vmatmul.mubr.f32.gmra.mxu0 %v6042
        %v6218 = vpop.f32.mrf.mxu0
        %v6219 = vadd.f32 %v6085, %v6218
        %v6220 = vpop.f32.mrf.mxu0
        %6221 = vmatprep.mubr.f32.mxu0 %v6045
        %6222 = vmatmul.mubr.f32.gmra.mxu0 %v6044
        %v6223 = vpop.f32.mrf.mxu0
        %v6224 = vadd.f32 %v6085, %v6223
        %v6225 = vpop.f32.mrf.mxu0
        %6226 = vmatprep.mubr.f32.mxu0 %v6047
        %6227 = vmatmul.mubr.f32.gmra.mxu0 %v6046
        %v6228 = vpop.f32.mrf.mxu0
        %v6229 = vadd.f32 %v6085, %v6228
        %v6230 = vpop.f32.mrf.mxu0
        %6231 = vdwg.mxu0
        %v6232 = vmax.f32 %v6154, 0.0
        %v6233 = vmax.f32 %v6159, 0.0
        %v6234 = vmax.f32 %v6164, 0.0
        %v6235 = vmax.f32 %v6169, 0.0
        %v6236 = vmax.f32 %v6174, 0.0
        %v6237 = vmax.f32 %v6179, 0.0
        %v6238 = vmax.f32 %v6184, 0.0
        %v6239 = vmax.f32 %v6189, 0.0
        %v6240 = vmax.f32 %v6194, 0.0
        %v6241 = vmax.f32 %v6199, 0.0
        %v6242 = vmax.f32 %v6204, 0.0
        %v6243 = vmax.f32 %v6209, 0.0
        %v6244 = vmax.f32 %v6214, 0.0
        %v6245 = vmax.f32 %v6219, 0.0
        %v6246 = vmax.f32 %v6224, 0.0
        %v6247 = vmax.f32 %v6229, 0.0
        %v6248 = vld [vmem:[#allocation5 + $0x3000] sm:$0xff]
        %v6249 = vld [vmem:[#allocation5 + $0x3018] sm:$0xff]
        %v6250 = vld [vmem:[#allocation5 + $0x3030] sm:$0xff]
        %v6251 = vld [vmem:[#allocation5 + $0x3048] sm:$0xff]
        %v6252 = vld [vmem:[#allocation5 + $0x3060] sm:$0xff]
        %v6253 = vld [vmem:[#allocation5 + $0x3078] sm:$0xff]
        %v6254 = vld [vmem:[#allocation5 + $0x3090] sm:$0xff]
        %v6255 = vld [vmem:[#allocation5 + $0x30a8] sm:$0xff]
        %v6256 = vld [vmem:[#allocation5 + $0x30c0] sm:$0xff]
        %v6257 = vld [vmem:[#allocation5 + $0x30d8] sm:$0xff]
        %v6258 = vld [vmem:[#allocation5 + $0x30f0] sm:$0xff]
        %v6259 = vld [vmem:[#allocation5 + $0x3108] sm:$0xff]
        %v6260 = vld [vmem:[#allocation5 + $0x3120] sm:$0xff]
        %v6261 = vld [vmem:[#allocation5 + $0x3138] sm:$0xff]
        %v6262 = vld [vmem:[#allocation5 + $0x3150] sm:$0xff]
        %v6263 = vld [vmem:[#allocation5 + $0x3168] sm:$0xff]
        %v6264 = vld [vmem:[#allocation7 + $0x30] sm:$0x1]
        %v6266 = vlaneseq
        %v6267 = vshrl.u32 %v6266, 7
        %v6268 = vsub.s32 0, %v6267
        %v6269 = vrot.slane %v6264, %v6268
        %6271 = vmatprep.subr.mxu0 0.0
        %6272 = vmatpush1.msra.mxu0 %v6263
        %6273 = vmatprep.subr.mxu0 0.0
        %6274 = vmatpush1.msra.mxu0 %v6262
        %6275 = vmatprep.subr.mxu0 0.0
        %6276 = vmatpush1.msra.mxu0 %v6261
        %6277 = vmatprep.subr.mxu0 0.0
        %6278 = vmatpush1.msra.mxu0 %v6260
        %6279 = vmatprep.subr.mxu0 0.0
        %6280 = vmatpush1.msra.mxu0 %v6259
        %6281 = vmatprep.subr.mxu0 0.0
        %6282 = vmatpush1.msra.mxu0 %v6258
        %6283 = vmatprep.subr.mxu0 0.0
        %6284 = vmatpush1.msra.mxu0 %v6257
        %6285 = vmatprep.subr.mxu0 0.0
        %6286 = vmatpush1.msra.mxu0 %v6256
        %6287 = vmatprep.subr.mxu0 0.0
        %6288 = vmatpush1.msra.mxu0 %v6255
        %6289 = vmatprep.subr.mxu0 0.0
        %6290 = vmatpush1.msra.mxu0 %v6254
        %6291 = vmatprep.subr.mxu0 0.0
        %6292 = vmatpush1.msra.mxu0 %v6253
        %6293 = vmatprep.subr.mxu0 0.0
        %6294 = vmatpush1.msra.mxu0 %v6252
        %6295 = vmatprep.subr.mxu0 0.0
        %6296 = vmatpush1.msra.mxu0 %v6251
        %6297 = vmatprep.subr.mxu0 0.0
        %6298 = vmatpush1.msra.mxu0 %v6250
        %6299 = vmatprep.subr.mxu0 0.0
        %6300 = vmatpush1.msra.mxu0 %v6249
        %6301 = vmatprep.subr.mxu0 0.0
        %6302 = vmatpush1.msra.mxu0 %v6248
        %6303 = vmatprep.subr.mxu0 0.0
        %6304 = vmatpush2.msra.mxu0 0.0
        %6305 = vmatprep.subr.mxu0 0.0
        %6306 = vmatpush2.msra.mxu0 0.0
        %6307 = vmatprep.subr.mxu0 0.0
        %6308 = vmatpush2.msra.mxu0 0.0
        %6309 = vmatprep.subr.mxu0 0.0
        %6310 = vmatpush2.msra.mxu0 0.0
        %6311 = vmatprep.subr.mxu0 0.0
        %6312 = vmatpush2.msra.mxu0 0.0
        %6313 = vmatprep.subr.mxu0 0.0
        %6314 = vmatpush2.msra.mxu0 0.0
        %6315 = vmatprep.subr.mxu0 0.0
        %6316 = vmatpush2.msra.mxu0 0.0
        %6317 = vmatprep.subr.mxu0 0.0
        %6318 = vmatpush2.msra.mxu0 0.0
        %6319 = vmatprep.subr.mxu0 0.0
        %6320 = vmatpush2.msra.mxu0 0.0
        %6321 = vmatprep.subr.mxu0 0.0
        %6322 = vmatpush2.msra.mxu0 0.0
        %6323 = vmatprep.subr.mxu0 0.0
        %6324 = vmatpush2.msra.mxu0 0.0
        %6325 = vmatprep.subr.mxu0 0.0
        %6326 = vmatpush2.msra.mxu0 0.0
        %6327 = vmatprep.subr.mxu0 0.0
        %6328 = vmatpush2.msra.mxu0 0.0
        %6329 = vmatprep.subr.mxu0 0.0
        %6330 = vmatpush2.msra.mxu0 0.0
        %6331 = vmatprep.subr.mxu0 0.0
        %6332 = vmatpush2.msra.mxu0 0.0
        %6333 = vmatprep.subr.mxu0 0.0
        %6334 = vmatpush2.msra.mxu0 0.0
        %6335 = vmatprep.mubr.f32.mxu0 0.0
        %6336 = vmatmul.mubr.f32.gmra.mxu0 %v6232
        %v6337 = vpop.f32.mrf.mxu0
        %v6338 = vadd.f32 %v6269, %v6337
        %v6339 = vpop.f32.mrf.mxu0
        %6340 = vmatprep.mubr.f32.mxu0 0.0
        %6341 = vmatmul.mubr.f32.gmra.mxu0 %v6233
        %v6342 = vpop.f32.mrf.mxu0
        %v6343 = vadd.f32 %v6269, %v6342
        %v6344 = vpop.f32.mrf.mxu0
        %6345 = vmatprep.mubr.f32.mxu0 0.0
        %6346 = vmatmul.mubr.f32.gmra.mxu0 %v6234
        %v6347 = vpop.f32.mrf.mxu0
        %v6348 = vadd.f32 %v6269, %v6347
        %v6349 = vpop.f32.mrf.mxu0
        %6350 = vmatprep.mubr.f32.mxu0 0.0
        %6351 = vmatmul.mubr.f32.gmra.mxu0 %v6235
        %v6352 = vpop.f32.mrf.mxu0
        %v6353 = vadd.f32 %v6269, %v6352
        %v6354 = vpop.f32.mrf.mxu0
        %6355 = vmatprep.mubr.f32.mxu0 0.0
        %6356 = vmatmul.mubr.f32.gmra.mxu0 %v6236
        %v6357 = vpop.f32.mrf.mxu0
        %v6358 = vadd.f32 %v6269, %v6357
        %v6359 = vpop.f32.mrf.mxu0
        %6360 = vmatprep.mubr.f32.mxu0 0.0
        %6361 = vmatmul.mubr.f32.gmra.mxu0 %v6237
        %v6362 = vpop.f32.mrf.mxu0
        %v6363 = vadd.f32 %v6269, %v6362
        %v6364 = vpop.f32.mrf.mxu0
        %6365 = vmatprep.mubr.f32.mxu0 0.0
        %6366 = vmatmul.mubr.f32.gmra.mxu0 %v6238
        %v6367 = vpop.f32.mrf.mxu0
        %v6368 = vadd.f32 %v6269, %v6367
        %v6369 = vpop.f32.mrf.mxu0
        %6370 = vmatprep.mubr.f32.mxu0 0.0
        %6371 = vmatmul.mubr.f32.gmra.mxu0 %v6239
        %v6372 = vpop.f32.mrf.mxu0
        %v6373 = vadd.f32 %v6269, %v6372
        %v6374 = vpop.f32.mrf.mxu0
        %6375 = vmatprep.mubr.f32.mxu0 0.0
        %6376 = vmatmul.mubr.f32.gmra.mxu0 %v6240
        %v6377 = vpop.f32.mrf.mxu0
        %v6378 = vadd.f32 %v6269, %v6377
        %v6379 = vpop.f32.mrf.mxu0
        %6380 = vmatprep.mubr.f32.mxu0 0.0
        %6381 = vmatmul.mubr.f32.gmra.mxu0 %v6241
        %v6382 = vpop.f32.mrf.mxu0
        %v6383 = vadd.f32 %v6269, %v6382
        %v6384 = vpop.f32.mrf.mxu0
        %6385 = vmatprep.mubr.f32.mxu0 0.0
        %6386 = vmatmul.mubr.f32.gmra.mxu0 %v6242
        %v6387 = vpop.f32.mrf.mxu0
        %v6388 = vadd.f32 %v6269, %v6387
        %v6389 = vpop.f32.mrf.mxu0
        %6390 = vmatprep.mubr.f32.mxu0 0.0
        %6391 = vmatmul.mubr.f32.gmra.mxu0 %v6243
        %v6392 = vpop.f32.mrf.mxu0
        %v6393 = vadd.f32 %v6269, %v6392
        %v6394 = vpop.f32.mrf.mxu0
        %6395 = vmatprep.mubr.f32.mxu0 0.0
        %6396 = vmatmul.mubr.f32.gmra.mxu0 %v6244
        %v6397 = vpop.f32.mrf.mxu0
        %v6398 = vadd.f32 %v6269, %v6397
        %v6399 = vpop.f32.mrf.mxu0
        %6400 = vmatprep.mubr.f32.mxu0 0.0
        %6401 = vmatmul.mubr.f32.gmra.mxu0 %v6245
        %v6402 = vpop.f32.mrf.mxu0
        %v6403 = vadd.f32 %v6269, %v6402
        %v6404 = vpop.f32.mrf.mxu0
        %6405 = vmatprep.mubr.f32.mxu0 0.0
        %6406 = vmatmul.mubr.f32.gmra.mxu0 %v6246
        %v6407 = vpop.f32.mrf.mxu0
        %v6408 = vadd.f32 %v6269, %v6407
        %v6409 = vpop.f32.mrf.mxu0
        %6410 = vmatprep.mubr.f32.mxu0 0.0
        %6411 = vmatmul.mubr.f32.gmra.mxu0 %v6247
        %v6412 = vpop.f32.mrf.mxu0
        %v6413 = vadd.f32 %v6269, %v6412
        %v6414 = vpop.f32.mrf.mxu0
        %6415 = vdwg.mxu0
        %v6416 = vld [vmem:[#allocation5 + $0x3180] sm:$0xff]
        %v6417 = vld [vmem:[#allocation5 + $0x3198] sm:$0xff]
        %v6418 = vld [vmem:[#allocation5 + $0x31b0] sm:$0xff]
        %v6419 = vld [vmem:[#allocation5 + $0x31c8] sm:$0xff]
        %v6420 = vld [vmem:[#allocation5 + $0x31e0] sm:$0xff]
        %v6421 = vld [vmem:[#allocation5 + $0x31f8] sm:$0xff]
        %v6422 = vld [vmem:[#allocation5 + $0x3210] sm:$0xff]
        %v6423 = vld [vmem:[#allocation5 + $0x3228] sm:$0xff]
        %v6424 = vld [vmem:[#allocation5 + $0x3240] sm:$0xff]
        %v6425 = vld [vmem:[#allocation5 + $0x3258] sm:$0xff]
        %v6426 = vld [vmem:[#allocation5 + $0x3270] sm:$0xff]
        %v6427 = vld [vmem:[#allocation5 + $0x3288] sm:$0xff]
        %v6428 = vld [vmem:[#allocation5 + $0x32a0] sm:$0xff]
        %v6429 = vld [vmem:[#allocation5 + $0x32b8] sm:$0xff]
        %v6430 = vld [vmem:[#allocation5 + $0x32d0] sm:$0xff]
        %v6431 = vld [vmem:[#allocation5 + $0x32e8] sm:$0xff]
        %6432 = vmatprep.subr.mxu0 0.0
        %6433 = vmatpush1.msra.mxu0 %v6431
        %6434 = vmatprep.subr.mxu0 0.0
        %6435 = vmatpush1.msra.mxu0 %v6430
        %6436 = vmatprep.subr.mxu0 0.0
        %6437 = vmatpush1.msra.mxu0 %v6429
        %6438 = vmatprep.subr.mxu0 0.0
        %6439 = vmatpush1.msra.mxu0 %v6428
        %6440 = vmatprep.subr.mxu0 0.0
        %6441 = vmatpush1.msra.mxu0 %v6427
        %6442 = vmatprep.subr.mxu0 0.0
        %6443 = vmatpush1.msra.mxu0 %v6426
        %6444 = vmatprep.subr.mxu0 0.0
        %6445 = vmatpush1.msra.mxu0 %v6425
        %6446 = vmatprep.subr.mxu0 0.0
        %6447 = vmatpush1.msra.mxu0 %v6424
        %6448 = vmatprep.subr.mxu0 0.0
        %6449 = vmatpush1.msra.mxu0 %v6423
        %6450 = vmatprep.subr.mxu0 0.0
        %6451 = vmatpush1.msra.mxu0 %v6422
        %6452 = vmatprep.subr.mxu0 0.0
        %6453 = vmatpush1.msra.mxu0 %v6421
        %6454 = vmatprep.subr.mxu0 0.0
        %6455 = vmatpush1.msra.mxu0 %v6420
        %6456 = vmatprep.subr.mxu0 0.0
        %6457 = vmatpush1.msra.mxu0 %v6419
        %6458 = vmatprep.subr.mxu0 0.0
        %6459 = vmatpush1.msra.mxu0 %v6418
        %6460 = vmatprep.subr.mxu0 0.0
        %6461 = vmatpush1.msra.mxu0 %v6417
        %6462 = vmatprep.subr.mxu0 0.0
        %6463 = vmatpush1.msra.mxu0 %v6416
        %6464 = vmatprep.subr.mxu0 0.0
        %6465 = vmatpush2.msra.mxu0 0.0
        %6466 = vmatprep.subr.mxu0 0.0
        %6467 = vmatpush2.msra.mxu0 0.0
        %6468 = vmatprep.subr.mxu0 0.0
        %6469 = vmatpush2.msra.mxu0 0.0
        %6470 = vmatprep.subr.mxu0 0.0
        %6471 = vmatpush2.msra.mxu0 0.0
        %6472 = vmatprep.subr.mxu0 0.0
        %6473 = vmatpush2.msra.mxu0 0.0
        %6474 = vmatprep.subr.mxu0 0.0
        %6475 = vmatpush2.msra.mxu0 0.0
        %6476 = vmatprep.subr.mxu0 0.0
        %6477 = vmatpush2.msra.mxu0 0.0
        %6478 = vmatprep.subr.mxu0 0.0
        %6479 = vmatpush2.msra.mxu0 0.0
        %6480 = vmatprep.subr.mxu0 0.0
        %6481 = vmatpush2.msra.mxu0 0.0
        %6482 = vmatprep.subr.mxu0 0.0
        %6483 = vmatpush2.msra.mxu0 0.0
        %6484 = vmatprep.subr.mxu0 0.0
        %6485 = vmatpush2.msra.mxu0 0.0
        %6486 = vmatprep.subr.mxu0 0.0
        %6487 = vmatpush2.msra.mxu0 0.0
        %6488 = vmatprep.subr.mxu0 0.0
        %6489 = vmatpush2.msra.mxu0 0.0
        %6490 = vmatprep.subr.mxu0 0.0
        %6491 = vmatpush2.msra.mxu0 0.0
        %6492 = vmatprep.subr.mxu0 0.0
        %6493 = vmatpush2.msra.mxu0 0.0
        %6494 = vmatprep.subr.mxu0 0.0
        %6495 = vmatpush2.msra.mxu0 0.0
        %6496 = vmatprep.mubr.f32.mxu0 0.0
        %6497 = vmatmul.mubr.f32.gmra.mxu0 %v6338
        %v6498 = vpop.f32.mrf.mxu0
        %v6499 = vadd.f32 0.0, %v6498
        %v6500 = vpop.f32.mrf.mxu0
        %6501 = vmatprep.mubr.f32.mxu0 0.0
        %6502 = vmatmul.mubr.f32.gmra.mxu0 %v6343
        %v6503 = vpop.f32.mrf.mxu0
        %v6504 = vadd.f32 0.0, %v6503
        %v6505 = vpop.f32.mrf.mxu0
        %6506 = vmatprep.mubr.f32.mxu0 0.0
        %6507 = vmatmul.mubr.f32.gmra.mxu0 %v6348
        %v6508 = vpop.f32.mrf.mxu0
        %v6509 = vadd.f32 0.0, %v6508
        %v6510 = vpop.f32.mrf.mxu0
        %6511 = vmatprep.mubr.f32.mxu0 0.0
        %6512 = vmatmul.mubr.f32.gmra.mxu0 %v6353
        %v6513 = vpop.f32.mrf.mxu0
        %v6514 = vadd.f32 0.0, %v6513
        %v6515 = vpop.f32.mrf.mxu0
        %6516 = vmatprep.mubr.f32.mxu0 0.0
        %6517 = vmatmul.mubr.f32.gmra.mxu0 %v6358
        %v6518 = vpop.f32.mrf.mxu0
        %v6519 = vadd.f32 0.0, %v6518
        %v6520 = vpop.f32.mrf.mxu0
        %6521 = vmatprep.mubr.f32.mxu0 0.0
        %6522 = vmatmul.mubr.f32.gmra.mxu0 %v6363
        %v6523 = vpop.f32.mrf.mxu0
        %v6524 = vadd.f32 0.0, %v6523
        %v6525 = vpop.f32.mrf.mxu0
        %6526 = vmatprep.mubr.f32.mxu0 0.0
        %6527 = vmatmul.mubr.f32.gmra.mxu0 %v6368
        %v6528 = vpop.f32.mrf.mxu0
        %v6529 = vadd.f32 0.0, %v6528
        %v6530 = vpop.f32.mrf.mxu0
        %6531 = vmatprep.mubr.f32.mxu0 0.0
        %6532 = vmatmul.mubr.f32.gmra.mxu0 %v6373
        %v6533 = vpop.f32.mrf.mxu0
        %v6534 = vadd.f32 0.0, %v6533
        %v6535 = vpop.f32.mrf.mxu0
        %6536 = vmatprep.mubr.f32.mxu0 0.0
        %6537 = vmatmul.mubr.f32.gmra.mxu0 %v6378
        %v6538 = vpop.f32.mrf.mxu0
        %v6539 = vadd.f32 0.0, %v6538
        %v6540 = vpop.f32.mrf.mxu0
        %6541 = vmatprep.mubr.f32.mxu0 0.0
        %6542 = vmatmul.mubr.f32.gmra.mxu0 %v6383
        %v6543 = vpop.f32.mrf.mxu0
        %v6544 = vadd.f32 0.0, %v6543
        %v6545 = vpop.f32.mrf.mxu0
        %6546 = vmatprep.mubr.f32.mxu0 0.0
        %6547 = vmatmul.mubr.f32.gmra.mxu0 %v6388
        %v6548 = vpop.f32.mrf.mxu0
        %v6549 = vadd.f32 0.0, %v6548
        %v6550 = vpop.f32.mrf.mxu0
        %6551 = vmatprep.mubr.f32.mxu0 0.0
        %6552 = vmatmul.mubr.f32.gmra.mxu0 %v6393
        %v6553 = vpop.f32.mrf.mxu0
        %v6554 = vadd.f32 0.0, %v6553
        %v6555 = vpop.f32.mrf.mxu0
        %6556 = vmatprep.mubr.f32.mxu0 0.0
        %6557 = vmatmul.mubr.f32.gmra.mxu0 %v6398
        %v6558 = vpop.f32.mrf.mxu0
        %v6559 = vadd.f32 0.0, %v6558
        %v6560 = vpop.f32.mrf.mxu0
        %6561 = vmatprep.mubr.f32.mxu0 0.0
        %6562 = vmatmul.mubr.f32.gmra.mxu0 %v6403
        %v6563 = vpop.f32.mrf.mxu0
        %v6564 = vadd.f32 0.0, %v6563
        %v6565 = vpop.f32.mrf.mxu0
        %6566 = vmatprep.mubr.f32.mxu0 0.0
        %6567 = vmatmul.mubr.f32.gmra.mxu0 %v6408
        %v6568 = vpop.f32.mrf.mxu0
        %v6569 = vadd.f32 0.0, %v6568
        %v6570 = vpop.f32.mrf.mxu0
        %6571 = vmatprep.mubr.f32.mxu0 0.0
        %6572 = vmatmul.mubr.f32.gmra.mxu0 %v6413
        %v6573 = vpop.f32.mrf.mxu0
        %v6574 = vadd.f32 0.0, %v6573
        %v6575 = vpop.f32.mrf.mxu0
        %6576 = vdwg.mxu0
        %v6577 = vmax.f32 %v6499, 0.0
        %v6578 = vmax.f32 %v6504, 0.0
        %v6579 = vmax.f32 %v6509, 0.0
        %v6580 = vmax.f32 %v6514, 0.0
        %v6581 = vmax.f32 %v6519, 0.0
        %v6582 = vmax.f32 %v6524, 0.0
        %v6583 = vmax.f32 %v6529, 0.0
        %v6584 = vmax.f32 %v6534, 0.0
        %v6585 = vmax.f32 %v6539, 0.0
        %v6586 = vmax.f32 %v6544, 0.0
        %v6587 = vmax.f32 %v6549, 0.0
        %v6588 = vmax.f32 %v6554, 0.0
        %v6589 = vmax.f32 %v6559, 0.0
        %v6590 = vmax.f32 %v6564, 0.0
        %v6591 = vmax.f32 %v6569, 0.0
        %v6592 = vmax.f32 %v6574, 0.0
        %v6593 = vld [vmem:[#allocation5 + $0x3300] sm:$0xff]
        %v6594 = vld [vmem:[#allocation5 + $0x3318] sm:$0xff]
        %v6595 = vld [vmem:[#allocation5 + $0x3330] sm:$0xff]
        %v6596 = vld [vmem:[#allocation5 + $0x3348] sm:$0xff]
        %v6597 = vld [vmem:[#allocation5 + $0x3360] sm:$0xff]
        %v6598 = vld [vmem:[#allocation5 + $0x3378] sm:$0xff]
        %v6599 = vld [vmem:[#allocation5 + $0x3390] sm:$0xff]
        %v6600 = vld [vmem:[#allocation5 + $0x33a8] sm:$0xff]
        %v6601 = vld [vmem:[#allocation5 + $0x33c0] sm:$0xff]
        %v6602 = vld [vmem:[#allocation5 + $0x33d8] sm:$0xff]
        %v6603 = vld [vmem:[#allocation5 + $0x33f0] sm:$0xff]
        %v6604 = vld [vmem:[#allocation5 + $0x3408] sm:$0xff]
        %v6605 = vld [vmem:[#allocation5 + $0x3420] sm:$0xff]
        %v6606 = vld [vmem:[#allocation5 + $0x3438] sm:$0xff]
        %v6607 = vld [vmem:[#allocation5 + $0x3450] sm:$0xff]
        %v6608 = vld [vmem:[#allocation5 + $0x3468] sm:$0xff]
        %6609 = vmatprep.subr.mxu0 0.0
        %6610 = vmatpush1.msra.mxu0 %v6608
        %6611 = vmatprep.subr.mxu0 0.0
        %6612 = vmatpush1.msra.mxu0 %v6607
        %6613 = vmatprep.subr.mxu0 0.0
        %6614 = vmatpush1.msra.mxu0 %v6606
        %6615 = vmatprep.subr.mxu0 0.0
        %6616 = vmatpush1.msra.mxu0 %v6605
        %6617 = vmatprep.subr.mxu0 0.0
        %6618 = vmatpush1.msra.mxu0 %v6604
        %6619 = vmatprep.subr.mxu0 0.0
        %6620 = vmatpush1.msra.mxu0 %v6603
        %6621 = vmatprep.subr.mxu0 0.0
        %6622 = vmatpush1.msra.mxu0 %v6602
        %6623 = vmatprep.subr.mxu0 0.0
        %6624 = vmatpush1.msra.mxu0 %v6601
        %6625 = vmatprep.subr.mxu0 0.0
        %6626 = vmatpush1.msra.mxu0 %v6600
        %6627 = vmatprep.subr.mxu0 0.0
        %6628 = vmatpush1.msra.mxu0 %v6599
        %6629 = vmatprep.subr.mxu0 0.0
        %6630 = vmatpush1.msra.mxu0 %v6598
        %6631 = vmatprep.subr.mxu0 0.0
        %6632 = vmatpush1.msra.mxu0 %v6597
        %6633 = vmatprep.subr.mxu0 0.0
        %6634 = vmatpush1.msra.mxu0 %v6596
        %6635 = vmatprep.subr.mxu0 0.0
        %6636 = vmatpush1.msra.mxu0 %v6595
        %6637 = vmatprep.subr.mxu0 0.0
        %6638 = vmatpush1.msra.mxu0 %v6594
        %6639 = vmatprep.subr.mxu0 0.0
        %6640 = vmatpush1.msra.mxu0 %v6593
        %6641 = vmatprep.subr.mxu0 0.0
        %6642 = vmatpush2.msra.mxu0 0.0
        %6643 = vmatprep.subr.mxu0 0.0
        %6644 = vmatpush2.msra.mxu0 0.0
        %6645 = vmatprep.subr.mxu0 0.0
        %6646 = vmatpush2.msra.mxu0 0.0
        %6647 = vmatprep.subr.mxu0 0.0
        %6648 = vmatpush2.msra.mxu0 0.0
        %6649 = vmatprep.subr.mxu0 0.0
        %6650 = vmatpush2.msra.mxu0 0.0
        %6651 = vmatprep.subr.mxu0 0.0
        %6652 = vmatpush2.msra.mxu0 0.0
        %6653 = vmatprep.subr.mxu0 0.0
        %6654 = vmatpush2.msra.mxu0 0.0
        %6655 = vmatprep.subr.mxu0 0.0
        %6656 = vmatpush2.msra.mxu0 0.0
        %6657 = vmatprep.subr.mxu0 0.0
        %6658 = vmatpush2.msra.mxu0 0.0
        %6659 = vmatprep.subr.mxu0 0.0
        %6660 = vmatpush2.msra.mxu0 0.0
        %6661 = vmatprep.subr.mxu0 0.0
        %6662 = vmatpush2.msra.mxu0 0.0
        %6663 = vmatprep.subr.mxu0 0.0
        %6664 = vmatpush2.msra.mxu0 0.0
        %6665 = vmatprep.subr.mxu0 0.0
        %6666 = vmatpush2.msra.mxu0 0.0
        %6667 = vmatprep.subr.mxu0 0.0
        %6668 = vmatpush2.msra.mxu0 0.0
        %6669 = vmatprep.subr.mxu0 0.0
        %6670 = vmatpush2.msra.mxu0 0.0
        %6671 = vmatprep.subr.mxu0 0.0
        %6672 = vmatpush2.msra.mxu0 0.0
        %6673 = vmatprep.mubr.f32.mxu0 0.0
        %6674 = vmatmul.mubr.f32.gmra.mxu0 %v6577
        %v6675 = vpop.f32.mrf.mxu0
        %v6676 = vadd.f32 0.0, %v6675
        %v6677 = vpop.f32.mrf.mxu0
        %6678 = vmatprep.mubr.f32.mxu0 0.0
        %6679 = vmatmul.mubr.f32.gmra.mxu0 %v6578
        %v6680 = vpop.f32.mrf.mxu0
        %v6681 = vadd.f32 0.0, %v6680
        %v6682 = vpop.f32.mrf.mxu0
        %6683 = vmatprep.mubr.f32.mxu0 0.0
        %6684 = vmatmul.mubr.f32.gmra.mxu0 %v6579
        %v6685 = vpop.f32.mrf.mxu0
        %v6686 = vadd.f32 0.0, %v6685
        %v6687 = vpop.f32.mrf.mxu0
        %6688 = vmatprep.mubr.f32.mxu0 0.0
        %6689 = vmatmul.mubr.f32.gmra.mxu0 %v6580
        %v6690 = vpop.f32.mrf.mxu0
        %v6691 = vadd.f32 0.0, %v6690
        %v6692 = vpop.f32.mrf.mxu0
        %6693 = vmatprep.mubr.f32.mxu0 0.0
        %6694 = vmatmul.mubr.f32.gmra.mxu0 %v6581
        %v6695 = vpop.f32.mrf.mxu0
        %v6696 = vadd.f32 0.0, %v6695
        %v6697 = vpop.f32.mrf.mxu0
        %6698 = vmatprep.mubr.f32.mxu0 0.0
        %6699 = vmatmul.mubr.f32.gmra.mxu0 %v6582
        %v6700 = vpop.f32.mrf.mxu0
        %v6701 = vadd.f32 0.0, %v6700
        %v6702 = vpop.f32.mrf.mxu0
        %6703 = vmatprep.mubr.f32.mxu0 0.0
        %6704 = vmatmul.mubr.f32.gmra.mxu0 %v6583
        %v6705 = vpop.f32.mrf.mxu0
        %v6706 = vadd.f32 0.0, %v6705
        %v6707 = vpop.f32.mrf.mxu0
        %6708 = vmatprep.mubr.f32.mxu0 0.0
        %6709 = vmatmul.mubr.f32.gmra.mxu0 %v6584
        %v6710 = vpop.f32.mrf.mxu0
        %v6711 = vadd.f32 0.0, %v6710
        %v6712 = vpop.f32.mrf.mxu0
        %6713 = vmatprep.mubr.f32.mxu0 0.0
        %6714 = vmatmul.mubr.f32.gmra.mxu0 %v6585
        %v6715 = vpop.f32.mrf.mxu0
        %v6716 = vadd.f32 0.0, %v6715
        %v6717 = vpop.f32.mrf.mxu0
        %6718 = vmatprep.mubr.f32.mxu0 0.0
        %6719 = vmatmul.mubr.f32.gmra.mxu0 %v6586
        %v6720 = vpop.f32.mrf.mxu0
        %v6721 = vadd.f32 0.0, %v6720
        %v6722 = vpop.f32.mrf.mxu0
        %6723 = vmatprep.mubr.f32.mxu0 0.0
        %6724 = vmatmul.mubr.f32.gmra.mxu0 %v6587
        %v6725 = vpop.f32.mrf.mxu0
        %v6726 = vadd.f32 0.0, %v6725
        %v6727 = vpop.f32.mrf.mxu0
        %6728 = vmatprep.mubr.f32.mxu0 0.0
        %6729 = vmatmul.mubr.f32.gmra.mxu0 %v6588
        %v6730 = vpop.f32.mrf.mxu0
        %v6731 = vadd.f32 0.0, %v6730
        %v6732 = vpop.f32.mrf.mxu0
        %6733 = vmatprep.mubr.f32.mxu0 0.0
        %6734 = vmatmul.mubr.f32.gmra.mxu0 %v6589
        %v6735 = vpop.f32.mrf.mxu0
        %v6736 = vadd.f32 0.0, %v6735
        %v6737 = vpop.f32.mrf.mxu0
        %6738 = vmatprep.mubr.f32.mxu0 0.0
        %6739 = vmatmul.mubr.f32.gmra.mxu0 %v6590
        %v6740 = vpop.f32.mrf.mxu0
        %v6741 = vadd.f32 0.0, %v6740
        %v6742 = vpop.f32.mrf.mxu0
        %6743 = vmatprep.mubr.f32.mxu0 0.0
        %6744 = vmatmul.mubr.f32.gmra.mxu0 %v6591
        %v6745 = vpop.f32.mrf.mxu0
        %v6746 = vadd.f32 0.0, %v6745
        %v6747 = vpop.f32.mrf.mxu0
        %6748 = vmatprep.mubr.f32.mxu0 0.0
        %6749 = vmatmul.mubr.f32.gmra.mxu0 %v6592
        %v6750 = vpop.f32.mrf.mxu0
        %v6751 = vadd.f32 0.0, %v6750
        %v6752 = vpop.f32.mrf.mxu0
        %6753 = vdwg.mxu0
        %v6754 = vxor.u32 %v6676, 2147483648
        %v6755 = vxor.u32 %v6681, 2147483648
        %v6756 = vxor.u32 %v6686, 2147483648
        %v6757 = vxor.u32 %v6691, 2147483648
        %v6758 = vxor.u32 %v6696, 2147483648
        %v6759 = vxor.u32 %v6701, 2147483648
        %v6760 = vxor.u32 %v6706, 2147483648
        %v6761 = vxor.u32 %v6711, 2147483648
        %v6762 = vxor.u32 %v6716, 2147483648
        %v6763 = vxor.u32 %v6721, 2147483648
        %v6764 = vxor.u32 %v6726, 2147483648
        %v6765 = vxor.u32 %v6731, 2147483648
        %v6766 = vxor.u32 %v6736, 2147483648
        %v6767 = vxor.u32 %v6741, 2147483648
        %v6768 = vxor.u32 %v6746, 2147483648
        %v6769 = vxor.u32 %v6751, 2147483648
        %v6770 = vmul.f32 %v6754, 1.442695
        %v6771 = vpow.pop %v6770
        %v6772 = vmul.f32 %v6755, 1.442695
        %v6773 = vpow.pop %v6772
        %v6774 = vmul.f32 %v6756, 1.442695
        %v6775 = vpow.pop %v6774
        %v6776 = vmul.f32 %v6757, 1.442695
        %v6777 = vpow.pop %v6776
        %v6778 = vmul.f32 %v6758, 1.442695
        %v6779 = vpow.pop %v6778
        %v6780 = vmul.f32 %v6759, 1.442695
        %v6781 = vpow.pop %v6780
        %v6782 = vmul.f32 %v6760, 1.442695
        %v6783 = vpow.pop %v6782
        %v6784 = vmul.f32 %v6761, 1.442695
        %v6785 = vpow.pop %v6784
        %v6786 = vmul.f32 %v6762, 1.442695
        %v6787 = vpow.pop %v6786
        %v6788 = vmul.f32 %v6763, 1.442695
        %v6789 = vpow.pop %v6788
        %v6790 = vmul.f32 %v6764, 1.442695
        %v6791 = vpow.pop %v6790
        %v6792 = vmul.f32 %v6765, 1.442695
        %v6793 = vpow.pop %v6792
        %v6794 = vmul.f32 %v6766, 1.442695
        %v6795 = vpow.pop %v6794
        %v6796 = vmul.f32 %v6767, 1.442695
        %v6797 = vpow.pop %v6796
        %v6798 = vmul.f32 %v6768, 1.442695
        %v6799 = vpow.pop %v6798
        %v6800 = vmul.f32 %v6769, 1.442695
        %v6801 = vpow.pop %v6800
        %v6802 = vadd.f32 %v6771, 1.0
        %v6803 = vadd.f32 %v6773, 1.0
        %v6804 = vadd.f32 %v6775, 1.0
        %v6805 = vadd.f32 %v6777, 1.0
        %v6806 = vadd.f32 %v6779, 1.0
        %v6807 = vadd.f32 %v6781, 1.0
        %v6808 = vadd.f32 %v6783, 1.0
        %v6809 = vadd.f32 %v6785, 1.0
        %v6810 = vadd.f32 %v6787, 1.0
        %v6811 = vadd.f32 %v6789, 1.0
        %v6812 = vadd.f32 %v6791, 1.0
        %v6813 = vadd.f32 %v6793, 1.0
        %v6814 = vadd.f32 %v6795, 1.0
        %v6815 = vadd.f32 %v6797, 1.0
        %v6816 = vadd.f32 %v6799, 1.0
        %v6817 = vadd.f32 %v6801, 1.0
        %v6818 = vrcp.pop %v6802
        %v6819 = vmul.f32 1.0, %v6818
        %v6820 = vrcp.pop %v6803
        %v6821 = vmul.f32 1.0, %v6820
        %v6822 = vrcp.pop %v6804
        %v6823 = vmul.f32 1.0, %v6822
        %v6824 = vrcp.pop %v6805
        %v6825 = vmul.f32 1.0, %v6824
        %v6826 = vrcp.pop %v6806
        %v6827 = vmul.f32 1.0, %v6826
        %v6828 = vrcp.pop %v6807
        %v6829 = vmul.f32 1.0, %v6828
        %v6830 = vrcp.pop %v6808
        %v6831 = vmul.f32 1.0, %v6830
        %v6832 = vrcp.pop %v6809
        %v6833 = vmul.f32 1.0, %v6832
        %v6834 = vrcp.pop %v6810
        %v6835 = vmul.f32 1.0, %v6834
        %v6836 = vrcp.pop %v6811
        %v6837 = vmul.f32 1.0, %v6836
        %v6838 = vrcp.pop %v6812
        %v6839 = vmul.f32 1.0, %v6838
        %v6840 = vrcp.pop %v6813
        %v6841 = vmul.f32 1.0, %v6840
        %v6842 = vrcp.pop %v6814
        %v6843 = vmul.f32 1.0, %v6842
        %v6844 = vrcp.pop %v6815
        %v6845 = vmul.f32 1.0, %v6844
        %v6846 = vrcp.pop %v6816
        %v6847 = vmul.f32 1.0, %v6846
        %v6848 = vrcp.pop %v6817
        %v6849 = vmul.f32 1.0, %v6848
        %v6850 = vmul.f32 %v6338, %v6819
        %v6851 = vmul.f32 %v6343, %v6821
        %v6852 = vmul.f32 %v6348, %v6823
        %v6853 = vmul.f32 %v6353, %v6825
        %v6854 = vmul.f32 %v6358, %v6827
        %v6855 = vmul.f32 %v6363, %v6829
        %v6856 = vmul.f32 %v6368, %v6831
        %v6857 = vmul.f32 %v6373, %v6833
        %v6858 = vmul.f32 %v6378, %v6835
        %v6859 = vmul.f32 %v6383, %v6837
        %v6860 = vmul.f32 %v6388, %v6839
        %v6861 = vmul.f32 %v6393, %v6841
        %v6862 = vmul.f32 %v6398, %v6843
        %v6863 = vmul.f32 %v6403, %v6845
        %v6864 = vmul.f32 %v6408, %v6847
        %v6865 = vmul.f32 %v6413, %v6849
        %v6866 = vadd.f32 %v6850, %v324
        %v6867 = vadd.f32 %v6851, %v329
        %v6868 = vadd.f32 %v6852, %v334
        %v6869 = vadd.f32 %v6853, %v339
        %v6870 = vadd.f32 %v6854, %v344
        %v6871 = vadd.f32 %v6855, %v349
        %v6872 = vadd.f32 %v6856, %v354
        %v6873 = vadd.f32 %v6857, %v359
        %v6874 = vadd.f32 %v6858, %v364
        %v6875 = vadd.f32 %v6859, %v369
        %v6876 = vadd.f32 %v6860, %v374
        %v6877 = vadd.f32 %v6861, %v379
        %v6878 = vadd.f32 %v6862, %v384
        %v6879 = vadd.f32 %v6863, %v389
        %v6880 = vadd.f32 %v6864, %v394
        %v6881 = vadd.f32 %v6865, %v399
        %v6882 = vadd.f32 %v6866, %v2000
        %v6883 = vadd.f32 %v6867, %v2001
        %v6884 = vadd.f32 %v6868, %v2002
        %v6885 = vadd.f32 %v6869, %v2003
        %v6886 = vadd.f32 %v6870, %v2004
        %v6887 = vadd.f32 %v6871, %v2005
        %v6888 = vadd.f32 %v6872, %v2006
        %v6889 = vadd.f32 %v6873, %v2007
        %v6890 = vadd.f32 %v6874, %v2008
        %v6891 = vadd.f32 %v6875, %v2009
        %v6892 = vadd.f32 %v6876, %v2010
        %v6893 = vadd.f32 %v6877, %v2011
        %v6894 = vadd.f32 %v6878, %v2012
        %v6895 = vadd.f32 %v6879, %v2013
        %v6896 = vadd.f32 %v6880, %v2014
        %v6897 = vadd.f32 %v6881, %v2015
        %v6898 = vadd.f32 %v6882, %v3731
        %v6899 = vadd.f32 %v6883, %v3732
        %v6900 = vadd.f32 %v6884, %v3733
        %v6901 = vadd.f32 %v6885, %v3734
        %v6902 = vadd.f32 %v6886, %v3735
        %v6903 = vadd.f32 %v6887, %v3736
        %v6904 = vadd.f32 %v6888, %v3737
        %v6905 = vadd.f32 %v6889, %v3738
        %v6906 = vadd.f32 %v6890, %v3739
        %v6907 = vadd.f32 %v6891, %v3740
        %v6908 = vadd.f32 %v6892, %v3741
        %v6909 = vadd.f32 %v6893, %v3742
        %v6910 = vadd.f32 %v6894, %v3743
        %v6911 = vadd.f32 %v6895, %v3744
        %v6912 = vadd.f32 %v6896, %v3745
        %v6913 = vadd.f32 %v6897, %v3746
        %v6914 = vadd.f32 %v6898, %v5595
        %v6915 = vadd.f32 %v6899, %v5596
        %v6916 = vadd.f32 %v6900, %v5597
        %v6917 = vadd.f32 %v6901, %v5598
        %v6918 = vadd.f32 %v6902, %v5599
        %v6919 = vadd.f32 %v6903, %v5600
        %v6920 = vadd.f32 %v6904, %v5601
        %v6921 = vadd.f32 %v6905, %v5602
        %v6922 = vadd.f32 %v6906, %v5603
        %v6923 = vadd.f32 %v6907, %v5604
        %v6924 = vadd.f32 %v6908, %v5605
        %v6925 = vadd.f32 %v6909, %v5606
        %v6926 = vadd.f32 %v6910, %v5607
        %v6927 = vadd.f32 %v6911, %v5608
        %v6928 = vadd.f32 %v6912, %v5609
        %v6929 = vadd.f32 %v6913, %v5610
        %v6930 = vmax.f32 %v6914, 0.0
        %v6931 = vmax.f32 %v6915, 0.0
        %v6932 = vmax.f32 %v6916, 0.0
        %v6933 = vmax.f32 %v6917, 0.0
        %v6934 = vmax.f32 %v6918, 0.0
        %v6935 = vmax.f32 %v6919, 0.0
        %v6936 = vmax.f32 %v6920, 0.0
        %v6937 = vmax.f32 %v6921, 0.0
        %v6938 = vmax.f32 %v6922, 0.0
        %v6939 = vmax.f32 %v6923, 0.0
        %v6940 = vmax.f32 %v6924, 0.0
        %v6941 = vmax.f32 %v6925, 0.0
        %v6942 = vmax.f32 %v6926, 0.0
        %v6943 = vmax.f32 %v6927, 0.0
        %v6944 = vmax.f32 %v6928, 0.0
        %v6945 = vmax.f32 %v6929, 0.0
        %v6946 = vld [vmem:[#allocation5 + $0x3480] sm:$0xff]
        %v6947 = vld [vmem:[#allocation5 + $0x3498] sm:$0xff]
        %v6948 = vld [vmem:[#allocation5 + $0x34b0] sm:$0xff]
        %v6949 = vld [vmem:[#allocation5 + $0x34c8] sm:$0xff]
        %v6950 = vld [vmem:[#allocation5 + $0x34e0] sm:$0xff]
        %v6951 = vld [vmem:[#allocation5 + $0x34f8] sm:$0xff]
        %v6952 = vld [vmem:[#allocation5 + $0x3510] sm:$0xff]
        %v6953 = vld [vmem:[#allocation5 + $0x3528] sm:$0xff]
        %v6954 = vld [vmem:[#allocation5 + $0x3540] sm:$0xff]
        %v6955 = vld [vmem:[#allocation5 + $0x3558] sm:$0xff]
        %v6956 = vld [vmem:[#allocation5 + $0x3570] sm:$0xff]
        %v6957 = vld [vmem:[#allocation5 + $0x3588] sm:$0xff]
        %v6958 = vld [vmem:[#allocation5 + $0x35a0] sm:$0xff]
        %v6959 = vld [vmem:[#allocation5 + $0x35b8] sm:$0xff]
        %v6960 = vld [vmem:[#allocation5 + $0x35d0] sm:$0xff]
        %v6961 = vld [vmem:[#allocation5 + $0x35e8] sm:$0xff]
        %v6962 = vld [vmem:[#allocation7 + $0x33] sm:$0x1]
        %v6964 = vlaneseq
        %v6965 = vshrl.u32 %v6964, 7
        %v6966 = vsub.s32 0, %v6965
        %v6967 = vrot.slane %v6962, %v6966
        %6969 = vmatprep.subr.mxu0 0.0
        %6970 = vmatpush1.msra.mxu0 %v6961
        %6971 = vmatprep.subr.mxu0 0.0
        %6972 = vmatpush1.msra.mxu0 %v6960
        %6973 = vmatprep.subr.mxu0 0.0
        %6974 = vmatpush1.msra.mxu0 %v6959
        %6975 = vmatprep.subr.mxu0 0.0
        %6976 = vmatpush1.msra.mxu0 %v6958
        %6977 = vmatprep.subr.mxu0 0.0
        %6978 = vmatpush1.msra.mxu0 %v6957
        %6979 = vmatprep.subr.mxu0 0.0
        %6980 = vmatpush1.msra.mxu0 %v6956
        %6981 = vmatprep.subr.mxu0 0.0
        %6982 = vmatpush1.msra.mxu0 %v6955
        %6983 = vmatprep.subr.mxu0 0.0
        %6984 = vmatpush1.msra.mxu0 %v6954
        %6985 = vmatprep.subr.mxu0 0.0
        %6986 = vmatpush1.msra.mxu0 %v6953
        %6987 = vmatprep.subr.mxu0 0.0
        %6988 = vmatpush1.msra.mxu0 %v6952
        %6989 = vmatprep.subr.mxu0 0.0
        %6990 = vmatpush1.msra.mxu0 %v6951
        %6991 = vmatprep.subr.mxu0 0.0
        %6992 = vmatpush1.msra.mxu0 %v6950
        %6993 = vmatprep.subr.mxu0 0.0
        %6994 = vmatpush1.msra.mxu0 %v6949
        %6995 = vmatprep.subr.mxu0 0.0
        %6996 = vmatpush1.msra.mxu0 %v6948
        %6997 = vmatprep.subr.mxu0 0.0
        %6998 = vmatpush1.msra.mxu0 %v6947
        %6999 = vmatprep.subr.mxu0 0.0
        %7000 = vmatpush1.msra.mxu0 %v6946
        %7001 = vmatprep.subr.mxu0 0.0
        %7002 = vmatpush2.msra.mxu0 0.0
        %7003 = vmatprep.subr.mxu0 0.0
        %7004 = vmatpush2.msra.mxu0 0.0
        %7005 = vmatprep.subr.mxu0 0.0
        %7006 = vmatpush2.msra.mxu0 0.0
        %7007 = vmatprep.subr.mxu0 0.0
        %7008 = vmatpush2.msra.mxu0 0.0
        %7009 = vmatprep.subr.mxu0 0.0
        %7010 = vmatpush2.msra.mxu0 0.0
        %7011 = vmatprep.subr.mxu0 0.0
        %7012 = vmatpush2.msra.mxu0 0.0
        %7013 = vmatprep.subr.mxu0 0.0
        %7014 = vmatpush2.msra.mxu0 0.0
        %7015 = vmatprep.subr.mxu0 0.0
        %7016 = vmatpush2.msra.mxu0 0.0
        %7017 = vmatprep.subr.mxu0 0.0
        %7018 = vmatpush2.msra.mxu0 0.0
        %7019 = vmatprep.subr.mxu0 0.0
        %7020 = vmatpush2.msra.mxu0 0.0
        %7021 = vmatprep.subr.mxu0 0.0
        %7022 = vmatpush2.msra.mxu0 0.0
        %7023 = vmatprep.subr.mxu0 0.0
        %7024 = vmatpush2.msra.mxu0 0.0
        %7025 = vmatprep.subr.mxu0 0.0
        %7026 = vmatpush2.msra.mxu0 0.0
        %7027 = vmatprep.subr.mxu0 0.0
        %7028 = vmatpush2.msra.mxu0 0.0
        %7029 = vmatprep.subr.mxu0 0.0
        %7030 = vmatpush2.msra.mxu0 0.0
        %7031 = vmatprep.subr.mxu0 0.0
        %7032 = vmatpush2.msra.mxu0 0.0
        %7033 = vmatprep.mubr.f32.mxu0 0.0
        %7034 = vmatmul.mubr.f32.gmra.mxu0 %v6930
        %v7035 = vpop.f32.mrf.mxu0
        %v7036 = vadd.f32 %v6967, %v7035
        %v7037 = vpop.f32.mrf.mxu0
        %7038 = vmatprep.mubr.f32.mxu0 0.0
        %7039 = vmatmul.mubr.f32.gmra.mxu0 %v6931
        %v7040 = vpop.f32.mrf.mxu0
        %v7041 = vadd.f32 %v6967, %v7040
        %v7042 = vpop.f32.mrf.mxu0
        %7043 = vmatprep.mubr.f32.mxu0 0.0
        %7044 = vmatmul.mubr.f32.gmra.mxu0 %v6932
        %v7045 = vpop.f32.mrf.mxu0
        %v7046 = vadd.f32 %v6967, %v7045
        %v7047 = vpop.f32.mrf.mxu0
        %7048 = vmatprep.mubr.f32.mxu0 0.0
        %7049 = vmatmul.mubr.f32.gmra.mxu0 %v6933
        %v7050 = vpop.f32.mrf.mxu0
        %v7051 = vadd.f32 %v6967, %v7050
        %v7052 = vpop.f32.mrf.mxu0
        %7053 = vmatprep.mubr.f32.mxu0 0.0
        %7054 = vmatmul.mubr.f32.gmra.mxu0 %v6934
        %v7055 = vpop.f32.mrf.mxu0
        %v7056 = vadd.f32 %v6967, %v7055
        %v7057 = vpop.f32.mrf.mxu0
        %7058 = vmatprep.mubr.f32.mxu0 0.0
        %7059 = vmatmul.mubr.f32.gmra.mxu0 %v6935
        %v7060 = vpop.f32.mrf.mxu0
        %v7061 = vadd.f32 %v6967, %v7060
        %v7062 = vpop.f32.mrf.mxu0
        %7063 = vmatprep.mubr.f32.mxu0 0.0
        %7064 = vmatmul.mubr.f32.gmra.mxu0 %v6936
        %v7065 = vpop.f32.mrf.mxu0
        %v7066 = vadd.f32 %v6967, %v7065
        %v7067 = vpop.f32.mrf.mxu0
        %7068 = vmatprep.mubr.f32.mxu0 0.0
        %7069 = vmatmul.mubr.f32.gmra.mxu0 %v6937
        %v7070 = vpop.f32.mrf.mxu0
        %v7071 = vadd.f32 %v6967, %v7070
        %v7072 = vpop.f32.mrf.mxu0
        %7073 = vmatprep.mubr.f32.mxu0 0.0
        %7074 = vmatmul.mubr.f32.gmra.mxu0 %v6938
        %v7075 = vpop.f32.mrf.mxu0
        %v7076 = vadd.f32 %v6967, %v7075
        %v7077 = vpop.f32.mrf.mxu0
        %7078 = vmatprep.mubr.f32.mxu0 0.0
        %7079 = vmatmul.mubr.f32.gmra.mxu0 %v6939
        %v7080 = vpop.f32.mrf.mxu0
        %v7081 = vadd.f32 %v6967, %v7080
        %v7082 = vpop.f32.mrf.mxu0
        %7083 = vmatprep.mubr.f32.mxu0 0.0
        %7084 = vmatmul.mubr.f32.gmra.mxu0 %v6940
        %v7085 = vpop.f32.mrf.mxu0
        %v7086 = vadd.f32 %v6967, %v7085
        %v7087 = vpop.f32.mrf.mxu0
        %7088 = vmatprep.mubr.f32.mxu0 0.0
        %7089 = vmatmul.mubr.f32.gmra.mxu0 %v6941
        %v7090 = vpop.f32.mrf.mxu0
        %v7091 = vadd.f32 %v6967, %v7090
        %v7092 = vpop.f32.mrf.mxu0
        %7093 = vmatprep.mubr.f32.mxu0 0.0
        %7094 = vmatmul.mubr.f32.gmra.mxu0 %v6942
        %v7095 = vpop.f32.mrf.mxu0
        %v7096 = vadd.f32 %v6967, %v7095
        %v7097 = vpop.f32.mrf.mxu0
        %7098 = vmatprep.mubr.f32.mxu0 0.0
        %7099 = vmatmul.mubr.f32.gmra.mxu0 %v6943
        %v7100 = vpop.f32.mrf.mxu0
        %v7101 = vadd.f32 %v6967, %v7100
        %v7102 = vpop.f32.mrf.mxu0
        %7103 = vmatprep.mubr.f32.mxu0 0.0
        %7104 = vmatmul.mubr.f32.gmra.mxu0 %v6944
        %v7105 = vpop.f32.mrf.mxu0
        %v7106 = vadd.f32 %v6967, %v7105
        %v7107 = vpop.f32.mrf.mxu0
        %7108 = vmatprep.mubr.f32.mxu0 0.0
        %7109 = vmatmul.mubr.f32.gmra.mxu0 %v6945
        %v7110 = vpop.f32.mrf.mxu0
        %v7111 = vadd.f32 %v6967, %v7110
        %v7112 = vpop.f32.mrf.mxu0
        %7113 = vdwg.mxu0
        %v7114 = vmax.f32 %v7036, 0.0
        %v7115 = vmax.f32 %v7041, 0.0
        %v7116 = vmax.f32 %v7046, 0.0
        %v7117 = vmax.f32 %v7051, 0.0
        %v7118 = vmax.f32 %v7056, 0.0
        %v7119 = vmax.f32 %v7061, 0.0
        %v7120 = vmax.f32 %v7066, 0.0
        %v7121 = vmax.f32 %v7071, 0.0
        %v7122 = vmax.f32 %v7076, 0.0
        %v7123 = vmax.f32 %v7081, 0.0
        %v7124 = vmax.f32 %v7086, 0.0
        %v7125 = vmax.f32 %v7091, 0.0
        %v7126 = vmax.f32 %v7096, 0.0
        %v7127 = vmax.f32 %v7101, 0.0
        %v7128 = vmax.f32 %v7106, 0.0
        %v7129 = vmax.f32 %v7111, 0.0
        %v7130 = vld [vmem:[#allocation5 + $0x3600] sm:$0xff]
        %v7131 = vld [vmem:[#allocation5 + $0x3608] sm:$0xff]
        %v7132 = vld [vmem:[#allocation5 + $0x3618] sm:$0xff]
        %v7133 = vld [vmem:[#allocation5 + $0x3620] sm:$0xff]
        %v7134 = vld [vmem:[#allocation5 + $0x3630] sm:$0xff]
        %v7135 = vld [vmem:[#allocation5 + $0x3638] sm:$0xff]
        %v7136 = vld [vmem:[#allocation5 + $0x3648] sm:$0xff]
        %v7137 = vld [vmem:[#allocation5 + $0x3650] sm:$0xff]
        %v7138 = vld [vmem:[#allocation5 + $0x3660] sm:$0xff]
        %v7139 = vld [vmem:[#allocation5 + $0x3668] sm:$0xff]
        %v7140 = vld [vmem:[#allocation5 + $0x3678] sm:$0xff]
        %v7141 = vld [vmem:[#allocation5 + $0x3680] sm:$0xff]
        %v7142 = vld [vmem:[#allocation5 + $0x3690] sm:$0xff]
        %v7143 = vld [vmem:[#allocation5 + $0x3698] sm:$0xff]
        %v7144 = vld [vmem:[#allocation5 + $0x36a8] sm:$0xff]
        %v7145 = vld [vmem:[#allocation5 + $0x36b0] sm:$0xff]
        %v7146 = vld [vmem:[#allocation5 + $0x36c0] sm:$0xff]
        %v7147 = vld [vmem:[#allocation5 + $0x36c8] sm:$0xff]
        %v7148 = vld [vmem:[#allocation5 + $0x36d8] sm:$0xff]
        %v7149 = vld [vmem:[#allocation5 + $0x36e0] sm:$0xff]
        %v7150 = vld [vmem:[#allocation5 + $0x36f0] sm:$0xff]
        %v7151 = vld [vmem:[#allocation5 + $0x36f8] sm:$0xff]
        %v7152 = vld [vmem:[#allocation5 + $0x3708] sm:$0xff]
        %v7153 = vld [vmem:[#allocation5 + $0x3710] sm:$0xff]
        %v7154 = vld [vmem:[#allocation5 + $0x3720] sm:$0xff]
        %v7155 = vld [vmem:[#allocation5 + $0x3728] sm:$0xff]
        %v7156 = vld [vmem:[#allocation5 + $0x3738] sm:$0xff]
        %v7157 = vld [vmem:[#allocation5 + $0x3740] sm:$0xff]
        %v7158 = vld [vmem:[#allocation5 + $0x3750] sm:$0xff]
        %v7159 = vld [vmem:[#allocation5 + $0x3758] sm:$0xff]
        %v7160 = vld [vmem:[#allocation5 + $0x3768] sm:$0xff]
        %v7161 = vld [vmem:[#allocation5 + $0x3770] sm:$0xff]
        %v7162 = vld [vmem:[#allocation7 + $0x36] sm:$0x3]
        %v7164 = vlaneseq
        %v7165 = vshrl.u32 %v7164, 7
        %v7166 = vsub.s32 0, %v7165
        %v7167 = vrot.slane %v7162, %v7166
        %v7168 = vlaneseq
        %v7169 = vshrl.u32 %v7168, 7
        %v7170 = vsub.s32 1, %v7169
        %v7171 = vrot.slane %v7162, %v7170
        %7174 = vmatprep.subr.mxu0 %v7161
        %7175 = vmatpush1.msra.mxu0 %v7160
        %7176 = vmatprep.subr.mxu0 %v7159
        %7177 = vmatpush1.msra.mxu0 %v7158
        %7178 = vmatprep.subr.mxu0 %v7157
        %7179 = vmatpush1.msra.mxu0 %v7156
        %7180 = vmatprep.subr.mxu0 %v7155
        %7181 = vmatpush1.msra.mxu0 %v7154
        %7182 = vmatprep.subr.mxu0 %v7153
        %7183 = vmatpush1.msra.mxu0 %v7152
        %7184 = vmatprep.subr.mxu0 %v7151
        %7185 = vmatpush1.msra.mxu0 %v7150
        %7186 = vmatprep.subr.mxu0 %v7149
        %7187 = vmatpush1.msra.mxu0 %v7148
        %7188 = vmatprep.subr.mxu0 %v7147
        %7189 = vmatpush1.msra.mxu0 %v7146
        %7190 = vmatprep.subr.mxu0 %v7145
        %7191 = vmatpush1.msra.mxu0 %v7144
        %7192 = vmatprep.subr.mxu0 %v7143
        %7193 = vmatpush1.msra.mxu0 %v7142
        %7194 = vmatprep.subr.mxu0 %v7141
        %7195 = vmatpush1.msra.mxu0 %v7140
        %7196 = vmatprep.subr.mxu0 %v7139
        %7197 = vmatpush1.msra.mxu0 %v7138
        %7198 = vmatprep.subr.mxu0 %v7137
        %7199 = vmatpush1.msra.mxu0 %v7136
        %7200 = vmatprep.subr.mxu0 %v7135
        %7201 = vmatpush1.msra.mxu0 %v7134
        %7202 = vmatprep.subr.mxu0 %v7133
        %7203 = vmatpush1.msra.mxu0 %v7132
        %7204 = vmatprep.subr.mxu0 %v7131
        %7205 = vmatpush1.msra.mxu0 %v7130
        %7206 = vmatprep.subr.mxu0 0.0
        %7207 = vmatpush2.msra.mxu0 0.0
        %7208 = vmatprep.subr.mxu0 0.0
        %7209 = vmatpush2.msra.mxu0 0.0
        %7210 = vmatprep.subr.mxu0 0.0
        %7211 = vmatpush2.msra.mxu0 0.0
        %7212 = vmatprep.subr.mxu0 0.0
        %7213 = vmatpush2.msra.mxu0 0.0
        %7214 = vmatprep.subr.mxu0 0.0
        %7215 = vmatpush2.msra.mxu0 0.0
        %7216 = vmatprep.subr.mxu0 0.0
        %7217 = vmatpush2.msra.mxu0 0.0
        %7218 = vmatprep.subr.mxu0 0.0
        %7219 = vmatpush2.msra.mxu0 0.0
        %7220 = vmatprep.subr.mxu0 0.0
        %7221 = vmatpush2.msra.mxu0 0.0
        %7222 = vmatprep.subr.mxu0 0.0
        %7223 = vmatpush2.msra.mxu0 0.0
        %7224 = vmatprep.subr.mxu0 0.0
        %7225 = vmatpush2.msra.mxu0 0.0
        %7226 = vmatprep.subr.mxu0 0.0
        %7227 = vmatpush2.msra.mxu0 0.0
        %7228 = vmatprep.subr.mxu0 0.0
        %7229 = vmatpush2.msra.mxu0 0.0
        %7230 = vmatprep.subr.mxu0 0.0
        %7231 = vmatpush2.msra.mxu0 0.0
        %7232 = vmatprep.subr.mxu0 0.0
        %7233 = vmatpush2.msra.mxu0 0.0
        %7234 = vmatprep.subr.mxu0 0.0
        %7235 = vmatpush2.msra.mxu0 0.0
        %7236 = vmatprep.subr.mxu0 0.0
        %7237 = vmatpush2.msra.mxu0 0.0
        %7238 = vmatprep.mubr.f32.mxu0 0.0
        %7239 = vmatmul.mubr.f32.gmra.mxu0 %v7114
        %v7240 = vpop.f32.mrf.mxu0
        %v7241 = vadd.f32 %v7167, %v7240
        %v7242 = vpop.f32.mrf.mxu0
        %v7243 = vadd.f32 %v7171, %v7242
        %7244 = vmatprep.mubr.f32.mxu0 0.0
        %7245 = vmatmul.mubr.f32.gmra.mxu0 %v7115
        %v7246 = vpop.f32.mrf.mxu0
        %v7247 = vadd.f32 %v7167, %v7246
        %v7248 = vpop.f32.mrf.mxu0
        %v7249 = vadd.f32 %v7171, %v7248
        %7250 = vmatprep.mubr.f32.mxu0 0.0
        %7251 = vmatmul.mubr.f32.gmra.mxu0 %v7116
        %v7252 = vpop.f32.mrf.mxu0
        %v7253 = vadd.f32 %v7167, %v7252
        %v7254 = vpop.f32.mrf.mxu0
        %v7255 = vadd.f32 %v7171, %v7254
        %7256 = vmatprep.mubr.f32.mxu0 0.0
        %7257 = vmatmul.mubr.f32.gmra.mxu0 %v7117
        %v7258 = vpop.f32.mrf.mxu0
        %v7259 = vadd.f32 %v7167, %v7258
        %v7260 = vpop.f32.mrf.mxu0
        %v7261 = vadd.f32 %v7171, %v7260
        %7262 = vmatprep.mubr.f32.mxu0 0.0
        %7263 = vmatmul.mubr.f32.gmra.mxu0 %v7118
        %v7264 = vpop.f32.mrf.mxu0
        %v7265 = vadd.f32 %v7167, %v7264
        %v7266 = vpop.f32.mrf.mxu0
        %v7267 = vadd.f32 %v7171, %v7266
        %7268 = vmatprep.mubr.f32.mxu0 0.0
        %7269 = vmatmul.mubr.f32.gmra.mxu0 %v7119
        %v7270 = vpop.f32.mrf.mxu0
        %v7271 = vadd.f32 %v7167, %v7270
        %v7272 = vpop.f32.mrf.mxu0
        %v7273 = vadd.f32 %v7171, %v7272
        %7274 = vmatprep.mubr.f32.mxu0 0.0
        %7275 = vmatmul.mubr.f32.gmra.mxu0 %v7120
        %v7276 = vpop.f32.mrf.mxu0
        %v7277 = vadd.f32 %v7167, %v7276
        %v7278 = vpop.f32.mrf.mxu0
        %v7279 = vadd.f32 %v7171, %v7278
        %7280 = vmatprep.mubr.f32.mxu0 0.0
        %7281 = vmatmul.mubr.f32.gmra.mxu0 %v7121
        %v7282 = vpop.f32.mrf.mxu0
        %v7283 = vadd.f32 %v7167, %v7282
        %v7284 = vpop.f32.mrf.mxu0
        %v7285 = vadd.f32 %v7171, %v7284
        %7286 = vmatprep.mubr.f32.mxu0 0.0
        %7287 = vmatmul.mubr.f32.gmra.mxu0 %v7122
        %v7288 = vpop.f32.mrf.mxu0
        %v7289 = vadd.f32 %v7167, %v7288
        %v7290 = vpop.f32.mrf.mxu0
        %v7291 = vadd.f32 %v7171, %v7290
        %7292 = vmatprep.mubr.f32.mxu0 0.0
        %7293 = vmatmul.mubr.f32.gmra.mxu0 %v7123
        %v7294 = vpop.f32.mrf.mxu0
        %v7295 = vadd.f32 %v7167, %v7294
        %v7296 = vpop.f32.mrf.mxu0
        %v7297 = vadd.f32 %v7171, %v7296
        %7298 = vmatprep.mubr.f32.mxu0 0.0
        %7299 = vmatmul.mubr.f32.gmra.mxu0 %v7124
        %v7300 = vpop.f32.mrf.mxu0
        %v7301 = vadd.f32 %v7167, %v7300
        %v7302 = vpop.f32.mrf.mxu0
        %v7303 = vadd.f32 %v7171, %v7302
        %7304 = vmatprep.mubr.f32.mxu0 0.0
        %7305 = vmatmul.mubr.f32.gmra.mxu0 %v7125
        %v7306 = vpop.f32.mrf.mxu0
        %v7307 = vadd.f32 %v7167, %v7306
        %v7308 = vpop.f32.mrf.mxu0
        %v7309 = vadd.f32 %v7171, %v7308
        %7310 = vmatprep.mubr.f32.mxu0 0.0
        %7311 = vmatmul.mubr.f32.gmra.mxu0 %v7126
        %v7312 = vpop.f32.mrf.mxu0
        %v7313 = vadd.f32 %v7167, %v7312
        %v7314 = vpop.f32.mrf.mxu0
        %v7315 = vadd.f32 %v7171, %v7314
        %7316 = vmatprep.mubr.f32.mxu0 0.0
        %7317 = vmatmul.mubr.f32.gmra.mxu0 %v7127
        %v7318 = vpop.f32.mrf.mxu0
        %v7319 = vadd.f32 %v7167, %v7318
        %v7320 = vpop.f32.mrf.mxu0
        %v7321 = vadd.f32 %v7171, %v7320
        %7322 = vmatprep.mubr.f32.mxu0 0.0
        %7323 = vmatmul.mubr.f32.gmra.mxu0 %v7128
        %v7324 = vpop.f32.mrf.mxu0
        %v7325 = vadd.f32 %v7167, %v7324
        %v7326 = vpop.f32.mrf.mxu0
        %v7327 = vadd.f32 %v7171, %v7326
        %7328 = vmatprep.mubr.f32.mxu0 0.0
        %7329 = vmatmul.mubr.f32.gmra.mxu0 %v7129
        %v7330 = vpop.f32.mrf.mxu0
        %v7331 = vadd.f32 %v7167, %v7330
        %v7332 = vpop.f32.mrf.mxu0
        %v7333 = vadd.f32 %v7171, %v7332
        %7334 = vdwg.mxu0
        %v7335 = vmax.f32 %v7241, 0.0
        %v7336 = vmax.f32 %v7243, 0.0
        %v7337 = vmax.f32 %v7247, 0.0
        %v7338 = vmax.f32 %v7249, 0.0
        %v7339 = vmax.f32 %v7253, 0.0
        %v7340 = vmax.f32 %v7255, 0.0
        %v7341 = vmax.f32 %v7259, 0.0
        %v7342 = vmax.f32 %v7261, 0.0
        %v7343 = vmax.f32 %v7265, 0.0
        %v7344 = vmax.f32 %v7267, 0.0
        %v7345 = vmax.f32 %v7271, 0.0
        %v7346 = vmax.f32 %v7273, 0.0
        %v7347 = vmax.f32 %v7277, 0.0
        %v7348 = vmax.f32 %v7279, 0.0
        %v7349 = vmax.f32 %v7283, 0.0
        %v7350 = vmax.f32 %v7285, 0.0
        %v7351 = vmax.f32 %v7289, 0.0
        %v7352 = vmax.f32 %v7291, 0.0
        %v7353 = vmax.f32 %v7295, 0.0
        %v7354 = vmax.f32 %v7297, 0.0
        %v7355 = vmax.f32 %v7301, 0.0
        %v7356 = vmax.f32 %v7303, 0.0
        %v7357 = vmax.f32 %v7307, 0.0
        %v7358 = vmax.f32 %v7309, 0.0
        %v7359 = vmax.f32 %v7313, 0.0
        %v7360 = vmax.f32 %v7315, 0.0
        %v7361 = vmax.f32 %v7319, 0.0
        %v7362 = vmax.f32 %v7321, 0.0
        %v7363 = vmax.f32 %v7325, 0.0
        %v7364 = vmax.f32 %v7327, 0.0
        %v7365 = vmax.f32 %v7331, 0.0
        %v7366 = vmax.f32 %v7333, 0.0
        %v7367 = vld [vmem:[#allocation5 + $0x3780] sm:$0xff]
        %v7368 = vld [vmem:[#allocation5 + $0x3788] sm:$0xff]
        %v7369 = vld [vmem:[#allocation5 + $0x3798] sm:$0xff]
        %v7370 = vld [vmem:[#allocation5 + $0x37a0] sm:$0xff]
        %v7371 = vld [vmem:[#allocation5 + $0x37b0] sm:$0xff]
        %v7372 = vld [vmem:[#allocation5 + $0x37b8] sm:$0xff]
        %v7373 = vld [vmem:[#allocation5 + $0x37c8] sm:$0xff]
        %v7374 = vld [vmem:[#allocation5 + $0x37d0] sm:$0xff]
        %v7375 = vld [vmem:[#allocation5 + $0x37e0] sm:$0xff]
        %v7376 = vld [vmem:[#allocation5 + $0x37e8] sm:$0xff]
        %v7377 = vld [vmem:[#allocation5 + $0x37f8] sm:$0xff]
        %v7378 = vld [vmem:[#allocation5 + $0x3800] sm:$0xff]
        %v7379 = vld [vmem:[#allocation5 + $0x3810] sm:$0xff]
        %v7380 = vld [vmem:[#allocation5 + $0x3818] sm:$0xff]
        %v7381 = vld [vmem:[#allocation5 + $0x3828] sm:$0xff]
        %v7382 = vld [vmem:[#allocation5 + $0x3830] sm:$0xff]
        %v7383 = vld [vmem:[#allocation5 + $0x3840] sm:$0xff]
        %v7384 = vld [vmem:[#allocation5 + $0x3848] sm:$0xff]
        %v7385 = vld [vmem:[#allocation5 + $0x3858] sm:$0xff]
        %v7386 = vld [vmem:[#allocation5 + $0x3860] sm:$0xff]
        %v7387 = vld [vmem:[#allocation5 + $0x3870] sm:$0xff]
        %v7388 = vld [vmem:[#allocation5 + $0x3878] sm:$0xff]
        %v7389 = vld [vmem:[#allocation5 + $0x3888] sm:$0xff]
        %v7390 = vld [vmem:[#allocation5 + $0x3890] sm:$0xff]
        %v7391 = vld [vmem:[#allocation5 + $0x38a0] sm:$0xff]
        %v7392 = vld [vmem:[#allocation5 + $0x38a8] sm:$0xff]
        %v7393 = vld [vmem:[#allocation5 + $0x38b8] sm:$0xff]
        %v7394 = vld [vmem:[#allocation5 + $0x38c0] sm:$0xff]
        %v7395 = vld [vmem:[#allocation5 + $0x38d0] sm:$0xff]
        %v7396 = vld [vmem:[#allocation5 + $0x38d8] sm:$0xff]
        %v7397 = vld [vmem:[#allocation5 + $0x38e8] sm:$0xff]
        %v7398 = vld [vmem:[#allocation5 + $0x38f0] sm:$0xff]
        %v7399 = vld [vmem:[#allocation5 + $0x3900] sm:$0xff]
        %v7400 = vld [vmem:[#allocation5 + $0x3908] sm:$0xff]
        %v7401 = vld [vmem:[#allocation5 + $0x3918] sm:$0xff]
        %v7402 = vld [vmem:[#allocation5 + $0x3920] sm:$0xff]
        %v7403 = vld [vmem:[#allocation5 + $0x3930] sm:$0xff]
        %v7404 = vld [vmem:[#allocation5 + $0x3938] sm:$0xff]
        %v7405 = vld [vmem:[#allocation5 + $0x3948] sm:$0xff]
        %v7406 = vld [vmem:[#allocation5 + $0x3950] sm:$0xff]
        %v7407 = vld [vmem:[#allocation5 + $0x3960] sm:$0xff]
        %v7408 = vld [vmem:[#allocation5 + $0x3968] sm:$0xff]
        %v7409 = vld [vmem:[#allocation5 + $0x3978] sm:$0xff]
        %v7410 = vld [vmem:[#allocation5 + $0x3980] sm:$0xff]
        %v7411 = vld [vmem:[#allocation5 + $0x3990] sm:$0xff]
        %v7412 = vld [vmem:[#allocation5 + $0x3998] sm:$0xff]
        %v7413 = vld [vmem:[#allocation5 + $0x39a8] sm:$0xff]
        %v7414 = vld [vmem:[#allocation5 + $0x39b0] sm:$0xff]
        %v7415 = vld [vmem:[#allocation5 + $0x39c0] sm:$0xff]
        %v7416 = vld [vmem:[#allocation5 + $0x39c8] sm:$0xff]
        %v7417 = vld [vmem:[#allocation5 + $0x39d8] sm:$0xff]
        %v7418 = vld [vmem:[#allocation5 + $0x39e0] sm:$0xff]
        %v7419 = vld [vmem:[#allocation5 + $0x39f0] sm:$0xff]
        %v7420 = vld [vmem:[#allocation5 + $0x39f8] sm:$0xff]
        %v7421 = vld [vmem:[#allocation5 + $0x3a08] sm:$0xff]
        %v7422 = vld [vmem:[#allocation5 + $0x3a10] sm:$0xff]
        %v7423 = vld [vmem:[#allocation5 + $0x3a20] sm:$0xff]
        %v7424 = vld [vmem:[#allocation5 + $0x3a28] sm:$0xff]
        %v7425 = vld [vmem:[#allocation5 + $0x3a38] sm:$0xff]
        %v7426 = vld [vmem:[#allocation5 + $0x3a40] sm:$0xff]
        %v7427 = vld [vmem:[#allocation5 + $0x3a50] sm:$0xff]
        %v7428 = vld [vmem:[#allocation5 + $0x3a58] sm:$0xff]
        %v7429 = vld [vmem:[#allocation5 + $0x3a68] sm:$0xff]
        %v7430 = vld [vmem:[#allocation5 + $0x3a70] sm:$0xff]
        %v7431 = vld [vmem:[#allocation7 + $0x39] sm:$0x3]
        %v7433 = vlaneseq
        %v7434 = vshrl.u32 %v7433, 7
        %v7435 = vsub.s32 0, %v7434
        %v7436 = vrot.slane %v7431, %v7435
        %v7437 = vlaneseq
        %v7438 = vshrl.u32 %v7437, 7
        %v7439 = vsub.s32 1, %v7438
        %v7440 = vrot.slane %v7431, %v7439
        %7443 = vmatprep.subr.mxu0 %v7398
        %7444 = vmatpush1.msra.mxu0 %v7397
        %7445 = vmatprep.subr.mxu0 %v7396
        %7446 = vmatpush1.msra.mxu0 %v7395
        %7447 = vmatprep.subr.mxu0 %v7394
        %7448 = vmatpush1.msra.mxu0 %v7393
        %7449 = vmatprep.subr.mxu0 %v7392
        %7450 = vmatpush1.msra.mxu0 %v7391
        %7451 = vmatprep.subr.mxu0 %v7390
        %7452 = vmatpush1.msra.mxu0 %v7389
        %7453 = vmatprep.subr.mxu0 %v7388
        %7454 = vmatpush1.msra.mxu0 %v7387
        %7455 = vmatprep.subr.mxu0 %v7386
        %7456 = vmatpush1.msra.mxu0 %v7385
        %7457 = vmatprep.subr.mxu0 %v7384
        %7458 = vmatpush1.msra.mxu0 %v7383
        %7459 = vmatprep.subr.mxu0 %v7382
        %7460 = vmatpush1.msra.mxu0 %v7381
        %7461 = vmatprep.subr.mxu0 %v7380
        %7462 = vmatpush1.msra.mxu0 %v7379
        %7463 = vmatprep.subr.mxu0 %v7378
        %7464 = vmatpush1.msra.mxu0 %v7377
        %7465 = vmatprep.subr.mxu0 %v7376
        %7466 = vmatpush1.msra.mxu0 %v7375
        %7467 = vmatprep.subr.mxu0 %v7374
        %7468 = vmatpush1.msra.mxu0 %v7373
        %7469 = vmatprep.subr.mxu0 %v7372
        %7470 = vmatpush1.msra.mxu0 %v7371
        %7471 = vmatprep.subr.mxu0 %v7370
        %7472 = vmatpush1.msra.mxu0 %v7369
        %7473 = vmatprep.subr.mxu0 %v7368
        %7474 = vmatpush1.msra.mxu0 %v7367
        %7475 = vmatprep.subr.mxu0 %v7430
        %7476 = vmatpush2.msra.mxu0 %v7429
        %7477 = vmatprep.subr.mxu0 %v7428
        %7478 = vmatpush2.msra.mxu0 %v7427
        %7479 = vmatprep.subr.mxu0 %v7426
        %7480 = vmatpush2.msra.mxu0 %v7425
        %7481 = vmatprep.subr.mxu0 %v7424
        %7482 = vmatpush2.msra.mxu0 %v7423
        %7483 = vmatprep.subr.mxu0 %v7422
        %7484 = vmatpush2.msra.mxu0 %v7421
        %7485 = vmatprep.subr.mxu0 %v7420
        %7486 = vmatpush2.msra.mxu0 %v7419
        %7487 = vmatprep.subr.mxu0 %v7418
        %7488 = vmatpush2.msra.mxu0 %v7417
        %7489 = vmatprep.subr.mxu0 %v7416
        %7490 = vmatpush2.msra.mxu0 %v7415
        %7491 = vmatprep.subr.mxu0 %v7414
        %7492 = vmatpush2.msra.mxu0 %v7413
        %7493 = vmatprep.subr.mxu0 %v7412
        %7494 = vmatpush2.msra.mxu0 %v7411
        %7495 = vmatprep.subr.mxu0 %v7410
        %7496 = vmatpush2.msra.mxu0 %v7409
        %7497 = vmatprep.subr.mxu0 %v7408
        %7498 = vmatpush2.msra.mxu0 %v7407
        %7499 = vmatprep.subr.mxu0 %v7406
        %7500 = vmatpush2.msra.mxu0 %v7405
        %7501 = vmatprep.subr.mxu0 %v7404
        %7502 = vmatpush2.msra.mxu0 %v7403
        %7503 = vmatprep.subr.mxu0 %v7402
        %7504 = vmatpush2.msra.mxu0 %v7401
        %7505 = vmatprep.subr.mxu0 %v7400
        %7506 = vmatpush2.msra.mxu0 %v7399
        %7507 = vmatprep.mubr.f32.mxu0 %v7336
        %7508 = vmatmul.mubr.f32.gmra.mxu0 %v7335
        %v7509 = vpop.f32.mrf.mxu0
        %v7510 = vadd.f32 %v7436, %v7509
        %v7511 = vpop.f32.mrf.mxu0
        %v7512 = vadd.f32 %v7440, %v7511
        %7513 = vmatprep.mubr.f32.mxu0 %v7338
        %7514 = vmatmul.mubr.f32.gmra.mxu0 %v7337
        %v7515 = vpop.f32.mrf.mxu0
        %v7516 = vadd.f32 %v7436, %v7515
        %v7517 = vpop.f32.mrf.mxu0
        %v7518 = vadd.f32 %v7440, %v7517
        %7519 = vmatprep.mubr.f32.mxu0 %v7340
        %7520 = vmatmul.mubr.f32.gmra.mxu0 %v7339
        %v7521 = vpop.f32.mrf.mxu0
        %v7522 = vadd.f32 %v7436, %v7521
        %v7523 = vpop.f32.mrf.mxu0
        %v7524 = vadd.f32 %v7440, %v7523
        %7525 = vmatprep.mubr.f32.mxu0 %v7342
        %7526 = vmatmul.mubr.f32.gmra.mxu0 %v7341
        %v7527 = vpop.f32.mrf.mxu0
        %v7528 = vadd.f32 %v7436, %v7527
        %v7529 = vpop.f32.mrf.mxu0
        %v7530 = vadd.f32 %v7440, %v7529
        %7531 = vmatprep.mubr.f32.mxu0 %v7344
        %7532 = vmatmul.mubr.f32.gmra.mxu0 %v7343
        %v7533 = vpop.f32.mrf.mxu0
        %v7534 = vadd.f32 %v7436, %v7533
        %v7535 = vpop.f32.mrf.mxu0
        %v7536 = vadd.f32 %v7440, %v7535
        %7537 = vmatprep.mubr.f32.mxu0 %v7346
        %7538 = vmatmul.mubr.f32.gmra.mxu0 %v7345
        %v7539 = vpop.f32.mrf.mxu0
        %v7540 = vadd.f32 %v7436, %v7539
        %v7541 = vpop.f32.mrf.mxu0
        %v7542 = vadd.f32 %v7440, %v7541
        %7543 = vmatprep.mubr.f32.mxu0 %v7348
        %7544 = vmatmul.mubr.f32.gmra.mxu0 %v7347
        %v7545 = vpop.f32.mrf.mxu0
        %v7546 = vadd.f32 %v7436, %v7545
        %v7547 = vpop.f32.mrf.mxu0
        %v7548 = vadd.f32 %v7440, %v7547
        %7549 = vmatprep.mubr.f32.mxu0 %v7350
        %7550 = vmatmul.mubr.f32.gmra.mxu0 %v7349
        %v7551 = vpop.f32.mrf.mxu0
        %v7552 = vadd.f32 %v7436, %v7551
        %v7553 = vpop.f32.mrf.mxu0
        %v7554 = vadd.f32 %v7440, %v7553
        %7555 = vmatprep.mubr.f32.mxu0 %v7352
        %7556 = vmatmul.mubr.f32.gmra.mxu0 %v7351
        %v7557 = vpop.f32.mrf.mxu0
        %v7558 = vadd.f32 %v7436, %v7557
        %v7559 = vpop.f32.mrf.mxu0
        %v7560 = vadd.f32 %v7440, %v7559
        %7561 = vmatprep.mubr.f32.mxu0 %v7354
        %7562 = vmatmul.mubr.f32.gmra.mxu0 %v7353
        %v7563 = vpop.f32.mrf.mxu0
        %v7564 = vadd.f32 %v7436, %v7563
        %v7565 = vpop.f32.mrf.mxu0
        %v7566 = vadd.f32 %v7440, %v7565
        %7567 = vmatprep.mubr.f32.mxu0 %v7356
        %7568 = vmatmul.mubr.f32.gmra.mxu0 %v7355
        %v7569 = vpop.f32.mrf.mxu0
        %v7570 = vadd.f32 %v7436, %v7569
        %v7571 = vpop.f32.mrf.mxu0
        %v7572 = vadd.f32 %v7440, %v7571
        %7573 = vmatprep.mubr.f32.mxu0 %v7358
        %7574 = vmatmul.mubr.f32.gmra.mxu0 %v7357
        %v7575 = vpop.f32.mrf.mxu0
        %v7576 = vadd.f32 %v7436, %v7575
        %v7577 = vpop.f32.mrf.mxu0
        %v7578 = vadd.f32 %v7440, %v7577
        %7579 = vmatprep.mubr.f32.mxu0 %v7360
        %7580 = vmatmul.mubr.f32.gmra.mxu0 %v7359
        %v7581 = vpop.f32.mrf.mxu0
        %v7582 = vadd.f32 %v7436, %v7581
        %v7583 = vpop.f32.mrf.mxu0
        %v7584 = vadd.f32 %v7440, %v7583
        %7585 = vmatprep.mubr.f32.mxu0 %v7362
        %7586 = vmatmul.mubr.f32.gmra.mxu0 %v7361
        %v7587 = vpop.f32.mrf.mxu0
        %v7588 = vadd.f32 %v7436, %v7587
        %v7589 = vpop.f32.mrf.mxu0
        %v7590 = vadd.f32 %v7440, %v7589
        %7591 = vmatprep.mubr.f32.mxu0 %v7364
        %7592 = vmatmul.mubr.f32.gmra.mxu0 %v7363
        %v7593 = vpop.f32.mrf.mxu0
        %v7594 = vadd.f32 %v7436, %v7593
        %v7595 = vpop.f32.mrf.mxu0
        %v7596 = vadd.f32 %v7440, %v7595
        %7597 = vmatprep.mubr.f32.mxu0 %v7366
        %7598 = vmatmul.mubr.f32.gmra.mxu0 %v7365
        %v7599 = vpop.f32.mrf.mxu0
        %v7600 = vadd.f32 %v7436, %v7599
        %v7601 = vpop.f32.mrf.mxu0
        %v7602 = vadd.f32 %v7440, %v7601
        %7603 = vdwg.mxu0
        %v7604 = vmax.f32 %v7510, 0.0
        %v7605 = vmax.f32 %v7512, 0.0
        %v7606 = vmax.f32 %v7516, 0.0
        %v7607 = vmax.f32 %v7518, 0.0
        %v7608 = vmax.f32 %v7522, 0.0
        %v7609 = vmax.f32 %v7524, 0.0
        %v7610 = vmax.f32 %v7528, 0.0
        %v7611 = vmax.f32 %v7530, 0.0
        %v7612 = vmax.f32 %v7534, 0.0
        %v7613 = vmax.f32 %v7536, 0.0
        %v7614 = vmax.f32 %v7540, 0.0
        %v7615 = vmax.f32 %v7542, 0.0
        %v7616 = vmax.f32 %v7546, 0.0
        %v7617 = vmax.f32 %v7548, 0.0
        %v7618 = vmax.f32 %v7552, 0.0
        %v7619 = vmax.f32 %v7554, 0.0
        %v7620 = vmax.f32 %v7558, 0.0
        %v7621 = vmax.f32 %v7560, 0.0
        %v7622 = vmax.f32 %v7564, 0.0
        %v7623 = vmax.f32 %v7566, 0.0
        %v7624 = vmax.f32 %v7570, 0.0
        %v7625 = vmax.f32 %v7572, 0.0
        %v7626 = vmax.f32 %v7576, 0.0
        %v7627 = vmax.f32 %v7578, 0.0
        %v7628 = vmax.f32 %v7582, 0.0
        %v7629 = vmax.f32 %v7584, 0.0
        %v7630 = vmax.f32 %v7588, 0.0
        %v7631 = vmax.f32 %v7590, 0.0
        %v7632 = vmax.f32 %v7594, 0.0
        %v7633 = vmax.f32 %v7596, 0.0
        %v7634 = vmax.f32 %v7600, 0.0
        %v7635 = vmax.f32 %v7602, 0.0
        %v7636 = vld [vmem:[#allocation5 + $0x3a80] sm:$0xff]
        %v7637 = vld [vmem:[#allocation5 + $0x3a98] sm:$0xff]
        %v7638 = vld [vmem:[#allocation5 + $0x3ab0] sm:$0xff]
        %v7639 = vld [vmem:[#allocation5 + $0x3ac8] sm:$0xff]
        %v7640 = vld [vmem:[#allocation5 + $0x3ae0] sm:$0xff]
        %v7641 = vld [vmem:[#allocation5 + $0x3af8] sm:$0xff]
        %v7642 = vld [vmem:[#allocation5 + $0x3b10] sm:$0xff]
        %v7643 = vld [vmem:[#allocation5 + $0x3b28] sm:$0xff]
        %v7644 = vld [vmem:[#allocation5 + $0x3b40] sm:$0xff]
        %v7645 = vld [vmem:[#allocation5 + $0x3b58] sm:$0xff]
        %v7646 = vld [vmem:[#allocation5 + $0x3b70] sm:$0xff]
        %v7647 = vld [vmem:[#allocation5 + $0x3b88] sm:$0xff]
        %v7648 = vld [vmem:[#allocation5 + $0x3ba0] sm:$0xff]
        %v7649 = vld [vmem:[#allocation5 + $0x3bb8] sm:$0xff]
        %v7650 = vld [vmem:[#allocation5 + $0x3bd0] sm:$0xff]
        %v7651 = vld [vmem:[#allocation5 + $0x3be8] sm:$0xff]
        %v7652 = vld [vmem:[#allocation5 + $0x3c00] sm:$0xff]
        %v7653 = vld [vmem:[#allocation5 + $0x3c18] sm:$0xff]
        %v7654 = vld [vmem:[#allocation5 + $0x3c30] sm:$0xff]
        %v7655 = vld [vmem:[#allocation5 + $0x3c48] sm:$0xff]
        %v7656 = vld [vmem:[#allocation5 + $0x3c60] sm:$0xff]
        %v7657 = vld [vmem:[#allocation5 + $0x3c78] sm:$0xff]
        %v7658 = vld [vmem:[#allocation5 + $0x3c90] sm:$0xff]
        %v7659 = vld [vmem:[#allocation5 + $0x3ca8] sm:$0xff]
        %v7660 = vld [vmem:[#allocation5 + $0x3cc0] sm:$0xff]
        %v7661 = vld [vmem:[#allocation5 + $0x3cd8] sm:$0xff]
        %v7662 = vld [vmem:[#allocation5 + $0x3cf0] sm:$0xff]
        %v7663 = vld [vmem:[#allocation5 + $0x3d08] sm:$0xff]
        %v7664 = vld [vmem:[#allocation5 + $0x3d20] sm:$0xff]
        %v7665 = vld [vmem:[#allocation5 + $0x3d38] sm:$0xff]
        %v7666 = vld [vmem:[#allocation5 + $0x3d50] sm:$0xff]
        %v7667 = vld [vmem:[#allocation5 + $0x3d68] sm:$0xff]
        %v7668 = vld [vmem:[#allocation7 + $0x3c] sm:$0x1]
        %v7670 = vlaneseq
        %v7671 = vshrl.u32 %v7670, 7
        %v7672 = vsub.s32 0, %v7671
        %v7673 = vrot.slane %v7668, %v7672
        %7675 = vmatprep.subr.mxu0 0.0
        %7676 = vmatpush1.msra.mxu0 %v7651
        %7677 = vmatprep.subr.mxu0 0.0
        %7678 = vmatpush1.msra.mxu0 %v7650
        %7679 = vmatprep.subr.mxu0 0.0
        %7680 = vmatpush1.msra.mxu0 %v7649
        %7681 = vmatprep.subr.mxu0 0.0
        %7682 = vmatpush1.msra.mxu0 %v7648
        %7683 = vmatprep.subr.mxu0 0.0
        %7684 = vmatpush1.msra.mxu0 %v7647
        %7685 = vmatprep.subr.mxu0 0.0
        %7686 = vmatpush1.msra.mxu0 %v7646
        %7687 = vmatprep.subr.mxu0 0.0
        %7688 = vmatpush1.msra.mxu0 %v7645
        %7689 = vmatprep.subr.mxu0 0.0
        %7690 = vmatpush1.msra.mxu0 %v7644
        %7691 = vmatprep.subr.mxu0 0.0
        %7692 = vmatpush1.msra.mxu0 %v7643
        %7693 = vmatprep.subr.mxu0 0.0
        %7694 = vmatpush1.msra.mxu0 %v7642
        %7695 = vmatprep.subr.mxu0 0.0
        %7696 = vmatpush1.msra.mxu0 %v7641
        %7697 = vmatprep.subr.mxu0 0.0
        %7698 = vmatpush1.msra.mxu0 %v7640
        %7699 = vmatprep.subr.mxu0 0.0
        %7700 = vmatpush1.msra.mxu0 %v7639
        %7701 = vmatprep.subr.mxu0 0.0
        %7702 = vmatpush1.msra.mxu0 %v7638
        %7703 = vmatprep.subr.mxu0 0.0
        %7704 = vmatpush1.msra.mxu0 %v7637
        %7705 = vmatprep.subr.mxu0 0.0
        %7706 = vmatpush1.msra.mxu0 %v7636
        %7707 = vmatprep.subr.mxu0 0.0
        %7708 = vmatpush2.msra.mxu0 %v7667
        %7709 = vmatprep.subr.mxu0 0.0
        %7710 = vmatpush2.msra.mxu0 %v7666
        %7711 = vmatprep.subr.mxu0 0.0
        %7712 = vmatpush2.msra.mxu0 %v7665
        %7713 = vmatprep.subr.mxu0 0.0
        %7714 = vmatpush2.msra.mxu0 %v7664
        %7715 = vmatprep.subr.mxu0 0.0
        %7716 = vmatpush2.msra.mxu0 %v7663
        %7717 = vmatprep.subr.mxu0 0.0
        %7718 = vmatpush2.msra.mxu0 %v7662
        %7719 = vmatprep.subr.mxu0 0.0
        %7720 = vmatpush2.msra.mxu0 %v7661
        %7721 = vmatprep.subr.mxu0 0.0
        %7722 = vmatpush2.msra.mxu0 %v7660
        %7723 = vmatprep.subr.mxu0 0.0
        %7724 = vmatpush2.msra.mxu0 %v7659
        %7725 = vmatprep.subr.mxu0 0.0
        %7726 = vmatpush2.msra.mxu0 %v7658
        %7727 = vmatprep.subr.mxu0 0.0
        %7728 = vmatpush2.msra.mxu0 %v7657
        %7729 = vmatprep.subr.mxu0 0.0
        %7730 = vmatpush2.msra.mxu0 %v7656
        %7731 = vmatprep.subr.mxu0 0.0
        %7732 = vmatpush2.msra.mxu0 %v7655
        %7733 = vmatprep.subr.mxu0 0.0
        %7734 = vmatpush2.msra.mxu0 %v7654
        %7735 = vmatprep.subr.mxu0 0.0
        %7736 = vmatpush2.msra.mxu0 %v7653
        %7737 = vmatprep.subr.mxu0 0.0
        %7738 = vmatpush2.msra.mxu0 %v7652
        %7739 = vmatprep.mubr.f32.mxu0 %v7605
        %7740 = vmatmul.mubr.f32.gmra.mxu0 %v7604
        %v7741 = vpop.f32.mrf.mxu0
        %v7742 = vadd.f32 %v7673, %v7741
        %v7743 = vpop.f32.mrf.mxu0
        %7744 = vmatprep.mubr.f32.mxu0 %v7607
        %7745 = vmatmul.mubr.f32.gmra.mxu0 %v7606
        %v7746 = vpop.f32.mrf.mxu0
        %v7747 = vadd.f32 %v7673, %v7746
        %v7748 = vpop.f32.mrf.mxu0
        %7749 = vmatprep.mubr.f32.mxu0 %v7609
        %7750 = vmatmul.mubr.f32.gmra.mxu0 %v7608
        %v7751 = vpop.f32.mrf.mxu0
        %v7752 = vadd.f32 %v7673, %v7751
        %v7753 = vpop.f32.mrf.mxu0
        %7754 = vmatprep.mubr.f32.mxu0 %v7611
        %7755 = vmatmul.mubr.f32.gmra.mxu0 %v7610
        %v7756 = vpop.f32.mrf.mxu0
        %v7757 = vadd.f32 %v7673, %v7756
        %v7758 = vpop.f32.mrf.mxu0
        %7759 = vmatprep.mubr.f32.mxu0 %v7613
        %7760 = vmatmul.mubr.f32.gmra.mxu0 %v7612
        %v7761 = vpop.f32.mrf.mxu0
        %v7762 = vadd.f32 %v7673, %v7761
        %v7763 = vpop.f32.mrf.mxu0
        %7764 = vmatprep.mubr.f32.mxu0 %v7615
        %7765 = vmatmul.mubr.f32.gmra.mxu0 %v7614
        %v7766 = vpop.f32.mrf.mxu0
        %v7767 = vadd.f32 %v7673, %v7766
        %v7768 = vpop.f32.mrf.mxu0
        %7769 = vmatprep.mubr.f32.mxu0 %v7617
        %7770 = vmatmul.mubr.f32.gmra.mxu0 %v7616
        %v7771 = vpop.f32.mrf.mxu0
        %v7772 = vadd.f32 %v7673, %v7771
        %v7773 = vpop.f32.mrf.mxu0
        %7774 = vmatprep.mubr.f32.mxu0 %v7619
        %7775 = vmatmul.mubr.f32.gmra.mxu0 %v7618
        %v7776 = vpop.f32.mrf.mxu0
        %v7777 = vadd.f32 %v7673, %v7776
        %v7778 = vpop.f32.mrf.mxu0
        %7779 = vmatprep.mubr.f32.mxu0 %v7621
        %7780 = vmatmul.mubr.f32.gmra.mxu0 %v7620
        %v7781 = vpop.f32.mrf.mxu0
        %v7782 = vadd.f32 %v7673, %v7781
        %v7783 = vpop.f32.mrf.mxu0
        %7784 = vmatprep.mubr.f32.mxu0 %v7623
        %7785 = vmatmul.mubr.f32.gmra.mxu0 %v7622
        %v7786 = vpop.f32.mrf.mxu0
        %v7787 = vadd.f32 %v7673, %v7786
        %v7788 = vpop.f32.mrf.mxu0
        %7789 = vmatprep.mubr.f32.mxu0 %v7625
        %7790 = vmatmul.mubr.f32.gmra.mxu0 %v7624
        %v7791 = vpop.f32.mrf.mxu0
        %v7792 = vadd.f32 %v7673, %v7791
        %v7793 = vpop.f32.mrf.mxu0
        %7794 = vmatprep.mubr.f32.mxu0 %v7627
        %7795 = vmatmul.mubr.f32.gmra.mxu0 %v7626
        %v7796 = vpop.f32.mrf.mxu0
        %v7797 = vadd.f32 %v7673, %v7796
        %v7798 = vpop.f32.mrf.mxu0
        %7799 = vmatprep.mubr.f32.mxu0 %v7629
        %7800 = vmatmul.mubr.f32.gmra.mxu0 %v7628
        %v7801 = vpop.f32.mrf.mxu0
        %v7802 = vadd.f32 %v7673, %v7801
        %v7803 = vpop.f32.mrf.mxu0
        %7804 = vmatprep.mubr.f32.mxu0 %v7631
        %7805 = vmatmul.mubr.f32.gmra.mxu0 %v7630
        %v7806 = vpop.f32.mrf.mxu0
        %v7807 = vadd.f32 %v7673, %v7806
        %v7808 = vpop.f32.mrf.mxu0
        %7809 = vmatprep.mubr.f32.mxu0 %v7633
        %7810 = vmatmul.mubr.f32.gmra.mxu0 %v7632
        %v7811 = vpop.f32.mrf.mxu0
        %v7812 = vadd.f32 %v7673, %v7811
        %v7813 = vpop.f32.mrf.mxu0
        %7814 = vmatprep.mubr.f32.mxu0 %v7635
        %7815 = vmatmul.mubr.f32.gmra.mxu0 %v7634
        %v7816 = vpop.f32.mrf.mxu0
        %v7817 = vadd.f32 %v7673, %v7816
        %v7818 = vpop.f32.mrf.mxu0
        %7819 = vdwg.mxu0
        %v7820 = vlaneseq
        %v7821 = vand.u32 %v7820, 127
        %vm7822 = vcmp.lt.s32.totalorder %v7821, 10
        %v7823 = vsel %vm7822, %v7742, -1e+30
        %v7824 = vsel %vm7822, %v7747, -1e+30
        %v7825 = vsel %vm7822, %v7752, -1e+30
        %v7826 = vsel %vm7822, %v7757, -1e+30
        %v7827 = vsel %vm7822, %v7762, -1e+30
        %v7828 = vsel %vm7822, %v7767, -1e+30
        %v7829 = vsel %vm7822, %v7772, -1e+30
        %v7830 = vsel %vm7822, %v7777, -1e+30
        %v7831 = vsel %vm7822, %v7782, -1e+30
        %v7832 = vsel %vm7822, %v7787, -1e+30
        %v7833 = vsel %vm7822, %v7792, -1e+30
        %v7834 = vsel %vm7822, %v7797, -1e+30
        %v7835 = vsel %vm7822, %v7802, -1e+30
        %v7836 = vsel %vm7822, %v7807, -1e+30
        %v7837 = vsel %vm7822, %v7812, -1e+30
        %v7838 = vsel %vm7822, %v7817, -1e+30
        %7839 = vmax.xlane.f32.xlu0 %v7823
        %v7840 = vpop.xlane.xlu0 %7839
        %7841 = vmax.xlane.f32.xlu0 %v7824
        %v7842 = vpop.xlane.xlu0 %7841
        %7843 = vmax.xlane.f32.xlu0 %v7825
        %v7844 = vpop.xlane.xlu0 %7843
        %7845 = vmax.xlane.f32.xlu0 %v7826
        %v7846 = vpop.xlane.xlu0 %7845
        %7847 = vmax.xlane.f32.xlu0 %v7827
        %v7848 = vpop.xlane.xlu0 %7847
        %7849 = vmax.xlane.f32.xlu0 %v7828
        %v7850 = vpop.xlane.xlu0 %7849
        %7851 = vmax.xlane.f32.xlu0 %v7829
        %v7852 = vpop.xlane.xlu0 %7851
        %7853 = vmax.xlane.f32.xlu0 %v7830
        %v7854 = vpop.xlane.xlu0 %7853
        %7855 = vmax.xlane.f32.xlu0 %v7831
        %v7856 = vpop.xlane.xlu0 %7855
        %7857 = vmax.xlane.f32.xlu0 %v7832
        %v7858 = vpop.xlane.xlu0 %7857
        %7859 = vmax.xlane.f32.xlu0 %v7833
        %v7860 = vpop.xlane.xlu0 %7859
        %7861 = vmax.xlane.f32.xlu0 %v7834
        %v7862 = vpop.xlane.xlu0 %7861
        %7863 = vmax.xlane.f32.xlu0 %v7835
        %v7864 = vpop.xlane.xlu0 %7863
        %7865 = vmax.xlane.f32.xlu0 %v7836
        %v7866 = vpop.xlane.xlu0 %7865
        %7867 = vmax.xlane.f32.xlu0 %v7837
        %v7868 = vpop.xlane.xlu0 %7867
        %7869 = vmax.xlane.f32.xlu0 %v7838
        %v7870 = vpop.xlane.xlu0 %7869
        %v7871 = vsub.f32 %v7823, %v7840
        %v7872 = vsub.f32 %v7824, %v7842
        %v7873 = vsub.f32 %v7825, %v7844
        %v7874 = vsub.f32 %v7826, %v7846
        %v7875 = vsub.f32 %v7827, %v7848
        %v7876 = vsub.f32 %v7828, %v7850
        %v7877 = vsub.f32 %v7829, %v7852
        %v7878 = vsub.f32 %v7830, %v7854
        %v7879 = vsub.f32 %v7831, %v7856
        %v7880 = vsub.f32 %v7832, %v7858
        %v7881 = vsub.f32 %v7833, %v7860
        %v7882 = vsub.f32 %v7834, %v7862
        %v7883 = vsub.f32 %v7835, %v7864
        %v7884 = vsub.f32 %v7836, %v7866
        %v7885 = vsub.f32 %v7837, %v7868
        %v7886 = vsub.f32 %v7838, %v7870
        %v7887 = vmul.f32 %v7871, 1.442695
        %v7888 = vpow.pop %v7887
        %v7889 = vmul.f32 %v7872, 1.442695
        %v7890 = vpow.pop %v7889
        %v7891 = vmul.f32 %v7873, 1.442695
        %v7892 = vpow.pop %v7891
        %v7893 = vmul.f32 %v7874, 1.442695
        %v7894 = vpow.pop %v7893
        %v7895 = vmul.f32 %v7875, 1.442695
        %v7896 = vpow.pop %v7895
        %v7897 = vmul.f32 %v7876, 1.442695
        %v7898 = vpow.pop %v7897
        %v7899 = vmul.f32 %v7877, 1.442695
        %v7900 = vpow.pop %v7899
        %v7901 = vmul.f32 %v7878, 1.442695
        %v7902 = vpow.pop %v7901
        %v7903 = vmul.f32 %v7879, 1.442695
        %v7904 = vpow.pop %v7903
        %v7905 = vmul.f32 %v7880, 1.442695
        %v7906 = vpow.pop %v7905
        %v7907 = vmul.f32 %v7881, 1.442695
        %v7908 = vpow.pop %v7907
        %v7909 = vmul.f32 %v7882, 1.442695
        %v7910 = vpow.pop %v7909
        %v7911 = vmul.f32 %v7883, 1.442695
        %v7912 = vpow.pop %v7911
        %v7913 = vmul.f32 %v7884, 1.442695
        %v7914 = vpow.pop %v7913
        %v7915 = vmul.f32 %v7885, 1.442695
        %v7916 = vpow.pop %v7915
        %v7917 = vmul.f32 %v7886, 1.442695
        %v7918 = vpow.pop %v7917
        %7919 = vadd.xlane.f32.xlu0 %v7888
        %v7920 = vpop.xlane.xlu0 %7919
        %7921 = vadd.xlane.f32.xlu0 %v7890
        %v7922 = vpop.xlane.xlu0 %7921
        %7923 = vadd.xlane.f32.xlu0 %v7892
        %v7924 = vpop.xlane.xlu0 %7923
        %7925 = vadd.xlane.f32.xlu0 %v7894
        %v7926 = vpop.xlane.xlu0 %7925
        %7927 = vadd.xlane.f32.xlu0 %v7896
        %v7928 = vpop.xlane.xlu0 %7927
        %7929 = vadd.xlane.f32.xlu0 %v7898
        %v7930 = vpop.xlane.xlu0 %7929
        %7931 = vadd.xlane.f32.xlu0 %v7900
        %v7932 = vpop.xlane.xlu0 %7931
        %7933 = vadd.xlane.f32.xlu0 %v7902
        %v7934 = vpop.xlane.xlu0 %7933
        %7935 = vadd.xlane.f32.xlu0 %v7904
        %v7936 = vpop.xlane.xlu0 %7935
        %7937 = vadd.xlane.f32.xlu0 %v7906
        %v7938 = vpop.xlane.xlu0 %7937
        %7939 = vadd.xlane.f32.xlu0 %v7908
        %v7940 = vpop.xlane.xlu0 %7939
        %7941 = vadd.xlane.f32.xlu0 %v7910
        %v7942 = vpop.xlane.xlu0 %7941
        %7943 = vadd.xlane.f32.xlu0 %v7912
        %v7944 = vpop.xlane.xlu0 %7943
        %7945 = vadd.xlane.f32.xlu0 %v7914
        %v7946 = vpop.xlane.xlu0 %7945
        %7947 = vadd.xlane.f32.xlu0 %v7916
        %v7948 = vpop.xlane.xlu0 %7947
        %7949 = vadd.xlane.f32.xlu0 %v7918
        %v7950 = vpop.xlane.xlu0 %7949
        %v7951 = vrcp.pop %v7920
        %v7952 = vrcp.pop %v7922
        %v7953 = vrcp.pop %v7924
        %v7954 = vrcp.pop %v7926
        %v7955 = vrcp.pop %v7928
        %v7956 = vrcp.pop %v7930
        %v7957 = vrcp.pop %v7932
        %v7958 = vrcp.pop %v7934
        %v7959 = vrcp.pop %v7936
        %v7960 = vrcp.pop %v7938
        %v7961 = vrcp.pop %v7940
        %v7962 = vrcp.pop %v7942
        %v7963 = vrcp.pop %v7944
        %v7964 = vrcp.pop %v7946
        %v7965 = vrcp.pop %v7948
        %v7966 = vrcp.pop %v7950
        %v7967 = vmul.f32 %v7888, %v7951
        %v7968 = vmul.f32 %v7890, %v7952
        %v7969 = vmul.f32 %v7892, %v7953
        %v7970 = vmul.f32 %v7894, %v7954
        %v7971 = vmul.f32 %v7896, %v7955
        %v7972 = vmul.f32 %v7898, %v7956
        %v7973 = vmul.f32 %v7900, %v7957
        %v7974 = vmul.f32 %v7902, %v7958
        %v7975 = vmul.f32 %v7904, %v7959
        %v7976 = vmul.f32 %v7906, %v7960
        %v7977 = vmul.f32 %v7908, %v7961
        %v7978 = vmul.f32 %v7910, %v7962
        %v7979 = vmul.f32 %v7912, %v7963
        %v7980 = vmul.f32 %v7914, %v7964
        %v7981 = vmul.f32 %v7916, %v7965
        %v7982 = vmul.f32 %v7918, %v7966
        %7983 = vst [vmem:[%s215] sm:$0xff] %v7967
        %7984 = vst [vmem:[%s215 + $0x8] sm:$0xff] %v7968
        %7985 = vst [vmem:[%s215 + $0x10] sm:$0xff] %v7969
        %7986 = vst [vmem:[%s215 + $0x18] sm:$0xff] %v7970
        %7987 = vst [vmem:[%s215 + $0x20] sm:$0xff] %v7971
        %7988 = vst [vmem:[%s215 + $0x28] sm:$0xff] %v7972
        %7989 = vst [vmem:[%s215 + $0x30] sm:$0xff] %v7973
        %7990 = vst [vmem:[%s215 + $0x38] sm:$0xff] %v7974
        %7991 = vst [vmem:[%s215 + $0x40] sm:$0xff] %v7975
        %7992 = vst [vmem:[%s215 + $0x48] sm:$0xff] %v7976
        %7993 = vst [vmem:[%s215 + $0x50] sm:$0xff] %v7977
        %7994 = vst [vmem:[%s215 + $0x58] sm:$0xff] %v7978
        %7995 = vst [vmem:[%s215 + $0x60] sm:$0xff] %v7979
        %7996 = vst [vmem:[%s215 + $0x68] sm:$0xff] %v7980
        %7997 = vst [vmem:[%s215 + $0x70] sm:$0xff] %v7981
        %7998 = vst [vmem:[%s215 + $0x78] sm:$0xff] %v7982
        %s7999 = sand.u32 %s97, 1
        %s8000 = scalar_lea.sflag [#allocation4], %s7999
        %s8001 = sand.u32 %s97, 1
        %s8002 = smul.addr %s8001, 128
        %s8003 = scalar_lea.vmem [#allocation8], %s8002
        // Predicated region
        $region45: #{tpu_custom_call.1} parent=31 // pred_check
          %p8004 = pneg %p107
        $region46: #{tpu_custom_call.1} parent=31 // pred_check_branch
          %8006 = sbr.rel (%p8004) target = $region48
        $region47: #{tpu_custom_call.1} parent=31 // pred_region
          %s8007 = smul.u32 16, %s21
          %s8009 = ssub.s32 2048, 2048
          %8010 = vsyncadd %s8000, %s8009
          %s8011 = smul.addr %s8007, 128
          %s8012 = scalar_lea.hbm %s3, %s8011
          %s8013 = sshll.u32 %s8003, 4
          %s8014 = int_to_ptr.vmem [resolvable:$true] %s8013
          %8019 = dma.vmem_to_hbm [thread:$0]  %s8014, 2048, %s8012, %s8000, 128, 128, 8
        $region48: #{tpu_custom_call.1} parent=31 // pred_fallthru
          _
      $region32: #{tpu_custom_call.1} parent=5 // pred_fallthru
        _
      %p8020 = scmp.le.s32.totalorder 2, %s16
      // Predicated region
      $region49: #{tpu_custom_call.1} parent=5 // pred_check
        %p8021 = pneg %p8020
      $region50: #{tpu_custom_call.1} parent=5 // pred_check_branch
        %8023 = sbr.rel (%p8021) target = $region52
      $region51: #{tpu_custom_call.1} parent=5 // pred_region
        %s8024 = ssub.s32 %s16, 2
        // Predicated region
        $region53: #{tpu_custom_call.1} parent=51 // pred_check
          %p8025 = pneg %p113
        $region54: #{tpu_custom_call.1} parent=51 // pred_check_branch
          %8027 = sbr.rel (%p8025) target = $region56
        $region55: #{tpu_custom_call.1} parent=51 // pred_region
          %s8028 = sand.u32 %s98, 1
          %s8029 = scalar_lea.sflag [#allocation4], %s8028
          %s8030 = sand.u32 %s98, 1
          %s8031 = smul.addr %s8030, 128
          %s8032 = scalar_lea.vmem [#allocation8], %s8031
          %8033 = dma.done %s8029, 2048
        $region56: #{tpu_custom_call.1} parent=51 // pred_fallthru
          _
      $region52: #{tpu_custom_call.1} parent=5 // pred_fallthru
        _
    $region6: #{tpu_custom_call.1} parent=1 // loop_footer
      %s20 = sadd.s32 1, %s16
    $region7: #{tpu_custom_call.1} parent=1 // loop_footer_branch
      %15 = sbr.rel target = $region3
    $region8: #{tpu_custom_call.1} parent=1 // loop_exit
      _
    %8034 = vsyncpa [#allocation3], 1
    %s8035 = scalar_lea.sflag [#allocation3], 1
    %8036 = vsyncpa %s8035, 1
    %8037 = vsyncpa [#allocation6], 1
    %8038 = vsyncpa [#allocation4], 1
    %s8039 = scalar_lea.sflag [#allocation4], 1
    %8040 = vsyncpa %s8039, 1

</llo_original>
